<compile_context>
chip_gen: v7x
topology: tpu7x:2x2x1
jax: 0.10.0
libtpu: 0.0.40
codegen_flags: <defaults>
</compile_context>

<pallas_src>
import functools
import math

import jax
import jax.numpy as jnp
from jax.experimental import pallas as pl
from jax.experimental.pallas import tpu as pltpu


# ----------------------------- fused Pallas kernel ---------------------------

def _conv3x3(v, w_ref, s_ref, b_ref, relu):
    """3x3 'same' convolution on channel-major flattened activations.

    v:     (Cin, M)  f32 activations, M = H*W flattened spatial (lane axis)
    w_ref: (9, Cout, Cin) per-tap weights, tap k = (dy+1)*3 + (dx+1)
    s_ref: (9, M, M) masked shift-selection matrices:  (x @ S_k)[:, p] equals
           x[:, p + dy*W + dx] when (h+dy, w+dx) is in bounds, else 0.
    b_ref: (Cout, 1) bias
    """
    cout, cin = w_ref.shape[1], w_ref.shape[2]
    m = v.shape[-1]
    acc = jnp.zeros((cout, m), jnp.float32)
    # Apply the shift matmul on whichever side has fewer channels.
    shift_output = cout < cin
    for k in range(9):
        if shift_output:
            y = jnp.dot(w_ref[k], v, preferred_element_type=jnp.float32)
            if k == 4:  # center tap: identity shift
                acc = acc + y
            else:
                acc = acc + jnp.dot(y, s_ref[k], preferred_element_type=jnp.float32)
        else:
            xs = v if k == 4 else jnp.dot(v, s_ref[k],
                                          preferred_element_type=jnp.float32)
            if cin == 1:
                # rank-1 tap: broadcast outer product instead of a K=1 matmul
                acc = acc + w_ref[k] * xs
            else:
                acc = acc + jnp.dot(w_ref[k], xs,
                                    preferred_element_type=jnp.float32)
    acc = acc + b_ref[...]
    return jnp.maximum(acc, 0.0) if relu else acc


def _unet_fused_kernel(x_ref,
                       wf_ref, bf_ref,
                       we0_ref, be0_ref,
                       we1_ref, be1_ref,
                       wu_ref, bu_ref,
                       wd0_ref, bd0_ref,
                       wl_ref, bl_ref,
                       s_full_ref, s_half_ref, pdn_ref, pup_ref,
                       o_ref,
                       *, act_first, long_skip, long_skip_feat):
    x_in = x_ref[0]                                                 # (1, M)
    m_full = x_in.shape[-1]

    # first_conv (+ ReLU when act_first)
    x0 = _conv3x3(x_in, wf_ref, s_full_ref, bf_ref, relu=act_first)
    # encoder level 0 (no down-sample): conv + ReLU
    e0 = _conv3x3(x0, we0_ref, s_full_ref, be0_ref, relu=True)

    # encoder level 1: fused 2x2 / stride-2 max-pool, then conv + ReLU at H/2 x W/2
    # s_full[5] / s_full[7] gather the right / down neighbor (valid at all
    # selected even-coordinate window corners; e0 >= 0 so masked zeros are inert).
    m1 = jnp.maximum(e0, jnp.dot(e0, s_full_ref[5],
                                 preferred_element_type=jnp.float32))
    m2 = jnp.maximum(m1, jnp.dot(m1, s_full_ref[7],
                                 preferred_element_type=jnp.float32))
    pooled = jnp.dot(m2, pdn_ref[...], preferred_element_type=jnp.float32)
    e1 = _conv3x3(pooled, we1_ref, s_half_ref, be1_ref, relu=True)

    # decoder: ConvTranspose2d(kernel=2, stride=2) with the stride-2 interleave
    # fused via scatter-selection matmuls (no post-hoc 6-D transpose).
    cout_u = wu_ref.shape[1]
    up = jnp.zeros((cout_u, m_full), jnp.float32)
    for k in range(4):
        t = jnp.dot(wu_ref[k], e1, preferred_element_type=jnp.float32)
        up = up + jnp.dot(t, pup_ref[k], preferred_element_type=jnp.float32)
    up = up + bu_ref[...]

    # skip concat along the channel (sublane) axis, then decoder conv + ReLU
    cat = jnp.concatenate([up, e0], axis=0)
    d0 = _conv3x3(cat, wd0_ref, s_full_ref, bd0_ref, relu=True)

    if long_skip_feat:
        d0 = d0 + x0

    # last_conv with the long-skip residual fused into the final store
    out = _conv3x3(d0, wl_ref, s_full_ref, bl_ref, relu=False)
    if long_skip:
        out = out + x_in
    o_ref[0] = out.astype(o_ref.dtype)


# ------------------------- host-side constant builders -----------------------

def _make_shift_select(H, W):
    """(9, M, M) masked shift matrices: (x @ S_k)[:, p] = x[:, p+dy*W+dx] or 0."""
    M = H * W
    p = jnp.arange(M)
    h, w = p // W, p % W
    q = jnp.arange(M)
    mats = []
    for dy in (-1, 0, 1):
        for dx in (-1, 0, 1):
            valid = (h + dy >= 0) & (h + dy < H) & (w + dx >= 0) & (w + dx < W)
            src = p + dy * W + dx
            mats.append(((q[:, None] == src[None, :]) &
                         valid[None, :]).astype(jnp.float32))
    return jnp.stack(mats)


def _make_pool_select(H, W):
    """(M, Mp) selection: column q picks flattened position (2*qh, 2*qw)."""
    Hp, Wp = H // 2, W // 2
    p = jnp.arange(H * W)
    q = jnp.arange(Hp * Wp)
    src = 2 * (q // Wp) * W + 2 * (q % Wp)
    return (p[:, None] == src[None, :]).astype(jnp.float32)


def _make_up_scatter(H, W):
    """(4, Mp, M) scatter: tap k=(dy*2+dx) sends q -> (2*qh+dy, 2*qw+dx)."""
    Hp, Wp = H // 2, W // 2
    q = jnp.arange(Hp * Wp)
    p = jnp.arange(H * W)
    mats = []
    for dy in (0, 1):
        for dx in (0, 1):
            dst = (2 * (q // Wp) + dy) * W + (2 * (q % Wp) + dx)
            mats.append((dst[:, None] == p[None, :]).astype(jnp.float32))
    return jnp.stack(mats)


def _prep_conv(p):
    """HWIO (3,3,Cin,Cout) -> per-tap (9, Cout, Cin), bias -> (Cout, 1)."""
    w, b = p["w"], p["b"]
    cout, cin = w.shape[3], w.shape[2]
    w9 = jnp.transpose(w, (0, 1, 3, 2)).reshape(9, cout, cin)
    return w9.astype(jnp.float32), b.reshape(cout, 1).astype(jnp.float32)


def _prep_convT(p):
    """PyTorch (Cin,Cout,2,2) -> per-tap (4, Cout, Cin), bias -> (Cout, 1)."""
    w, b = p["w"], p["b"]
    cin, cout = w.shape[0], w.shape[1]
    w4 = jnp.transpose(w, (2, 3, 1, 0)).reshape(4, cout, cin)
    return w4.astype(jnp.float32), b.reshape(cout, 1).astype(jnp.float32)


def _const_spec(a):
    idx = (0,) * a.ndim
    return pl.BlockSpec(a.shape, lambda n, _idx=idx: _idx)


# ------------------------------- UNet model ----------------------------------

class Args:
    num_level = 2
    num_channel = 8
    num_block = 1
    kernel_size = 3
    scale = 2
    patch_size = 16
    slide_overlap = 4
    long_skip = True
    long_skip_feat = False
    do_fusion = False
    output_lr_up = False
    act_first = True
    cat_feat = False
    use_resenc = False
    use_resdec = False
    act_after_res = False
    down_op = "maxpool"
    up_op = "transpose"


def init_params(key, args):
    keys = iter(jax.random.split(key, 32))

    def conv_p(cin, cout):
        s = 1.0 / math.sqrt(cin * 9)
        return {"w": jax.random.uniform(next(keys), (3, 3, cin, cout), jnp.float32, -s, s),
                "b": jax.random.uniform(next(keys), (cout,), jnp.float32, -s, s)}

    def convT_p(cin, cout):
        s = 1.0 / math.sqrt(cin * 4)
        return {"w": jax.random.uniform(next(keys), (cin, cout, 2, 2), jnp.float32, -s, s),
                "b": jax.random.uniform(next(keys), (cout,), jnp.float32, -s, s)}

    C = args.num_channel
    return {
        "first_conv": conv_p(1, C),      # in_channels=1 (do_fusion/cat_feat False)
        "enc0": conv_p(C, C),            # encoder level 0 conv
        "enc1": conv_p(C, 2 * C),        # encoder level 1 conv (after maxpool)
        "up": convT_p(2 * C, C),         # decoder ConvTranspose2d(2C -> C, k=2, s=2)
        "dec0": conv_p(2 * C, C),        # decoder conv (after skip concat)
        "last_conv": conv_p(C, 1),
    }


def unet_forward(params, lr_up_nchw, args):
    """Forward pass (pre_upsampled=True path). Input/output are NCHW."""
    assert args.num_level == 2 and args.num_block == 1, "kernel specialized to this config"
    N, cin, H, W = lr_up_nchw.shape
    assert cin == 1 and H % 2 == 0 and W % 2 == 0
    M = H * W

    # channel count is 1, so NCHW -> channel-major (1, H*W) is a pure reshape.
    x = lr_up_nchw.reshape(N, 1, M).astype(jnp.float32)

    wf, bf = _prep_conv(params["first_conv"])
    we0, be0 = _prep_conv(params["enc0"])
    we1, be1 = _prep_conv(params["enc1"])
    wu, bu = _prep_convT(params["up"])
    wd0, bd0 = _prep_conv(params["dec0"])
    wl, bl = _prep_conv(params["last_conv"])

    s_full = _make_shift_select(H, W)
    s_half = _make_shift_select(H // 2, W // 2)
    pdn = _make_pool_select(H, W)
    pup = _make_up_scatter(H, W)

    consts = (wf, bf, we0, be0, we1, be1, wu, bu, wd0, bd0, wl, bl,
              s_full, s_half, pdn, pup)

    kernel = functools.partial(
        _unet_fused_kernel,
        act_first=args.act_first,
        long_skip=args.long_skip,
        long_skip_feat=args.long_skip_feat,
    )

    out = pl.pallas_call(
        kernel,
        out_shape=jax.ShapeDtypeStruct((N, 1, M), jnp.float32),
        grid=(N,),
        in_specs=[pl.BlockSpec((1, 1, M), lambda n: (n, 0, 0))]
                 + [_const_spec(a) for a in consts],
        out_specs=pl.BlockSpec((1, 1, M), lambda n: (n, 0, 0)),
        compiler_params=pltpu.CompilerParams(
            dimension_semantics=("parallel",),   # batch split across v7x cores
            vmem_limit_bytes=32 * 1024 * 1024,
        ),
    )(x, *consts)

    out = out.reshape(N, 1, H, W)
    return {"lr_up": lr_up_nchw, "out": out}


# ------------------------- pure-XLA reference (check) -------------------------

def unet_reference(params, lr_up_nchw, args):
    hi = jax.lax.Precision.HIGHEST
    x = jnp.transpose(lr_up_nchw, (0, 2, 3, 1))
    lr = x

    def conv(v, p, relu):
        y = jax.lax.conv_general_dilated(
            v, p["w"], (1, 1), ((1, 1), (1, 1)),
            dimension_numbers=("NHWC", "HWIO", "NHWC"), precision=hi) + p["b"]
        return jnp.maximum(y, 0.0) if relu else y

    x0 = conv(x, params["first_conv"], args.act_first)
    e0 = conv(x0, params["enc0"], True)
    p1 = jnp.maximum(jnp.maximum(e0[:, 0::2, 0::2, :], e0[:, 0::2, 1::2, :]),
                     jnp.maximum(e0[:, 1::2, 0::2, :], e0[:, 1::2, 1::2, :]))
    e1 = conv(p1, params["enc1"], True)

    w, b = params["up"]["w"], params["up"]["b"]        # (Cin, Cout, 2, 2)
    t = jnp.einsum("nhwi,iopq->nhpwqo", e1, w, precision=hi)
    N, Hp, _, Wp, _, Co = t.shape
    up = t.reshape(N, 2 * Hp, 2 * Wp, Co) + b

    cat = jnp.concatenate([up, e0], axis=-1)
    d0 = conv(cat, params["dec0"], True)
    if args.long_skip_feat:
        d0 = d0 + x0
    out = conv(d0, params["last_conv"], False)
    if args.long_skip:
        out = out + lr
    return jnp.transpose(out, (0, 3, 1, 2))


# ---------------------------------- main --------------------------------------

if __name__ == "__main__":
    args = Args()
    key = jax.random.PRNGKey(0)
    pkey, xkey = jax.random.split(key)

    params = init_params(pkey, args)
    lr_up = jax.random.normal(xkey, (2, 1, 16, 16), jnp.float32)   # NCHW input

    fwd = jax.jit(functools.partial(unet_forward, args=args))
    out_dict = jax.block_until_ready(fwd(params, lr_up))

    assert out_dict["out"].shape == (2, 1, 16, 16)
    assert out_dict["lr_up"].shape == (2, 1, 16, 16)

    # End-to-end check of the fused Pallas forward against an XLA reference.
    ref = unet_reference(params, lr_up, args)
    max_err = float(jnp.max(jnp.abs(out_dict["out"] - ref)))
    assert max_err < 2e-3, f"UNet forward mismatch vs XLA reference: {max_err}"

    print("KERNEL_OK")
</pallas_src>

<mosaic_0001>
module attributes {stable_mosaic.version = 11 : i64} {
  func.func @_unet_fused_kernel(%arg0: i32, %arg1: memref<1x1x256xf32, #tpu.memory_space<vmem>>, %arg2: memref<9x8x1xf32, #tpu.memory_space<vmem>>, %arg3: memref<8x1xf32, #tpu.memory_space<vmem>>, %arg4: memref<9x8x8xf32, #tpu.memory_space<vmem>>, %arg5: memref<8x1xf32, #tpu.memory_space<vmem>>, %arg6: memref<9x16x8xf32, #tpu.memory_space<vmem>>, %arg7: memref<16x1xf32, #tpu.memory_space<vmem>>, %arg8: memref<4x8x16xf32, #tpu.memory_space<vmem>>, %arg9: memref<8x1xf32, #tpu.memory_space<vmem>>, %arg10: memref<9x8x16xf32, #tpu.memory_space<vmem>>, %arg11: memref<8x1xf32, #tpu.memory_space<vmem>>, %arg12: memref<9x1x8xf32, #tpu.memory_space<vmem>>, %arg13: memref<1x1xf32, #tpu.memory_space<vmem>>, %arg14: memref<9x256x256xf32, #tpu.memory_space<vmem>>, %arg15: memref<9x64x64xf32, #tpu.memory_space<vmem>>, %arg16: memref<256x64xf32, #tpu.memory_space<vmem>>, %arg17: memref<4x64x256xf32, #tpu.memory_space<vmem>>, %arg18: memref<1x1x256xf32, #tpu.memory_space<vmem>>) attributes {dimension_semantics = [#tpu.dimension_semantics<parallel>], iteration_bounds = array<i64: 2>, scalar_prefetch = 0 : i64, scratch_operands = 0 : i64, tpu.core_type = #tpu.core_type<tc>, window_params = [{transform_indices = @transform_0, window_bounds = array<i64: 1, 1, 256>}, {pipeline_mode = #tpu.pipeline_mode<synchronous>, transform_indices = @transform_1, window_bounds = array<i64: 9, 8, 1>}, {pipeline_mode = #tpu.pipeline_mode<synchronous>, transform_indices = @transform_2, window_bounds = array<i64: 8, 1>}, {pipeline_mode = #tpu.pipeline_mode<synchronous>, transform_indices = @transform_3, window_bounds = array<i64: 9, 8, 8>}, {pipeline_mode = #tpu.pipeline_mode<synchronous>, transform_indices = @transform_4, window_bounds = array<i64: 8, 1>}, {pipeline_mode = #tpu.pipeline_mode<synchronous>, transform_indices = @transform_5, window_bounds = array<i64: 9, 16, 8>}, {pipeline_mode = #tpu.pipeline_mode<synchronous>, transform_indices = @transform_6, window_bounds = array<i64: 16, 1>}, {pipeline_mode = #tpu.pipeline_mode<synchronous>, transform_indices = @transform_7, window_bounds = array<i64: 4, 8, 16>}, {pipeline_mode = #tpu.pipeline_mode<synchronous>, transform_indices = @transform_8, window_bounds = array<i64: 8, 1>}, {pipeline_mode = #tpu.pipeline_mode<synchronous>, transform_indices = @transform_9, window_bounds = array<i64: 9, 8, 16>}, {pipeline_mode = #tpu.pipeline_mode<synchronous>, transform_indices = @transform_10, window_bounds = array<i64: 8, 1>}, {pipeline_mode = #tpu.pipeline_mode<synchronous>, transform_indices = @transform_11, window_bounds = array<i64: 9, 1, 8>}, {pipeline_mode = #tpu.pipeline_mode<synchronous>, transform_indices = @transform_12, window_bounds = array<i64: 1, 1>}, {pipeline_mode = #tpu.pipeline_mode<synchronous>, transform_indices = @transform_13, window_bounds = array<i64: 9, 256, 256>}, {pipeline_mode = #tpu.pipeline_mode<synchronous>, transform_indices = @transform_14, window_bounds = array<i64: 9, 64, 64>}, {pipeline_mode = #tpu.pipeline_mode<synchronous>, transform_indices = @transform_15, window_bounds = array<i64: 256, 64>}, {pipeline_mode = #tpu.pipeline_mode<synchronous>, transform_indices = @transform_16, window_bounds = array<i64: 4, 64, 256>}, {transform_indices = @transform_17, window_bounds = array<i64: 1, 1, 256>}]} {
    %c0 = arith.constant 0 : index
    %c0_0 = arith.constant 0 : index
    %c0_1 = arith.constant 0 : index
    %0 = vector.load %arg1[%c0, %c0_0, %c0_1] : memref<1x1x256xf32, #tpu.memory_space<vmem>>, vector<1x1x256xf32>
    %1 = vector.shape_cast %0 : vector<1x1x256xf32> to vector<1x256xf32>
    %cst = arith.constant 0.000000e+00 : f32
    %2 = vector.broadcast %cst : f32 to vector<8x256xf32>
    %c0_2 = arith.constant 0 : index
    %c0_3 = arith.constant 0 : index
    %c0_4 = arith.constant 0 : index
    %3 = vector.load %arg14[%c0_2, %c0_3, %c0_4] : memref<9x256x256xf32, #tpu.memory_space<vmem>>, vector<1x256x256xf32>
    %4 = vector.shape_cast %3 : vector<1x256x256xf32> to vector<256x256xf32>
    %cst_5 = arith.constant dense<0.000000e+00> : vector<1x256xf32>
    %5 = tpu.matmul %1, %4, %cst_5 {dimension_numbers = #tpu.dot_dimension_numbers<[1], [0], [0], [1], [0, 0, 1, 1], [], []>} : vector<1x256xf32>, vector<256x256xf32>, vector<1x256xf32> -> vector<1x256xf32>
    %c0_6 = arith.constant 0 : index
    %c0_7 = arith.constant 0 : index
    %c0_8 = arith.constant 0 : index
    %6 = vector.load %arg2[%c0_6, %c0_7, %c0_8] : memref<9x8x1xf32, #tpu.memory_space<vmem>>, vector<1x8x1xf32>
    %7 = vector.shape_cast %6 : vector<1x8x1xf32> to vector<8x1xf32>
    %8 = vector.broadcast %7 : vector<8x1xf32> to vector<8x256xf32>
    %9 = vector.broadcast %5 : vector<1x256xf32> to vector<8x256xf32>
    %10 = arith.mulf %8, %9 : vector<8x256xf32>
    %11 = arith.addf %2, %10 : vector<8x256xf32>
    %c1 = arith.constant 1 : index
    %c0_9 = arith.constant 0 : index
    %c0_10 = arith.constant 0 : index
    %12 = vector.load %arg14[%c1, %c0_9, %c0_10] : memref<9x256x256xf32, #tpu.memory_space<vmem>>, vector<1x256x256xf32>
    %13 = vector.shape_cast %12 : vector<1x256x256xf32> to vector<256x256xf32>
    %cst_11 = arith.constant dense<0.000000e+00> : vector<1x256xf32>
    %14 = tpu.matmul %1, %13, %cst_11 {dimension_numbers = #tpu.dot_dimension_numbers<[1], [0], [0], [1], [0, 0, 1, 1], [], []>} : vector<1x256xf32>, vector<256x256xf32>, vector<1x256xf32> -> vector<1x256xf32>
    %c1_12 = arith.constant 1 : index
    %c0_13 = arith.constant 0 : index
    %c0_14 = arith.constant 0 : index
    %15 = vector.load %arg2[%c1_12, %c0_13, %c0_14] : memref<9x8x1xf32, #tpu.memory_space<vmem>>, vector<1x8x1xf32>
    %16 = vector.shape_cast %15 : vector<1x8x1xf32> to vector<8x1xf32>
    %17 = vector.broadcast %16 : vector<8x1xf32> to vector<8x256xf32>
    %18 = vector.broadcast %14 : vector<1x256xf32> to vector<8x256xf32>
    %19 = arith.mulf %17, %18 : vector<8x256xf32>
    %20 = arith.addf %11, %19 : vector<8x256xf32>
    %c2 = arith.constant 2 : index
    %c0_15 = arith.constant 0 : index
    %c0_16 = arith.constant 0 : index
    %21 = vector.load %arg14[%c2, %c0_15, %c0_16] : memref<9x256x256xf32, #tpu.memory_space<vmem>>, vector<1x256x256xf32>
    %22 = vector.shape_cast %21 : vector<1x256x256xf32> to vector<256x256xf32>
    %cst_17 = arith.constant dense<0.000000e+00> : vector<1x256xf32>
    %23 = tpu.matmul %1, %22, %cst_17 {dimension_numbers = #tpu.dot_dimension_numbers<[1], [0], [0], [1], [0, 0, 1, 1], [], []>} : vector<1x256xf32>, vector<256x256xf32>, vector<1x256xf32> -> vector<1x256xf32>
    %c2_18 = arith.constant 2 : index
    %c0_19 = arith.constant 0 : index
    %c0_20 = arith.constant 0 : index
    %24 = vector.load %arg2[%c2_18, %c0_19, %c0_20] : memref<9x8x1xf32, #tpu.memory_space<vmem>>, vector<1x8x1xf32>
    %25 = vector.shape_cast %24 : vector<1x8x1xf32> to vector<8x1xf32>
    %26 = vector.broadcast %25 : vector<8x1xf32> to vector<8x256xf32>
    %27 = vector.broadcast %23 : vector<1x256xf32> to vector<8x256xf32>
    %28 = arith.mulf %26, %27 : vector<8x256xf32>
    %29 = arith.addf %20, %28 : vector<8x256xf32>
    %c3 = arith.constant 3 : index
    %c0_21 = arith.constant 0 : index
    %c0_22 = arith.constant 0 : index
    %30 = vector.load %arg14[%c3, %c0_21, %c0_22] : memref<9x256x256xf32, #tpu.memory_space<vmem>>, vector<1x256x256xf32>
    %31 = vector.shape_cast %30 : vector<1x256x256xf32> to vector<256x256xf32>
    %cst_23 = arith.constant dense<0.000000e+00> : vector<1x256xf32>
    %32 = tpu.matmul %1, %31, %cst_23 {dimension_numbers = #tpu.dot_dimension_numbers<[1], [0], [0], [1], [0, 0, 1, 1], [], []>} : vector<1x256xf32>, vector<256x256xf32>, vector<1x256xf32> -> vector<1x256xf32>
    %c3_24 = arith.constant 3 : index
    %c0_25 = arith.constant 0 : index
    %c0_26 = arith.constant 0 : index
    %33 = vector.load %arg2[%c3_24, %c0_25, %c0_26] : memref<9x8x1xf32, #tpu.memory_space<vmem>>, vector<1x8x1xf32>
    %34 = vector.shape_cast %33 : vector<1x8x1xf32> to vector<8x1xf32>
    %35 = vector.broadcast %34 : vector<8x1xf32> to vector<8x256xf32>
    %36 = vector.broadcast %32 : vector<1x256xf32> to vector<8x256xf32>
    %37 = arith.mulf %35, %36 : vector<8x256xf32>
    %38 = arith.addf %29, %37 : vector<8x256xf32>
    %c4 = arith.constant 4 : index
    %c0_27 = arith.constant 0 : index
    %c0_28 = arith.constant 0 : index
    %39 = vector.load %arg2[%c4, %c0_27, %c0_28] : memref<9x8x1xf32, #tpu.memory_space<vmem>>, vector<1x8x1xf32>
    %40 = vector.shape_cast %39 : vector<1x8x1xf32> to vector<8x1xf32>
    %41 = vector.broadcast %40 : vector<8x1xf32> to vector<8x256xf32>
    %42 = vector.broadcast %1 : vector<1x256xf32> to vector<8x256xf32>
    %43 = arith.mulf %41, %42 : vector<8x256xf32>
    %44 = arith.addf %38, %43 : vector<8x256xf32>
    %c5 = arith.constant 5 : index
    %c0_29 = arith.constant 0 : index
    %c0_30 = arith.constant 0 : index
    %45 = vector.load %arg14[%c5, %c0_29, %c0_30] : memref<9x256x256xf32, #tpu.memory_space<vmem>>, vector<1x256x256xf32>
    %46 = vector.shape_cast %45 : vector<1x256x256xf32> to vector<256x256xf32>
    %cst_31 = arith.constant dense<0.000000e+00> : vector<1x256xf32>
    %47 = tpu.matmul %1, %46, %cst_31 {dimension_numbers = #tpu.dot_dimension_numbers<[1], [0], [0], [1], [0, 0, 1, 1], [], []>} : vector<1x256xf32>, vector<256x256xf32>, vector<1x256xf32> -> vector<1x256xf32>
    %c5_32 = arith.constant 5 : index
    %c0_33 = arith.constant 0 : index
    %c0_34 = arith.constant 0 : index
    %48 = vector.load %arg2[%c5_32, %c0_33, %c0_34] : memref<9x8x1xf32, #tpu.memory_space<vmem>>, vector<1x8x1xf32>
    %49 = vector.shape_cast %48 : vector<1x8x1xf32> to vector<8x1xf32>
    %50 = vector.broadcast %49 : vector<8x1xf32> to vector<8x256xf32>
    %51 = vector.broadcast %47 : vector<1x256xf32> to vector<8x256xf32>
    %52 = arith.mulf %50, %51 : vector<8x256xf32>
    %53 = arith.addf %44, %52 : vector<8x256xf32>
    %c6 = arith.constant 6 : index
    %c0_35 = arith.constant 0 : index
    %c0_36 = arith.constant 0 : index
    %54 = vector.load %arg14[%c6, %c0_35, %c0_36] : memref<9x256x256xf32, #tpu.memory_space<vmem>>, vector<1x256x256xf32>
    %55 = vector.shape_cast %54 : vector<1x256x256xf32> to vector<256x256xf32>
    %cst_37 = arith.constant dense<0.000000e+00> : vector<1x256xf32>
    %56 = tpu.matmul %1, %55, %cst_37 {dimension_numbers = #tpu.dot_dimension_numbers<[1], [0], [0], [1], [0, 0, 1, 1], [], []>} : vector<1x256xf32>, vector<256x256xf32>, vector<1x256xf32> -> vector<1x256xf32>
    %c6_38 = arith.constant 6 : index
    %c0_39 = arith.constant 0 : index
    %c0_40 = arith.constant 0 : index
    %57 = vector.load %arg2[%c6_38, %c0_39, %c0_40] : memref<9x8x1xf32, #tpu.memory_space<vmem>>, vector<1x8x1xf32>
    %58 = vector.shape_cast %57 : vector<1x8x1xf32> to vector<8x1xf32>
    %59 = vector.broadcast %58 : vector<8x1xf32> to vector<8x256xf32>
    %60 = vector.broadcast %56 : vector<1x256xf32> to vector<8x256xf32>
    %61 = arith.mulf %59, %60 : vector<8x256xf32>
    %62 = arith.addf %53, %61 : vector<8x256xf32>
    %c7 = arith.constant 7 : index
    %c0_41 = arith.constant 0 : index
    %c0_42 = arith.constant 0 : index
    %63 = vector.load %arg14[%c7, %c0_41, %c0_42] : memref<9x256x256xf32, #tpu.memory_space<vmem>>, vector<1x256x256xf32>
    %64 = vector.shape_cast %63 : vector<1x256x256xf32> to vector<256x256xf32>
    %cst_43 = arith.constant dense<0.000000e+00> : vector<1x256xf32>
    %65 = tpu.matmul %1, %64, %cst_43 {dimension_numbers = #tpu.dot_dimension_numbers<[1], [0], [0], [1], [0, 0, 1, 1], [], []>} : vector<1x256xf32>, vector<256x256xf32>, vector<1x256xf32> -> vector<1x256xf32>
    %c7_44 = arith.constant 7 : index
    %c0_45 = arith.constant 0 : index
    %c0_46 = arith.constant 0 : index
    %66 = vector.load %arg2[%c7_44, %c0_45, %c0_46] : memref<9x8x1xf32, #tpu.memory_space<vmem>>, vector<1x8x1xf32>
    %67 = vector.shape_cast %66 : vector<1x8x1xf32> to vector<8x1xf32>
    %68 = vector.broadcast %67 : vector<8x1xf32> to vector<8x256xf32>
    %69 = vector.broadcast %65 : vector<1x256xf32> to vector<8x256xf32>
    %70 = arith.mulf %68, %69 : vector<8x256xf32>
    %71 = arith.addf %62, %70 : vector<8x256xf32>
    %c8 = arith.constant 8 : index
    %c0_47 = arith.constant 0 : index
    %c0_48 = arith.constant 0 : index
    %72 = vector.load %arg14[%c8, %c0_47, %c0_48] : memref<9x256x256xf32, #tpu.memory_space<vmem>>, vector<1x256x256xf32>
    %73 = vector.shape_cast %72 : vector<1x256x256xf32> to vector<256x256xf32>
    %cst_49 = arith.constant dense<0.000000e+00> : vector<1x256xf32>
    %74 = tpu.matmul %1, %73, %cst_49 {dimension_numbers = #tpu.dot_dimension_numbers<[1], [0], [0], [1], [0, 0, 1, 1], [], []>} : vector<1x256xf32>, vector<256x256xf32>, vector<1x256xf32> -> vector<1x256xf32>
    %c8_50 = arith.constant 8 : index
    %c0_51 = arith.constant 0 : index
    %c0_52 = arith.constant 0 : index
    %75 = vector.load %arg2[%c8_50, %c0_51, %c0_52] : memref<9x8x1xf32, #tpu.memory_space<vmem>>, vector<1x8x1xf32>
    %76 = vector.shape_cast %75 : vector<1x8x1xf32> to vector<8x1xf32>
    %77 = vector.broadcast %76 : vector<8x1xf32> to vector<8x256xf32>
    %78 = vector.broadcast %74 : vector<1x256xf32> to vector<8x256xf32>
    %79 = arith.mulf %77, %78 : vector<8x256xf32>
    %80 = arith.addf %71, %79 : vector<8x256xf32>
    %c0_53 = arith.constant 0 : index
    %c0_54 = arith.constant 0 : index
    %81 = vector.load %arg3[%c0_53, %c0_54] : memref<8x1xf32, #tpu.memory_space<vmem>>, vector<8x1xf32>
    %82 = vector.broadcast %81 : vector<8x1xf32> to vector<8x256xf32>
    %83 = arith.addf %80, %82 : vector<8x256xf32>
    %cst_55 = arith.constant 0.000000e+00 : f32
    %84 = vector.broadcast %cst_55 : f32 to vector<8x256xf32>
    %85 = arith.maximumf %83, %84 : vector<8x256xf32>
    %cst_56 = arith.constant 0.000000e+00 : f32
    %86 = vector.broadcast %cst_56 : f32 to vector<8x256xf32>
    %c0_57 = arith.constant 0 : index
    %c0_58 = arith.constant 0 : index
    %c0_59 = arith.constant 0 : index
    %87 = vector.load %arg14[%c0_57, %c0_58, %c0_59] : memref<9x256x256xf32, #tpu.memory_space<vmem>>, vector<1x256x256xf32>
    %88 = vector.shape_cast %87 : vector<1x256x256xf32> to vector<256x256xf32>
    %cst_60 = arith.constant dense<0.000000e+00> : vector<8x256xf32>
    %89 = tpu.matmul %85, %88, %cst_60 {dimension_numbers = #tpu.dot_dimension_numbers<[1], [0], [0], [1], [0, 0, 1, 1], [], []>} : vector<8x256xf32>, vector<256x256xf32>, vector<8x256xf32> -> vector<8x256xf32>
    %c0_61 = arith.constant 0 : index
    %c0_62 = arith.constant 0 : index
    %c0_63 = arith.constant 0 : index
    %90 = vector.load %arg4[%c0_61, %c0_62, %c0_63] : memref<9x8x8xf32, #tpu.memory_space<vmem>>, vector<1x8x8xf32>
    %91 = vector.shape_cast %90 : vector<1x8x8xf32> to vector<8x8xf32>
    %cst_64 = arith.constant dense<0.000000e+00> : vector<8x256xf32>
    %92 = tpu.matmul %91, %89, %cst_64 {dimension_numbers = #tpu.dot_dimension_numbers<[1], [0], [0], [1], [0, 0, 1, 1], [], []>} : vector<8x8xf32>, vector<8x256xf32>, vector<8x256xf32> -> vector<8x256xf32>
    %93 = arith.addf %86, %92 : vector<8x256xf32>
    %c1_65 = arith.constant 1 : index
    %c0_66 = arith.constant 0 : index
    %c0_67 = arith.constant 0 : index
    %94 = vector.load %arg14[%c1_65, %c0_66, %c0_67] : memref<9x256x256xf32, #tpu.memory_space<vmem>>, vector<1x256x256xf32>
    %95 = vector.shape_cast %94 : vector<1x256x256xf32> to vector<256x256xf32>
    %cst_68 = arith.constant dense<0.000000e+00> : vector<8x256xf32>
    %96 = tpu.matmul %85, %95, %cst_68 {dimension_numbers = #tpu.dot_dimension_numbers<[1], [0], [0], [1], [0, 0, 1, 1], [], []>} : vector<8x256xf32>, vector<256x256xf32>, vector<8x256xf32> -> vector<8x256xf32>
    %c1_69 = arith.constant 1 : index
    %c0_70 = arith.constant 0 : index
    %c0_71 = arith.constant 0 : index
    %97 = vector.load %arg4[%c1_69, %c0_70, %c0_71] : memref<9x8x8xf32, #tpu.memory_space<vmem>>, vector<1x8x8xf32>
    %98 = vector.shape_cast %97 : vector<1x8x8xf32> to vector<8x8xf32>
    %cst_72 = arith.constant dense<0.000000e+00> : vector<8x256xf32>
    %99 = tpu.matmul %98, %96, %cst_72 {dimension_numbers = #tpu.dot_dimension_numbers<[1], [0], [0], [1], [0, 0, 1, 1], [], []>} : vector<8x8xf32>, vector<8x256xf32>, vector<8x256xf32> -> vector<8x256xf32>
    %100 = arith.addf %93, %99 : vector<8x256xf32>
    %c2_73 = arith.constant 2 : index
    %c0_74 = arith.constant 0 : index
    %c0_75 = arith.constant 0 : index
    %101 = vector.load %arg14[%c2_73, %c0_74, %c0_75] : memref<9x256x256xf32, #tpu.memory_space<vmem>>, vector<1x256x256xf32>
    %102 = vector.shape_cast %101 : vector<1x256x256xf32> to vector<256x256xf32>
    %cst_76 = arith.constant dense<0.000000e+00> : vector<8x256xf32>
    %103 = tpu.matmul %85, %102, %cst_76 {dimension_numbers = #tpu.dot_dimension_numbers<[1], [0], [0], [1], [0, 0, 1, 1], [], []>} : vector<8x256xf32>, vector<256x256xf32>, vector<8x256xf32> -> vector<8x256xf32>
    %c2_77 = arith.constant 2 : index
    %c0_78 = arith.constant 0 : index
    %c0_79 = arith.constant 0 : index
    %104 = vector.load %arg4[%c2_77, %c0_78, %c0_79] : memref<9x8x8xf32, #tpu.memory_space<vmem>>, vector<1x8x8xf32>
    %105 = vector.shape_cast %104 : vector<1x8x8xf32> to vector<8x8xf32>
    %cst_80 = arith.constant dense<0.000000e+00> : vector<8x256xf32>
    %106 = tpu.matmul %105, %103, %cst_80 {dimension_numbers = #tpu.dot_dimension_numbers<[1], [0], [0], [1], [0, 0, 1, 1], [], []>} : vector<8x8xf32>, vector<8x256xf32>, vector<8x256xf32> -> vector<8x256xf32>
    %107 = arith.addf %100, %106 : vector<8x256xf32>
    %c3_81 = arith.constant 3 : index
    %c0_82 = arith.constant 0 : index
    %c0_83 = arith.constant 0 : index
    %108 = vector.load %arg14[%c3_81, %c0_82, %c0_83] : memref<9x256x256xf32, #tpu.memory_space<vmem>>, vector<1x256x256xf32>
    %109 = vector.shape_cast %108 : vector<1x256x256xf32> to vector<256x256xf32>
    %cst_84 = arith.constant dense<0.000000e+00> : vector<8x256xf32>
    %110 = tpu.matmul %85, %109, %cst_84 {dimension_numbers = #tpu.dot_dimension_numbers<[1], [0], [0], [1], [0, 0, 1, 1], [], []>} : vector<8x256xf32>, vector<256x256xf32>, vector<8x256xf32> -> vector<8x256xf32>
    %c3_85 = arith.constant 3 : index
    %c0_86 = arith.constant 0 : index
    %c0_87 = arith.constant 0 : index
    %111 = vector.load %arg4[%c3_85, %c0_86, %c0_87] : memref<9x8x8xf32, #tpu.memory_space<vmem>>, vector<1x8x8xf32>
    %112 = vector.shape_cast %111 : vector<1x8x8xf32> to vector<8x8xf32>
    %cst_88 = arith.constant dense<0.000000e+00> : vector<8x256xf32>
    %113 = tpu.matmul %112, %110, %cst_88 {dimension_numbers = #tpu.dot_dimension_numbers<[1], [0], [0], [1], [0, 0, 1, 1], [], []>} : vector<8x8xf32>, vector<8x256xf32>, vector<8x256xf32> -> vector<8x256xf32>
    %114 = arith.addf %107, %113 : vector<8x256xf32>
    %c4_89 = arith.constant 4 : index
    %c0_90 = arith.constant 0 : index
    %c0_91 = arith.constant 0 : index
    %115 = vector.load %arg4[%c4_89, %c0_90, %c0_91] : memref<9x8x8xf32, #tpu.memory_space<vmem>>, vector<1x8x8xf32>
    %116 = vector.shape_cast %115 : vector<1x8x8xf32> to vector<8x8xf32>
    %cst_92 = arith.constant dense<0.000000e+00> : vector<8x256xf32>
    %117 = tpu.matmul %116, %85, %cst_92 {dimension_numbers = #tpu.dot_dimension_numbers<[1], [0], [0], [1], [0, 0, 1, 1], [], []>} : vector<8x8xf32>, vector<8x256xf32>, vector<8x256xf32> -> vector<8x256xf32>
    %118 = arith.addf %114, %117 : vector<8x256xf32>
    %c5_93 = arith.constant 5 : index
    %c0_94 = arith.constant 0 : index
    %c0_95 = arith.constant 0 : index
    %119 = vector.load %arg14[%c5_93, %c0_94, %c0_95] : memref<9x256x256xf32, #tpu.memory_space<vmem>>, vector<1x256x256xf32>
    %120 = vector.shape_cast %119 : vector<1x256x256xf32> to vector<256x256xf32>
    %cst_96 = arith.constant dense<0.000000e+00> : vector<8x256xf32>
    %121 = tpu.matmul %85, %120, %cst_96 {dimension_numbers = #tpu.dot_dimension_numbers<[1], [0], [0], [1], [0, 0, 1, 1], [], []>} : vector<8x256xf32>, vector<256x256xf32>, vector<8x256xf32> -> vector<8x256xf32>
    %c5_97 = arith.constant 5 : index
    %c0_98 = arith.constant 0 : index
    %c0_99 = arith.constant 0 : index
    %122 = vector.load %arg4[%c5_97, %c0_98, %c0_99] : memref<9x8x8xf32, #tpu.memory_space<vmem>>, vector<1x8x8xf32>
    %123 = vector.shape_cast %122 : vector<1x8x8xf32> to vector<8x8xf32>
    %cst_100 = arith.constant dense<0.000000e+00> : vector<8x256xf32>
    %124 = tpu.matmul %123, %121, %cst_100 {dimension_numbers = #tpu.dot_dimension_numbers<[1], [0], [0], [1], [0, 0, 1, 1], [], []>} : vector<8x8xf32>, vector<8x256xf32>, vector<8x256xf32> -> vector<8x256xf32>
    %125 = arith.addf %118, %124 : vector<8x256xf32>
    %c6_101 = arith.constant 6 : index
    %c0_102 = arith.constant 0 : index
    %c0_103 = arith.constant 0 : index
    %126 = vector.load %arg14[%c6_101, %c0_102, %c0_103] : memref<9x256x256xf32, #tpu.memory_space<vmem>>, vector<1x256x256xf32>
    %127 = vector.shape_cast %126 : vector<1x256x256xf32> to vector<256x256xf32>
    %cst_104 = arith.constant dense<0.000000e+00> : vector<8x256xf32>
    %128 = tpu.matmul %85, %127, %cst_104 {dimension_numbers = #tpu.dot_dimension_numbers<[1], [0], [0], [1], [0, 0, 1, 1], [], []>} : vector<8x256xf32>, vector<256x256xf32>, vector<8x256xf32> -> vector<8x256xf32>
    %c6_105 = arith.constant 6 : index
    %c0_106 = arith.constant 0 : index
    %c0_107 = arith.constant 0 : index
    %129 = vector.load %arg4[%c6_105, %c0_106, %c0_107] : memref<9x8x8xf32, #tpu.memory_space<vmem>>, vector<1x8x8xf32>
    %130 = vector.shape_cast %129 : vector<1x8x8xf32> to vector<8x8xf32>
    %cst_108 = arith.constant dense<0.000000e+00> : vector<8x256xf32>
    %131 = tpu.matmul %130, %128, %cst_108 {dimension_numbers = #tpu.dot_dimension_numbers<[1], [0], [0], [1], [0, 0, 1, 1], [], []>} : vector<8x8xf32>, vector<8x256xf32>, vector<8x256xf32> -> vector<8x256xf32>
    %132 = arith.addf %125, %131 : vector<8x256xf32>
    %c7_109 = arith.constant 7 : index
    %c0_110 = arith.constant 0 : index
    %c0_111 = arith.constant 0 : index
    %133 = vector.load %arg14[%c7_109, %c0_110, %c0_111] : memref<9x256x256xf32, #tpu.memory_space<vmem>>, vector<1x256x256xf32>
    %134 = vector.shape_cast %133 : vector<1x256x256xf32> to vector<256x256xf32>
    %cst_112 = arith.constant dense<0.000000e+00> : vector<8x256xf32>
    %135 = tpu.matmul %85, %134, %cst_112 {dimension_numbers = #tpu.dot_dimension_numbers<[1], [0], [0], [1], [0, 0, 1, 1], [], []>} : vector<8x256xf32>, vector<256x256xf32>, vector<8x256xf32> -> vector<8x256xf32>
    %c7_113 = arith.constant 7 : index
    %c0_114 = arith.constant 0 : index
    %c0_115 = arith.constant 0 : index
    %136 = vector.load %arg4[%c7_113, %c0_114, %c0_115] : memref<9x8x8xf32, #tpu.memory_space<vmem>>, vector<1x8x8xf32>
    %137 = vector.shape_cast %136 : vector<1x8x8xf32> to vector<8x8xf32>
    %cst_116 = arith.constant dense<0.000000e+00> : vector<8x256xf32>
    %138 = tpu.matmul %137, %135, %cst_116 {dimension_numbers = #tpu.dot_dimension_numbers<[1], [0], [0], [1], [0, 0, 1, 1], [], []>} : vector<8x8xf32>, vector<8x256xf32>, vector<8x256xf32> -> vector<8x256xf32>
    %139 = arith.addf %132, %138 : vector<8x256xf32>
    %c8_117 = arith.constant 8 : index
    %c0_118 = arith.constant 0 : index
    %c0_119 = arith.constant 0 : index
    %140 = vector.load %arg14[%c8_117, %c0_118, %c0_119] : memref<9x256x256xf32, #tpu.memory_space<vmem>>, vector<1x256x256xf32>
    %141 = vector.shape_cast %140 : vector<1x256x256xf32> to vector<256x256xf32>
    %cst_120 = arith.constant dense<0.000000e+00> : vector<8x256xf32>
    %142 = tpu.matmul %85, %141, %cst_120 {dimension_numbers = #tpu.dot_dimension_numbers<[1], [0], [0], [1], [0, 0, 1, 1], [], []>} : vector<8x256xf32>, vector<256x256xf32>, vector<8x256xf32> -> vector<8x256xf32>
    %c8_121 = arith.constant 8 : index
    %c0_122 = arith.constant 0 : index
    %c0_123 = arith.constant 0 : index
    %143 = vector.load %arg4[%c8_121, %c0_122, %c0_123] : memref<9x8x8xf32, #tpu.memory_space<vmem>>, vector<1x8x8xf32>
    %144 = vector.shape_cast %143 : vector<1x8x8xf32> to vector<8x8xf32>
    %cst_124 = arith.constant dense<0.000000e+00> : vector<8x256xf32>
    %145 = tpu.matmul %144, %142, %cst_124 {dimension_numbers = #tpu.dot_dimension_numbers<[1], [0], [0], [1], [0, 0, 1, 1], [], []>} : vector<8x8xf32>, vector<8x256xf32>, vector<8x256xf32> -> vector<8x256xf32>
    %146 = arith.addf %139, %145 : vector<8x256xf32>
    %c0_125 = arith.constant 0 : index
    %c0_126 = arith.constant 0 : index
    %147 = vector.load %arg5[%c0_125, %c0_126] : memref<8x1xf32, #tpu.memory_space<vmem>>, vector<8x1xf32>
    %148 = vector.broadcast %147 : vector<8x1xf32> to vector<8x256xf32>
    %149 = arith.addf %146, %148 : vector<8x256xf32>
    %cst_127 = arith.constant 0.000000e+00 : f32
    %150 = vector.broadcast %cst_127 : f32 to vector<8x256xf32>
    %151 = arith.maximumf %149, %150 : vector<8x256xf32>
    %c5_128 = arith.constant 5 : index
    %c0_129 = arith.constant 0 : index
    %c0_130 = arith.constant 0 : index
    %152 = vector.load %arg14[%c5_128, %c0_129, %c0_130] : memref<9x256x256xf32, #tpu.memory_space<vmem>>, vector<1x256x256xf32>
    %153 = vector.shape_cast %152 : vector<1x256x256xf32> to vector<256x256xf32>
    %cst_131 = arith.constant dense<0.000000e+00> : vector<8x256xf32>
    %154 = tpu.matmul %151, %153, %cst_131 {dimension_numbers = #tpu.dot_dimension_numbers<[1], [0], [0], [1], [0, 0, 1, 1], [], []>} : vector<8x256xf32>, vector<256x256xf32>, vector<8x256xf32> -> vector<8x256xf32>
    %155 = arith.maximumf %151, %154 : vector<8x256xf32>
    %c7_132 = arith.constant 7 : index
    %c0_133 = arith.constant 0 : index
    %c0_134 = arith.constant 0 : index
    %156 = vector.load %arg14[%c7_132, %c0_133, %c0_134] : memref<9x256x256xf32, #tpu.memory_space<vmem>>, vector<1x256x256xf32>
    %157 = vector.shape_cast %156 : vector<1x256x256xf32> to vector<256x256xf32>
    %cst_135 = arith.constant dense<0.000000e+00> : vector<8x256xf32>
    %158 = tpu.matmul %155, %157, %cst_135 {dimension_numbers = #tpu.dot_dimension_numbers<[1], [0], [0], [1], [0, 0, 1, 1], [], []>} : vector<8x256xf32>, vector<256x256xf32>, vector<8x256xf32> -> vector<8x256xf32>
    %159 = arith.maximumf %155, %158 : vector<8x256xf32>
    %c0_136 = arith.constant 0 : index
    %c0_137 = arith.constant 0 : index
    %160 = vector.load %arg16[%c0_136, %c0_137] : memref<256x64xf32, #tpu.memory_space<vmem>>, vector<256x64xf32>
    %cst_138 = arith.constant dense<0.000000e+00> : vector<8x64xf32>
    %161 = tpu.matmul %159, %160, %cst_138 {dimension_numbers = #tpu.dot_dimension_numbers<[1], [0], [0], [1], [0, 0, 1, 1], [], []>} : vector<8x256xf32>, vector<256x64xf32>, vector<8x64xf32> -> vector<8x64xf32>
    %cst_139 = arith.constant 0.000000e+00 : f32
    %162 = vector.broadcast %cst_139 : f32 to vector<16x64xf32>
    %c0_140 = arith.constant 0 : index
    %c0_141 = arith.constant 0 : index
    %c0_142 = arith.constant 0 : index
    %163 = vector.load %arg15[%c0_140, %c0_141, %c0_142] : memref<9x64x64xf32, #tpu.memory_space<vmem>>, vector<1x64x64xf32>
    %164 = vector.shape_cast %163 : vector<1x64x64xf32> to vector<64x64xf32>
    %cst_143 = arith.constant dense<0.000000e+00> : vector<8x64xf32>
    %165 = tpu.matmul %161, %164, %cst_143 {dimension_numbers = #tpu.dot_dimension_numbers<[1], [0], [0], [1], [0, 0, 1, 1], [], []>} : vector<8x64xf32>, vector<64x64xf32>, vector<8x64xf32> -> vector<8x64xf32>
    %c0_144 = arith.constant 0 : index
    %c0_145 = arith.constant 0 : index
    %c0_146 = arith.constant 0 : index
    %166 = vector.load %arg6[%c0_144, %c0_145, %c0_146] : memref<9x16x8xf32, #tpu.memory_space<vmem>>, vector<1x16x8xf32>
    %167 = vector.shape_cast %166 : vector<1x16x8xf32> to vector<16x8xf32>
    %cst_147 = arith.constant dense<0.000000e+00> : vector<16x64xf32>
    %168 = tpu.matmul %167, %165, %cst_147 {dimension_numbers = #tpu.dot_dimension_numbers<[1], [0], [0], [1], [0, 0, 1, 1], [], []>} : vector<16x8xf32>, vector<8x64xf32>, vector<16x64xf32> -> vector<16x64xf32>
    %169 = arith.addf %162, %168 : vector<16x64xf32>
    %c1_148 = arith.constant 1 : index
    %c0_149 = arith.constant 0 : index
    %c0_150 = arith.constant 0 : index
    %170 = vector.load %arg15[%c1_148, %c0_149, %c0_150] : memref<9x64x64xf32, #tpu.memory_space<vmem>>, vector<1x64x64xf32>
    %171 = vector.shape_cast %170 : vector<1x64x64xf32> to vector<64x64xf32>
    %cst_151 = arith.constant dense<0.000000e+00> : vector<8x64xf32>
    %172 = tpu.matmul %161, %171, %cst_151 {dimension_numbers = #tpu.dot_dimension_numbers<[1], [0], [0], [1], [0, 0, 1, 1], [], []>} : vector<8x64xf32>, vector<64x64xf32>, vector<8x64xf32> -> vector<8x64xf32>
    %c1_152 = arith.constant 1 : index
    %c0_153 = arith.constant 0 : index
    %c0_154 = arith.constant 0 : index
    %173 = vector.load %arg6[%c1_152, %c0_153, %c0_154] : memref<9x16x8xf32, #tpu.memory_space<vmem>>, vector<1x16x8xf32>
    %174 = vector.shape_cast %173 : vector<1x16x8xf32> to vector<16x8xf32>
    %cst_155 = arith.constant dense<0.000000e+00> : vector<16x64xf32>
    %175 = tpu.matmul %174, %172, %cst_155 {dimension_numbers = #tpu.dot_dimension_numbers<[1], [0], [0], [1], [0, 0, 1, 1], [], []>} : vector<16x8xf32>, vector<8x64xf32>, vector<16x64xf32> -> vector<16x64xf32>
    %176 = arith.addf %169, %175 : vector<16x64xf32>
    %c2_156 = arith.constant 2 : index
    %c0_157 = arith.constant 0 : index
    %c0_158 = arith.constant 0 : index
    %177 = vector.load %arg15[%c2_156, %c0_157, %c0_158] : memref<9x64x64xf32, #tpu.memory_space<vmem>>, vector<1x64x64xf32>
    %178 = vector.shape_cast %177 : vector<1x64x64xf32> to vector<64x64xf32>
    %cst_159 = arith.constant dense<0.000000e+00> : vector<8x64xf32>
    %179 = tpu.matmul %161, %178, %cst_159 {dimension_numbers = #tpu.dot_dimension_numbers<[1], [0], [0], [1], [0, 0, 1, 1], [], []>} : vector<8x64xf32>, vector<64x64xf32>, vector<8x64xf32> -> vector<8x64xf32>
    %c2_160 = arith.constant 2 : index
    %c0_161 = arith.constant 0 : index
    %c0_162 = arith.constant 0 : index
    %180 = vector.load %arg6[%c2_160, %c0_161, %c0_162] : memref<9x16x8xf32, #tpu.memory_space<vmem>>, vector<1x16x8xf32>
    %181 = vector.shape_cast %180 : vector<1x16x8xf32> to vector<16x8xf32>
    %cst_163 = arith.constant dense<0.000000e+00> : vector<16x64xf32>
    %182 = tpu.matmul %181, %179, %cst_163 {dimension_numbers = #tpu.dot_dimension_numbers<[1], [0], [0], [1], [0, 0, 1, 1], [], []>} : vector<16x8xf32>, vector<8x64xf32>, vector<16x64xf32> -> vector<16x64xf32>
    %183 = arith.addf %176, %182 : vector<16x64xf32>
    %c3_164 = arith.constant 3 : index
    %c0_165 = arith.constant 0 : index
    %c0_166 = arith.constant 0 : index
    %184 = vector.load %arg15[%c3_164, %c0_165, %c0_166] : memref<9x64x64xf32, #tpu.memory_space<vmem>>, vector<1x64x64xf32>
    %185 = vector.shape_cast %184 : vector<1x64x64xf32> to vector<64x64xf32>
    %cst_167 = arith.constant dense<0.000000e+00> : vector<8x64xf32>
    %186 = tpu.matmul %161, %185, %cst_167 {dimension_numbers = #tpu.dot_dimension_numbers<[1], [0], [0], [1], [0, 0, 1, 1], [], []>} : vector<8x64xf32>, vector<64x64xf32>, vector<8x64xf32> -> vector<8x64xf32>
    %c3_168 = arith.constant 3 : index
    %c0_169 = arith.constant 0 : index
    %c0_170 = arith.constant 0 : index
    %187 = vector.load %arg6[%c3_168, %c0_169, %c0_170] : memref<9x16x8xf32, #tpu.memory_space<vmem>>, vector<1x16x8xf32>
    %188 = vector.shape_cast %187 : vector<1x16x8xf32> to vector<16x8xf32>
    %cst_171 = arith.constant dense<0.000000e+00> : vector<16x64xf32>
    %189 = tpu.matmul %188, %186, %cst_171 {dimension_numbers = #tpu.dot_dimension_numbers<[1], [0], [0], [1], [0, 0, 1, 1], [], []>} : vector<16x8xf32>, vector<8x64xf32>, vector<16x64xf32> -> vector<16x64xf32>
    %190 = arith.addf %183, %189 : vector<16x64xf32>
    %c4_172 = arith.constant 4 : index
    %c0_173 = arith.constant 0 : index
    %c0_174 = arith.constant 0 : index
    %191 = vector.load %arg6[%c4_172, %c0_173, %c0_174] : memref<9x16x8xf32, #tpu.memory_space<vmem>>, vector<1x16x8xf32>
    %192 = vector.shape_cast %191 : vector<1x16x8xf32> to vector<16x8xf32>
    %cst_175 = arith.constant dense<0.000000e+00> : vector<16x64xf32>
    %193 = tpu.matmul %192, %161, %cst_175 {dimension_numbers = #tpu.dot_dimension_numbers<[1], [0], [0], [1], [0, 0, 1, 1], [], []>} : vector<16x8xf32>, vector<8x64xf32>, vector<16x64xf32> -> vector<16x64xf32>
    %194 = arith.addf %190, %193 : vector<16x64xf32>
    %c5_176 = arith.constant 5 : index
    %c0_177 = arith.constant 0 : index
    %c0_178 = arith.constant 0 : index
    %195 = vector.load %arg15[%c5_176, %c0_177, %c0_178] : memref<9x64x64xf32, #tpu.memory_space<vmem>>, vector<1x64x64xf32>
    %196 = vector.shape_cast %195 : vector<1x64x64xf32> to vector<64x64xf32>
    %cst_179 = arith.constant dense<0.000000e+00> : vector<8x64xf32>
    %197 = tpu.matmul %161, %196, %cst_179 {dimension_numbers = #tpu.dot_dimension_numbers<[1], [0], [0], [1], [0, 0, 1, 1], [], []>} : vector<8x64xf32>, vector<64x64xf32>, vector<8x64xf32> -> vector<8x64xf32>
    %c5_180 = arith.constant 5 : index
    %c0_181 = arith.constant 0 : index
    %c0_182 = arith.constant 0 : index
    %198 = vector.load %arg6[%c5_180, %c0_181, %c0_182] : memref<9x16x8xf32, #tpu.memory_space<vmem>>, vector<1x16x8xf32>
    %199 = vector.shape_cast %198 : vector<1x16x8xf32> to vector<16x8xf32>
    %cst_183 = arith.constant dense<0.000000e+00> : vector<16x64xf32>
    %200 = tpu.matmul %199, %197, %cst_183 {dimension_numbers = #tpu.dot_dimension_numbers<[1], [0], [0], [1], [0, 0, 1, 1], [], []>} : vector<16x8xf32>, vector<8x64xf32>, vector<16x64xf32> -> vector<16x64xf32>
    %201 = arith.addf %194, %200 : vector<16x64xf32>
    %c6_184 = arith.constant 6 : index
    %c0_185 = arith.constant 0 : index
    %c0_186 = arith.constant 0 : index
    %202 = vector.load %arg15[%c6_184, %c0_185, %c0_186] : memref<9x64x64xf32, #tpu.memory_space<vmem>>, vector<1x64x64xf32>
    %203 = vector.shape_cast %202 : vector<1x64x64xf32> to vector<64x64xf32>
    %cst_187 = arith.constant dense<0.000000e+00> : vector<8x64xf32>
    %204 = tpu.matmul %161, %203, %cst_187 {dimension_numbers = #tpu.dot_dimension_numbers<[1], [0], [0], [1], [0, 0, 1, 1], [], []>} : vector<8x64xf32>, vector<64x64xf32>, vector<8x64xf32> -> vector<8x64xf32>
    %c6_188 = arith.constant 6 : index
    %c0_189 = arith.constant 0 : index
    %c0_190 = arith.constant 0 : index
    %205 = vector.load %arg6[%c6_188, %c0_189, %c0_190] : memref<9x16x8xf32, #tpu.memory_space<vmem>>, vector<1x16x8xf32>
    %206 = vector.shape_cast %205 : vector<1x16x8xf32> to vector<16x8xf32>
    %cst_191 = arith.constant dense<0.000000e+00> : vector<16x64xf32>
    %207 = tpu.matmul %206, %204, %cst_191 {dimension_numbers = #tpu.dot_dimension_numbers<[1], [0], [0], [1], [0, 0, 1, 1], [], []>} : vector<16x8xf32>, vector<8x64xf32>, vector<16x64xf32> -> vector<16x64xf32>
    %208 = arith.addf %201, %207 : vector<16x64xf32>
    %c7_192 = arith.constant 7 : index
    %c0_193 = arith.constant 0 : index
    %c0_194 = arith.constant 0 : index
    %209 = vector.load %arg15[%c7_192, %c0_193, %c0_194] : memref<9x64x64xf32, #tpu.memory_space<vmem>>, vector<1x64x64xf32>
    %210 = vector.shape_cast %209 : vector<1x64x64xf32> to vector<64x64xf32>
    %cst_195 = arith.constant dense<0.000000e+00> : vector<8x64xf32>
    %211 = tpu.matmul %161, %210, %cst_195 {dimension_numbers = #tpu.dot_dimension_numbers<[1], [0], [0], [1], [0, 0, 1, 1], [], []>} : vector<8x64xf32>, vector<64x64xf32>, vector<8x64xf32> -> vector<8x64xf32>
    %c7_196 = arith.constant 7 : index
    %c0_197 = arith.constant 0 : index
    %c0_198 = arith.constant 0 : index
    %212 = vector.load %arg6[%c7_196, %c0_197, %c0_198] : memref<9x16x8xf32, #tpu.memory_space<vmem>>, vector<1x16x8xf32>
    %213 = vector.shape_cast %212 : vector<1x16x8xf32> to vector<16x8xf32>
    %cst_199 = arith.constant dense<0.000000e+00> : vector<16x64xf32>
    %214 = tpu.matmul %213, %211, %cst_199 {dimension_numbers = #tpu.dot_dimension_numbers<[1], [0], [0], [1], [0, 0, 1, 1], [], []>} : vector<16x8xf32>, vector<8x64xf32>, vector<16x64xf32> -> vector<16x64xf32>
    %215 = arith.addf %208, %214 : vector<16x64xf32>
    %c8_200 = arith.constant 8 : index
    %c0_201 = arith.constant 0 : index
    %c0_202 = arith.constant 0 : index
    %216 = vector.load %arg15[%c8_200, %c0_201, %c0_202] : memref<9x64x64xf32, #tpu.memory_space<vmem>>, vector<1x64x64xf32>
    %217 = vector.shape_cast %216 : vector<1x64x64xf32> to vector<64x64xf32>
    %cst_203 = arith.constant dense<0.000000e+00> : vector<8x64xf32>
    %218 = tpu.matmul %161, %217, %cst_203 {dimension_numbers = #tpu.dot_dimension_numbers<[1], [0], [0], [1], [0, 0, 1, 1], [], []>} : vector<8x64xf32>, vector<64x64xf32>, vector<8x64xf32> -> vector<8x64xf32>
    %c8_204 = arith.constant 8 : index
    %c0_205 = arith.constant 0 : index
    %c0_206 = arith.constant 0 : index
    %219 = vector.load %arg6[%c8_204, %c0_205, %c0_206] : memref<9x16x8xf32, #tpu.memory_space<vmem>>, vector<1x16x8xf32>
    %220 = vector.shape_cast %219 : vector<1x16x8xf32> to vector<16x8xf32>
    %cst_207 = arith.constant dense<0.000000e+00> : vector<16x64xf32>
    %221 = tpu.matmul %220, %218, %cst_207 {dimension_numbers = #tpu.dot_dimension_numbers<[1], [0], [0], [1], [0, 0, 1, 1], [], []>} : vector<16x8xf32>, vector<8x64xf32>, vector<16x64xf32> -> vector<16x64xf32>
    %222 = arith.addf %215, %221 : vector<16x64xf32>
    %c0_208 = arith.constant 0 : index
    %c0_209 = arith.constant 0 : index
    %223 = vector.load %arg7[%c0_208, %c0_209] : memref<16x1xf32, #tpu.memory_space<vmem>>, vector<16x1xf32>
    %224 = vector.broadcast %223 : vector<16x1xf32> to vector<16x64xf32>
    %225 = arith.addf %222, %224 : vector<16x64xf32>
    %cst_210 = arith.constant 0.000000e+00 : f32
    %226 = vector.broadcast %cst_210 : f32 to vector<16x64xf32>
    %227 = arith.maximumf %225, %226 : vector<16x64xf32>
    %cst_211 = arith.constant 0.000000e+00 : f32
    %228 = vector.broadcast %cst_211 : f32 to vector<8x256xf32>
    %c0_212 = arith.constant 0 : index
    %c0_213 = arith.constant 0 : index
    %c0_214 = arith.constant 0 : index
    %229 = vector.load %arg8[%c0_212, %c0_213, %c0_214] : memref<4x8x16xf32, #tpu.memory_space<vmem>>, vector<1x8x16xf32>
    %230 = vector.shape_cast %229 : vector<1x8x16xf32> to vector<8x16xf32>
    %cst_215 = arith.constant dense<0.000000e+00> : vector<8x64xf32>
    %231 = tpu.matmul %230, %227, %cst_215 {dimension_numbers = #tpu.dot_dimension_numbers<[1], [0], [0], [1], [0, 0, 1, 1], [], []>} : vector<8x16xf32>, vector<16x64xf32>, vector<8x64xf32> -> vector<8x64xf32>
    %c0_216 = arith.constant 0 : index
    %c0_217 = arith.constant 0 : index
    %c0_218 = arith.constant 0 : index
    %232 = vector.load %arg17[%c0_216, %c0_217, %c0_218] : memref<4x64x256xf32, #tpu.memory_space<vmem>>, vector<1x64x256xf32>
    %233 = vector.shape_cast %232 : vector<1x64x256xf32> to vector<64x256xf32>
    %cst_219 = arith.constant dense<0.000000e+00> : vector<8x256xf32>
    %234 = tpu.matmul %231, %233, %cst_219 {dimension_numbers = #tpu.dot_dimension_numbers<[1], [0], [0], [1], [0, 0, 1, 1], [], []>} : vector<8x64xf32>, vector<64x256xf32>, vector<8x256xf32> -> vector<8x256xf32>
    %235 = arith.addf %228, %234 : vector<8x256xf32>
    %c1_220 = arith.constant 1 : index
    %c0_221 = arith.constant 0 : index
    %c0_222 = arith.constant 0 : index
    %236 = vector.load %arg8[%c1_220, %c0_221, %c0_222] : memref<4x8x16xf32, #tpu.memory_space<vmem>>, vector<1x8x16xf32>
    %237 = vector.shape_cast %236 : vector<1x8x16xf32> to vector<8x16xf32>
    %cst_223 = arith.constant dense<0.000000e+00> : vector<8x64xf32>
    %238 = tpu.matmul %237, %227, %cst_223 {dimension_numbers = #tpu.dot_dimension_numbers<[1], [0], [0], [1], [0, 0, 1, 1], [], []>} : vector<8x16xf32>, vector<16x64xf32>, vector<8x64xf32> -> vector<8x64xf32>
    %c1_224 = arith.constant 1 : index
    %c0_225 = arith.constant 0 : index
    %c0_226 = arith.constant 0 : index
    %239 = vector.load %arg17[%c1_224, %c0_225, %c0_226] : memref<4x64x256xf32, #tpu.memory_space<vmem>>, vector<1x64x256xf32>
    %240 = vector.shape_cast %239 : vector<1x64x256xf32> to vector<64x256xf32>
    %cst_227 = arith.constant dense<0.000000e+00> : vector<8x256xf32>
    %241 = tpu.matmul %238, %240, %cst_227 {dimension_numbers = #tpu.dot_dimension_numbers<[1], [0], [0], [1], [0, 0, 1, 1], [], []>} : vector<8x64xf32>, vector<64x256xf32>, vector<8x256xf32> -> vector<8x256xf32>
    %242 = arith.addf %235, %241 : vector<8x256xf32>
    %c2_228 = arith.constant 2 : index
    %c0_229 = arith.constant 0 : index
    %c0_230 = arith.constant 0 : index
    %243 = vector.load %arg8[%c2_228, %c0_229, %c0_230] : memref<4x8x16xf32, #tpu.memory_space<vmem>>, vector<1x8x16xf32>
    %244 = vector.shape_cast %243 : vector<1x8x16xf32> to vector<8x16xf32>
    %cst_231 = arith.constant dense<0.000000e+00> : vector<8x64xf32>
    %245 = tpu.matmul %244, %227, %cst_231 {dimension_numbers = #tpu.dot_dimension_numbers<[1], [0], [0], [1], [0, 0, 1, 1], [], []>} : vector<8x16xf32>, vector<16x64xf32>, vector<8x64xf32> -> vector<8x64xf32>
    %c2_232 = arith.constant 2 : index
    %c0_233 = arith.constant 0 : index
    %c0_234 = arith.constant 0 : index
    %246 = vector.load %arg17[%c2_232, %c0_233, %c0_234] : memref<4x64x256xf32, #tpu.memory_space<vmem>>, vector<1x64x256xf32>
    %247 = vector.shape_cast %246 : vector<1x64x256xf32> to vector<64x256xf32>
    %cst_235 = arith.constant dense<0.000000e+00> : vector<8x256xf32>
    %248 = tpu.matmul %245, %247, %cst_235 {dimension_numbers = #tpu.dot_dimension_numbers<[1], [0], [0], [1], [0, 0, 1, 1], [], []>} : vector<8x64xf32>, vector<64x256xf32>, vector<8x256xf32> -> vector<8x256xf32>
    %249 = arith.addf %242, %248 : vector<8x256xf32>
    %c3_236 = arith.constant 3 : index
    %c0_237 = arith.constant 0 : index
    %c0_238 = arith.constant 0 : index
    %250 = vector.load %arg8[%c3_236, %c0_237, %c0_238] : memref<4x8x16xf32, #tpu.memory_space<vmem>>, vector<1x8x16xf32>
    %251 = vector.shape_cast %250 : vector<1x8x16xf32> to vector<8x16xf32>
    %cst_239 = arith.constant dense<0.000000e+00> : vector<8x64xf32>
    %252 = tpu.matmul %251, %227, %cst_239 {dimension_numbers = #tpu.dot_dimension_numbers<[1], [0], [0], [1], [0, 0, 1, 1], [], []>} : vector<8x16xf32>, vector<16x64xf32>, vector<8x64xf32> -> vector<8x64xf32>
    %c3_240 = arith.constant 3 : index
    %c0_241 = arith.constant 0 : index
    %c0_242 = arith.constant 0 : index
    %253 = vector.load %arg17[%c3_240, %c0_241, %c0_242] : memref<4x64x256xf32, #tpu.memory_space<vmem>>, vector<1x64x256xf32>
    %254 = vector.shape_cast %253 : vector<1x64x256xf32> to vector<64x256xf32>
    %cst_243 = arith.constant dense<0.000000e+00> : vector<8x256xf32>
    %255 = tpu.matmul %252, %254, %cst_243 {dimension_numbers = #tpu.dot_dimension_numbers<[1], [0], [0], [1], [0, 0, 1, 1], [], []>} : vector<8x64xf32>, vector<64x256xf32>, vector<8x256xf32> -> vector<8x256xf32>
    %256 = arith.addf %249, %255 : vector<8x256xf32>
    %c0_244 = arith.constant 0 : index
    %c0_245 = arith.constant 0 : index
    %257 = vector.load %arg9[%c0_244, %c0_245] : memref<8x1xf32, #tpu.memory_space<vmem>>, vector<8x1xf32>
    %258 = vector.broadcast %257 : vector<8x1xf32> to vector<8x256xf32>
    %259 = arith.addf %256, %258 : vector<8x256xf32>
    %260 = tpu.concatenate %259, %151 in 0 : vector<8x256xf32>, vector<8x256xf32> -> vector<16x256xf32>
    %cst_246 = arith.constant 0.000000e+00 : f32
    %261 = vector.broadcast %cst_246 : f32 to vector<8x256xf32>
    %c0_247 = arith.constant 0 : index
    %c0_248 = arith.constant 0 : index
    %c0_249 = arith.constant 0 : index
    %262 = vector.load %arg10[%c0_247, %c0_248, %c0_249] : memref<9x8x16xf32, #tpu.memory_space<vmem>>, vector<1x8x16xf32>
    %263 = vector.shape_cast %262 : vector<1x8x16xf32> to vector<8x16xf32>
    %cst_250 = arith.constant dense<0.000000e+00> : vector<8x256xf32>
    %264 = tpu.matmul %263, %260, %cst_250 {dimension_numbers = #tpu.dot_dimension_numbers<[1], [0], [0], [1], [0, 0, 1, 1], [], []>} : vector<8x16xf32>, vector<16x256xf32>, vector<8x256xf32> -> vector<8x256xf32>
    %c0_251 = arith.constant 0 : index
    %c0_252 = arith.constant 0 : index
    %c0_253 = arith.constant 0 : index
    %265 = vector.load %arg14[%c0_251, %c0_252, %c0_253] : memref<9x256x256xf32, #tpu.memory_space<vmem>>, vector<1x256x256xf32>
    %266 = vector.shape_cast %265 : vector<1x256x256xf32> to vector<256x256xf32>
    %cst_254 = arith.constant dense<0.000000e+00> : vector<8x256xf32>
    %267 = tpu.matmul %264, %266, %cst_254 {dimension_numbers = #tpu.dot_dimension_numbers<[1], [0], [0], [1], [0, 0, 1, 1], [], []>} : vector<8x256xf32>, vector<256x256xf32>, vector<8x256xf32> -> vector<8x256xf32>
    %268 = arith.addf %261, %267 : vector<8x256xf32>
    %c1_255 = arith.constant 1 : index
    %c0_256 = arith.constant 0 : index
    %c0_257 = arith.constant 0 : index
    %269 = vector.load %arg10[%c1_255, %c0_256, %c0_257] : memref<9x8x16xf32, #tpu.memory_space<vmem>>, vector<1x8x16xf32>
    %270 = vector.shape_cast %269 : vector<1x8x16xf32> to vector<8x16xf32>
    %cst_258 = arith.constant dense<0.000000e+00> : vector<8x256xf32>
    %271 = tpu.matmul %270, %260, %cst_258 {dimension_numbers = #tpu.dot_dimension_numbers<[1], [0], [0], [1], [0, 0, 1, 1], [], []>} : vector<8x16xf32>, vector<16x256xf32>, vector<8x256xf32> -> vector<8x256xf32>
    %c1_259 = arith.constant 1 : index
    %c0_260 = arith.constant 0 : index
    %c0_261 = arith.constant 0 : index
    %272 = vector.load %arg14[%c1_259, %c0_260, %c0_261] : memref<9x256x256xf32, #tpu.memory_space<vmem>>, vector<1x256x256xf32>
    %273 = vector.shape_cast %272 : vector<1x256x256xf32> to vector<256x256xf32>
    %cst_262 = arith.constant dense<0.000000e+00> : vector<8x256xf32>
    %274 = tpu.matmul %271, %273, %cst_262 {dimension_numbers = #tpu.dot_dimension_numbers<[1], [0], [0], [1], [0, 0, 1, 1], [], []>} : vector<8x256xf32>, vector<256x256xf32>, vector<8x256xf32> -> vector<8x256xf32>
    %275 = arith.addf %268, %274 : vector<8x256xf32>
    %c2_263 = arith.constant 2 : index
    %c0_264 = arith.constant 0 : index
    %c0_265 = arith.constant 0 : index
    %276 = vector.load %arg10[%c2_263, %c0_264, %c0_265] : memref<9x8x16xf32, #tpu.memory_space<vmem>>, vector<1x8x16xf32>
    %277 = vector.shape_cast %276 : vector<1x8x16xf32> to vector<8x16xf32>
    %cst_266 = arith.constant dense<0.000000e+00> : vector<8x256xf32>
    %278 = tpu.matmul %277, %260, %cst_266 {dimension_numbers = #tpu.dot_dimension_numbers<[1], [0], [0], [1], [0, 0, 1, 1], [], []>} : vector<8x16xf32>, vector<16x256xf32>, vector<8x256xf32> -> vector<8x256xf32>
    %c2_267 = arith.constant 2 : index
    %c0_268 = arith.constant 0 : index
    %c0_269 = arith.constant 0 : index
    %279 = vector.load %arg14[%c2_267, %c0_268, %c0_269] : memref<9x256x256xf32, #tpu.memory_space<vmem>>, vector<1x256x256xf32>
    %280 = vector.shape_cast %279 : vector<1x256x256xf32> to vector<256x256xf32>
    %cst_270 = arith.constant dense<0.000000e+00> : vector<8x256xf32>
    %281 = tpu.matmul %278, %280, %cst_270 {dimension_numbers = #tpu.dot_dimension_numbers<[1], [0], [0], [1], [0, 0, 1, 1], [], []>} : vector<8x256xf32>, vector<256x256xf32>, vector<8x256xf32> -> vector<8x256xf32>
    %282 = arith.addf %275, %281 : vector<8x256xf32>
    %c3_271 = arith.constant 3 : index
    %c0_272 = arith.constant 0 : index
    %c0_273 = arith.constant 0 : index
    %283 = vector.load %arg10[%c3_271, %c0_272, %c0_273] : memref<9x8x16xf32, #tpu.memory_space<vmem>>, vector<1x8x16xf32>
    %284 = vector.shape_cast %283 : vector<1x8x16xf32> to vector<8x16xf32>
    %cst_274 = arith.constant dense<0.000000e+00> : vector<8x256xf32>
    %285 = tpu.matmul %284, %260, %cst_274 {dimension_numbers = #tpu.dot_dimension_numbers<[1], [0], [0], [1], [0, 0, 1, 1], [], []>} : vector<8x16xf32>, vector<16x256xf32>, vector<8x256xf32> -> vector<8x256xf32>
    %c3_275 = arith.constant 3 : index
    %c0_276 = arith.constant 0 : index
    %c0_277 = arith.constant 0 : index
    %286 = vector.load %arg14[%c3_275, %c0_276, %c0_277] : memref<9x256x256xf32, #tpu.memory_space<vmem>>, vector<1x256x256xf32>
    %287 = vector.shape_cast %286 : vector<1x256x256xf32> to vector<256x256xf32>
    %cst_278 = arith.constant dense<0.000000e+00> : vector<8x256xf32>
    %288 = tpu.matmul %285, %287, %cst_278 {dimension_numbers = #tpu.dot_dimension_numbers<[1], [0], [0], [1], [0, 0, 1, 1], [], []>} : vector<8x256xf32>, vector<256x256xf32>, vector<8x256xf32> -> vector<8x256xf32>
    %289 = arith.addf %282, %288 : vector<8x256xf32>
    %c4_279 = arith.constant 4 : index
    %c0_280 = arith.constant 0 : index
    %c0_281 = arith.constant 0 : index
    %290 = vector.load %arg10[%c4_279, %c0_280, %c0_281] : memref<9x8x16xf32, #tpu.memory_space<vmem>>, vector<1x8x16xf32>
    %291 = vector.shape_cast %290 : vector<1x8x16xf32> to vector<8x16xf32>
    %cst_282 = arith.constant dense<0.000000e+00> : vector<8x256xf32>
    %292 = tpu.matmul %291, %260, %cst_282 {dimension_numbers = #tpu.dot_dimension_numbers<[1], [0], [0], [1], [0, 0, 1, 1], [], []>} : vector<8x16xf32>, vector<16x256xf32>, vector<8x256xf32> -> vector<8x256xf32>
    %293 = arith.addf %289, %292 : vector<8x256xf32>
    %c5_283 = arith.constant 5 : index
    %c0_284 = arith.constant 0 : index
    %c0_285 = arith.constant 0 : index
    %294 = vector.load %arg10[%c5_283, %c0_284, %c0_285] : memref<9x8x16xf32, #tpu.memory_space<vmem>>, vector<1x8x16xf32>
    %295 = vector.shape_cast %294 : vector<1x8x16xf32> to vector<8x16xf32>
    %cst_286 = arith.constant dense<0.000000e+00> : vector<8x256xf32>
    %296 = tpu.matmul %295, %260, %cst_286 {dimension_numbers = #tpu.dot_dimension_numbers<[1], [0], [0], [1], [0, 0, 1, 1], [], []>} : vector<8x16xf32>, vector<16x256xf32>, vector<8x256xf32> -> vector<8x256xf32>
    %c5_287 = arith.constant 5 : index
    %c0_288 = arith.constant 0 : index
    %c0_289 = arith.constant 0 : index
    %297 = vector.load %arg14[%c5_287, %c0_288, %c0_289] : memref<9x256x256xf32, #tpu.memory_space<vmem>>, vector<1x256x256xf32>
    %298 = vector.shape_cast %297 : vector<1x256x256xf32> to vector<256x256xf32>
    %cst_290 = arith.constant dense<0.000000e+00> : vector<8x256xf32>
    %299 = tpu.matmul %296, %298, %cst_290 {dimension_numbers = #tpu.dot_dimension_numbers<[1], [0], [0], [1], [0, 0, 1, 1], [], []>} : vector<8x256xf32>, vector<256x256xf32>, vector<8x256xf32> -> vector<8x256xf32>
    %300 = arith.addf %293, %299 : vector<8x256xf32>
    %c6_291 = arith.constant 6 : index
    %c0_292 = arith.constant 0 : index
    %c0_293 = arith.constant 0 : index
    %301 = vector.load %arg10[%c6_291, %c0_292, %c0_293] : memref<9x8x16xf32, #tpu.memory_space<vmem>>, vector<1x8x16xf32>
    %302 = vector.shape_cast %301 : vector<1x8x16xf32> to vector<8x16xf32>
    %cst_294 = arith.constant dense<0.000000e+00> : vector<8x256xf32>
    %303 = tpu.matmul %302, %260, %cst_294 {dimension_numbers = #tpu.dot_dimension_numbers<[1], [0], [0], [1], [0, 0, 1, 1], [], []>} : vector<8x16xf32>, vector<16x256xf32>, vector<8x256xf32> -> vector<8x256xf32>
    %c6_295 = arith.constant 6 : index
    %c0_296 = arith.constant 0 : index
    %c0_297 = arith.constant 0 : index
    %304 = vector.load %arg14[%c6_295, %c0_296, %c0_297] : memref<9x256x256xf32, #tpu.memory_space<vmem>>, vector<1x256x256xf32>
    %305 = vector.shape_cast %304 : vector<1x256x256xf32> to vector<256x256xf32>
    %cst_298 = arith.constant dense<0.000000e+00> : vector<8x256xf32>
    %306 = tpu.matmul %303, %305, %cst_298 {dimension_numbers = #tpu.dot_dimension_numbers<[1], [0], [0], [1], [0, 0, 1, 1], [], []>} : vector<8x256xf32>, vector<256x256xf32>, vector<8x256xf32> -> vector<8x256xf32>
    %307 = arith.addf %300, %306 : vector<8x256xf32>
    %c7_299 = arith.constant 7 : index
    %c0_300 = arith.constant 0 : index
    %c0_301 = arith.constant 0 : index
    %308 = vector.load %arg10[%c7_299, %c0_300, %c0_301] : memref<9x8x16xf32, #tpu.memory_space<vmem>>, vector<1x8x16xf32>
    %309 = vector.shape_cast %308 : vector<1x8x16xf32> to vector<8x16xf32>
    %cst_302 = arith.constant dense<0.000000e+00> : vector<8x256xf32>
    %310 = tpu.matmul %309, %260, %cst_302 {dimension_numbers = #tpu.dot_dimension_numbers<[1], [0], [0], [1], [0, 0, 1, 1], [], []>} : vector<8x16xf32>, vector<16x256xf32>, vector<8x256xf32> -> vector<8x256xf32>
    %c7_303 = arith.constant 7 : index
    %c0_304 = arith.constant 0 : index
    %c0_305 = arith.constant 0 : index
    %311 = vector.load %arg14[%c7_303, %c0_304, %c0_305] : memref<9x256x256xf32, #tpu.memory_space<vmem>>, vector<1x256x256xf32>
    %312 = vector.shape_cast %311 : vector<1x256x256xf32> to vector<256x256xf32>
    %cst_306 = arith.constant dense<0.000000e+00> : vector<8x256xf32>
    %313 = tpu.matmul %310, %312, %cst_306 {dimension_numbers = #tpu.dot_dimension_numbers<[1], [0], [0], [1], [0, 0, 1, 1], [], []>} : vector<8x256xf32>, vector<256x256xf32>, vector<8x256xf32> -> vector<8x256xf32>
    %314 = arith.addf %307, %313 : vector<8x256xf32>
    %c8_307 = arith.constant 8 : index
    %c0_308 = arith.constant 0 : index
    %c0_309 = arith.constant 0 : index
    %315 = vector.load %arg10[%c8_307, %c0_308, %c0_309] : memref<9x8x16xf32, #tpu.memory_space<vmem>>, vector<1x8x16xf32>
    %316 = vector.shape_cast %315 : vector<1x8x16xf32> to vector<8x16xf32>
    %cst_310 = arith.constant dense<0.000000e+00> : vector<8x256xf32>
    %317 = tpu.matmul %316, %260, %cst_310 {dimension_numbers = #tpu.dot_dimension_numbers<[1], [0], [0], [1], [0, 0, 1, 1], [], []>} : vector<8x16xf32>, vector<16x256xf32>, vector<8x256xf32> -> vector<8x256xf32>
    %c8_311 = arith.constant 8 : index
    %c0_312 = arith.constant 0 : index
    %c0_313 = arith.constant 0 : index
    %318 = vector.load %arg14[%c8_311, %c0_312, %c0_313] : memref<9x256x256xf32, #tpu.memory_space<vmem>>, vector<1x256x256xf32>
    %319 = vector.shape_cast %318 : vector<1x256x256xf32> to vector<256x256xf32>
    %cst_314 = arith.constant dense<0.000000e+00> : vector<8x256xf32>
    %320 = tpu.matmul %317, %319, %cst_314 {dimension_numbers = #tpu.dot_dimension_numbers<[1], [0], [0], [1], [0, 0, 1, 1], [], []>} : vector<8x256xf32>, vector<256x256xf32>, vector<8x256xf32> -> vector<8x256xf32>
    %321 = arith.addf %314, %320 : vector<8x256xf32>
    %c0_315 = arith.constant 0 : index
    %c0_316 = arith.constant 0 : index
    %322 = vector.load %arg11[%c0_315, %c0_316] : memref<8x1xf32, #tpu.memory_space<vmem>>, vector<8x1xf32>
    %323 = vector.broadcast %322 : vector<8x1xf32> to vector<8x256xf32>
    %324 = arith.addf %321, %323 : vector<8x256xf32>
    %cst_317 = arith.constant 0.000000e+00 : f32
    %325 = vector.broadcast %cst_317 : f32 to vector<8x256xf32>
    %326 = arith.maximumf %324, %325 : vector<8x256xf32>
    %cst_318 = arith.constant 0.000000e+00 : f32
    %327 = vector.broadcast %cst_318 : f32 to vector<1x256xf32>
    %c0_319 = arith.constant 0 : index
    %c0_320 = arith.constant 0 : index
    %c0_321 = arith.constant 0 : index
    %328 = vector.load %arg12[%c0_319, %c0_320, %c0_321] : memref<9x1x8xf32, #tpu.memory_space<vmem>>, vector<1x1x8xf32>
    %329 = vector.shape_cast %328 : vector<1x1x8xf32> to vector<1x8xf32>
    %cst_322 = arith.constant dense<0.000000e+00> : vector<1x256xf32>
    %330 = tpu.matmul %329, %326, %cst_322 {dimension_numbers = #tpu.dot_dimension_numbers<[1], [0], [0], [1], [0, 0, 1, 1], [], []>} : vector<1x8xf32>, vector<8x256xf32>, vector<1x256xf32> -> vector<1x256xf32>
    %c0_323 = arith.constant 0 : index
    %c0_324 = arith.constant 0 : index
    %c0_325 = arith.constant 0 : index
    %331 = vector.load %arg14[%c0_323, %c0_324, %c0_325] : memref<9x256x256xf32, #tpu.memory_space<vmem>>, vector<1x256x256xf32>
    %332 = vector.shape_cast %331 : vector<1x256x256xf32> to vector<256x256xf32>
    %cst_326 = arith.constant dense<0.000000e+00> : vector<1x256xf32>
    %333 = tpu.matmul %330, %332, %cst_326 {dimension_numbers = #tpu.dot_dimension_numbers<[1], [0], [0], [1], [0, 0, 1, 1], [], []>} : vector<1x256xf32>, vector<256x256xf32>, vector<1x256xf32> -> vector<1x256xf32>
    %334 = arith.addf %327, %333 : vector<1x256xf32>
    %c1_327 = arith.constant 1 : index
    %c0_328 = arith.constant 0 : index
    %c0_329 = arith.constant 0 : index
    %335 = vector.load %arg12[%c1_327, %c0_328, %c0_329] : memref<9x1x8xf32, #tpu.memory_space<vmem>>, vector<1x1x8xf32>
    %336 = vector.shape_cast %335 : vector<1x1x8xf32> to vector<1x8xf32>
    %cst_330 = arith.constant dense<0.000000e+00> : vector<1x256xf32>
    %337 = tpu.matmul %336, %326, %cst_330 {dimension_numbers = #tpu.dot_dimension_numbers<[1], [0], [0], [1], [0, 0, 1, 1], [], []>} : vector<1x8xf32>, vector<8x256xf32>, vector<1x256xf32> -> vector<1x256xf32>
    %c1_331 = arith.constant 1 : index
    %c0_332 = arith.constant 0 : index
    %c0_333 = arith.constant 0 : index
    %338 = vector.load %arg14[%c1_331, %c0_332, %c0_333] : memref<9x256x256xf32, #tpu.memory_space<vmem>>, vector<1x256x256xf32>
    %339 = vector.shape_cast %338 : vector<1x256x256xf32> to vector<256x256xf32>
    %cst_334 = arith.constant dense<0.000000e+00> : vector<1x256xf32>
    %340 = tpu.matmul %337, %339, %cst_334 {dimension_numbers = #tpu.dot_dimension_numbers<[1], [0], [0], [1], [0, 0, 1, 1], [], []>} : vector<1x256xf32>, vector<256x256xf32>, vector<1x256xf32> -> vector<1x256xf32>
    %341 = arith.addf %334, %340 : vector<1x256xf32>
    %c2_335 = arith.constant 2 : index
    %c0_336 = arith.constant 0 : index
    %c0_337 = arith.constant 0 : index
    %342 = vector.load %arg12[%c2_335, %c0_336, %c0_337] : memref<9x1x8xf32, #tpu.memory_space<vmem>>, vector<1x1x8xf32>
    %343 = vector.shape_cast %342 : vector<1x1x8xf32> to vector<1x8xf32>
    %cst_338 = arith.constant dense<0.000000e+00> : vector<1x256xf32>
    %344 = tpu.matmul %343, %326, %cst_338 {dimension_numbers = #tpu.dot_dimension_numbers<[1], [0], [0], [1], [0, 0, 1, 1], [], []>} : vector<1x8xf32>, vector<8x256xf32>, vector<1x256xf32> -> vector<1x256xf32>
    %c2_339 = arith.constant 2 : index
    %c0_340 = arith.constant 0 : index
    %c0_341 = arith.constant 0 : index
    %345 = vector.load %arg14[%c2_339, %c0_340, %c0_341] : memref<9x256x256xf32, #tpu.memory_space<vmem>>, vector<1x256x256xf32>
    %346 = vector.shape_cast %345 : vector<1x256x256xf32> to vector<256x256xf32>
    %cst_342 = arith.constant dense<0.000000e+00> : vector<1x256xf32>
    %347 = tpu.matmul %344, %346, %cst_342 {dimension_numbers = #tpu.dot_dimension_numbers<[1], [0], [0], [1], [0, 0, 1, 1], [], []>} : vector<1x256xf32>, vector<256x256xf32>, vector<1x256xf32> -> vector<1x256xf32>
    %348 = arith.addf %341, %347 : vector<1x256xf32>
    %c3_343 = arith.constant 3 : index
    %c0_344 = arith.constant 0 : index
    %c0_345 = arith.constant 0 : index
    %349 = vector.load %arg12[%c3_343, %c0_344, %c0_345] : memref<9x1x8xf32, #tpu.memory_space<vmem>>, vector<1x1x8xf32>
    %350 = vector.shape_cast %349 : vector<1x1x8xf32> to vector<1x8xf32>
    %cst_346 = arith.constant dense<0.000000e+00> : vector<1x256xf32>
    %351 = tpu.matmul %350, %326, %cst_346 {dimension_numbers = #tpu.dot_dimension_numbers<[1], [0], [0], [1], [0, 0, 1, 1], [], []>} : vector<1x8xf32>, vector<8x256xf32>, vector<1x256xf32> -> vector<1x256xf32>
    %c3_347 = arith.constant 3 : index
    %c0_348 = arith.constant 0 : index
    %c0_349 = arith.constant 0 : index
    %352 = vector.load %arg14[%c3_347, %c0_348, %c0_349] : memref<9x256x256xf32, #tpu.memory_space<vmem>>, vector<1x256x256xf32>
    %353 = vector.shape_cast %352 : vector<1x256x256xf32> to vector<256x256xf32>
    %cst_350 = arith.constant dense<0.000000e+00> : vector<1x256xf32>
    %354 = tpu.matmul %351, %353, %cst_350 {dimension_numbers = #tpu.dot_dimension_numbers<[1], [0], [0], [1], [0, 0, 1, 1], [], []>} : vector<1x256xf32>, vector<256x256xf32>, vector<1x256xf32> -> vector<1x256xf32>
    %355 = arith.addf %348, %354 : vector<1x256xf32>
    %c4_351 = arith.constant 4 : index
    %c0_352 = arith.constant 0 : index
    %c0_353 = arith.constant 0 : index
    %356 = vector.load %arg12[%c4_351, %c0_352, %c0_353] : memref<9x1x8xf32, #tpu.memory_space<vmem>>, vector<1x1x8xf32>
    %357 = vector.shape_cast %356 : vector<1x1x8xf32> to vector<1x8xf32>
    %cst_354 = arith.constant dense<0.000000e+00> : vector<1x256xf32>
    %358 = tpu.matmul %357, %326, %cst_354 {dimension_numbers = #tpu.dot_dimension_numbers<[1], [0], [0], [1], [0, 0, 1, 1], [], []>} : vector<1x8xf32>, vector<8x256xf32>, vector<1x256xf32> -> vector<1x256xf32>
    %359 = arith.addf %355, %358 : vector<1x256xf32>
    %c5_355 = arith.constant 5 : index
    %c0_356 = arith.constant 0 : index
    %c0_357 = arith.constant 0 : index
    %360 = vector.load %arg12[%c5_355, %c0_356, %c0_357] : memref<9x1x8xf32, #tpu.memory_space<vmem>>, vector<1x1x8xf32>
    %361 = vector.shape_cast %360 : vector<1x1x8xf32> to vector<1x8xf32>
    %cst_358 = arith.constant dense<0.000000e+00> : vector<1x256xf32>
    %362 = tpu.matmul %361, %326, %cst_358 {dimension_numbers = #tpu.dot_dimension_numbers<[1], [0], [0], [1], [0, 0, 1, 1], [], []>} : vector<1x8xf32>, vector<8x256xf32>, vector<1x256xf32> -> vector<1x256xf32>
    %c5_359 = arith.constant 5 : index
    %c0_360 = arith.constant 0 : index
    %c0_361 = arith.constant 0 : index
    %363 = vector.load %arg14[%c5_359, %c0_360, %c0_361] : memref<9x256x256xf32, #tpu.memory_space<vmem>>, vector<1x256x256xf32>
    %364 = vector.shape_cast %363 : vector<1x256x256xf32> to vector<256x256xf32>
    %cst_362 = arith.constant dense<0.000000e+00> : vector<1x256xf32>
    %365 = tpu.matmul %362, %364, %cst_362 {dimension_numbers = #tpu.dot_dimension_numbers<[1], [0], [0], [1], [0, 0, 1, 1], [], []>} : vector<1x256xf32>, vector<256x256xf32>, vector<1x256xf32> -> vector<1x256xf32>
    %366 = arith.addf %359, %365 : vector<1x256xf32>
    %c6_363 = arith.constant 6 : index
    %c0_364 = arith.constant 0 : index
    %c0_365 = arith.constant 0 : index
    %367 = vector.load %arg12[%c6_363, %c0_364, %c0_365] : memref<9x1x8xf32, #tpu.memory_space<vmem>>, vector<1x1x8xf32>
    %368 = vector.shape_cast %367 : vector<1x1x8xf32> to vector<1x8xf32>
    %cst_366 = arith.constant dense<0.000000e+00> : vector<1x256xf32>
    %369 = tpu.matmul %368, %326, %cst_366 {dimension_numbers = #tpu.dot_dimension_numbers<[1], [0], [0], [1], [0, 0, 1, 1], [], []>} : vector<1x8xf32>, vector<8x256xf32>, vector<1x256xf32> -> vector<1x256xf32>
    %c6_367 = arith.constant 6 : index
    %c0_368 = arith.constant 0 : index
    %c0_369 = arith.constant 0 : index
    %370 = vector.load %arg14[%c6_367, %c0_368, %c0_369] : memref<9x256x256xf32, #tpu.memory_space<vmem>>, vector<1x256x256xf32>
    %371 = vector.shape_cast %370 : vector<1x256x256xf32> to vector<256x256xf32>
    %cst_370 = arith.constant dense<0.000000e+00> : vector<1x256xf32>
    %372 = tpu.matmul %369, %371, %cst_370 {dimension_numbers = #tpu.dot_dimension_numbers<[1], [0], [0], [1], [0, 0, 1, 1], [], []>} : vector<1x256xf32>, vector<256x256xf32>, vector<1x256xf32> -> vector<1x256xf32>
    %373 = arith.addf %366, %372 : vector<1x256xf32>
    %c7_371 = arith.constant 7 : index
    %c0_372 = arith.constant 0 : index
    %c0_373 = arith.constant 0 : index
    %374 = vector.load %arg12[%c7_371, %c0_372, %c0_373] : memref<9x1x8xf32, #tpu.memory_space<vmem>>, vector<1x1x8xf32>
    %375 = vector.shape_cast %374 : vector<1x1x8xf32> to vector<1x8xf32>
    %cst_374 = arith.constant dense<0.000000e+00> : vector<1x256xf32>
    %376 = tpu.matmul %375, %326, %cst_374 {dimension_numbers = #tpu.dot_dimension_numbers<[1], [0], [0], [1], [0, 0, 1, 1], [], []>} : vector<1x8xf32>, vector<8x256xf32>, vector<1x256xf32> -> vector<1x256xf32>
    %c7_375 = arith.constant 7 : index
    %c0_376 = arith.constant 0 : index
    %c0_377 = arith.constant 0 : index
    %377 = vector.load %arg14[%c7_375, %c0_376, %c0_377] : memref<9x256x256xf32, #tpu.memory_space<vmem>>, vector<1x256x256xf32>
    %378 = vector.shape_cast %377 : vector<1x256x256xf32> to vector<256x256xf32>
    %cst_378 = arith.constant dense<0.000000e+00> : vector<1x256xf32>
    %379 = tpu.matmul %376, %378, %cst_378 {dimension_numbers = #tpu.dot_dimension_numbers<[1], [0], [0], [1], [0, 0, 1, 1], [], []>} : vector<1x256xf32>, vector<256x256xf32>, vector<1x256xf32> -> vector<1x256xf32>
    %380 = arith.addf %373, %379 : vector<1x256xf32>
    %c8_379 = arith.constant 8 : index
    %c0_380 = arith.constant 0 : index
    %c0_381 = arith.constant 0 : index
    %381 = vector.load %arg12[%c8_379, %c0_380, %c0_381] : memref<9x1x8xf32, #tpu.memory_space<vmem>>, vector<1x1x8xf32>
    %382 = vector.shape_cast %381 : vector<1x1x8xf32> to vector<1x8xf32>
    %cst_382 = arith.constant dense<0.000000e+00> : vector<1x256xf32>
    %383 = tpu.matmul %382, %326, %cst_382 {dimension_numbers = #tpu.dot_dimension_numbers<[1], [0], [0], [1], [0, 0, 1, 1], [], []>} : vector<1x8xf32>, vector<8x256xf32>, vector<1x256xf32> -> vector<1x256xf32>
    %c8_383 = arith.constant 8 : index
    %c0_384 = arith.constant 0 : index
    %c0_385 = arith.constant 0 : index
    %384 = vector.load %arg14[%c8_383, %c0_384, %c0_385] : memref<9x256x256xf32, #tpu.memory_space<vmem>>, vector<1x256x256xf32>
    %385 = vector.shape_cast %384 : vector<1x256x256xf32> to vector<256x256xf32>
    %cst_386 = arith.constant dense<0.000000e+00> : vector<1x256xf32>
    %386 = tpu.matmul %383, %385, %cst_386 {dimension_numbers = #tpu.dot_dimension_numbers<[1], [0], [0], [1], [0, 0, 1, 1], [], []>} : vector<1x256xf32>, vector<256x256xf32>, vector<1x256xf32> -> vector<1x256xf32>
    %387 = arith.addf %380, %386 : vector<1x256xf32>
    %c0_387 = arith.constant 0 : index
    %c0_388 = arith.constant 0 : index
    %388 = vector.load %arg13[%c0_387, %c0_388] : memref<1x1xf32, #tpu.memory_space<vmem>>, vector<1x1xf32>
    %389 = vector.broadcast %388 : vector<1x1xf32> to vector<1x256xf32>
    %390 = arith.addf %387, %389 : vector<1x256xf32>
    %391 = arith.addf %390, %1 : vector<1x256xf32>
    %c0_389 = arith.constant 0 : index
    %c0_390 = arith.constant 0 : index
    %c0_391 = arith.constant 0 : index
    %392 = vector.load %arg18[%c0_389, %c0_390, %c0_391] : memref<1x1x256xf32, #tpu.memory_space<vmem>>, vector<1x1x256xf32>
    %393 = vector.shape_cast %392 : vector<1x1x256xf32> to vector<1x256xf32>
    %394 = vector.shape_cast %391 : vector<1x256xf32> to vector<1x1x256xf32>
    tpu.vector_store %arg18[%c0_389, %c0_390, %c0_391], %394 {strides = array<i32>} : memref<1x1x256xf32, #tpu.memory_space<vmem>>, vector<1x1x256xf32>,
    return
  }
  func.func @transform_0(%arg0: i32) -> (i32, i32, i32) {
    %c0_i32 = arith.constant 0 : i32
    %c0_i32_0 = arith.constant 0 : i32
    %c0_i32_1 = arith.constant 0 : i32
    return %arg0, %c0_i32, %c0_i32_0 : i32, i32, i32
  }
  func.func @transform_1(%arg0: i32) -> (i32, i32, i32) {
    %c0_i32 = arith.constant 0 : i32
    %c0_i32_0 = arith.constant 0 : i32
    %c0_i32_1 = arith.constant 0 : i32
    %c0_i32_2 = arith.constant 0 : i32
    return %c0_i32, %c0_i32_0, %c0_i32_1 : i32, i32, i32
  }
  func.func @transform_2(%arg0: i32) -> (i32, i32) {
    %c0_i32 = arith.constant 0 : i32
    %c0_i32_0 = arith.constant 0 : i32
    %c0_i32_1 = arith.constant 0 : i32
    return %c0_i32, %c0_i32_0 : i32, i32
  }
  func.func @transform_3(%arg0: i32) -> (i32, i32, i32) {
    %c0_i32 = arith.constant 0 : i32
    %c0_i32_0 = arith.constant 0 : i32
    %c0_i32_1 = arith.constant 0 : i32
    %c0_i32_2 = arith.constant 0 : i32
    return %c0_i32, %c0_i32_0, %c0_i32_1 : i32, i32, i32
  }
  func.func @transform_4(%arg0: i32) -> (i32, i32) {
    %c0_i32 = arith.constant 0 : i32
    %c0_i32_0 = arith.constant 0 : i32
    %c0_i32_1 = arith.constant 0 : i32
    return %c0_i32, %c0_i32_0 : i32, i32
  }
  func.func @transform_5(%arg0: i32) -> (i32, i32, i32) {
    %c0_i32 = arith.constant 0 : i32
    %c0_i32_0 = arith.constant 0 : i32
    %c0_i32_1 = arith.constant 0 : i32
    %c0_i32_2 = arith.constant 0 : i32
    return %c0_i32, %c0_i32_0, %c0_i32_1 : i32, i32, i32
  }
  func.func @transform_6(%arg0: i32) -> (i32, i32) {
    %c0_i32 = arith.constant 0 : i32
    %c0_i32_0 = arith.constant 0 : i32
    %c0_i32_1 = arith.constant 0 : i32
    return %c0_i32, %c0_i32_0 : i32, i32
  }
  func.func @transform_7(%arg0: i32) -> (i32, i32, i32) {
    %c0_i32 = arith.constant 0 : i32
    %c0_i32_0 = arith.constant 0 : i32
    %c0_i32_1 = arith.constant 0 : i32
    %c0_i32_2 = arith.constant 0 : i32
    return %c0_i32, %c0_i32_0, %c0_i32_1 : i32, i32, i32
  }
  func.func @transform_8(%arg0: i32) -> (i32, i32) {
    %c0_i32 = arith.constant 0 : i32
    %c0_i32_0 = arith.constant 0 : i32
    %c0_i32_1 = arith.constant 0 : i32
    return %c0_i32, %c0_i32_0 : i32, i32
  }
  func.func @transform_9(%arg0: i32) -> (i32, i32, i32) {
    %c0_i32 = arith.constant 0 : i32
    %c0_i32_0 = arith.constant 0 : i32
    %c0_i32_1 = arith.constant 0 : i32
    %c0_i32_2 = arith.constant 0 : i32
    return %c0_i32, %c0_i32_0, %c0_i32_1 : i32, i32, i32
  }
  func.func @transform_10(%arg0: i32) -> (i32, i32) {
    %c0_i32 = arith.constant 0 : i32
    %c0_i32_0 = arith.constant 0 : i32
    %c0_i32_1 = arith.constant 0 : i32
    return %c0_i32, %c0_i32_0 : i32, i32
  }
  func.func @transform_11(%arg0: i32) -> (i32, i32, i32) {
    %c0_i32 = arith.constant 0 : i32
    %c0_i32_0 = arith.constant 0 : i32
    %c0_i32_1 = arith.constant 0 : i32
    %c0_i32_2 = arith.constant 0 : i32
    return %c0_i32, %c0_i32_0, %c0_i32_1 : i32, i32, i32
  }
  func.func @transform_12(%arg0: i32) -> (i32, i32) {
    %c0_i32 = arith.constant 0 : i32
    %c0_i32_0 = arith.constant 0 : i32
    %c0_i32_1 = arith.constant 0 : i32
    return %c0_i32, %c0_i32_0 : i32, i32
  }
  func.func @transform_13(%arg0: i32) -> (i32, i32, i32) {
    %c0_i32 = arith.constant 0 : i32
    %c0_i32_0 = arith.constant 0 : i32
    %c0_i32_1 = arith.constant 0 : i32
    %c0_i32_2 = arith.constant 0 : i32
    return %c0_i32, %c0_i32_0, %c0_i32_1 : i32, i32, i32
  }
  func.func @transform_14(%arg0: i32) -> (i32, i32, i32) {
    %c0_i32 = arith.constant 0 : i32
    %c0_i32_0 = arith.constant 0 : i32
    %c0_i32_1 = arith.constant 0 : i32
    %c0_i32_2 = arith.constant 0 : i32
    return %c0_i32, %c0_i32_0, %c0_i32_1 : i32, i32, i32
  }
  func.func @transform_15(%arg0: i32) -> (i32, i32) {
    %c0_i32 = arith.constant 0 : i32
    %c0_i32_0 = arith.constant 0 : i32
    %c0_i32_1 = arith.constant 0 : i32
    return %c0_i32, %c0_i32_0 : i32, i32
  }
  func.func @transform_16(%arg0: i32) -> (i32, i32, i32) {
    %c0_i32 = arith.constant 0 : i32
    %c0_i32_0 = arith.constant 0 : i32
    %c0_i32_1 = arith.constant 0 : i32
    %c0_i32_2 = arith.constant 0 : i32
    return %c0_i32, %c0_i32_0, %c0_i32_1 : i32, i32, i32
  }
  func.func @transform_17(%arg0: i32) -> (i32, i32, i32) {
    %c0_i32 = arith.constant 0 : i32
    %c0_i32_0 = arith.constant 0 : i32
    %c0_i32_1 = arith.constant 0 : i32
    return %arg0, %c0_i32, %c0_i32_0 : i32, i32, i32
  }
}

</mosaic_0001>

<llo_original>
// kernel: unet_forward.1
$region0: #{unet_forward.1}
  #allocation0 [shape = 'u32[]', space=smem, size = 0x4, offset = 0x4, fixed_abs, tag = 'smem constant byte address 0x4 - core index']
  #allocation1 [shape = 'u32[144,128]{1,0:T(1,128)}', space=vmem, size = 0x12000, scoped, tag = 'internal scratch']
  #allocation2 [shape = 'f32[1,1]{1,0:T(1,128)S(1)}', space=vmem, size = 0x200, scoped, tag = 'scoped memory for unet_forward.1']
  %s0 = inlined_call_operand.vmem [shape: f32[2,1,256], index: 0, kind: input, shape index: {}]
  %s1 = inlined_call_operand.vmem [shape: f32[9,8,1], index: 1, kind: input, shape index: {}]
  %s2 = inlined_call_operand.vmem [shape: f32[8,1], index: 2, kind: input, shape index: {}]
  %s3 = inlined_call_operand.vmem [shape: f32[9,8,8], index: 3, kind: input, shape index: {}]
  %s4 = inlined_call_operand.vmem [shape: f32[8,1], index: 4, kind: input, shape index: {}]
  %s5 = inlined_call_operand.vmem [shape: f32[9,16,8], index: 5, kind: input, shape index: {}]
  %s6 = inlined_call_operand.vmem [shape: f32[16,1], index: 6, kind: input, shape index: {}]
  %s7 = inlined_call_operand.vmem [shape: f32[4,8,16], index: 7, kind: input, shape index: {}]
  %s8 = inlined_call_operand.vmem [shape: f32[8,1], index: 8, kind: input, shape index: {}]
  %s9 = inlined_call_operand.vmem [shape: f32[9,8,16], index: 9, kind: input, shape index: {}]
  %s10 = inlined_call_operand.vmem [shape: f32[8,1], index: 10, kind: input, shape index: {}]
  %s11 = inlined_call_operand.vmem [shape: f32[9,1,8], index: 11, kind: input, shape index: {}]
  %s12 = inlined_call_operand.<no memory space> [shape: f32[1,1], index: 12, kind: input, shape index: {}]
  %s13 = inlined_call_operand.vmem [shape: f32[9,256,256], index: 13, kind: input, shape index: {}]
  %s14 = inlined_call_operand.vmem [shape: f32[9,64,64], index: 14, kind: input, shape index: {}]
  %s15 = inlined_call_operand.vmem [shape: f32[256,64], index: 15, kind: input, shape index: {}]
  %s16 = inlined_call_operand.vmem [shape: f32[4,64,256], index: 16, kind: input, shape index: {}]
  %s17 = inlined_call_operand.vmem [shape: f32[2,1,256], index: 17, kind: output, shape index: {}]
  %s18 = sld [smem:[#allocation0]]
  $region101: #{unet_forward.1} parent=0
    _
  %s20 = ssub.s32 1, %s18
  %s21 = scalar_select 0, %s20, %s18
  %v22 = vstv %s12
  %23 = vst [vmem:[#allocation2] sm:$0x1] %v22
  loop: start=0, step=1, limit=4
  $region2: #{unet_forward.1} parent=0 // loop_pre_header
    _
  $region3: #{unet_forward.1} parent=0 // loop_header
    %s25 = sphi 0, %s29
    %p26 = scmp.ge.s32.totalorder %s25, 4
    %s35 = sphi 0, %s37
    %s38 = sphi 0, %s35
    %s39 = sphi 0, %s38
    %s55 = sphi 0, %s39
    %s59 = sphi 0, %s59
    %s61 = sphi 0, %s59
    %s62 = sphi 0, %s61
    %s76 = sphi 0, %s62
    %s80 = sphi 0, %s80
    %s82 = sphi 0, %s80
    %s83 = sphi 0, %s82
    %s97 = sphi 0, %s83
    %s101 = sphi 0, %s101
    %s103 = sphi 0, %s101
    %s104 = sphi 0, %s103
    %s118 = sphi 0, %s104
    %s122 = sphi 0, %s122
    %s124 = sphi 0, %s122
    %s125 = sphi 0, %s124
    %s139 = sphi 0, %s125
    %s143 = sphi 0, %s143
    %s145 = sphi 0, %s143
    %s146 = sphi 0, %s145
    %s160 = sphi 0, %s146
    %s164 = sphi 0, %s164
    %s166 = sphi 0, %s164
    %s167 = sphi 0, %s166
    %s181 = sphi 0, %s167
    %s185 = sphi 0, %s185
    %s187 = sphi 0, %s185
    %s188 = sphi 0, %s187
    %s202 = sphi 0, %s188
    %s206 = sphi 0, %s206
    %s208 = sphi 0, %s206
    %s209 = sphi 0, %s208
    %s223 = sphi 0, %s209
    %s227 = sphi 0, %s227
    %s229 = sphi 0, %s227
    %s230 = sphi 0, %s229
    %s244 = sphi 0, %s230
    %s248 = sphi 0, %s248
    %s250 = sphi 0, %s248
    %s251 = sphi 0, %s250
    %s265 = sphi 0, %s251
    %s269 = sphi 0, %s269
    %s271 = sphi 0, %s269
    %s272 = sphi 0, %s271
    %s286 = sphi 0, %s272
    %s290 = sphi 0, %s290
    %s292 = sphi 0, %s290
    %s293 = sphi 0, %s292
    %s307 = sphi 0, %s293
    %s311 = sphi 0, %s311
    %s313 = sphi 0, %s311
    %s314 = sphi 0, %s313
    %s328 = sphi 0, %s314
    %s332 = sphi 0, %s332
    %s334 = sphi 0, %s332
    %s335 = sphi 0, %s334
    %s349 = sphi 0, %s335
    %s353 = sphi 0, %s353
    %s355 = sphi 0, %s353
    %s356 = sphi 0, %s355
    %s370 = sphi 0, %s356
    %s374 = sphi 0, %s374
    %s376 = sphi 0, %s374
    %s377 = sphi 0, %s376
    %s391 = sphi 0, %s377
    %s397 = sphi 0, %s399
    %s400 = sphi 0, %s397
    %s401 = sphi 0, %s400
    %s417 = sphi 0, %s401
  $region4: #{unet_forward.1} parent=0 // loop_header_branch
    %28 = sbr.rel (%p26) target = $region8
  $region5: #{unet_forward.1} parent=0 // loop_body
    %s30 = ssub.s32 %s25, 1
    %s31 = ssub.s32 %s25, 2
    %s32 = sadd.s32 %s25, 1
    %s33 = ssub.s32 %s25, %s32
    %p34 = scmp.eq.s32.totalorder %s33, 0
    %s36 = sadd.s32 %s35, 1
    %s37 = scalar_select %p34, %s35, %s36
    %p40 = pneg %p34
    %p41 = scmp.eq.s32.totalorder %s25, 1
    %p42 = por %p40, %p41
    %p43 = scmp.ne.s32.totalorder %s35, %s38
    %p44 = scmp.eq.s32.totalorder %s25, 0
    %p45 = por %p43, %p44
    %p46 = scmp.ne.s32.totalorder %s35, %s38
    %p47 = scmp.eq.s32.totalorder %s30, 1
    %p48 = por %p46, %p47
    %p49 = scmp.ne.s32.totalorder %s38, %s39
    %p50 = scmp.eq.s32.totalorder %s30, 0
    %p51 = por %p49, %p50
    %p52 = scmp.ne.s32.totalorder %s38, %s39
    %p53 = scmp.eq.s32.totalorder %s31, 1
    %p54 = por %p52, %p53
    %p56 = scmp.ne.s32.totalorder %s39, %s55
    %p57 = scmp.eq.s32.totalorder %s31, 0
    %p58 = por %p56, %p57
    %s60 = sadd.s32 %s59, 1
    %p63 = scmp.eq.s32.totalorder %s25, 1
    %p64 = scmp.ne.s32.totalorder %s59, %s61
    %p65 = scmp.eq.s32.totalorder %s25, 0
    %p66 = por %p64, %p65
    %p67 = scmp.ne.s32.totalorder %s59, %s61
    %p68 = scmp.eq.s32.totalorder %s30, 1
    %p69 = por %p67, %p68
    %p70 = scmp.ne.s32.totalorder %s61, %s62
    %p71 = scmp.eq.s32.totalorder %s30, 0
    %p72 = por %p70, %p71
    %p73 = scmp.ne.s32.totalorder %s61, %s62
    %p74 = scmp.eq.s32.totalorder %s31, 1
    %p75 = por %p73, %p74
    %p77 = scmp.ne.s32.totalorder %s62, %s76
    %p78 = scmp.eq.s32.totalorder %s31, 0
    %p79 = por %p77, %p78
    %s81 = sadd.s32 %s80, 1
    %p84 = scmp.eq.s32.totalorder %s25, 1
    %p85 = scmp.ne.s32.totalorder %s80, %s82
    %p86 = scmp.eq.s32.totalorder %s25, 0
    %p87 = por %p85, %p86
    %p88 = scmp.ne.s32.totalorder %s80, %s82
    %p89 = scmp.eq.s32.totalorder %s30, 1
    %p90 = por %p88, %p89
    %p91 = scmp.ne.s32.totalorder %s82, %s83
    %p92 = scmp.eq.s32.totalorder %s30, 0
    %p93 = por %p91, %p92
    %p94 = scmp.ne.s32.totalorder %s82, %s83
    %p95 = scmp.eq.s32.totalorder %s31, 1
    %p96 = por %p94, %p95
    %p98 = scmp.ne.s32.totalorder %s83, %s97
    %p99 = scmp.eq.s32.totalorder %s31, 0
    %p100 = por %p98, %p99
    %s102 = sadd.s32 %s101, 1
    %p105 = scmp.eq.s32.totalorder %s25, 1
    %p106 = scmp.ne.s32.totalorder %s101, %s103
    %p107 = scmp.eq.s32.totalorder %s25, 0
    %p108 = por %p106, %p107
    %p109 = scmp.ne.s32.totalorder %s101, %s103
    %p110 = scmp.eq.s32.totalorder %s30, 1
    %p111 = por %p109, %p110
    %p112 = scmp.ne.s32.totalorder %s103, %s104
    %p113 = scmp.eq.s32.totalorder %s30, 0
    %p114 = por %p112, %p113
    %p115 = scmp.ne.s32.totalorder %s103, %s104
    %p116 = scmp.eq.s32.totalorder %s31, 1
    %p117 = por %p115, %p116
    %p119 = scmp.ne.s32.totalorder %s104, %s118
    %p120 = scmp.eq.s32.totalorder %s31, 0
    %p121 = por %p119, %p120
    %s123 = sadd.s32 %s122, 1
    %p126 = scmp.eq.s32.totalorder %s25, 1
    %p127 = scmp.ne.s32.totalorder %s122, %s124
    %p128 = scmp.eq.s32.totalorder %s25, 0
    %p129 = por %p127, %p128
    %p130 = scmp.ne.s32.totalorder %s122, %s124
    %p131 = scmp.eq.s32.totalorder %s30, 1
    %p132 = por %p130, %p131
    %p133 = scmp.ne.s32.totalorder %s124, %s125
    %p134 = scmp.eq.s32.totalorder %s30, 0
    %p135 = por %p133, %p134
    %p136 = scmp.ne.s32.totalorder %s124, %s125
    %p137 = scmp.eq.s32.totalorder %s31, 1
    %p138 = por %p136, %p137
    %p140 = scmp.ne.s32.totalorder %s125, %s139
    %p141 = scmp.eq.s32.totalorder %s31, 0
    %p142 = por %p140, %p141
    %s144 = sadd.s32 %s143, 1
    %p147 = scmp.eq.s32.totalorder %s25, 1
    %p148 = scmp.ne.s32.totalorder %s143, %s145
    %p149 = scmp.eq.s32.totalorder %s25, 0
    %p150 = por %p148, %p149
    %p151 = scmp.ne.s32.totalorder %s143, %s145
    %p152 = scmp.eq.s32.totalorder %s30, 1
    %p153 = por %p151, %p152
    %p154 = scmp.ne.s32.totalorder %s145, %s146
    %p155 = scmp.eq.s32.totalorder %s30, 0
    %p156 = por %p154, %p155
    %p157 = scmp.ne.s32.totalorder %s145, %s146
    %p158 = scmp.eq.s32.totalorder %s31, 1
    %p159 = por %p157, %p158
    %p161 = scmp.ne.s32.totalorder %s146, %s160
    %p162 = scmp.eq.s32.totalorder %s31, 0
    %p163 = por %p161, %p162
    %s165 = sadd.s32 %s164, 1
    %p168 = scmp.eq.s32.totalorder %s25, 1
    %p169 = scmp.ne.s32.totalorder %s164, %s166
    %p170 = scmp.eq.s32.totalorder %s25, 0
    %p171 = por %p169, %p170
    %p172 = scmp.ne.s32.totalorder %s164, %s166
    %p173 = scmp.eq.s32.totalorder %s30, 1
    %p174 = por %p172, %p173
    %p175 = scmp.ne.s32.totalorder %s166, %s167
    %p176 = scmp.eq.s32.totalorder %s30, 0
    %p177 = por %p175, %p176
    %p178 = scmp.ne.s32.totalorder %s166, %s167
    %p179 = scmp.eq.s32.totalorder %s31, 1
    %p180 = por %p178, %p179
    %p182 = scmp.ne.s32.totalorder %s167, %s181
    %p183 = scmp.eq.s32.totalorder %s31, 0
    %p184 = por %p182, %p183
    %s186 = sadd.s32 %s185, 1
    %p189 = scmp.eq.s32.totalorder %s25, 1
    %p190 = scmp.ne.s32.totalorder %s185, %s187
    %p191 = scmp.eq.s32.totalorder %s25, 0
    %p192 = por %p190, %p191
    %p193 = scmp.ne.s32.totalorder %s185, %s187
    %p194 = scmp.eq.s32.totalorder %s30, 1
    %p195 = por %p193, %p194
    %p196 = scmp.ne.s32.totalorder %s187, %s188
    %p197 = scmp.eq.s32.totalorder %s30, 0
    %p198 = por %p196, %p197
    %p199 = scmp.ne.s32.totalorder %s187, %s188
    %p200 = scmp.eq.s32.totalorder %s31, 1
    %p201 = por %p199, %p200
    %p203 = scmp.ne.s32.totalorder %s188, %s202
    %p204 = scmp.eq.s32.totalorder %s31, 0
    %p205 = por %p203, %p204
    %s207 = sadd.s32 %s206, 1
    %p210 = scmp.eq.s32.totalorder %s25, 1
    %p211 = scmp.ne.s32.totalorder %s206, %s208
    %p212 = scmp.eq.s32.totalorder %s25, 0
    %p213 = por %p211, %p212
    %p214 = scmp.ne.s32.totalorder %s206, %s208
    %p215 = scmp.eq.s32.totalorder %s30, 1
    %p216 = por %p214, %p215
    %p217 = scmp.ne.s32.totalorder %s208, %s209
    %p218 = scmp.eq.s32.totalorder %s30, 0
    %p219 = por %p217, %p218
    %p220 = scmp.ne.s32.totalorder %s208, %s209
    %p221 = scmp.eq.s32.totalorder %s31, 1
    %p222 = por %p220, %p221
    %p224 = scmp.ne.s32.totalorder %s209, %s223
    %p225 = scmp.eq.s32.totalorder %s31, 0
    %p226 = por %p224, %p225
    %s228 = sadd.s32 %s227, 1
    %p231 = scmp.eq.s32.totalorder %s25, 1
    %p232 = scmp.ne.s32.totalorder %s227, %s229
    %p233 = scmp.eq.s32.totalorder %s25, 0
    %p234 = por %p232, %p233
    %p235 = scmp.ne.s32.totalorder %s227, %s229
    %p236 = scmp.eq.s32.totalorder %s30, 1
    %p237 = por %p235, %p236
    %p238 = scmp.ne.s32.totalorder %s229, %s230
    %p239 = scmp.eq.s32.totalorder %s30, 0
    %p240 = por %p238, %p239
    %p241 = scmp.ne.s32.totalorder %s229, %s230
    %p242 = scmp.eq.s32.totalorder %s31, 1
    %p243 = por %p241, %p242
    %p245 = scmp.ne.s32.totalorder %s230, %s244
    %p246 = scmp.eq.s32.totalorder %s31, 0
    %p247 = por %p245, %p246
    %s249 = sadd.s32 %s248, 1
    %p252 = scmp.eq.s32.totalorder %s25, 1
    %p253 = scmp.ne.s32.totalorder %s248, %s250
    %p254 = scmp.eq.s32.totalorder %s25, 0
    %p255 = por %p253, %p254
    %p256 = scmp.ne.s32.totalorder %s248, %s250
    %p257 = scmp.eq.s32.totalorder %s30, 1
    %p258 = por %p256, %p257
    %p259 = scmp.ne.s32.totalorder %s250, %s251
    %p260 = scmp.eq.s32.totalorder %s30, 0
    %p261 = por %p259, %p260
    %p262 = scmp.ne.s32.totalorder %s250, %s251
    %p263 = scmp.eq.s32.totalorder %s31, 1
    %p264 = por %p262, %p263
    %p266 = scmp.ne.s32.totalorder %s251, %s265
    %p267 = scmp.eq.s32.totalorder %s31, 0
    %p268 = por %p266, %p267
    %s270 = sadd.s32 %s269, 1
    %p273 = scmp.eq.s32.totalorder %s25, 1
    %p274 = scmp.ne.s32.totalorder %s269, %s271
    %p275 = scmp.eq.s32.totalorder %s25, 0
    %p276 = por %p274, %p275
    %p277 = scmp.ne.s32.totalorder %s269, %s271
    %p278 = scmp.eq.s32.totalorder %s30, 1
    %p279 = por %p277, %p278
    %p280 = scmp.ne.s32.totalorder %s271, %s272
    %p281 = scmp.eq.s32.totalorder %s30, 0
    %p282 = por %p280, %p281
    %p283 = scmp.ne.s32.totalorder %s271, %s272
    %p284 = scmp.eq.s32.totalorder %s31, 1
    %p285 = por %p283, %p284
    %p287 = scmp.ne.s32.totalorder %s272, %s286
    %p288 = scmp.eq.s32.totalorder %s31, 0
    %p289 = por %p287, %p288
    %s291 = sadd.s32 %s290, 1
    %p294 = scmp.eq.s32.totalorder %s25, 1
    %p295 = scmp.ne.s32.totalorder %s290, %s292
    %p296 = scmp.eq.s32.totalorder %s25, 0
    %p297 = por %p295, %p296
    %p298 = scmp.ne.s32.totalorder %s290, %s292
    %p299 = scmp.eq.s32.totalorder %s30, 1
    %p300 = por %p298, %p299
    %p301 = scmp.ne.s32.totalorder %s292, %s293
    %p302 = scmp.eq.s32.totalorder %s30, 0
    %p303 = por %p301, %p302
    %p304 = scmp.ne.s32.totalorder %s292, %s293
    %p305 = scmp.eq.s32.totalorder %s31, 1
    %p306 = por %p304, %p305
    %p308 = scmp.ne.s32.totalorder %s293, %s307
    %p309 = scmp.eq.s32.totalorder %s31, 0
    %p310 = por %p308, %p309
    %s312 = sadd.s32 %s311, 1
    %p315 = scmp.eq.s32.totalorder %s25, 1
    %p316 = scmp.ne.s32.totalorder %s311, %s313
    %p317 = scmp.eq.s32.totalorder %s25, 0
    %p318 = por %p316, %p317
    %p319 = scmp.ne.s32.totalorder %s311, %s313
    %p320 = scmp.eq.s32.totalorder %s30, 1
    %p321 = por %p319, %p320
    %p322 = scmp.ne.s32.totalorder %s313, %s314
    %p323 = scmp.eq.s32.totalorder %s30, 0
    %p324 = por %p322, %p323
    %p325 = scmp.ne.s32.totalorder %s313, %s314
    %p326 = scmp.eq.s32.totalorder %s31, 1
    %p327 = por %p325, %p326
    %p329 = scmp.ne.s32.totalorder %s314, %s328
    %p330 = scmp.eq.s32.totalorder %s31, 0
    %p331 = por %p329, %p330
    %s333 = sadd.s32 %s332, 1
    %p336 = scmp.eq.s32.totalorder %s25, 1
    %p337 = scmp.ne.s32.totalorder %s332, %s334
    %p338 = scmp.eq.s32.totalorder %s25, 0
    %p339 = por %p337, %p338
    %p340 = scmp.ne.s32.totalorder %s332, %s334
    %p341 = scmp.eq.s32.totalorder %s30, 1
    %p342 = por %p340, %p341
    %p343 = scmp.ne.s32.totalorder %s334, %s335
    %p344 = scmp.eq.s32.totalorder %s30, 0
    %p345 = por %p343, %p344
    %p346 = scmp.ne.s32.totalorder %s334, %s335
    %p347 = scmp.eq.s32.totalorder %s31, 1
    %p348 = por %p346, %p347
    %p350 = scmp.ne.s32.totalorder %s335, %s349
    %p351 = scmp.eq.s32.totalorder %s31, 0
    %p352 = por %p350, %p351
    %s354 = sadd.s32 %s353, 1
    %p357 = scmp.eq.s32.totalorder %s25, 1
    %p358 = scmp.ne.s32.totalorder %s353, %s355
    %p359 = scmp.eq.s32.totalorder %s25, 0
    %p360 = por %p358, %p359
    %p361 = scmp.ne.s32.totalorder %s353, %s355
    %p362 = scmp.eq.s32.totalorder %s30, 1
    %p363 = por %p361, %p362
    %p364 = scmp.ne.s32.totalorder %s355, %s356
    %p365 = scmp.eq.s32.totalorder %s30, 0
    %p366 = por %p364, %p365
    %p367 = scmp.ne.s32.totalorder %s355, %s356
    %p368 = scmp.eq.s32.totalorder %s31, 1
    %p369 = por %p367, %p368
    %p371 = scmp.ne.s32.totalorder %s356, %s370
    %p372 = scmp.eq.s32.totalorder %s31, 0
    %p373 = por %p371, %p372
    %s375 = sadd.s32 %s374, 1
    %p378 = scmp.eq.s32.totalorder %s25, 1
    %p379 = scmp.ne.s32.totalorder %s374, %s376
    %p380 = scmp.eq.s32.totalorder %s25, 0
    %p381 = por %p379, %p380
    %p382 = scmp.ne.s32.totalorder %s374, %s376
    %p383 = scmp.eq.s32.totalorder %s30, 1
    %p384 = por %p382, %p383
    %p385 = scmp.ne.s32.totalorder %s376, %s377
    %p386 = scmp.eq.s32.totalorder %s30, 0
    %p387 = por %p385, %p386
    %p388 = scmp.ne.s32.totalorder %s376, %s377
    %p389 = scmp.eq.s32.totalorder %s31, 1
    %p390 = por %p388, %p389
    %p392 = scmp.ne.s32.totalorder %s377, %s391
    %p393 = scmp.eq.s32.totalorder %s31, 0
    %p394 = por %p392, %p393
    %s395 = ssub.s32 %s25, %s32
    %p396 = scmp.eq.s32.totalorder %s395, 0
    %s398 = sadd.s32 %s397, 1
    %s399 = scalar_select %p396, %s397, %s398
    %p402 = pneg %p396
    %p403 = scmp.eq.s32.totalorder %s25, 1
    %p404 = por %p402, %p403
    %p405 = scmp.ne.s32.totalorder %s397, %s400
    %p406 = scmp.eq.s32.totalorder %s25, 0
    %p407 = por %p405, %p406
    %p408 = scmp.ne.s32.totalorder %s397, %s400
    %p409 = scmp.eq.s32.totalorder %s30, 1
    %p410 = por %p408, %p409
    %p411 = scmp.ne.s32.totalorder %s400, %s401
    %p412 = scmp.eq.s32.totalorder %s30, 0
    %p413 = por %p411, %p412
    %p414 = scmp.ne.s32.totalorder %s400, %s401
    %p415 = scmp.eq.s32.totalorder %s31, 1
    %p416 = por %p414, %p415
    %p418 = scmp.ne.s32.totalorder %s401, %s417
    %p419 = scmp.eq.s32.totalorder %s31, 0
    %p420 = por %p418, %p419
    %p421 = scmp.le.s32.totalorder 1, %s25
    %p422 = scmp.lt.s32.totalorder %s25, 3
    %p423 = pnand %p421, %p422
    %p424 = pneg %p423
    // Predicated region
    $region9: #{unet_forward.1} parent=5 // pred_check
      _
    $region10: #{unet_forward.1} parent=5 // pred_check_branch
      %426 = sbr.rel (%p423) target = $region12
    $region11: #{unet_forward.1} parent=5 // pred_region
      %s427 = ssub.s32 %s25, 1
      // Predicated region
      $region13: #{unet_forward.1} parent=11 // pred_check
        %p428 = pneg %p72
      $region14: #{unet_forward.1} parent=11 // pred_check_branch
        %430 = sbr.rel (%p428) target = $region16
      $region15: #{unet_forward.1} parent=11 // pred_region
        _
      $region16: #{unet_forward.1} parent=11 // pred_fallthru
        _
      // Predicated region
      $region17: #{unet_forward.1} parent=11 // pred_check
        %p431 = pneg %p93
      $region18: #{unet_forward.1} parent=11 // pred_check_branch
        %433 = sbr.rel (%p431) target = $region20
      $region19: #{unet_forward.1} parent=11 // pred_region
        _
      $region20: #{unet_forward.1} parent=11 // pred_fallthru
        _
      // Predicated region
      $region21: #{unet_forward.1} parent=11 // pred_check
        %p434 = pneg %p114
      $region22: #{unet_forward.1} parent=11 // pred_check_branch
        %436 = sbr.rel (%p434) target = $region24
      $region23: #{unet_forward.1} parent=11 // pred_region
        _
      $region24: #{unet_forward.1} parent=11 // pred_fallthru
        _
      // Predicated region
      $region25: #{unet_forward.1} parent=11 // pred_check
        %p437 = pneg %p135
      $region26: #{unet_forward.1} parent=11 // pred_check_branch
        %439 = sbr.rel (%p437) target = $region28
      $region27: #{unet_forward.1} parent=11 // pred_region
        _
      $region28: #{unet_forward.1} parent=11 // pred_fallthru
        _
      // Predicated region
      $region29: #{unet_forward.1} parent=11 // pred_check
        %p440 = pneg %p156
      $region30: #{unet_forward.1} parent=11 // pred_check_branch
        %442 = sbr.rel (%p440) target = $region32
      $region31: #{unet_forward.1} parent=11 // pred_region
        _
      $region32: #{unet_forward.1} parent=11 // pred_fallthru
        _
      // Predicated region
      $region33: #{unet_forward.1} parent=11 // pred_check
        %p443 = pneg %p177
      $region34: #{unet_forward.1} parent=11 // pred_check_branch
        %445 = sbr.rel (%p443) target = $region36
      $region35: #{unet_forward.1} parent=11 // pred_region
        _
      $region36: #{unet_forward.1} parent=11 // pred_fallthru
        _
      // Predicated region
      $region37: #{unet_forward.1} parent=11 // pred_check
        %p446 = pneg %p198
      $region38: #{unet_forward.1} parent=11 // pred_check_branch
        %448 = sbr.rel (%p446) target = $region40
      $region39: #{unet_forward.1} parent=11 // pred_region
        _
      $region40: #{unet_forward.1} parent=11 // pred_fallthru
        _
      // Predicated region
      $region41: #{unet_forward.1} parent=11 // pred_check
        %p449 = pneg %p219
      $region42: #{unet_forward.1} parent=11 // pred_check_branch
        %451 = sbr.rel (%p449) target = $region44
      $region43: #{unet_forward.1} parent=11 // pred_region
        _
      $region44: #{unet_forward.1} parent=11 // pred_fallthru
        _
      // Predicated region
      $region45: #{unet_forward.1} parent=11 // pred_check
        %p452 = pneg %p240
      $region46: #{unet_forward.1} parent=11 // pred_check_branch
        %454 = sbr.rel (%p452) target = $region48
      $region47: #{unet_forward.1} parent=11 // pred_region
        _
      $region48: #{unet_forward.1} parent=11 // pred_fallthru
        _
      // Predicated region
      $region49: #{unet_forward.1} parent=11 // pred_check
        %p455 = pneg %p261
      $region50: #{unet_forward.1} parent=11 // pred_check_branch
        %457 = sbr.rel (%p455) target = $region52
      $region51: #{unet_forward.1} parent=11 // pred_region
        _
      $region52: #{unet_forward.1} parent=11 // pred_fallthru
        _
      // Predicated region
      $region53: #{unet_forward.1} parent=11 // pred_check
        %p458 = pneg %p282
      $region54: #{unet_forward.1} parent=11 // pred_check_branch
        %460 = sbr.rel (%p458) target = $region56
      $region55: #{unet_forward.1} parent=11 // pred_region
        _
      $region56: #{unet_forward.1} parent=11 // pred_fallthru
        _
      // Predicated region
      $region57: #{unet_forward.1} parent=11 // pred_check
        %p461 = pneg %p303
      $region58: #{unet_forward.1} parent=11 // pred_check_branch
        %463 = sbr.rel (%p461) target = $region60
      $region59: #{unet_forward.1} parent=11 // pred_region
        _
      $region60: #{unet_forward.1} parent=11 // pred_fallthru
        _
      // Predicated region
      $region61: #{unet_forward.1} parent=11 // pred_check
        %p464 = pneg %p324
      $region62: #{unet_forward.1} parent=11 // pred_check_branch
        %466 = sbr.rel (%p464) target = $region64
      $region63: #{unet_forward.1} parent=11 // pred_region
        _
      $region64: #{unet_forward.1} parent=11 // pred_fallthru
        _
      // Predicated region
      $region65: #{unet_forward.1} parent=11 // pred_check
        %p467 = pneg %p345
      $region66: #{unet_forward.1} parent=11 // pred_check_branch
        %469 = sbr.rel (%p467) target = $region68
      $region67: #{unet_forward.1} parent=11 // pred_region
        _
      $region68: #{unet_forward.1} parent=11 // pred_fallthru
        _
      // Predicated region
      $region69: #{unet_forward.1} parent=11 // pred_check
        %p470 = pneg %p366
      $region70: #{unet_forward.1} parent=11 // pred_check_branch
        %472 = sbr.rel (%p470) target = $region72
      $region71: #{unet_forward.1} parent=11 // pred_region
        _
      $region72: #{unet_forward.1} parent=11 // pred_fallthru
        _
      // Predicated region
      $region73: #{unet_forward.1} parent=11 // pred_check
        %p473 = pneg %p387
      $region74: #{unet_forward.1} parent=11 // pred_check_branch
        %475 = sbr.rel (%p473) target = $region76
      $region75: #{unet_forward.1} parent=11 // pred_region
        _
      $region76: #{unet_forward.1} parent=11 // pred_fallthru
        _
    $region12: #{unet_forward.1} parent=5 // pred_fallthru
      _
    %p476 = scmp.lt.s32.totalorder %s25, 2
    // Predicated region
    $region77: #{unet_forward.1} parent=5 // pred_check
      %p477 = pneg %p476
    $region78: #{unet_forward.1} parent=5 // pred_check_branch
      %479 = sbr.rel (%p477) target = $region80
    $region79: #{unet_forward.1} parent=5 // pred_region
      // Predicated region
      $region81: #{unet_forward.1} parent=79 // pred_check
        %p480 = pneg %p45
      $region82: #{unet_forward.1} parent=79 // pred_check_branch
        %482 = sbr.rel (%p480) target = $region84
      $region83: #{unet_forward.1} parent=79 // pred_region
        %p483 = scmp.lt.s32.totalorder %s25, 1
        %s484 = scalar_select %p483, %s25, 1
        %s485 = smul.addr %s484, 2
        %s486 = scalar_lea.vmem %s0, %s485
      $region84: #{unet_forward.1} parent=79 // pred_fallthru
        _
    $region80: #{unet_forward.1} parent=5 // pred_fallthru
      _
    %p487 = scmp.le.s32.totalorder 1, %s25
    %p488 = scmp.lt.s32.totalorder %s25, 3
    %p489 = pnand %p487, %p488
    %p490 = pneg %p489
    // Predicated region
    $region85: #{unet_forward.1} parent=5 // pred_check
      _
    $region86: #{unet_forward.1} parent=5 // pred_check_branch
      %492 = sbr.rel (%p489) target = $region88
    $region87: #{unet_forward.1} parent=5 // pred_region
      %s493 = ssub.s32 %s25, 1
      %p494 = scmp.lt.s32.totalorder %s30, 1
      %s495 = scalar_select %p494, %s30, 1
      %s496 = smul.addr %s495, 2
      %s497 = scalar_lea.vmem %s0, %s496
      %p498 = pneg %p51
      %p499 = pneg %p48
      %p500 = pneg %p72
      %p501 = pneg %p69
      %p502 = pneg %p93
      %p503 = pneg %p90
      %p504 = pneg %p114
      %p505 = pneg %p111
      %p506 = pneg %p135
      %p507 = pneg %p132
      %p508 = pneg %p156
      %p509 = pneg %p153
      %p510 = pneg %p177
      %p511 = pneg %p174
      %p512 = pneg %p198
      %p513 = pneg %p195
      %p514 = pneg %p219
      %p515 = pneg %p216
      %p516 = pneg %p240
      %p517 = pneg %p237
      %p518 = pneg %p261
      %p519 = pneg %p258
      %p520 = pneg %p282
      %p521 = pneg %p279
      %p522 = pneg %p303
      %p523 = pneg %p300
      %p524 = pneg %p324
      %p525 = pneg %p321
      %p526 = pneg %p345
      %p527 = pneg %p342
      %p528 = pneg %p366
      %p529 = pneg %p363
      %p530 = pneg %p387
      %p531 = pneg %p384
      %p532 = pneg %p413
      %p533 = pneg %p410
      %p534 = scmp.lt.s32.totalorder %s30, 1
      %s535 = scalar_select %p534, %s30, 1
      %s536 = smul.addr %s535, 2
      %s537 = scalar_lea.vmem %s17, %s536
      %p538 = scmp.lt.s32.totalorder %s30, 1
      %s539 = scalar_select %p538, %s30, 1
      %s540 = smul.addr %s539, 2
      %s541 = scalar_lea.vmem %s0, %s540
      %p542 = scmp.lt.s32.totalorder %s30, 1
      %s543 = scalar_select %p542, %s30, 1
      %s544 = smul.addr %s543, 2
      %s545 = scalar_lea.vmem %s17, %s544
      %v546 = vld [vmem:[%s541] sm:$0x3]
      %v547 = vld [vmem:[%s13] sm:$0xff]
      %v548 = vld [vmem:[%s13 + $0x8] sm:$0xff]
      %v549 = vld [vmem:[%s13 + $0x10] sm:$0xff]
      %v550 = vld [vmem:[%s13 + $0x18] sm:$0xff]
      %v551 = vld [vmem:[%s13 + $0x20] sm:$0xff]
      %v552 = vld [vmem:[%s13 + $0x28] sm:$0xff]
      %v553 = vld [vmem:[%s13 + $0x30] sm:$0xff]
      %v554 = vld [vmem:[%s13 + $0x38] sm:$0xff]
      %v555 = vld [vmem:[%s13 + $0x40] sm:$0xff]
      %v556 = vld [vmem:[%s13 + $0x48] sm:$0xff]
      %v557 = vld [vmem:[%s13 + $0x50] sm:$0xff]
      %v558 = vld [vmem:[%s13 + $0x58] sm:$0xff]
      %v559 = vld [vmem:[%s13 + $0x60] sm:$0xff]
      %v560 = vld [vmem:[%s13 + $0x68] sm:$0xff]
      %v561 = vld [vmem:[%s13 + $0x70] sm:$0xff]
      %v562 = vld [vmem:[%s13 + $0x78] sm:$0xff]
      %v563 = vld [vmem:[%s13 + $0x80] sm:$0xff]
      %v564 = vld [vmem:[%s13 + $0x88] sm:$0xff]
      %v565 = vld [vmem:[%s13 + $0x90] sm:$0xff]
      %v566 = vld [vmem:[%s13 + $0x98] sm:$0xff]
      %v567 = vld [vmem:[%s13 + $0xa0] sm:$0xff]
      %v568 = vld [vmem:[%s13 + $0xa8] sm:$0xff]
      %v569 = vld [vmem:[%s13 + $0xb0] sm:$0xff]
      %v570 = vld [vmem:[%s13 + $0xb8] sm:$0xff]
      %v571 = vld [vmem:[%s13 + $0xc0] sm:$0xff]
      %v572 = vld [vmem:[%s13 + $0xc8] sm:$0xff]
      %v573 = vld [vmem:[%s13 + $0xd0] sm:$0xff]
      %v574 = vld [vmem:[%s13 + $0xd8] sm:$0xff]
      %v575 = vld [vmem:[%s13 + $0xe0] sm:$0xff]
      %v576 = vld [vmem:[%s13 + $0xe8] sm:$0xff]
      %v577 = vld [vmem:[%s13 + $0xf0] sm:$0xff]
      %v578 = vld [vmem:[%s13 + $0xf8] sm:$0xff]
      %v579 = vld [vmem:[%s13 + $0x100] sm:$0xff]
      %v580 = vld [vmem:[%s13 + $0x108] sm:$0xff]
      %v581 = vld [vmem:[%s13 + $0x110] sm:$0xff]
      %v582 = vld [vmem:[%s13 + $0x118] sm:$0xff]
      %v583 = vld [vmem:[%s13 + $0x120] sm:$0xff]
      %v584 = vld [vmem:[%s13 + $0x128] sm:$0xff]
      %v585 = vld [vmem:[%s13 + $0x130] sm:$0xff]
      %v586 = vld [vmem:[%s13 + $0x138] sm:$0xff]
      %v587 = vld [vmem:[%s13 + $0x140] sm:$0xff]
      %v588 = vld [vmem:[%s13 + $0x148] sm:$0xff]
      %v589 = vld [vmem:[%s13 + $0x150] sm:$0xff]
      %v590 = vld [vmem:[%s13 + $0x158] sm:$0xff]
      %v591 = vld [vmem:[%s13 + $0x160] sm:$0xff]
      %v592 = vld [vmem:[%s13 + $0x168] sm:$0xff]
      %v593 = vld [vmem:[%s13 + $0x170] sm:$0xff]
      %v594 = vld [vmem:[%s13 + $0x178] sm:$0xff]
      %v595 = vld [vmem:[%s13 + $0x180] sm:$0xff]
      %v596 = vld [vmem:[%s13 + $0x188] sm:$0xff]
      %v597 = vld [vmem:[%s13 + $0x190] sm:$0xff]
      %v598 = vld [vmem:[%s13 + $0x198] sm:$0xff]
      %v599 = vld [vmem:[%s13 + $0x1a0] sm:$0xff]
      %v600 = vld [vmem:[%s13 + $0x1a8] sm:$0xff]
      %v601 = vld [vmem:[%s13 + $0x1b0] sm:$0xff]
      %v602 = vld [vmem:[%s13 + $0x1b8] sm:$0xff]
      %v603 = vld [vmem:[%s13 + $0x1c0] sm:$0xff]
      %v604 = vld [vmem:[%s13 + $0x1c8] sm:$0xff]
      %v605 = vld [vmem:[%s13 + $0x1d0] sm:$0xff]
      %v606 = vld [vmem:[%s13 + $0x1d8] sm:$0xff]
      %v607 = vld [vmem:[%s13 + $0x1e0] sm:$0xff]
      %v608 = vld [vmem:[%s13 + $0x1e8] sm:$0xff]
      %v609 = vld [vmem:[%s13 + $0x1f0] sm:$0xff]
      %v610 = vld [vmem:[%s13 + $0x1f8] sm:$0xff]
      %v612 = vlaneseq
      %v613 = vshrl.u32 %v612, 7
      %v614 = vsub.s32 0, %v613
      %v615 = vrot.slane %v546, %v614
      %v616 = vlaneseq
      %v617 = vshrl.u32 %v616, 7
      %v618 = vsub.s32 1, %v617
      %v619 = vrot.slane %v546, %v618
      %622 = vmatprep.subr.mxu0 %v548
      %623 = vmatpush1.msra.mxu0 %v547
      %624 = vmatprep.subr.mxu0 %v550
      %625 = vmatpush1.msra.mxu0 %v549
      %626 = vmatprep.subr.mxu0 %v552
      %627 = vmatpush1.msra.mxu0 %v551
      %628 = vmatprep.subr.mxu0 %v554
      %629 = vmatpush1.msra.mxu0 %v553
      %630 = vmatprep.subr.mxu0 %v556
      %631 = vmatpush1.msra.mxu0 %v555
      %632 = vmatprep.subr.mxu0 %v558
      %633 = vmatpush1.msra.mxu0 %v557
      %634 = vmatprep.subr.mxu0 %v560
      %635 = vmatpush1.msra.mxu0 %v559
      %636 = vmatprep.subr.mxu0 %v562
      %637 = vmatpush1.msra.mxu0 %v561
      %638 = vmatprep.subr.mxu0 %v564
      %639 = vmatpush1.msra.mxu0 %v563
      %640 = vmatprep.subr.mxu0 %v566
      %641 = vmatpush1.msra.mxu0 %v565
      %642 = vmatprep.subr.mxu0 %v568
      %643 = vmatpush1.msra.mxu0 %v567
      %644 = vmatprep.subr.mxu0 %v570
      %645 = vmatpush1.msra.mxu0 %v569
      %646 = vmatprep.subr.mxu0 %v572
      %647 = vmatpush1.msra.mxu0 %v571
      %648 = vmatprep.subr.mxu0 %v574
      %649 = vmatpush1.msra.mxu0 %v573
      %650 = vmatprep.subr.mxu0 %v576
      %651 = vmatpush1.msra.mxu0 %v575
      %652 = vmatprep.subr.mxu0 %v578
      %653 = vmatpush1.msra.mxu0 %v577
      %654 = vmatprep.subr.mxu0 %v580
      %655 = vmatpush1.msra.mxu0 %v579
      %656 = vmatprep.subr.mxu0 %v582
      %657 = vmatpush1.msra.mxu0 %v581
      %658 = vmatprep.subr.mxu0 %v584
      %659 = vmatpush1.msra.mxu0 %v583
      %660 = vmatprep.subr.mxu0 %v586
      %661 = vmatpush1.msra.mxu0 %v585
      %662 = vmatprep.subr.mxu0 %v588
      %663 = vmatpush1.msra.mxu0 %v587
      %664 = vmatprep.subr.mxu0 %v590
      %665 = vmatpush1.msra.mxu0 %v589
      %666 = vmatprep.subr.mxu0 %v592
      %667 = vmatpush1.msra.mxu0 %v591
      %668 = vmatprep.subr.mxu0 %v594
      %669 = vmatpush1.msra.mxu0 %v593
      %670 = vmatprep.subr.mxu0 %v596
      %671 = vmatpush1.msra.mxu0 %v595
      %672 = vmatprep.subr.mxu0 %v598
      %673 = vmatpush1.msra.mxu0 %v597
      %674 = vmatprep.subr.mxu0 %v600
      %675 = vmatpush1.msra.mxu0 %v599
      %676 = vmatprep.subr.mxu0 %v602
      %677 = vmatpush1.msra.mxu0 %v601
      %678 = vmatprep.subr.mxu0 %v604
      %679 = vmatpush1.msra.mxu0 %v603
      %680 = vmatprep.subr.mxu0 %v606
      %681 = vmatpush1.msra.mxu0 %v605
      %682 = vmatprep.subr.mxu0 %v608
      %683 = vmatpush1.msra.mxu0 %v607
      %684 = vmatprep.subr.mxu0 %v610
      %685 = vmatpush1.msra.mxu0 %v609
      %686 = vmatprep.mubr.f32.mxu0 %v619
      %687 = vmatmul.mubr.f32.gmra.mrb[0].mxu0 %v615
      %v688 = vpop.f32.mrb[0].mxu0
      %v689 = vadd.f32 0.0, %v688
      %v690 = vpop.f32.mrb[0].mxu0
      %v691 = vadd.f32 0.0, %v690
      %692 = vdwg.mxu0
      %v693 = vld [vmem:[%s1] sm:$0xff]
      %695 = vset.pattern.permute.xlu0 0
      %696 = vperm.xlu0 %695, %v693
      %v697 = vpop.permute.xlu0 %696
      %v699 = vlaneseq
      %v700 = vshrl.u32 %v699, 7
      %v701 = vsub.s32 0, %v700
      %v702 = vrot.slane %v689, %v701
      %v703 = vlaneseq
      %v704 = vshrl.u32 %v703, 7
      %v705 = vsub.s32 0, %v704
      %v706 = vrot.slane %v691, %v705
      %v707 = vmul.f32 %v697, %v702
      %v708 = vmul.f32 %v697, %v706
      %v709 = vadd.f32 %v707, 0.0
      %v710 = vadd.f32 %v708, 0.0
      %s711 = scalar_lea.vmem %s13, 512
      %v712 = vld [vmem:[%s711] sm:$0xff]
      %v713 = vld [vmem:[%s711 + $0x8] sm:$0xff]
      %v714 = vld [vmem:[%s711 + $0x10] sm:$0xff]
      %v715 = vld [vmem:[%s711 + $0x18] sm:$0xff]
      %v716 = vld [vmem:[%s711 + $0x20] sm:$0xff]
      %v717 = vld [vmem:[%s711 + $0x28] sm:$0xff]
      %v718 = vld [vmem:[%s711 + $0x30] sm:$0xff]
      %v719 = vld [vmem:[%s711 + $0x38] sm:$0xff]
      %v720 = vld [vmem:[%s711 + $0x40] sm:$0xff]
      %v721 = vld [vmem:[%s711 + $0x48] sm:$0xff]
      %v722 = vld [vmem:[%s711 + $0x50] sm:$0xff]
      %v723 = vld [vmem:[%s711 + $0x58] sm:$0xff]
      %v724 = vld [vmem:[%s711 + $0x60] sm:$0xff]
      %v725 = vld [vmem:[%s711 + $0x68] sm:$0xff]
      %v726 = vld [vmem:[%s711 + $0x70] sm:$0xff]
      %v727 = vld [vmem:[%s711 + $0x78] sm:$0xff]
      %v728 = vld [vmem:[%s711 + $0x80] sm:$0xff]
      %v729 = vld [vmem:[%s711 + $0x88] sm:$0xff]
      %v730 = vld [vmem:[%s711 + $0x90] sm:$0xff]
      %v731 = vld [vmem:[%s711 + $0x98] sm:$0xff]
      %v732 = vld [vmem:[%s711 + $0xa0] sm:$0xff]
      %v733 = vld [vmem:[%s711 + $0xa8] sm:$0xff]
      %v734 = vld [vmem:[%s711 + $0xb0] sm:$0xff]
      %v735 = vld [vmem:[%s711 + $0xb8] sm:$0xff]
      %v736 = vld [vmem:[%s711 + $0xc0] sm:$0xff]
      %v737 = vld [vmem:[%s711 + $0xc8] sm:$0xff]
      %v738 = vld [vmem:[%s711 + $0xd0] sm:$0xff]
      %v739 = vld [vmem:[%s711 + $0xd8] sm:$0xff]
      %v740 = vld [vmem:[%s711 + $0xe0] sm:$0xff]
      %v741 = vld [vmem:[%s711 + $0xe8] sm:$0xff]
      %v742 = vld [vmem:[%s711 + $0xf0] sm:$0xff]
      %v743 = vld [vmem:[%s711 + $0xf8] sm:$0xff]
      %v744 = vld [vmem:[%s711 + $0x100] sm:$0xff]
      %v745 = vld [vmem:[%s711 + $0x108] sm:$0xff]
      %v746 = vld [vmem:[%s711 + $0x110] sm:$0xff]
      %v747 = vld [vmem:[%s711 + $0x118] sm:$0xff]
      %v748 = vld [vmem:[%s711 + $0x120] sm:$0xff]
      %v749 = vld [vmem:[%s711 + $0x128] sm:$0xff]
      %v750 = vld [vmem:[%s711 + $0x130] sm:$0xff]
      %v751 = vld [vmem:[%s711 + $0x138] sm:$0xff]
      %v752 = vld [vmem:[%s711 + $0x140] sm:$0xff]
      %v753 = vld [vmem:[%s711 + $0x148] sm:$0xff]
      %v754 = vld [vmem:[%s711 + $0x150] sm:$0xff]
      %v755 = vld [vmem:[%s711 + $0x158] sm:$0xff]
      %v756 = vld [vmem:[%s711 + $0x160] sm:$0xff]
      %v757 = vld [vmem:[%s711 + $0x168] sm:$0xff]
      %v758 = vld [vmem:[%s711 + $0x170] sm:$0xff]
      %v759 = vld [vmem:[%s711 + $0x178] sm:$0xff]
      %v760 = vld [vmem:[%s711 + $0x180] sm:$0xff]
      %v761 = vld [vmem:[%s711 + $0x188] sm:$0xff]
      %v762 = vld [vmem:[%s711 + $0x190] sm:$0xff]
      %v763 = vld [vmem:[%s711 + $0x198] sm:$0xff]
      %v764 = vld [vmem:[%s711 + $0x1a0] sm:$0xff]
      %v765 = vld [vmem:[%s711 + $0x1a8] sm:$0xff]
      %v766 = vld [vmem:[%s711 + $0x1b0] sm:$0xff]
      %v767 = vld [vmem:[%s711 + $0x1b8] sm:$0xff]
      %v768 = vld [vmem:[%s711 + $0x1c0] sm:$0xff]
      %v769 = vld [vmem:[%s711 + $0x1c8] sm:$0xff]
      %v770 = vld [vmem:[%s711 + $0x1d0] sm:$0xff]
      %v771 = vld [vmem:[%s711 + $0x1d8] sm:$0xff]
      %v772 = vld [vmem:[%s711 + $0x1e0] sm:$0xff]
      %v773 = vld [vmem:[%s711 + $0x1e8] sm:$0xff]
      %v774 = vld [vmem:[%s711 + $0x1f0] sm:$0xff]
      %v775 = vld [vmem:[%s711 + $0x1f8] sm:$0xff]
      %776 = vmatprep.subr.mxu0 %v713
      %777 = vmatpush1.msra.mxu0 %v712
      %778 = vmatprep.subr.mxu0 %v715
      %779 = vmatpush1.msra.mxu0 %v714
      %780 = vmatprep.subr.mxu0 %v717
      %781 = vmatpush1.msra.mxu0 %v716
      %782 = vmatprep.subr.mxu0 %v719
      %783 = vmatpush1.msra.mxu0 %v718
      %784 = vmatprep.subr.mxu0 %v721
      %785 = vmatpush1.msra.mxu0 %v720
      %786 = vmatprep.subr.mxu0 %v723
      %787 = vmatpush1.msra.mxu0 %v722
      %788 = vmatprep.subr.mxu0 %v725
      %789 = vmatpush1.msra.mxu0 %v724
      %790 = vmatprep.subr.mxu0 %v727
      %791 = vmatpush1.msra.mxu0 %v726
      %792 = vmatprep.subr.mxu0 %v729
      %793 = vmatpush1.msra.mxu0 %v728
      %794 = vmatprep.subr.mxu0 %v731
      %795 = vmatpush1.msra.mxu0 %v730
      %796 = vmatprep.subr.mxu0 %v733
      %797 = vmatpush1.msra.mxu0 %v732
      %798 = vmatprep.subr.mxu0 %v735
      %799 = vmatpush1.msra.mxu0 %v734
      %800 = vmatprep.subr.mxu0 %v737
      %801 = vmatpush1.msra.mxu0 %v736
      %802 = vmatprep.subr.mxu0 %v739
      %803 = vmatpush1.msra.mxu0 %v738
      %804 = vmatprep.subr.mxu0 %v741
      %805 = vmatpush1.msra.mxu0 %v740
      %806 = vmatprep.subr.mxu0 %v743
      %807 = vmatpush1.msra.mxu0 %v742
      %808 = vmatprep.subr.mxu0 %v745
      %809 = vmatpush1.msra.mxu0 %v744
      %810 = vmatprep.subr.mxu0 %v747
      %811 = vmatpush1.msra.mxu0 %v746
      %812 = vmatprep.subr.mxu0 %v749
      %813 = vmatpush1.msra.mxu0 %v748
      %814 = vmatprep.subr.mxu0 %v751
      %815 = vmatpush1.msra.mxu0 %v750
      %816 = vmatprep.subr.mxu0 %v753
      %817 = vmatpush1.msra.mxu0 %v752
      %818 = vmatprep.subr.mxu0 %v755
      %819 = vmatpush1.msra.mxu0 %v754
      %820 = vmatprep.subr.mxu0 %v757
      %821 = vmatpush1.msra.mxu0 %v756
      %822 = vmatprep.subr.mxu0 %v759
      %823 = vmatpush1.msra.mxu0 %v758
      %824 = vmatprep.subr.mxu0 %v761
      %825 = vmatpush1.msra.mxu0 %v760
      %826 = vmatprep.subr.mxu0 %v763
      %827 = vmatpush1.msra.mxu0 %v762
      %828 = vmatprep.subr.mxu0 %v765
      %829 = vmatpush1.msra.mxu0 %v764
      %830 = vmatprep.subr.mxu0 %v767
      %831 = vmatpush1.msra.mxu0 %v766
      %832 = vmatprep.subr.mxu0 %v769
      %833 = vmatpush1.msra.mxu0 %v768
      %834 = vmatprep.subr.mxu0 %v771
      %835 = vmatpush1.msra.mxu0 %v770
      %836 = vmatprep.subr.mxu0 %v773
      %837 = vmatpush1.msra.mxu0 %v772
      %838 = vmatprep.subr.mxu0 %v775
      %839 = vmatpush1.msra.mxu0 %v774
      %840 = vmatprep.mubr.f32.mxu0 %v619
      %841 = vmatmul.mubr.f32.gmra.mrb[0].mxu0 %v615
      %v842 = vpop.f32.mrb[0].mxu0
      %v843 = vadd.f32 0.0, %v842
      %v844 = vpop.f32.mrb[0].mxu0
      %v845 = vadd.f32 0.0, %v844
      %846 = vdwg.mxu0
      %s847 = scalar_lea.vmem %s1, 8
      %v848 = vld [vmem:[%s847] sm:$0xff]
      %850 = vset.pattern.permute.xlu0 0
      %851 = vperm.xlu0 %850, %v848
      %v852 = vpop.permute.xlu0 %851
      %v854 = vlaneseq
      %v855 = vshrl.u32 %v854, 7
      %v856 = vsub.s32 0, %v855
      %v857 = vrot.slane %v843, %v856
      %v858 = vlaneseq
      %v859 = vshrl.u32 %v858, 7
      %v860 = vsub.s32 0, %v859
      %v861 = vrot.slane %v845, %v860
      %v862 = vmul.f32 %v852, %v857
      %v863 = vmul.f32 %v852, %v861
      %v864 = vadd.f32 %v709, %v862
      %v865 = vadd.f32 %v710, %v863
      %s866 = scalar_lea.vmem %s13, 1024
      %v867 = vld [vmem:[%s866] sm:$0xff]
      %v868 = vld [vmem:[%s866 + $0x8] sm:$0xff]
      %v869 = vld [vmem:[%s866 + $0x10] sm:$0xff]
      %v870 = vld [vmem:[%s866 + $0x18] sm:$0xff]
      %v871 = vld [vmem:[%s866 + $0x20] sm:$0xff]
      %v872 = vld [vmem:[%s866 + $0x28] sm:$0xff]
      %v873 = vld [vmem:[%s866 + $0x30] sm:$0xff]
      %v874 = vld [vmem:[%s866 + $0x38] sm:$0xff]
      %v875 = vld [vmem:[%s866 + $0x40] sm:$0xff]
      %v876 = vld [vmem:[%s866 + $0x48] sm:$0xff]
      %v877 = vld [vmem:[%s866 + $0x50] sm:$0xff]
      %v878 = vld [vmem:[%s866 + $0x58] sm:$0xff]
      %v879 = vld [vmem:[%s866 + $0x60] sm:$0xff]
      %v880 = vld [vmem:[%s866 + $0x68] sm:$0xff]
      %v881 = vld [vmem:[%s866 + $0x70] sm:$0xff]
      %v882 = vld [vmem:[%s866 + $0x78] sm:$0xff]
      %v883 = vld [vmem:[%s866 + $0x80] sm:$0xff]
      %v884 = vld [vmem:[%s866 + $0x88] sm:$0xff]
      %v885 = vld [vmem:[%s866 + $0x90] sm:$0xff]
      %v886 = vld [vmem:[%s866 + $0x98] sm:$0xff]
      %v887 = vld [vmem:[%s866 + $0xa0] sm:$0xff]
      %v888 = vld [vmem:[%s866 + $0xa8] sm:$0xff]
      %v889 = vld [vmem:[%s866 + $0xb0] sm:$0xff]
      %v890 = vld [vmem:[%s866 + $0xb8] sm:$0xff]
      %v891 = vld [vmem:[%s866 + $0xc0] sm:$0xff]
      %v892 = vld [vmem:[%s866 + $0xc8] sm:$0xff]
      %v893 = vld [vmem:[%s866 + $0xd0] sm:$0xff]
      %v894 = vld [vmem:[%s866 + $0xd8] sm:$0xff]
      %v895 = vld [vmem:[%s866 + $0xe0] sm:$0xff]
      %v896 = vld [vmem:[%s866 + $0xe8] sm:$0xff]
      %v897 = vld [vmem:[%s866 + $0xf0] sm:$0xff]
      %v898 = vld [vmem:[%s866 + $0xf8] sm:$0xff]
      %v899 = vld [vmem:[%s866 + $0x100] sm:$0xff]
      %v900 = vld [vmem:[%s866 + $0x108] sm:$0xff]
      %v901 = vld [vmem:[%s866 + $0x110] sm:$0xff]
      %v902 = vld [vmem:[%s866 + $0x118] sm:$0xff]
      %v903 = vld [vmem:[%s866 + $0x120] sm:$0xff]
      %v904 = vld [vmem:[%s866 + $0x128] sm:$0xff]
      %v905 = vld [vmem:[%s866 + $0x130] sm:$0xff]
      %v906 = vld [vmem:[%s866 + $0x138] sm:$0xff]
      %v907 = vld [vmem:[%s866 + $0x140] sm:$0xff]
      %v908 = vld [vmem:[%s866 + $0x148] sm:$0xff]
      %v909 = vld [vmem:[%s866 + $0x150] sm:$0xff]
      %v910 = vld [vmem:[%s866 + $0x158] sm:$0xff]
      %v911 = vld [vmem:[%s866 + $0x160] sm:$0xff]
      %v912 = vld [vmem:[%s866 + $0x168] sm:$0xff]
      %v913 = vld [vmem:[%s866 + $0x170] sm:$0xff]
      %v914 = vld [vmem:[%s866 + $0x178] sm:$0xff]
      %v915 = vld [vmem:[%s866 + $0x180] sm:$0xff]
      %v916 = vld [vmem:[%s866 + $0x188] sm:$0xff]
      %v917 = vld [vmem:[%s866 + $0x190] sm:$0xff]
      %v918 = vld [vmem:[%s866 + $0x198] sm:$0xff]
      %v919 = vld [vmem:[%s866 + $0x1a0] sm:$0xff]
      %v920 = vld [vmem:[%s866 + $0x1a8] sm:$0xff]
      %v921 = vld [vmem:[%s866 + $0x1b0] sm:$0xff]
      %v922 = vld [vmem:[%s866 + $0x1b8] sm:$0xff]
      %v923 = vld [vmem:[%s866 + $0x1c0] sm:$0xff]
      %v924 = vld [vmem:[%s866 + $0x1c8] sm:$0xff]
      %v925 = vld [vmem:[%s866 + $0x1d0] sm:$0xff]
      %v926 = vld [vmem:[%s866 + $0x1d8] sm:$0xff]
      %v927 = vld [vmem:[%s866 + $0x1e0] sm:$0xff]
      %v928 = vld [vmem:[%s866 + $0x1e8] sm:$0xff]
      %v929 = vld [vmem:[%s866 + $0x1f0] sm:$0xff]
      %v930 = vld [vmem:[%s866 + $0x1f8] sm:$0xff]
      %931 = vmatprep.subr.mxu0 %v868
      %932 = vmatpush1.msra.mxu0 %v867
      %933 = vmatprep.subr.mxu0 %v870
      %934 = vmatpush1.msra.mxu0 %v869
      %935 = vmatprep.subr.mxu0 %v872
      %936 = vmatpush1.msra.mxu0 %v871
      %937 = vmatprep.subr.mxu0 %v874
      %938 = vmatpush1.msra.mxu0 %v873
      %939 = vmatprep.subr.mxu0 %v876
      %940 = vmatpush1.msra.mxu0 %v875
      %941 = vmatprep.subr.mxu0 %v878
      %942 = vmatpush1.msra.mxu0 %v877
      %943 = vmatprep.subr.mxu0 %v880
      %944 = vmatpush1.msra.mxu0 %v879
      %945 = vmatprep.subr.mxu0 %v882
      %946 = vmatpush1.msra.mxu0 %v881
      %947 = vmatprep.subr.mxu0 %v884
      %948 = vmatpush1.msra.mxu0 %v883
      %949 = vmatprep.subr.mxu0 %v886
      %950 = vmatpush1.msra.mxu0 %v885
      %951 = vmatprep.subr.mxu0 %v888
      %952 = vmatpush1.msra.mxu0 %v887
      %953 = vmatprep.subr.mxu0 %v890
      %954 = vmatpush1.msra.mxu0 %v889
      %955 = vmatprep.subr.mxu0 %v892
      %956 = vmatpush1.msra.mxu0 %v891
      %957 = vmatprep.subr.mxu0 %v894
      %958 = vmatpush1.msra.mxu0 %v893
      %959 = vmatprep.subr.mxu0 %v896
      %960 = vmatpush1.msra.mxu0 %v895
      %961 = vmatprep.subr.mxu0 %v898
      %962 = vmatpush1.msra.mxu0 %v897
      %963 = vmatprep.subr.mxu0 %v900
      %964 = vmatpush1.msra.mxu0 %v899
      %965 = vmatprep.subr.mxu0 %v902
      %966 = vmatpush1.msra.mxu0 %v901
      %967 = vmatprep.subr.mxu0 %v904
      %968 = vmatpush1.msra.mxu0 %v903
      %969 = vmatprep.subr.mxu0 %v906
      %970 = vmatpush1.msra.mxu0 %v905
      %971 = vmatprep.subr.mxu0 %v908
      %972 = vmatpush1.msra.mxu0 %v907
      %973 = vmatprep.subr.mxu0 %v910
      %974 = vmatpush1.msra.mxu0 %v909
      %975 = vmatprep.subr.mxu0 %v912
      %976 = vmatpush1.msra.mxu0 %v911
      %977 = vmatprep.subr.mxu0 %v914
      %978 = vmatpush1.msra.mxu0 %v913
      %979 = vmatprep.subr.mxu0 %v916
      %980 = vmatpush1.msra.mxu0 %v915
      %981 = vmatprep.subr.mxu0 %v918
      %982 = vmatpush1.msra.mxu0 %v917
      %983 = vmatprep.subr.mxu0 %v920
      %984 = vmatpush1.msra.mxu0 %v919
      %985 = vmatprep.subr.mxu0 %v922
      %986 = vmatpush1.msra.mxu0 %v921
      %987 = vmatprep.subr.mxu0 %v924
      %988 = vmatpush1.msra.mxu0 %v923
      %989 = vmatprep.subr.mxu0 %v926
      %990 = vmatpush1.msra.mxu0 %v925
      %991 = vmatprep.subr.mxu0 %v928
      %992 = vmatpush1.msra.mxu0 %v927
      %993 = vmatprep.subr.mxu0 %v930
      %994 = vmatpush1.msra.mxu0 %v929
      %995 = vmatprep.mubr.f32.mxu0 %v619
      %996 = vmatmul.mubr.f32.gmra.mrb[0].mxu0 %v615
      %v997 = vpop.f32.mrb[0].mxu0
      %v998 = vadd.f32 0.0, %v997
      %v999 = vpop.f32.mrb[0].mxu0
      %v1000 = vadd.f32 0.0, %v999
      %1001 = vdwg.mxu0
      %s1002 = scalar_lea.vmem %s1, 16
      %v1003 = vld [vmem:[%s1002] sm:$0xff]
      %1005 = vset.pattern.permute.xlu0 0
      %1006 = vperm.xlu0 %1005, %v1003
      %v1007 = vpop.permute.xlu0 %1006
      %v1009 = vlaneseq
      %v1010 = vshrl.u32 %v1009, 7
      %v1011 = vsub.s32 0, %v1010
      %v1012 = vrot.slane %v998, %v1011
      %v1013 = vlaneseq
      %v1014 = vshrl.u32 %v1013, 7
      %v1015 = vsub.s32 0, %v1014
      %v1016 = vrot.slane %v1000, %v1015
      %v1017 = vmul.f32 %v1007, %v1012
      %v1018 = vmul.f32 %v1007, %v1016
      %v1019 = vadd.f32 %v864, %v1017
      %v1020 = vadd.f32 %v865, %v1018
      %s1021 = scalar_lea.vmem %s13, 1536
      %v1022 = vld [vmem:[%s1021] sm:$0xff]
      %v1023 = vld [vmem:[%s1021 + $0x8] sm:$0xff]
      %v1024 = vld [vmem:[%s1021 + $0x10] sm:$0xff]
      %v1025 = vld [vmem:[%s1021 + $0x18] sm:$0xff]
      %v1026 = vld [vmem:[%s1021 + $0x20] sm:$0xff]
      %v1027 = vld [vmem:[%s1021 + $0x28] sm:$0xff]
      %v1028 = vld [vmem:[%s1021 + $0x30] sm:$0xff]
      %v1029 = vld [vmem:[%s1021 + $0x38] sm:$0xff]
      %v1030 = vld [vmem:[%s1021 + $0x40] sm:$0xff]
      %v1031 = vld [vmem:[%s1021 + $0x48] sm:$0xff]
      %v1032 = vld [vmem:[%s1021 + $0x50] sm:$0xff]
      %v1033 = vld [vmem:[%s1021 + $0x58] sm:$0xff]
      %v1034 = vld [vmem:[%s1021 + $0x60] sm:$0xff]
      %v1035 = vld [vmem:[%s1021 + $0x68] sm:$0xff]
      %v1036 = vld [vmem:[%s1021 + $0x70] sm:$0xff]
      %v1037 = vld [vmem:[%s1021 + $0x78] sm:$0xff]
      %v1038 = vld [vmem:[%s1021 + $0x80] sm:$0xff]
      %v1039 = vld [vmem:[%s1021 + $0x88] sm:$0xff]
      %v1040 = vld [vmem:[%s1021 + $0x90] sm:$0xff]
      %v1041 = vld [vmem:[%s1021 + $0x98] sm:$0xff]
      %v1042 = vld [vmem:[%s1021 + $0xa0] sm:$0xff]
      %v1043 = vld [vmem:[%s1021 + $0xa8] sm:$0xff]
      %v1044 = vld [vmem:[%s1021 + $0xb0] sm:$0xff]
      %v1045 = vld [vmem:[%s1021 + $0xb8] sm:$0xff]
      %v1046 = vld [vmem:[%s1021 + $0xc0] sm:$0xff]
      %v1047 = vld [vmem:[%s1021 + $0xc8] sm:$0xff]
      %v1048 = vld [vmem:[%s1021 + $0xd0] sm:$0xff]
      %v1049 = vld [vmem:[%s1021 + $0xd8] sm:$0xff]
      %v1050 = vld [vmem:[%s1021 + $0xe0] sm:$0xff]
      %v1051 = vld [vmem:[%s1021 + $0xe8] sm:$0xff]
      %v1052 = vld [vmem:[%s1021 + $0xf0] sm:$0xff]
      %v1053 = vld [vmem:[%s1021 + $0xf8] sm:$0xff]
      %v1054 = vld [vmem:[%s1021 + $0x100] sm:$0xff]
      %v1055 = vld [vmem:[%s1021 + $0x108] sm:$0xff]
      %v1056 = vld [vmem:[%s1021 + $0x110] sm:$0xff]
      %v1057 = vld [vmem:[%s1021 + $0x118] sm:$0xff]
      %v1058 = vld [vmem:[%s1021 + $0x120] sm:$0xff]
      %v1059 = vld [vmem:[%s1021 + $0x128] sm:$0xff]
      %v1060 = vld [vmem:[%s1021 + $0x130] sm:$0xff]
      %v1061 = vld [vmem:[%s1021 + $0x138] sm:$0xff]
      %v1062 = vld [vmem:[%s1021 + $0x140] sm:$0xff]
      %v1063 = vld [vmem:[%s1021 + $0x148] sm:$0xff]
      %v1064 = vld [vmem:[%s1021 + $0x150] sm:$0xff]
      %v1065 = vld [vmem:[%s1021 + $0x158] sm:$0xff]
      %v1066 = vld [vmem:[%s1021 + $0x160] sm:$0xff]
      %v1067 = vld [vmem:[%s1021 + $0x168] sm:$0xff]
      %v1068 = vld [vmem:[%s1021 + $0x170] sm:$0xff]
      %v1069 = vld [vmem:[%s1021 + $0x178] sm:$0xff]
      %v1070 = vld [vmem:[%s1021 + $0x180] sm:$0xff]
      %v1071 = vld [vmem:[%s1021 + $0x188] sm:$0xff]
      %v1072 = vld [vmem:[%s1021 + $0x190] sm:$0xff]
      %v1073 = vld [vmem:[%s1021 + $0x198] sm:$0xff]
      %v1074 = vld [vmem:[%s1021 + $0x1a0] sm:$0xff]
      %v1075 = vld [vmem:[%s1021 + $0x1a8] sm:$0xff]
      %v1076 = vld [vmem:[%s1021 + $0x1b0] sm:$0xff]
      %v1077 = vld [vmem:[%s1021 + $0x1b8] sm:$0xff]
      %v1078 = vld [vmem:[%s1021 + $0x1c0] sm:$0xff]
      %v1079 = vld [vmem:[%s1021 + $0x1c8] sm:$0xff]
      %v1080 = vld [vmem:[%s1021 + $0x1d0] sm:$0xff]
      %v1081 = vld [vmem:[%s1021 + $0x1d8] sm:$0xff]
      %v1082 = vld [vmem:[%s1021 + $0x1e0] sm:$0xff]
      %v1083 = vld [vmem:[%s1021 + $0x1e8] sm:$0xff]
      %v1084 = vld [vmem:[%s1021 + $0x1f0] sm:$0xff]
      %v1085 = vld [vmem:[%s1021 + $0x1f8] sm:$0xff]
      %1086 = vmatprep.subr.mxu0 %v1023
      %1087 = vmatpush1.msra.mxu0 %v1022
      %1088 = vmatprep.subr.mxu0 %v1025
      %1089 = vmatpush1.msra.mxu0 %v1024
      %1090 = vmatprep.subr.mxu0 %v1027
      %1091 = vmatpush1.msra.mxu0 %v1026
      %1092 = vmatprep.subr.mxu0 %v1029
      %1093 = vmatpush1.msra.mxu0 %v1028
      %1094 = vmatprep.subr.mxu0 %v1031
      %1095 = vmatpush1.msra.mxu0 %v1030
      %1096 = vmatprep.subr.mxu0 %v1033
      %1097 = vmatpush1.msra.mxu0 %v1032
      %1098 = vmatprep.subr.mxu0 %v1035
      %1099 = vmatpush1.msra.mxu0 %v1034
      %1100 = vmatprep.subr.mxu0 %v1037
      %1101 = vmatpush1.msra.mxu0 %v1036
      %1102 = vmatprep.subr.mxu0 %v1039
      %1103 = vmatpush1.msra.mxu0 %v1038
      %1104 = vmatprep.subr.mxu0 %v1041
      %1105 = vmatpush1.msra.mxu0 %v1040
      %1106 = vmatprep.subr.mxu0 %v1043
      %1107 = vmatpush1.msra.mxu0 %v1042
      %1108 = vmatprep.subr.mxu0 %v1045
      %1109 = vmatpush1.msra.mxu0 %v1044
      %1110 = vmatprep.subr.mxu0 %v1047
      %1111 = vmatpush1.msra.mxu0 %v1046
      %1112 = vmatprep.subr.mxu0 %v1049
      %1113 = vmatpush1.msra.mxu0 %v1048
      %1114 = vmatprep.subr.mxu0 %v1051
      %1115 = vmatpush1.msra.mxu0 %v1050
      %1116 = vmatprep.subr.mxu0 %v1053
      %1117 = vmatpush1.msra.mxu0 %v1052
      %1118 = vmatprep.subr.mxu0 %v1055
      %1119 = vmatpush1.msra.mxu0 %v1054
      %1120 = vmatprep.subr.mxu0 %v1057
      %1121 = vmatpush1.msra.mxu0 %v1056
      %1122 = vmatprep.subr.mxu0 %v1059
      %1123 = vmatpush1.msra.mxu0 %v1058
      %1124 = vmatprep.subr.mxu0 %v1061
      %1125 = vmatpush1.msra.mxu0 %v1060
      %1126 = vmatprep.subr.mxu0 %v1063
      %1127 = vmatpush1.msra.mxu0 %v1062
      %1128 = vmatprep.subr.mxu0 %v1065
      %1129 = vmatpush1.msra.mxu0 %v1064
      %1130 = vmatprep.subr.mxu0 %v1067
      %1131 = vmatpush1.msra.mxu0 %v1066
      %1132 = vmatprep.subr.mxu0 %v1069
      %1133 = vmatpush1.msra.mxu0 %v1068
      %1134 = vmatprep.subr.mxu0 %v1071
      %1135 = vmatpush1.msra.mxu0 %v1070
      %1136 = vmatprep.subr.mxu0 %v1073
      %1137 = vmatpush1.msra.mxu0 %v1072
      %1138 = vmatprep.subr.mxu0 %v1075
      %1139 = vmatpush1.msra.mxu0 %v1074
      %1140 = vmatprep.subr.mxu0 %v1077
      %1141 = vmatpush1.msra.mxu0 %v1076
      %1142 = vmatprep.subr.mxu0 %v1079
      %1143 = vmatpush1.msra.mxu0 %v1078
      %1144 = vmatprep.subr.mxu0 %v1081
      %1145 = vmatpush1.msra.mxu0 %v1080
      %1146 = vmatprep.subr.mxu0 %v1083
      %1147 = vmatpush1.msra.mxu0 %v1082
      %1148 = vmatprep.subr.mxu0 %v1085
      %1149 = vmatpush1.msra.mxu0 %v1084
      %1150 = vmatprep.mubr.f32.mxu0 %v619
      %1151 = vmatmul.mubr.f32.gmra.mrb[0].mxu0 %v615
      %v1152 = vpop.f32.mrb[0].mxu0
      %v1153 = vadd.f32 0.0, %v1152
      %v1154 = vpop.f32.mrb[0].mxu0
      %v1155 = vadd.f32 0.0, %v1154
      %1156 = vdwg.mxu0
      %s1157 = scalar_lea.vmem %s1, 24
      %v1158 = vld [vmem:[%s1157] sm:$0xff]
      %1160 = vset.pattern.permute.xlu0 0
      %1161 = vperm.xlu0 %1160, %v1158
      %v1162 = vpop.permute.xlu0 %1161
      %v1164 = vlaneseq
      %v1165 = vshrl.u32 %v1164, 7
      %v1166 = vsub.s32 0, %v1165
      %v1167 = vrot.slane %v1153, %v1166
      %v1168 = vlaneseq
      %v1169 = vshrl.u32 %v1168, 7
      %v1170 = vsub.s32 0, %v1169
      %v1171 = vrot.slane %v1155, %v1170
      %v1172 = vmul.f32 %v1162, %v1167
      %v1173 = vmul.f32 %v1162, %v1171
      %v1174 = vadd.f32 %v1019, %v1172
      %v1175 = vadd.f32 %v1020, %v1173
      %s1176 = scalar_lea.vmem %s1, 32
      %v1177 = vld [vmem:[%s1176] sm:$0xff]
      %1179 = vset.pattern.permute.xlu0 0
      %1180 = vperm.xlu0 %1179, %v1177
      %v1181 = vpop.permute.xlu0 %1180
      %v1183 = vmul.f32 %v1181, %v615
      %v1184 = vmul.f32 %v1181, %v619
      %v1185 = vadd.f32 %v1174, %v1183
      %v1186 = vadd.f32 %v1175, %v1184
      %s1187 = scalar_lea.vmem %s13, 2560
      %v1188 = vld [vmem:[%s1187] sm:$0xff]
      %v1189 = vld [vmem:[%s1187 + $0x8] sm:$0xff]
      %v1190 = vld [vmem:[%s1187 + $0x10] sm:$0xff]
      %v1191 = vld [vmem:[%s1187 + $0x18] sm:$0xff]
      %v1192 = vld [vmem:[%s1187 + $0x20] sm:$0xff]
      %v1193 = vld [vmem:[%s1187 + $0x28] sm:$0xff]
      %v1194 = vld [vmem:[%s1187 + $0x30] sm:$0xff]
      %v1195 = vld [vmem:[%s1187 + $0x38] sm:$0xff]
      %v1196 = vld [vmem:[%s1187 + $0x40] sm:$0xff]
      %v1197 = vld [vmem:[%s1187 + $0x48] sm:$0xff]
      %v1198 = vld [vmem:[%s1187 + $0x50] sm:$0xff]
      %v1199 = vld [vmem:[%s1187 + $0x58] sm:$0xff]
      %v1200 = vld [vmem:[%s1187 + $0x60] sm:$0xff]
      %v1201 = vld [vmem:[%s1187 + $0x68] sm:$0xff]
      %v1202 = vld [vmem:[%s1187 + $0x70] sm:$0xff]
      %v1203 = vld [vmem:[%s1187 + $0x78] sm:$0xff]
      %v1204 = vld [vmem:[%s1187 + $0x80] sm:$0xff]
      %v1205 = vld [vmem:[%s1187 + $0x88] sm:$0xff]
      %v1206 = vld [vmem:[%s1187 + $0x90] sm:$0xff]
      %v1207 = vld [vmem:[%s1187 + $0x98] sm:$0xff]
      %v1208 = vld [vmem:[%s1187 + $0xa0] sm:$0xff]
      %v1209 = vld [vmem:[%s1187 + $0xa8] sm:$0xff]
      %v1210 = vld [vmem:[%s1187 + $0xb0] sm:$0xff]
      %v1211 = vld [vmem:[%s1187 + $0xb8] sm:$0xff]
      %v1212 = vld [vmem:[%s1187 + $0xc0] sm:$0xff]
      %v1213 = vld [vmem:[%s1187 + $0xc8] sm:$0xff]
      %v1214 = vld [vmem:[%s1187 + $0xd0] sm:$0xff]
      %v1215 = vld [vmem:[%s1187 + $0xd8] sm:$0xff]
      %v1216 = vld [vmem:[%s1187 + $0xe0] sm:$0xff]
      %v1217 = vld [vmem:[%s1187 + $0xe8] sm:$0xff]
      %v1218 = vld [vmem:[%s1187 + $0xf0] sm:$0xff]
      %v1219 = vld [vmem:[%s1187 + $0xf8] sm:$0xff]
      %v1220 = vld [vmem:[%s1187 + $0x100] sm:$0xff]
      %v1221 = vld [vmem:[%s1187 + $0x108] sm:$0xff]
      %v1222 = vld [vmem:[%s1187 + $0x110] sm:$0xff]
      %v1223 = vld [vmem:[%s1187 + $0x118] sm:$0xff]
      %v1224 = vld [vmem:[%s1187 + $0x120] sm:$0xff]
      %v1225 = vld [vmem:[%s1187 + $0x128] sm:$0xff]
      %v1226 = vld [vmem:[%s1187 + $0x130] sm:$0xff]
      %v1227 = vld [vmem:[%s1187 + $0x138] sm:$0xff]
      %v1228 = vld [vmem:[%s1187 + $0x140] sm:$0xff]
      %v1229 = vld [vmem:[%s1187 + $0x148] sm:$0xff]
      %v1230 = vld [vmem:[%s1187 + $0x150] sm:$0xff]
      %v1231 = vld [vmem:[%s1187 + $0x158] sm:$0xff]
      %v1232 = vld [vmem:[%s1187 + $0x160] sm:$0xff]
      %v1233 = vld [vmem:[%s1187 + $0x168] sm:$0xff]
      %v1234 = vld [vmem:[%s1187 + $0x170] sm:$0xff]
      %v1235 = vld [vmem:[%s1187 + $0x178] sm:$0xff]
      %v1236 = vld [vmem:[%s1187 + $0x180] sm:$0xff]
      %v1237 = vld [vmem:[%s1187 + $0x188] sm:$0xff]
      %v1238 = vld [vmem:[%s1187 + $0x190] sm:$0xff]
      %v1239 = vld [vmem:[%s1187 + $0x198] sm:$0xff]
      %v1240 = vld [vmem:[%s1187 + $0x1a0] sm:$0xff]
      %v1241 = vld [vmem:[%s1187 + $0x1a8] sm:$0xff]
      %v1242 = vld [vmem:[%s1187 + $0x1b0] sm:$0xff]
      %v1243 = vld [vmem:[%s1187 + $0x1b8] sm:$0xff]
      %v1244 = vld [vmem:[%s1187 + $0x1c0] sm:$0xff]
      %v1245 = vld [vmem:[%s1187 + $0x1c8] sm:$0xff]
      %v1246 = vld [vmem:[%s1187 + $0x1d0] sm:$0xff]
      %v1247 = vld [vmem:[%s1187 + $0x1d8] sm:$0xff]
      %v1248 = vld [vmem:[%s1187 + $0x1e0] sm:$0xff]
      %v1249 = vld [vmem:[%s1187 + $0x1e8] sm:$0xff]
      %v1250 = vld [vmem:[%s1187 + $0x1f0] sm:$0xff]
      %v1251 = vld [vmem:[%s1187 + $0x1f8] sm:$0xff]
      %1252 = vmatprep.subr.mxu0 %v1189
      %1253 = vmatpush1.msra.mxu0 %v1188
      %1254 = vmatprep.subr.mxu0 %v1191
      %1255 = vmatpush1.msra.mxu0 %v1190
      %1256 = vmatprep.subr.mxu0 %v1193
      %1257 = vmatpush1.msra.mxu0 %v1192
      %1258 = vmatprep.subr.mxu0 %v1195
      %1259 = vmatpush1.msra.mxu0 %v1194
      %1260 = vmatprep.subr.mxu0 %v1197
      %1261 = vmatpush1.msra.mxu0 %v1196
      %1262 = vmatprep.subr.mxu0 %v1199
      %1263 = vmatpush1.msra.mxu0 %v1198
      %1264 = vmatprep.subr.mxu0 %v1201
      %1265 = vmatpush1.msra.mxu0 %v1200
      %1266 = vmatprep.subr.mxu0 %v1203
      %1267 = vmatpush1.msra.mxu0 %v1202
      %1268 = vmatprep.subr.mxu0 %v1205
      %1269 = vmatpush1.msra.mxu0 %v1204
      %1270 = vmatprep.subr.mxu0 %v1207
      %1271 = vmatpush1.msra.mxu0 %v1206
      %1272 = vmatprep.subr.mxu0 %v1209
      %1273 = vmatpush1.msra.mxu0 %v1208
      %1274 = vmatprep.subr.mxu0 %v1211
      %1275 = vmatpush1.msra.mxu0 %v1210
      %1276 = vmatprep.subr.mxu0 %v1213
      %1277 = vmatpush1.msra.mxu0 %v1212
      %1278 = vmatprep.subr.mxu0 %v1215
      %1279 = vmatpush1.msra.mxu0 %v1214
      %1280 = vmatprep.subr.mxu0 %v1217
      %1281 = vmatpush1.msra.mxu0 %v1216
      %1282 = vmatprep.subr.mxu0 %v1219
      %1283 = vmatpush1.msra.mxu0 %v1218
      %1284 = vmatprep.subr.mxu0 %v1221
      %1285 = vmatpush1.msra.mxu0 %v1220
      %1286 = vmatprep.subr.mxu0 %v1223
      %1287 = vmatpush1.msra.mxu0 %v1222
      %1288 = vmatprep.subr.mxu0 %v1225
      %1289 = vmatpush1.msra.mxu0 %v1224
      %1290 = vmatprep.subr.mxu0 %v1227
      %1291 = vmatpush1.msra.mxu0 %v1226
      %1292 = vmatprep.subr.mxu0 %v1229
      %1293 = vmatpush1.msra.mxu0 %v1228
      %1294 = vmatprep.subr.mxu0 %v1231
      %1295 = vmatpush1.msra.mxu0 %v1230
      %1296 = vmatprep.subr.mxu0 %v1233
      %1297 = vmatpush1.msra.mxu0 %v1232
      %1298 = vmatprep.subr.mxu0 %v1235
      %1299 = vmatpush1.msra.mxu0 %v1234
      %1300 = vmatprep.subr.mxu0 %v1237
      %1301 = vmatpush1.msra.mxu0 %v1236
      %1302 = vmatprep.subr.mxu0 %v1239
      %1303 = vmatpush1.msra.mxu0 %v1238
      %1304 = vmatprep.subr.mxu0 %v1241
      %1305 = vmatpush1.msra.mxu0 %v1240
      %1306 = vmatprep.subr.mxu0 %v1243
      %1307 = vmatpush1.msra.mxu0 %v1242
      %1308 = vmatprep.subr.mxu0 %v1245
      %1309 = vmatpush1.msra.mxu0 %v1244
      %1310 = vmatprep.subr.mxu0 %v1247
      %1311 = vmatpush1.msra.mxu0 %v1246
      %1312 = vmatprep.subr.mxu0 %v1249
      %1313 = vmatpush1.msra.mxu0 %v1248
      %1314 = vmatprep.subr.mxu0 %v1251
      %1315 = vmatpush1.msra.mxu0 %v1250
      %1316 = vmatprep.mubr.f32.mxu0 %v619
      %1317 = vmatmul.mubr.f32.gmra.mrb[0].mxu0 %v615
      %v1318 = vpop.f32.mrb[0].mxu0
      %v1319 = vadd.f32 0.0, %v1318
      %v1320 = vpop.f32.mrb[0].mxu0
      %v1321 = vadd.f32 0.0, %v1320
      %1322 = vdwg.mxu0
      %s1323 = scalar_lea.vmem %s1, 40
      %v1324 = vld [vmem:[%s1323] sm:$0xff]
      %1326 = vset.pattern.permute.xlu0 0
      %1327 = vperm.xlu0 %1326, %v1324
      %v1328 = vpop.permute.xlu0 %1327
      %v1330 = vlaneseq
      %v1331 = vshrl.u32 %v1330, 7
      %v1332 = vsub.s32 0, %v1331
      %v1333 = vrot.slane %v1319, %v1332
      %v1334 = vlaneseq
      %v1335 = vshrl.u32 %v1334, 7
      %v1336 = vsub.s32 0, %v1335
      %v1337 = vrot.slane %v1321, %v1336
      %v1338 = vmul.f32 %v1328, %v1333
      %v1339 = vmul.f32 %v1328, %v1337
      %v1340 = vadd.f32 %v1185, %v1338
      %v1341 = vadd.f32 %v1186, %v1339
      %s1342 = scalar_lea.vmem %s13, 3072
      %v1343 = vld [vmem:[%s1342] sm:$0xff]
      %v1344 = vld [vmem:[%s1342 + $0x8] sm:$0xff]
      %v1345 = vld [vmem:[%s1342 + $0x10] sm:$0xff]
      %v1346 = vld [vmem:[%s1342 + $0x18] sm:$0xff]
      %v1347 = vld [vmem:[%s1342 + $0x20] sm:$0xff]
      %v1348 = vld [vmem:[%s1342 + $0x28] sm:$0xff]
      %v1349 = vld [vmem:[%s1342 + $0x30] sm:$0xff]
      %v1350 = vld [vmem:[%s1342 + $0x38] sm:$0xff]
      %v1351 = vld [vmem:[%s1342 + $0x40] sm:$0xff]
      %v1352 = vld [vmem:[%s1342 + $0x48] sm:$0xff]
      %v1353 = vld [vmem:[%s1342 + $0x50] sm:$0xff]
      %v1354 = vld [vmem:[%s1342 + $0x58] sm:$0xff]
      %v1355 = vld [vmem:[%s1342 + $0x60] sm:$0xff]
      %v1356 = vld [vmem:[%s1342 + $0x68] sm:$0xff]
      %v1357 = vld [vmem:[%s1342 + $0x70] sm:$0xff]
      %v1358 = vld [vmem:[%s1342 + $0x78] sm:$0xff]
      %v1359 = vld [vmem:[%s1342 + $0x80] sm:$0xff]
      %v1360 = vld [vmem:[%s1342 + $0x88] sm:$0xff]
      %v1361 = vld [vmem:[%s1342 + $0x90] sm:$0xff]
      %v1362 = vld [vmem:[%s1342 + $0x98] sm:$0xff]
      %v1363 = vld [vmem:[%s1342 + $0xa0] sm:$0xff]
      %v1364 = vld [vmem:[%s1342 + $0xa8] sm:$0xff]
      %v1365 = vld [vmem:[%s1342 + $0xb0] sm:$0xff]
      %v1366 = vld [vmem:[%s1342 + $0xb8] sm:$0xff]
      %v1367 = vld [vmem:[%s1342 + $0xc0] sm:$0xff]
      %v1368 = vld [vmem:[%s1342 + $0xc8] sm:$0xff]
      %v1369 = vld [vmem:[%s1342 + $0xd0] sm:$0xff]
      %v1370 = vld [vmem:[%s1342 + $0xd8] sm:$0xff]
      %v1371 = vld [vmem:[%s1342 + $0xe0] sm:$0xff]
      %v1372 = vld [vmem:[%s1342 + $0xe8] sm:$0xff]
      %v1373 = vld [vmem:[%s1342 + $0xf0] sm:$0xff]
      %v1374 = vld [vmem:[%s1342 + $0xf8] sm:$0xff]
      %v1375 = vld [vmem:[%s1342 + $0x100] sm:$0xff]
      %v1376 = vld [vmem:[%s1342 + $0x108] sm:$0xff]
      %v1377 = vld [vmem:[%s1342 + $0x110] sm:$0xff]
      %v1378 = vld [vmem:[%s1342 + $0x118] sm:$0xff]
      %v1379 = vld [vmem:[%s1342 + $0x120] sm:$0xff]
      %v1380 = vld [vmem:[%s1342 + $0x128] sm:$0xff]
      %v1381 = vld [vmem:[%s1342 + $0x130] sm:$0xff]
      %v1382 = vld [vmem:[%s1342 + $0x138] sm:$0xff]
      %v1383 = vld [vmem:[%s1342 + $0x140] sm:$0xff]
      %v1384 = vld [vmem:[%s1342 + $0x148] sm:$0xff]
      %v1385 = vld [vmem:[%s1342 + $0x150] sm:$0xff]
      %v1386 = vld [vmem:[%s1342 + $0x158] sm:$0xff]
      %v1387 = vld [vmem:[%s1342 + $0x160] sm:$0xff]
      %v1388 = vld [vmem:[%s1342 + $0x168] sm:$0xff]
      %v1389 = vld [vmem:[%s1342 + $0x170] sm:$0xff]
      %v1390 = vld [vmem:[%s1342 + $0x178] sm:$0xff]
      %v1391 = vld [vmem:[%s1342 + $0x180] sm:$0xff]
      %v1392 = vld [vmem:[%s1342 + $0x188] sm:$0xff]
      %v1393 = vld [vmem:[%s1342 + $0x190] sm:$0xff]
      %v1394 = vld [vmem:[%s1342 + $0x198] sm:$0xff]
      %v1395 = vld [vmem:[%s1342 + $0x1a0] sm:$0xff]
      %v1396 = vld [vmem:[%s1342 + $0x1a8] sm:$0xff]
      %v1397 = vld [vmem:[%s1342 + $0x1b0] sm:$0xff]
      %v1398 = vld [vmem:[%s1342 + $0x1b8] sm:$0xff]
      %v1399 = vld [vmem:[%s1342 + $0x1c0] sm:$0xff]
      %v1400 = vld [vmem:[%s1342 + $0x1c8] sm:$0xff]
      %v1401 = vld [vmem:[%s1342 + $0x1d0] sm:$0xff]
      %v1402 = vld [vmem:[%s1342 + $0x1d8] sm:$0xff]
      %v1403 = vld [vmem:[%s1342 + $0x1e0] sm:$0xff]
      %v1404 = vld [vmem:[%s1342 + $0x1e8] sm:$0xff]
      %v1405 = vld [vmem:[%s1342 + $0x1f0] sm:$0xff]
      %v1406 = vld [vmem:[%s1342 + $0x1f8] sm:$0xff]
      %1407 = vmatprep.subr.mxu0 %v1344
      %1408 = vmatpush1.msra.mxu0 %v1343
      %1409 = vmatprep.subr.mxu0 %v1346
      %1410 = vmatpush1.msra.mxu0 %v1345
      %1411 = vmatprep.subr.mxu0 %v1348
      %1412 = vmatpush1.msra.mxu0 %v1347
      %1413 = vmatprep.subr.mxu0 %v1350
      %1414 = vmatpush1.msra.mxu0 %v1349
      %1415 = vmatprep.subr.mxu0 %v1352
      %1416 = vmatpush1.msra.mxu0 %v1351
      %1417 = vmatprep.subr.mxu0 %v1354
      %1418 = vmatpush1.msra.mxu0 %v1353
      %1419 = vmatprep.subr.mxu0 %v1356
      %1420 = vmatpush1.msra.mxu0 %v1355
      %1421 = vmatprep.subr.mxu0 %v1358
      %1422 = vmatpush1.msra.mxu0 %v1357
      %1423 = vmatprep.subr.mxu0 %v1360
      %1424 = vmatpush1.msra.mxu0 %v1359
      %1425 = vmatprep.subr.mxu0 %v1362
      %1426 = vmatpush1.msra.mxu0 %v1361
      %1427 = vmatprep.subr.mxu0 %v1364
      %1428 = vmatpush1.msra.mxu0 %v1363
      %1429 = vmatprep.subr.mxu0 %v1366
      %1430 = vmatpush1.msra.mxu0 %v1365
      %1431 = vmatprep.subr.mxu0 %v1368
      %1432 = vmatpush1.msra.mxu0 %v1367
      %1433 = vmatprep.subr.mxu0 %v1370
      %1434 = vmatpush1.msra.mxu0 %v1369
      %1435 = vmatprep.subr.mxu0 %v1372
      %1436 = vmatpush1.msra.mxu0 %v1371
      %1437 = vmatprep.subr.mxu0 %v1374
      %1438 = vmatpush1.msra.mxu0 %v1373
      %1439 = vmatprep.subr.mxu0 %v1376
      %1440 = vmatpush1.msra.mxu0 %v1375
      %1441 = vmatprep.subr.mxu0 %v1378
      %1442 = vmatpush1.msra.mxu0 %v1377
      %1443 = vmatprep.subr.mxu0 %v1380
      %1444 = vmatpush1.msra.mxu0 %v1379
      %1445 = vmatprep.subr.mxu0 %v1382
      %1446 = vmatpush1.msra.mxu0 %v1381
      %1447 = vmatprep.subr.mxu0 %v1384
      %1448 = vmatpush1.msra.mxu0 %v1383
      %1449 = vmatprep.subr.mxu0 %v1386
      %1450 = vmatpush1.msra.mxu0 %v1385
      %1451 = vmatprep.subr.mxu0 %v1388
      %1452 = vmatpush1.msra.mxu0 %v1387
      %1453 = vmatprep.subr.mxu0 %v1390
      %1454 = vmatpush1.msra.mxu0 %v1389
      %1455 = vmatprep.subr.mxu0 %v1392
      %1456 = vmatpush1.msra.mxu0 %v1391
      %1457 = vmatprep.subr.mxu0 %v1394
      %1458 = vmatpush1.msra.mxu0 %v1393
      %1459 = vmatprep.subr.mxu0 %v1396
      %1460 = vmatpush1.msra.mxu0 %v1395
      %1461 = vmatprep.subr.mxu0 %v1398
      %1462 = vmatpush1.msra.mxu0 %v1397
      %1463 = vmatprep.subr.mxu0 %v1400
      %1464 = vmatpush1.msra.mxu0 %v1399
      %1465 = vmatprep.subr.mxu0 %v1402
      %1466 = vmatpush1.msra.mxu0 %v1401
      %1467 = vmatprep.subr.mxu0 %v1404
      %1468 = vmatpush1.msra.mxu0 %v1403
      %1469 = vmatprep.subr.mxu0 %v1406
      %1470 = vmatpush1.msra.mxu0 %v1405
      %1471 = vmatprep.mubr.f32.mxu0 %v619
      %1472 = vmatmul.mubr.f32.gmra.mrb[0].mxu0 %v615
      %v1473 = vpop.f32.mrb[0].mxu0
      %v1474 = vadd.f32 0.0, %v1473
      %v1475 = vpop.f32.mrb[0].mxu0
      %v1476 = vadd.f32 0.0, %v1475
      %1477 = vdwg.mxu0
      %s1478 = scalar_lea.vmem %s1, 48
      %v1479 = vld [vmem:[%s1478] sm:$0xff]
      %1481 = vset.pattern.permute.xlu0 0
      %1482 = vperm.xlu0 %1481, %v1479
      %v1483 = vpop.permute.xlu0 %1482
      %v1485 = vlaneseq
      %v1486 = vshrl.u32 %v1485, 7
      %v1487 = vsub.s32 0, %v1486
      %v1488 = vrot.slane %v1474, %v1487
      %v1489 = vlaneseq
      %v1490 = vshrl.u32 %v1489, 7
      %v1491 = vsub.s32 0, %v1490
      %v1492 = vrot.slane %v1476, %v1491
      %v1493 = vmul.f32 %v1483, %v1488
      %v1494 = vmul.f32 %v1483, %v1492
      %v1495 = vadd.f32 %v1340, %v1493
      %v1496 = vadd.f32 %v1341, %v1494
      %s1497 = scalar_lea.vmem %s13, 3584
      %v1498 = vld [vmem:[%s1497] sm:$0xff]
      %v1499 = vld [vmem:[%s1497 + $0x8] sm:$0xff]
      %v1500 = vld [vmem:[%s1497 + $0x10] sm:$0xff]
      %v1501 = vld [vmem:[%s1497 + $0x18] sm:$0xff]
      %v1502 = vld [vmem:[%s1497 + $0x20] sm:$0xff]
      %v1503 = vld [vmem:[%s1497 + $0x28] sm:$0xff]
      %v1504 = vld [vmem:[%s1497 + $0x30] sm:$0xff]
      %v1505 = vld [vmem:[%s1497 + $0x38] sm:$0xff]
      %v1506 = vld [vmem:[%s1497 + $0x40] sm:$0xff]
      %v1507 = vld [vmem:[%s1497 + $0x48] sm:$0xff]
      %v1508 = vld [vmem:[%s1497 + $0x50] sm:$0xff]
      %v1509 = vld [vmem:[%s1497 + $0x58] sm:$0xff]
      %v1510 = vld [vmem:[%s1497 + $0x60] sm:$0xff]
      %v1511 = vld [vmem:[%s1497 + $0x68] sm:$0xff]
      %v1512 = vld [vmem:[%s1497 + $0x70] sm:$0xff]
      %v1513 = vld [vmem:[%s1497 + $0x78] sm:$0xff]
      %v1514 = vld [vmem:[%s1497 + $0x80] sm:$0xff]
      %v1515 = vld [vmem:[%s1497 + $0x88] sm:$0xff]
      %v1516 = vld [vmem:[%s1497 + $0x90] sm:$0xff]
      %v1517 = vld [vmem:[%s1497 + $0x98] sm:$0xff]
      %v1518 = vld [vmem:[%s1497 + $0xa0] sm:$0xff]
      %v1519 = vld [vmem:[%s1497 + $0xa8] sm:$0xff]
      %v1520 = vld [vmem:[%s1497 + $0xb0] sm:$0xff]
      %v1521 = vld [vmem:[%s1497 + $0xb8] sm:$0xff]
      %v1522 = vld [vmem:[%s1497 + $0xc0] sm:$0xff]
      %v1523 = vld [vmem:[%s1497 + $0xc8] sm:$0xff]
      %v1524 = vld [vmem:[%s1497 + $0xd0] sm:$0xff]
      %v1525 = vld [vmem:[%s1497 + $0xd8] sm:$0xff]
      %v1526 = vld [vmem:[%s1497 + $0xe0] sm:$0xff]
      %v1527 = vld [vmem:[%s1497 + $0xe8] sm:$0xff]
      %v1528 = vld [vmem:[%s1497 + $0xf0] sm:$0xff]
      %v1529 = vld [vmem:[%s1497 + $0xf8] sm:$0xff]
      %v1530 = vld [vmem:[%s1497 + $0x100] sm:$0xff]
      %v1531 = vld [vmem:[%s1497 + $0x108] sm:$0xff]
      %v1532 = vld [vmem:[%s1497 + $0x110] sm:$0xff]
      %v1533 = vld [vmem:[%s1497 + $0x118] sm:$0xff]
      %v1534 = vld [vmem:[%s1497 + $0x120] sm:$0xff]
      %v1535 = vld [vmem:[%s1497 + $0x128] sm:$0xff]
      %v1536 = vld [vmem:[%s1497 + $0x130] sm:$0xff]
      %v1537 = vld [vmem:[%s1497 + $0x138] sm:$0xff]
      %v1538 = vld [vmem:[%s1497 + $0x140] sm:$0xff]
      %v1539 = vld [vmem:[%s1497 + $0x148] sm:$0xff]
      %v1540 = vld [vmem:[%s1497 + $0x150] sm:$0xff]
      %v1541 = vld [vmem:[%s1497 + $0x158] sm:$0xff]
      %v1542 = vld [vmem:[%s1497 + $0x160] sm:$0xff]
      %v1543 = vld [vmem:[%s1497 + $0x168] sm:$0xff]
      %v1544 = vld [vmem:[%s1497 + $0x170] sm:$0xff]
      %v1545 = vld [vmem:[%s1497 + $0x178] sm:$0xff]
      %v1546 = vld [vmem:[%s1497 + $0x180] sm:$0xff]
      %v1547 = vld [vmem:[%s1497 + $0x188] sm:$0xff]
      %v1548 = vld [vmem:[%s1497 + $0x190] sm:$0xff]
      %v1549 = vld [vmem:[%s1497 + $0x198] sm:$0xff]
      %v1550 = vld [vmem:[%s1497 + $0x1a0] sm:$0xff]
      %v1551 = vld [vmem:[%s1497 + $0x1a8] sm:$0xff]
      %v1552 = vld [vmem:[%s1497 + $0x1b0] sm:$0xff]
      %v1553 = vld [vmem:[%s1497 + $0x1b8] sm:$0xff]
      %v1554 = vld [vmem:[%s1497 + $0x1c0] sm:$0xff]
      %v1555 = vld [vmem:[%s1497 + $0x1c8] sm:$0xff]
      %v1556 = vld [vmem:[%s1497 + $0x1d0] sm:$0xff]
      %v1557 = vld [vmem:[%s1497 + $0x1d8] sm:$0xff]
      %v1558 = vld [vmem:[%s1497 + $0x1e0] sm:$0xff]
      %v1559 = vld [vmem:[%s1497 + $0x1e8] sm:$0xff]
      %v1560 = vld [vmem:[%s1497 + $0x1f0] sm:$0xff]
      %v1561 = vld [vmem:[%s1497 + $0x1f8] sm:$0xff]
      %1562 = vmatprep.subr.mxu0 %v1499
      %1563 = vmatpush1.msra.mxu0 %v1498
      %1564 = vmatprep.subr.mxu0 %v1501
      %1565 = vmatpush1.msra.mxu0 %v1500
      %1566 = vmatprep.subr.mxu0 %v1503
      %1567 = vmatpush1.msra.mxu0 %v1502
      %1568 = vmatprep.subr.mxu0 %v1505
      %1569 = vmatpush1.msra.mxu0 %v1504
      %1570 = vmatprep.subr.mxu0 %v1507
      %1571 = vmatpush1.msra.mxu0 %v1506
      %1572 = vmatprep.subr.mxu0 %v1509
      %1573 = vmatpush1.msra.mxu0 %v1508
      %1574 = vmatprep.subr.mxu0 %v1511
      %1575 = vmatpush1.msra.mxu0 %v1510
      %1576 = vmatprep.subr.mxu0 %v1513
      %1577 = vmatpush1.msra.mxu0 %v1512
      %1578 = vmatprep.subr.mxu0 %v1515
      %1579 = vmatpush1.msra.mxu0 %v1514
      %1580 = vmatprep.subr.mxu0 %v1517
      %1581 = vmatpush1.msra.mxu0 %v1516
      %1582 = vmatprep.subr.mxu0 %v1519
      %1583 = vmatpush1.msra.mxu0 %v1518
      %1584 = vmatprep.subr.mxu0 %v1521
      %1585 = vmatpush1.msra.mxu0 %v1520
      %1586 = vmatprep.subr.mxu0 %v1523
      %1587 = vmatpush1.msra.mxu0 %v1522
      %1588 = vmatprep.subr.mxu0 %v1525
      %1589 = vmatpush1.msra.mxu0 %v1524
      %1590 = vmatprep.subr.mxu0 %v1527
      %1591 = vmatpush1.msra.mxu0 %v1526
      %1592 = vmatprep.subr.mxu0 %v1529
      %1593 = vmatpush1.msra.mxu0 %v1528
      %1594 = vmatprep.subr.mxu0 %v1531
      %1595 = vmatpush1.msra.mxu0 %v1530
      %1596 = vmatprep.subr.mxu0 %v1533
      %1597 = vmatpush1.msra.mxu0 %v1532
      %1598 = vmatprep.subr.mxu0 %v1535
      %1599 = vmatpush1.msra.mxu0 %v1534
      %1600 = vmatprep.subr.mxu0 %v1537
      %1601 = vmatpush1.msra.mxu0 %v1536
      %1602 = vmatprep.subr.mxu0 %v1539
      %1603 = vmatpush1.msra.mxu0 %v1538
      %1604 = vmatprep.subr.mxu0 %v1541
      %1605 = vmatpush1.msra.mxu0 %v1540
      %1606 = vmatprep.subr.mxu0 %v1543
      %1607 = vmatpush1.msra.mxu0 %v1542
      %1608 = vmatprep.subr.mxu0 %v1545
      %1609 = vmatpush1.msra.mxu0 %v1544
      %1610 = vmatprep.subr.mxu0 %v1547
      %1611 = vmatpush1.msra.mxu0 %v1546
      %1612 = vmatprep.subr.mxu0 %v1549
      %1613 = vmatpush1.msra.mxu0 %v1548
      %1614 = vmatprep.subr.mxu0 %v1551
      %1615 = vmatpush1.msra.mxu0 %v1550
      %1616 = vmatprep.subr.mxu0 %v1553
      %1617 = vmatpush1.msra.mxu0 %v1552
      %1618 = vmatprep.subr.mxu0 %v1555
      %1619 = vmatpush1.msra.mxu0 %v1554
      %1620 = vmatprep.subr.mxu0 %v1557
      %1621 = vmatpush1.msra.mxu0 %v1556
      %1622 = vmatprep.subr.mxu0 %v1559
      %1623 = vmatpush1.msra.mxu0 %v1558
      %1624 = vmatprep.subr.mxu0 %v1561
      %1625 = vmatpush1.msra.mxu0 %v1560
      %1626 = vmatprep.mubr.f32.mxu0 %v619
      %1627 = vmatmul.mubr.f32.gmra.mrb[0].mxu0 %v615
      %v1628 = vpop.f32.mrb[0].mxu0
      %v1629 = vadd.f32 0.0, %v1628
      %v1630 = vpop.f32.mrb[0].mxu0
      %v1631 = vadd.f32 0.0, %v1630
      %1632 = vdwg.mxu0
      %s1633 = scalar_lea.vmem %s1, 56
      %v1634 = vld [vmem:[%s1633] sm:$0xff]
      %1636 = vset.pattern.permute.xlu0 0
      %1637 = vperm.xlu0 %1636, %v1634
      %v1638 = vpop.permute.xlu0 %1637
      %v1640 = vlaneseq
      %v1641 = vshrl.u32 %v1640, 7
      %v1642 = vsub.s32 0, %v1641
      %v1643 = vrot.slane %v1629, %v1642
      %v1644 = vlaneseq
      %v1645 = vshrl.u32 %v1644, 7
      %v1646 = vsub.s32 0, %v1645
      %v1647 = vrot.slane %v1631, %v1646
      %v1648 = vmul.f32 %v1638, %v1643
      %v1649 = vmul.f32 %v1638, %v1647
      %v1650 = vadd.f32 %v1495, %v1648
      %v1651 = vadd.f32 %v1496, %v1649
      %s1652 = scalar_lea.vmem %s13, 4096
      %v1653 = vld [vmem:[%s1652] sm:$0xff]
      %v1654 = vld [vmem:[%s1652 + $0x8] sm:$0xff]
      %v1655 = vld [vmem:[%s1652 + $0x10] sm:$0xff]
      %v1656 = vld [vmem:[%s1652 + $0x18] sm:$0xff]
      %v1657 = vld [vmem:[%s1652 + $0x20] sm:$0xff]
      %v1658 = vld [vmem:[%s1652 + $0x28] sm:$0xff]
      %v1659 = vld [vmem:[%s1652 + $0x30] sm:$0xff]
      %v1660 = vld [vmem:[%s1652 + $0x38] sm:$0xff]
      %v1661 = vld [vmem:[%s1652 + $0x40] sm:$0xff]
      %v1662 = vld [vmem:[%s1652 + $0x48] sm:$0xff]
      %v1663 = vld [vmem:[%s1652 + $0x50] sm:$0xff]
      %v1664 = vld [vmem:[%s1652 + $0x58] sm:$0xff]
      %v1665 = vld [vmem:[%s1652 + $0x60] sm:$0xff]
      %v1666 = vld [vmem:[%s1652 + $0x68] sm:$0xff]
      %v1667 = vld [vmem:[%s1652 + $0x70] sm:$0xff]
      %v1668 = vld [vmem:[%s1652 + $0x78] sm:$0xff]
      %v1669 = vld [vmem:[%s1652 + $0x80] sm:$0xff]
      %v1670 = vld [vmem:[%s1652 + $0x88] sm:$0xff]
      %v1671 = vld [vmem:[%s1652 + $0x90] sm:$0xff]
      %v1672 = vld [vmem:[%s1652 + $0x98] sm:$0xff]
      %v1673 = vld [vmem:[%s1652 + $0xa0] sm:$0xff]
      %v1674 = vld [vmem:[%s1652 + $0xa8] sm:$0xff]
      %v1675 = vld [vmem:[%s1652 + $0xb0] sm:$0xff]
      %v1676 = vld [vmem:[%s1652 + $0xb8] sm:$0xff]
      %v1677 = vld [vmem:[%s1652 + $0xc0] sm:$0xff]
      %v1678 = vld [vmem:[%s1652 + $0xc8] sm:$0xff]
      %v1679 = vld [vmem:[%s1652 + $0xd0] sm:$0xff]
      %v1680 = vld [vmem:[%s1652 + $0xd8] sm:$0xff]
      %v1681 = vld [vmem:[%s1652 + $0xe0] sm:$0xff]
      %v1682 = vld [vmem:[%s1652 + $0xe8] sm:$0xff]
      %v1683 = vld [vmem:[%s1652 + $0xf0] sm:$0xff]
      %v1684 = vld [vmem:[%s1652 + $0xf8] sm:$0xff]
      %v1685 = vld [vmem:[%s1652 + $0x100] sm:$0xff]
      %v1686 = vld [vmem:[%s1652 + $0x108] sm:$0xff]
      %v1687 = vld [vmem:[%s1652 + $0x110] sm:$0xff]
      %v1688 = vld [vmem:[%s1652 + $0x118] sm:$0xff]
      %v1689 = vld [vmem:[%s1652 + $0x120] sm:$0xff]
      %v1690 = vld [vmem:[%s1652 + $0x128] sm:$0xff]
      %v1691 = vld [vmem:[%s1652 + $0x130] sm:$0xff]
      %v1692 = vld [vmem:[%s1652 + $0x138] sm:$0xff]
      %v1693 = vld [vmem:[%s1652 + $0x140] sm:$0xff]
      %v1694 = vld [vmem:[%s1652 + $0x148] sm:$0xff]
      %v1695 = vld [vmem:[%s1652 + $0x150] sm:$0xff]
      %v1696 = vld [vmem:[%s1652 + $0x158] sm:$0xff]
      %v1697 = vld [vmem:[%s1652 + $0x160] sm:$0xff]
      %v1698 = vld [vmem:[%s1652 + $0x168] sm:$0xff]
      %v1699 = vld [vmem:[%s1652 + $0x170] sm:$0xff]
      %v1700 = vld [vmem:[%s1652 + $0x178] sm:$0xff]
      %v1701 = vld [vmem:[%s1652 + $0x180] sm:$0xff]
      %v1702 = vld [vmem:[%s1652 + $0x188] sm:$0xff]
      %v1703 = vld [vmem:[%s1652 + $0x190] sm:$0xff]
      %v1704 = vld [vmem:[%s1652 + $0x198] sm:$0xff]
      %v1705 = vld [vmem:[%s1652 + $0x1a0] sm:$0xff]
      %v1706 = vld [vmem:[%s1652 + $0x1a8] sm:$0xff]
      %v1707 = vld [vmem:[%s1652 + $0x1b0] sm:$0xff]
      %v1708 = vld [vmem:[%s1652 + $0x1b8] sm:$0xff]
      %v1709 = vld [vmem:[%s1652 + $0x1c0] sm:$0xff]
      %v1710 = vld [vmem:[%s1652 + $0x1c8] sm:$0xff]
      %v1711 = vld [vmem:[%s1652 + $0x1d0] sm:$0xff]
      %v1712 = vld [vmem:[%s1652 + $0x1d8] sm:$0xff]
      %v1713 = vld [vmem:[%s1652 + $0x1e0] sm:$0xff]
      %v1714 = vld [vmem:[%s1652 + $0x1e8] sm:$0xff]
      %v1715 = vld [vmem:[%s1652 + $0x1f0] sm:$0xff]
      %v1716 = vld [vmem:[%s1652 + $0x1f8] sm:$0xff]
      %1717 = vmatprep.subr.mxu0 %v1654
      %1718 = vmatpush1.msra.mxu0 %v1653
      %1719 = vmatprep.subr.mxu0 %v1656
      %1720 = vmatpush1.msra.mxu0 %v1655
      %1721 = vmatprep.subr.mxu0 %v1658
      %1722 = vmatpush1.msra.mxu0 %v1657
      %1723 = vmatprep.subr.mxu0 %v1660
      %1724 = vmatpush1.msra.mxu0 %v1659
      %1725 = vmatprep.subr.mxu0 %v1662
      %1726 = vmatpush1.msra.mxu0 %v1661
      %1727 = vmatprep.subr.mxu0 %v1664
      %1728 = vmatpush1.msra.mxu0 %v1663
      %1729 = vmatprep.subr.mxu0 %v1666
      %1730 = vmatpush1.msra.mxu0 %v1665
      %1731 = vmatprep.subr.mxu0 %v1668
      %1732 = vmatpush1.msra.mxu0 %v1667
      %1733 = vmatprep.subr.mxu0 %v1670
      %1734 = vmatpush1.msra.mxu0 %v1669
      %1735 = vmatprep.subr.mxu0 %v1672
      %1736 = vmatpush1.msra.mxu0 %v1671
      %1737 = vmatprep.subr.mxu0 %v1674
      %1738 = vmatpush1.msra.mxu0 %v1673
      %1739 = vmatprep.subr.mxu0 %v1676
      %1740 = vmatpush1.msra.mxu0 %v1675
      %1741 = vmatprep.subr.mxu0 %v1678
      %1742 = vmatpush1.msra.mxu0 %v1677
      %1743 = vmatprep.subr.mxu0 %v1680
      %1744 = vmatpush1.msra.mxu0 %v1679
      %1745 = vmatprep.subr.mxu0 %v1682
      %1746 = vmatpush1.msra.mxu0 %v1681
      %1747 = vmatprep.subr.mxu0 %v1684
      %1748 = vmatpush1.msra.mxu0 %v1683
      %1749 = vmatprep.subr.mxu0 %v1686
      %1750 = vmatpush1.msra.mxu0 %v1685
      %1751 = vmatprep.subr.mxu0 %v1688
      %1752 = vmatpush1.msra.mxu0 %v1687
      %1753 = vmatprep.subr.mxu0 %v1690
      %1754 = vmatpush1.msra.mxu0 %v1689
      %1755 = vmatprep.subr.mxu0 %v1692
      %1756 = vmatpush1.msra.mxu0 %v1691
      %1757 = vmatprep.subr.mxu0 %v1694
      %1758 = vmatpush1.msra.mxu0 %v1693
      %1759 = vmatprep.subr.mxu0 %v1696
      %1760 = vmatpush1.msra.mxu0 %v1695
      %1761 = vmatprep.subr.mxu0 %v1698
      %1762 = vmatpush1.msra.mxu0 %v1697
      %1763 = vmatprep.subr.mxu0 %v1700
      %1764 = vmatpush1.msra.mxu0 %v1699
      %1765 = vmatprep.subr.mxu0 %v1702
      %1766 = vmatpush1.msra.mxu0 %v1701
      %1767 = vmatprep.subr.mxu0 %v1704
      %1768 = vmatpush1.msra.mxu0 %v1703
      %1769 = vmatprep.subr.mxu0 %v1706
      %1770 = vmatpush1.msra.mxu0 %v1705
      %1771 = vmatprep.subr.mxu0 %v1708
      %1772 = vmatpush1.msra.mxu0 %v1707
      %1773 = vmatprep.subr.mxu0 %v1710
      %1774 = vmatpush1.msra.mxu0 %v1709
      %1775 = vmatprep.subr.mxu0 %v1712
      %1776 = vmatpush1.msra.mxu0 %v1711
      %1777 = vmatprep.subr.mxu0 %v1714
      %1778 = vmatpush1.msra.mxu0 %v1713
      %1779 = vmatprep.subr.mxu0 %v1716
      %1780 = vmatpush1.msra.mxu0 %v1715
      %1781 = vmatprep.mubr.f32.mxu0 %v619
      %1782 = vmatmul.mubr.f32.gmra.mrb[0].mxu0 %v615
      %v1783 = vpop.f32.mrb[0].mxu0
      %v1784 = vadd.f32 0.0, %v1783
      %v1785 = vpop.f32.mrb[0].mxu0
      %v1786 = vadd.f32 0.0, %v1785
      %1787 = vdwg.mxu0
      %s1788 = scalar_lea.vmem %s1, 64
      %v1789 = vld [vmem:[%s1788] sm:$0xff]
      %1791 = vset.pattern.permute.xlu0 0
      %1792 = vperm.xlu0 %1791, %v1789
      %v1793 = vpop.permute.xlu0 %1792
      %v1795 = vlaneseq
      %v1796 = vshrl.u32 %v1795, 7
      %v1797 = vsub.s32 0, %v1796
      %v1798 = vrot.slane %v1784, %v1797
      %v1799 = vlaneseq
      %v1800 = vshrl.u32 %v1799, 7
      %v1801 = vsub.s32 0, %v1800
      %v1802 = vrot.slane %v1786, %v1801
      %v1803 = vmul.f32 %v1793, %v1798
      %v1804 = vmul.f32 %v1793, %v1802
      %v1805 = vadd.f32 %v1650, %v1803
      %v1806 = vadd.f32 %v1651, %v1804
      %v1807 = vld [vmem:[%s2] sm:$0xff]
      %1809 = vset.pattern.permute.xlu0 0
      %1810 = vperm.xlu0 %1809, %v1807
      %v1811 = vpop.permute.xlu0 %1810
      %v1813 = vadd.f32 %v1805, %v1811
      %v1814 = vadd.f32 %v1806, %v1811
      %v1815 = vmax.f32 %v1813, 0.0
      %v1816 = vmax.f32 %v1814, 0.0
      %1817 = vmatprep.subr.mxu0 %v548
      %1818 = vmatpush1.msra.mxu0 %v547
      %1819 = vmatprep.subr.mxu0 %v550
      %1820 = vmatpush1.msra.mxu0 %v549
      %1821 = vmatprep.subr.mxu0 %v552
      %1822 = vmatpush1.msra.mxu0 %v551
      %1823 = vmatprep.subr.mxu0 %v554
      %1824 = vmatpush1.msra.mxu0 %v553
      %1825 = vmatprep.subr.mxu0 %v556
      %1826 = vmatpush1.msra.mxu0 %v555
      %1827 = vmatprep.subr.mxu0 %v558
      %1828 = vmatpush1.msra.mxu0 %v557
      %1829 = vmatprep.subr.mxu0 %v560
      %1830 = vmatpush1.msra.mxu0 %v559
      %1831 = vmatprep.subr.mxu0 %v562
      %1832 = vmatpush1.msra.mxu0 %v561
      %1833 = vmatprep.subr.mxu0 %v564
      %1834 = vmatpush1.msra.mxu0 %v563
      %1835 = vmatprep.subr.mxu0 %v566
      %1836 = vmatpush1.msra.mxu0 %v565
      %1837 = vmatprep.subr.mxu0 %v568
      %1838 = vmatpush1.msra.mxu0 %v567
      %1839 = vmatprep.subr.mxu0 %v570
      %1840 = vmatpush1.msra.mxu0 %v569
      %1841 = vmatprep.subr.mxu0 %v572
      %1842 = vmatpush1.msra.mxu0 %v571
      %1843 = vmatprep.subr.mxu0 %v574
      %1844 = vmatpush1.msra.mxu0 %v573
      %1845 = vmatprep.subr.mxu0 %v576
      %1846 = vmatpush1.msra.mxu0 %v575
      %1847 = vmatprep.subr.mxu0 %v578
      %1848 = vmatpush1.msra.mxu0 %v577
      %1849 = vmatprep.subr.mxu0 %v580
      %1850 = vmatpush1.msra.mxu0 %v579
      %1851 = vmatprep.subr.mxu0 %v582
      %1852 = vmatpush1.msra.mxu0 %v581
      %1853 = vmatprep.subr.mxu0 %v584
      %1854 = vmatpush1.msra.mxu0 %v583
      %1855 = vmatprep.subr.mxu0 %v586
      %1856 = vmatpush1.msra.mxu0 %v585
      %1857 = vmatprep.subr.mxu0 %v588
      %1858 = vmatpush1.msra.mxu0 %v587
      %1859 = vmatprep.subr.mxu0 %v590
      %1860 = vmatpush1.msra.mxu0 %v589
      %1861 = vmatprep.subr.mxu0 %v592
      %1862 = vmatpush1.msra.mxu0 %v591
      %1863 = vmatprep.subr.mxu0 %v594
      %1864 = vmatpush1.msra.mxu0 %v593
      %1865 = vmatprep.subr.mxu0 %v596
      %1866 = vmatpush1.msra.mxu0 %v595
      %1867 = vmatprep.subr.mxu0 %v598
      %1868 = vmatpush1.msra.mxu0 %v597
      %1869 = vmatprep.subr.mxu0 %v600
      %1870 = vmatpush1.msra.mxu0 %v599
      %1871 = vmatprep.subr.mxu0 %v602
      %1872 = vmatpush1.msra.mxu0 %v601
      %1873 = vmatprep.subr.mxu0 %v604
      %1874 = vmatpush1.msra.mxu0 %v603
      %1875 = vmatprep.subr.mxu0 %v606
      %1876 = vmatpush1.msra.mxu0 %v605
      %1877 = vmatprep.subr.mxu0 %v608
      %1878 = vmatpush1.msra.mxu0 %v607
      %1879 = vmatprep.subr.mxu0 %v610
      %1880 = vmatpush1.msra.mxu0 %v609
      %1881 = vmatprep.mubr.f32.mxu0 %v1816
      %1882 = vmatmul.mubr.f32.gmra.mrb[0].mxu0 %v1815
      %v1883 = vpop.f32.mrb[0].mxu0
      %v1884 = vadd.f32 0.0, %v1883
      %v1885 = vpop.f32.mrb[0].mxu0
      %v1886 = vadd.f32 0.0, %v1885
      %1887 = vdwg.mxu0
      %v1888 = vld [vmem:[%s3] sm:$0xff]
      %1889 = vmatprep.subr.mxu0 %v713
      %1890 = vmatpush1.msra.mxu0 %v712
      %1891 = vmatprep.subr.mxu0 %v715
      %1892 = vmatpush1.msra.mxu0 %v714
      %1893 = vmatprep.subr.mxu0 %v717
      %1894 = vmatpush1.msra.mxu0 %v716
      %1895 = vmatprep.subr.mxu0 %v719
      %1896 = vmatpush1.msra.mxu0 %v718
      %1897 = vmatprep.subr.mxu0 %v721
      %1898 = vmatpush1.msra.mxu0 %v720
      %1899 = vmatprep.subr.mxu0 %v723
      %1900 = vmatpush1.msra.mxu0 %v722
      %1901 = vmatprep.subr.mxu0 %v725
      %1902 = vmatpush1.msra.mxu0 %v724
      %1903 = vmatprep.subr.mxu0 %v727
      %1904 = vmatpush1.msra.mxu0 %v726
      %1905 = vmatprep.subr.mxu0 %v729
      %1906 = vmatpush1.msra.mxu0 %v728
      %1907 = vmatprep.subr.mxu0 %v731
      %1908 = vmatpush1.msra.mxu0 %v730
      %1909 = vmatprep.subr.mxu0 %v733
      %1910 = vmatpush1.msra.mxu0 %v732
      %1911 = vmatprep.subr.mxu0 %v735
      %1912 = vmatpush1.msra.mxu0 %v734
      %1913 = vmatprep.subr.mxu0 %v737
      %1914 = vmatpush1.msra.mxu0 %v736
      %1915 = vmatprep.subr.mxu0 %v739
      %1916 = vmatpush1.msra.mxu0 %v738
      %1917 = vmatprep.subr.mxu0 %v741
      %1918 = vmatpush1.msra.mxu0 %v740
      %1919 = vmatprep.subr.mxu0 %v743
      %1920 = vmatpush1.msra.mxu0 %v742
      %1921 = vmatprep.subr.mxu0 %v745
      %1922 = vmatpush1.msra.mxu0 %v744
      %1923 = vmatprep.subr.mxu0 %v747
      %1924 = vmatpush1.msra.mxu0 %v746
      %1925 = vmatprep.subr.mxu0 %v749
      %1926 = vmatpush1.msra.mxu0 %v748
      %1927 = vmatprep.subr.mxu0 %v751
      %1928 = vmatpush1.msra.mxu0 %v750
      %1929 = vmatprep.subr.mxu0 %v753
      %1930 = vmatpush1.msra.mxu0 %v752
      %1931 = vmatprep.subr.mxu0 %v755
      %1932 = vmatpush1.msra.mxu0 %v754
      %1933 = vmatprep.subr.mxu0 %v757
      %1934 = vmatpush1.msra.mxu0 %v756
      %1935 = vmatprep.subr.mxu0 %v759
      %1936 = vmatpush1.msra.mxu0 %v758
      %1937 = vmatprep.subr.mxu0 %v761
      %1938 = vmatpush1.msra.mxu0 %v760
      %1939 = vmatprep.subr.mxu0 %v763
      %1940 = vmatpush1.msra.mxu0 %v762
      %1941 = vmatprep.subr.mxu0 %v765
      %1942 = vmatpush1.msra.mxu0 %v764
      %1943 = vmatprep.subr.mxu0 %v767
      %1944 = vmatpush1.msra.mxu0 %v766
      %1945 = vmatprep.subr.mxu0 %v769
      %1946 = vmatpush1.msra.mxu0 %v768
      %1947 = vmatprep.subr.mxu0 %v771
      %1948 = vmatpush1.msra.mxu0 %v770
      %1949 = vmatprep.subr.mxu0 %v773
      %1950 = vmatpush1.msra.mxu0 %v772
      %1951 = vmatprep.subr.mxu0 %v775
      %1952 = vmatpush1.msra.mxu0 %v774
      %1953 = vmatprep.mubr.f32.mxu0 %v1816
      %1954 = vmatmul.mubr.f32.gmra.mrb[0].mxu0 %v1815
      %v1955 = vpop.f32.mrb[0].mxu0
      %v1956 = vadd.f32 0.0, %v1955
      %v1957 = vpop.f32.mrb[0].mxu0
      %v1958 = vadd.f32 0.0, %v1957
      %1959 = vdwg.mxu0
      %s1960 = scalar_lea.vmem %s3, 8
      %v1961 = vld [vmem:[%s1960] sm:$0xff]
      %vm1962 = vcmask 64512
      %v1964 = vsel %vm1962, %v1961, 0
      %1966 = vmatprep.subr.mxu0 %v1958
      %1967 = vmatpush1.msra.mxu0 %v1956
      %1968 = vmatprep.subr.mxu0 0.0
      %1969 = vmatpush1.msra.mxu0 0.0
      %1970 = vmatprep.subr.mxu0 0.0
      %1971 = vmatpush1.msra.mxu0 0.0
      %1972 = vmatprep.subr.mxu0 0.0
      %1973 = vmatpush1.msra.mxu0 0.0
      %1974 = vmatprep.subr.mxu0 0.0
      %1975 = vmatpush1.msra.mxu0 0.0
      %1976 = vmatprep.subr.mxu0 0.0
      %1977 = vmatpush1.msra.mxu0 0.0
      %1978 = vmatprep.subr.mxu0 0.0
      %1979 = vmatpush1.msra.mxu0 0.0
      %1980 = vmatprep.subr.mxu0 0.0
      %1981 = vmatpush1.msra.mxu0 0.0
      %1982 = vmatprep.subr.mxu0 0.0
      %1983 = vmatpush1.msra.mxu0 0.0
      %1984 = vmatprep.subr.mxu0 0.0
      %1985 = vmatpush1.msra.mxu0 0.0
      %1986 = vmatprep.subr.mxu0 0.0
      %1987 = vmatpush1.msra.mxu0 0.0
      %1988 = vmatprep.subr.mxu0 0.0
      %1989 = vmatpush1.msra.mxu0 0.0
      %1990 = vmatprep.subr.mxu0 0.0
      %1991 = vmatpush1.msra.mxu0 0.0
      %1992 = vmatprep.subr.mxu0 0.0
      %1993 = vmatpush1.msra.mxu0 0.0
      %1994 = vmatprep.subr.mxu0 0.0
      %1995 = vmatpush1.msra.mxu0 0.0
      %1996 = vmatprep.subr.mxu0 0.0
      %1997 = vmatpush1.msra.mxu0 0.0
      %1998 = vmatprep.subr.mxu0 0.0
      %1999 = vmatpush1.msra.mxu0 0.0
      %2000 = vmatprep.subr.mxu0 0.0
      %2001 = vmatpush1.msra.mxu0 0.0
      %2002 = vmatprep.subr.mxu0 0.0
      %2003 = vmatpush1.msra.mxu0 0.0
      %2004 = vmatprep.subr.mxu0 0.0
      %2005 = vmatpush1.msra.mxu0 0.0
      %2006 = vmatprep.subr.mxu0 0.0
      %2007 = vmatpush1.msra.mxu0 0.0
      %2008 = vmatprep.subr.mxu0 0.0
      %2009 = vmatpush1.msra.mxu0 0.0
      %2010 = vmatprep.subr.mxu0 0.0
      %2011 = vmatpush1.msra.mxu0 0.0
      %2012 = vmatprep.subr.mxu0 0.0
      %2013 = vmatpush1.msra.mxu0 0.0
      %2014 = vmatprep.subr.mxu0 0.0
      %2015 = vmatpush1.msra.mxu0 0.0
      %2016 = vmatprep.subr.mxu0 0.0
      %2017 = vmatpush1.msra.mxu0 0.0
      %2018 = vmatprep.subr.mxu0 0.0
      %2019 = vmatpush1.msra.mxu0 0.0
      %2020 = vmatprep.subr.mxu0 0.0
      %2021 = vmatpush1.msra.mxu0 0.0
      %2022 = vmatprep.subr.mxu0 0.0
      %2023 = vmatpush1.msra.mxu0 0.0
      %2024 = vmatprep.subr.mxu0 0.0
      %2025 = vmatpush1.msra.mxu0 0.0
      %2026 = vmatprep.subr.mxu0 0.0
      %2027 = vmatpush1.msra.mxu0 0.0
      %2028 = vmatprep.subr.mxu0 0.0
      %2029 = vmatpush1.msra.mxu0 0.0
      %2030 = vmatprep.mubr.f32.mxu0 0.0
      %2031 = vmatmul.mubr.f32.gmra.mrb[0].mxu0 %v1964
      %v2032 = vpop.f32.mrb[0].mxu0
      %v2033 = vadd.f32 0.0, %v2032
      %v2034 = vpop.f32.mrb[0].mxu0
      %v2035 = vadd.f32 0.0, %v2034
      %2036 = vdwg.mxu0
      %v2038 = vsel %vm1962, %v1888, 0
      %2040 = vmatprep.subr.mxu0 %v1886
      %2041 = vmatpush1.msra.mxu0 %v1884
      %2042 = vmatprep.subr.mxu0 0.0
      %2043 = vmatpush1.msra.mxu0 0.0
      %2044 = vmatprep.subr.mxu0 0.0
      %2045 = vmatpush1.msra.mxu0 0.0
      %2046 = vmatprep.subr.mxu0 0.0
      %2047 = vmatpush1.msra.mxu0 0.0
      %2048 = vmatprep.subr.mxu0 0.0
      %2049 = vmatpush1.msra.mxu0 0.0
      %2050 = vmatprep.subr.mxu0 0.0
      %2051 = vmatpush1.msra.mxu0 0.0
      %2052 = vmatprep.subr.mxu0 0.0
      %2053 = vmatpush1.msra.mxu0 0.0
      %2054 = vmatprep.subr.mxu0 0.0
      %2055 = vmatpush1.msra.mxu0 0.0
      %2056 = vmatprep.subr.mxu0 0.0
      %2057 = vmatpush1.msra.mxu0 0.0
      %2058 = vmatprep.subr.mxu0 0.0
      %2059 = vmatpush1.msra.mxu0 0.0
      %2060 = vmatprep.subr.mxu0 0.0
      %2061 = vmatpush1.msra.mxu0 0.0
      %2062 = vmatprep.subr.mxu0 0.0
      %2063 = vmatpush1.msra.mxu0 0.0
      %2064 = vmatprep.subr.mxu0 0.0
      %2065 = vmatpush1.msra.mxu0 0.0
      %2066 = vmatprep.subr.mxu0 0.0
      %2067 = vmatpush1.msra.mxu0 0.0
      %2068 = vmatprep.subr.mxu0 0.0
      %2069 = vmatpush1.msra.mxu0 0.0
      %2070 = vmatprep.subr.mxu0 0.0
      %2071 = vmatpush1.msra.mxu0 0.0
      %2072 = vmatprep.subr.mxu0 0.0
      %2073 = vmatpush1.msra.mxu0 0.0
      %2074 = vmatprep.subr.mxu0 0.0
      %2075 = vmatpush1.msra.mxu0 0.0
      %2076 = vmatprep.subr.mxu0 0.0
      %2077 = vmatpush1.msra.mxu0 0.0
      %2078 = vmatprep.subr.mxu0 0.0
      %2079 = vmatpush1.msra.mxu0 0.0
      %2080 = vmatprep.subr.mxu0 0.0
      %2081 = vmatpush1.msra.mxu0 0.0
      %2082 = vmatprep.subr.mxu0 0.0
      %2083 = vmatpush1.msra.mxu0 0.0
      %2084 = vmatprep.subr.mxu0 0.0
      %2085 = vmatpush1.msra.mxu0 0.0
      %2086 = vmatprep.subr.mxu0 0.0
      %2087 = vmatpush1.msra.mxu0 0.0
      %2088 = vmatprep.subr.mxu0 0.0
      %2089 = vmatpush1.msra.mxu0 0.0
      %2090 = vmatprep.subr.mxu0 0.0
      %2091 = vmatpush1.msra.mxu0 0.0
      %2092 = vmatprep.subr.mxu0 0.0
      %2093 = vmatpush1.msra.mxu0 0.0
      %2094 = vmatprep.subr.mxu0 0.0
      %2095 = vmatpush1.msra.mxu0 0.0
      %2096 = vmatprep.subr.mxu0 0.0
      %2097 = vmatpush1.msra.mxu0 0.0
      %2098 = vmatprep.subr.mxu0 0.0
      %2099 = vmatpush1.msra.mxu0 0.0
      %2100 = vmatprep.subr.mxu0 0.0
      %2101 = vmatpush1.msra.mxu0 0.0
      %2102 = vmatprep.subr.mxu0 0.0
      %2103 = vmatpush1.msra.mxu0 0.0
      %2104 = vmatprep.mubr.f32.mxu0 0.0
      %2105 = vmatmul.mubr.f32.gmra.mrb[0].mxu0 %v2038
      %v2106 = vpop.f32.mrb[0].mxu0
      %v2107 = vadd.f32 %v2033, %v2106
      %v2108 = vpop.f32.mrb[0].mxu0
      %v2109 = vadd.f32 %v2035, %v2108
      %2110 = vdwg.mxu0
      %2111 = vmatprep.subr.mxu0 %v868
      %2112 = vmatpush1.msra.mxu0 %v867
      %2113 = vmatprep.subr.mxu0 %v870
      %2114 = vmatpush1.msra.mxu0 %v869
      %2115 = vmatprep.subr.mxu0 %v872
      %2116 = vmatpush1.msra.mxu0 %v871
      %2117 = vmatprep.subr.mxu0 %v874
      %2118 = vmatpush1.msra.mxu0 %v873
      %2119 = vmatprep.subr.mxu0 %v876
      %2120 = vmatpush1.msra.mxu0 %v875
      %2121 = vmatprep.subr.mxu0 %v878
      %2122 = vmatpush1.msra.mxu0 %v877
      %2123 = vmatprep.subr.mxu0 %v880
      %2124 = vmatpush1.msra.mxu0 %v879
      %2125 = vmatprep.subr.mxu0 %v882
      %2126 = vmatpush1.msra.mxu0 %v881
      %2127 = vmatprep.subr.mxu0 %v884
      %2128 = vmatpush1.msra.mxu0 %v883
      %2129 = vmatprep.subr.mxu0 %v886
      %2130 = vmatpush1.msra.mxu0 %v885
      %2131 = vmatprep.subr.mxu0 %v888
      %2132 = vmatpush1.msra.mxu0 %v887
      %2133 = vmatprep.subr.mxu0 %v890
      %2134 = vmatpush1.msra.mxu0 %v889
      %2135 = vmatprep.subr.mxu0 %v892
      %2136 = vmatpush1.msra.mxu0 %v891
      %2137 = vmatprep.subr.mxu0 %v894
      %2138 = vmatpush1.msra.mxu0 %v893
      %2139 = vmatprep.subr.mxu0 %v896
      %2140 = vmatpush1.msra.mxu0 %v895
      %2141 = vmatprep.subr.mxu0 %v898
      %2142 = vmatpush1.msra.mxu0 %v897
      %2143 = vmatprep.subr.mxu0 %v900
      %2144 = vmatpush1.msra.mxu0 %v899
      %2145 = vmatprep.subr.mxu0 %v902
      %2146 = vmatpush1.msra.mxu0 %v901
      %2147 = vmatprep.subr.mxu0 %v904
      %2148 = vmatpush1.msra.mxu0 %v903
      %2149 = vmatprep.subr.mxu0 %v906
      %2150 = vmatpush1.msra.mxu0 %v905
      %2151 = vmatprep.subr.mxu0 %v908
      %2152 = vmatpush1.msra.mxu0 %v907
      %2153 = vmatprep.subr.mxu0 %v910
      %2154 = vmatpush1.msra.mxu0 %v909
      %2155 = vmatprep.subr.mxu0 %v912
      %2156 = vmatpush1.msra.mxu0 %v911
      %2157 = vmatprep.subr.mxu0 %v914
      %2158 = vmatpush1.msra.mxu0 %v913
      %2159 = vmatprep.subr.mxu0 %v916
      %2160 = vmatpush1.msra.mxu0 %v915
      %2161 = vmatprep.subr.mxu0 %v918
      %2162 = vmatpush1.msra.mxu0 %v917
      %2163 = vmatprep.subr.mxu0 %v920
      %2164 = vmatpush1.msra.mxu0 %v919
      %2165 = vmatprep.subr.mxu0 %v922
      %2166 = vmatpush1.msra.mxu0 %v921
      %2167 = vmatprep.subr.mxu0 %v924
      %2168 = vmatpush1.msra.mxu0 %v923
      %2169 = vmatprep.subr.mxu0 %v926
      %2170 = vmatpush1.msra.mxu0 %v925
      %2171 = vmatprep.subr.mxu0 %v928
      %2172 = vmatpush1.msra.mxu0 %v927
      %2173 = vmatprep.subr.mxu0 %v930
      %2174 = vmatpush1.msra.mxu0 %v929
      %2175 = vmatprep.mubr.f32.mxu0 %v1816
      %2176 = vmatmul.mubr.f32.gmra.mrb[0].mxu0 %v1815
      %v2177 = vpop.f32.mrb[0].mxu0
      %v2178 = vadd.f32 0.0, %v2177
      %v2179 = vpop.f32.mrb[0].mxu0
      %v2180 = vadd.f32 0.0, %v2179
      %2181 = vdwg.mxu0
      %s2182 = scalar_lea.vmem %s3, 16
      %v2183 = vld [vmem:[%s2182] sm:$0xff]
      %v2185 = vsel %vm1962, %v2183, 0
      %2187 = vmatprep.subr.mxu0 %v2180
      %2188 = vmatpush1.msra.mxu0 %v2178
      %2189 = vmatprep.subr.mxu0 0.0
      %2190 = vmatpush1.msra.mxu0 0.0
      %2191 = vmatprep.subr.mxu0 0.0
      %2192 = vmatpush1.msra.mxu0 0.0
      %2193 = vmatprep.subr.mxu0 0.0
      %2194 = vmatpush1.msra.mxu0 0.0
      %2195 = vmatprep.subr.mxu0 0.0
      %2196 = vmatpush1.msra.mxu0 0.0
      %2197 = vmatprep.subr.mxu0 0.0
      %2198 = vmatpush1.msra.mxu0 0.0
      %2199 = vmatprep.subr.mxu0 0.0
      %2200 = vmatpush1.msra.mxu0 0.0
      %2201 = vmatprep.subr.mxu0 0.0
      %2202 = vmatpush1.msra.mxu0 0.0
      %2203 = vmatprep.subr.mxu0 0.0
      %2204 = vmatpush1.msra.mxu0 0.0
      %2205 = vmatprep.subr.mxu0 0.0
      %2206 = vmatpush1.msra.mxu0 0.0
      %2207 = vmatprep.subr.mxu0 0.0
      %2208 = vmatpush1.msra.mxu0 0.0
      %2209 = vmatprep.subr.mxu0 0.0
      %2210 = vmatpush1.msra.mxu0 0.0
      %2211 = vmatprep.subr.mxu0 0.0
      %2212 = vmatpush1.msra.mxu0 0.0
      %2213 = vmatprep.subr.mxu0 0.0
      %2214 = vmatpush1.msra.mxu0 0.0
      %2215 = vmatprep.subr.mxu0 0.0
      %2216 = vmatpush1.msra.mxu0 0.0
      %2217 = vmatprep.subr.mxu0 0.0
      %2218 = vmatpush1.msra.mxu0 0.0
      %2219 = vmatprep.subr.mxu0 0.0
      %2220 = vmatpush1.msra.mxu0 0.0
      %2221 = vmatprep.subr.mxu0 0.0
      %2222 = vmatpush1.msra.mxu0 0.0
      %2223 = vmatprep.subr.mxu0 0.0
      %2224 = vmatpush1.msra.mxu0 0.0
      %2225 = vmatprep.subr.mxu0 0.0
      %2226 = vmatpush1.msra.mxu0 0.0
      %2227 = vmatprep.subr.mxu0 0.0
      %2228 = vmatpush1.msra.mxu0 0.0
      %2229 = vmatprep.subr.mxu0 0.0
      %2230 = vmatpush1.msra.mxu0 0.0
      %2231 = vmatprep.subr.mxu0 0.0
      %2232 = vmatpush1.msra.mxu0 0.0
      %2233 = vmatprep.subr.mxu0 0.0
      %2234 = vmatpush1.msra.mxu0 0.0
      %2235 = vmatprep.subr.mxu0 0.0
      %2236 = vmatpush1.msra.mxu0 0.0
      %2237 = vmatprep.subr.mxu0 0.0
      %2238 = vmatpush1.msra.mxu0 0.0
      %2239 = vmatprep.subr.mxu0 0.0
      %2240 = vmatpush1.msra.mxu0 0.0
      %2241 = vmatprep.subr.mxu0 0.0
      %2242 = vmatpush1.msra.mxu0 0.0
      %2243 = vmatprep.subr.mxu0 0.0
      %2244 = vmatpush1.msra.mxu0 0.0
      %2245 = vmatprep.subr.mxu0 0.0
      %2246 = vmatpush1.msra.mxu0 0.0
      %2247 = vmatprep.subr.mxu0 0.0
      %2248 = vmatpush1.msra.mxu0 0.0
      %2249 = vmatprep.subr.mxu0 0.0
      %2250 = vmatpush1.msra.mxu0 0.0
      %2251 = vmatprep.mubr.f32.mxu0 0.0
      %2252 = vmatmul.mubr.f32.gmra.mrb[0].mxu0 %v2185
      %v2253 = vpop.f32.mrb[0].mxu0
      %v2254 = vadd.f32 0.0, %v2253
      %v2255 = vpop.f32.mrb[0].mxu0
      %v2256 = vadd.f32 0.0, %v2255
      %2257 = vdwg.mxu0
      %v2258 = vadd.f32 %v2107, %v2254
      %v2259 = vadd.f32 %v2109, %v2256
      %2260 = vmatprep.subr.mxu0 %v1023
      %2261 = vmatpush1.msra.mxu0 %v1022
      %2262 = vmatprep.subr.mxu0 %v1025
      %2263 = vmatpush1.msra.mxu0 %v1024
      %2264 = vmatprep.subr.mxu0 %v1027
      %2265 = vmatpush1.msra.mxu0 %v1026
      %2266 = vmatprep.subr.mxu0 %v1029
      %2267 = vmatpush1.msra.mxu0 %v1028
      %2268 = vmatprep.subr.mxu0 %v1031
      %2269 = vmatpush1.msra.mxu0 %v1030
      %2270 = vmatprep.subr.mxu0 %v1033
      %2271 = vmatpush1.msra.mxu0 %v1032
      %2272 = vmatprep.subr.mxu0 %v1035
      %2273 = vmatpush1.msra.mxu0 %v1034
      %2274 = vmatprep.subr.mxu0 %v1037
      %2275 = vmatpush1.msra.mxu0 %v1036
      %2276 = vmatprep.subr.mxu0 %v1039
      %2277 = vmatpush1.msra.mxu0 %v1038
      %2278 = vmatprep.subr.mxu0 %v1041
      %2279 = vmatpush1.msra.mxu0 %v1040
      %2280 = vmatprep.subr.mxu0 %v1043
      %2281 = vmatpush1.msra.mxu0 %v1042
      %2282 = vmatprep.subr.mxu0 %v1045
      %2283 = vmatpush1.msra.mxu0 %v1044
      %2284 = vmatprep.subr.mxu0 %v1047
      %2285 = vmatpush1.msra.mxu0 %v1046
      %2286 = vmatprep.subr.mxu0 %v1049
      %2287 = vmatpush1.msra.mxu0 %v1048
      %2288 = vmatprep.subr.mxu0 %v1051
      %2289 = vmatpush1.msra.mxu0 %v1050
      %2290 = vmatprep.subr.mxu0 %v1053
      %2291 = vmatpush1.msra.mxu0 %v1052
      %2292 = vmatprep.subr.mxu0 %v1055
      %2293 = vmatpush1.msra.mxu0 %v1054
      %2294 = vmatprep.subr.mxu0 %v1057
      %2295 = vmatpush1.msra.mxu0 %v1056
      %2296 = vmatprep.subr.mxu0 %v1059
      %2297 = vmatpush1.msra.mxu0 %v1058
      %2298 = vmatprep.subr.mxu0 %v1061
      %2299 = vmatpush1.msra.mxu0 %v1060
      %2300 = vmatprep.subr.mxu0 %v1063
      %2301 = vmatpush1.msra.mxu0 %v1062
      %2302 = vmatprep.subr.mxu0 %v1065
      %2303 = vmatpush1.msra.mxu0 %v1064
      %2304 = vmatprep.subr.mxu0 %v1067
      %2305 = vmatpush1.msra.mxu0 %v1066
      %2306 = vmatprep.subr.mxu0 %v1069
      %2307 = vmatpush1.msra.mxu0 %v1068
      %2308 = vmatprep.subr.mxu0 %v1071
      %2309 = vmatpush1.msra.mxu0 %v1070
      %2310 = vmatprep.subr.mxu0 %v1073
      %2311 = vmatpush1.msra.mxu0 %v1072
      %2312 = vmatprep.subr.mxu0 %v1075
      %2313 = vmatpush1.msra.mxu0 %v1074
      %2314 = vmatprep.subr.mxu0 %v1077
      %2315 = vmatpush1.msra.mxu0 %v1076
      %2316 = vmatprep.subr.mxu0 %v1079
      %2317 = vmatpush1.msra.mxu0 %v1078
      %2318 = vmatprep.subr.mxu0 %v1081
      %2319 = vmatpush1.msra.mxu0 %v1080
      %2320 = vmatprep.subr.mxu0 %v1083
      %2321 = vmatpush1.msra.mxu0 %v1082
      %2322 = vmatprep.subr.mxu0 %v1085
      %2323 = vmatpush1.msra.mxu0 %v1084
      %2324 = vmatprep.mubr.f32.mxu0 %v1816
      %2325 = vmatmul.mubr.f32.gmra.mrb[0].mxu0 %v1815
      %v2326 = vpop.f32.mrb[0].mxu0
      %v2327 = vadd.f32 0.0, %v2326
      %v2328 = vpop.f32.mrb[0].mxu0
      %v2329 = vadd.f32 0.0, %v2328
      %2330 = vdwg.mxu0
      %s2331 = scalar_lea.vmem %s3, 24
      %v2332 = vld [vmem:[%s2331] sm:$0xff]
      %v2334 = vsel %vm1962, %v2332, 0
      %2336 = vmatprep.subr.mxu0 %v2329
      %2337 = vmatpush1.msra.mxu0 %v2327
      %2338 = vmatprep.subr.mxu0 0.0
      %2339 = vmatpush1.msra.mxu0 0.0
      %2340 = vmatprep.subr.mxu0 0.0
      %2341 = vmatpush1.msra.mxu0 0.0
      %2342 = vmatprep.subr.mxu0 0.0
      %2343 = vmatpush1.msra.mxu0 0.0
      %2344 = vmatprep.subr.mxu0 0.0
      %2345 = vmatpush1.msra.mxu0 0.0
      %2346 = vmatprep.subr.mxu0 0.0
      %2347 = vmatpush1.msra.mxu0 0.0
      %2348 = vmatprep.subr.mxu0 0.0
      %2349 = vmatpush1.msra.mxu0 0.0
      %2350 = vmatprep.subr.mxu0 0.0
      %2351 = vmatpush1.msra.mxu0 0.0
      %2352 = vmatprep.subr.mxu0 0.0
      %2353 = vmatpush1.msra.mxu0 0.0
      %2354 = vmatprep.subr.mxu0 0.0
      %2355 = vmatpush1.msra.mxu0 0.0
      %2356 = vmatprep.subr.mxu0 0.0
      %2357 = vmatpush1.msra.mxu0 0.0
      %2358 = vmatprep.subr.mxu0 0.0
      %2359 = vmatpush1.msra.mxu0 0.0
      %2360 = vmatprep.subr.mxu0 0.0
      %2361 = vmatpush1.msra.mxu0 0.0
      %2362 = vmatprep.subr.mxu0 0.0
      %2363 = vmatpush1.msra.mxu0 0.0
      %2364 = vmatprep.subr.mxu0 0.0
      %2365 = vmatpush1.msra.mxu0 0.0
      %2366 = vmatprep.subr.mxu0 0.0
      %2367 = vmatpush1.msra.mxu0 0.0
      %2368 = vmatprep.subr.mxu0 0.0
      %2369 = vmatpush1.msra.mxu0 0.0
      %2370 = vmatprep.subr.mxu0 0.0
      %2371 = vmatpush1.msra.mxu0 0.0
      %2372 = vmatprep.subr.mxu0 0.0
      %2373 = vmatpush1.msra.mxu0 0.0
      %2374 = vmatprep.subr.mxu0 0.0
      %2375 = vmatpush1.msra.mxu0 0.0
      %2376 = vmatprep.subr.mxu0 0.0
      %2377 = vmatpush1.msra.mxu0 0.0
      %2378 = vmatprep.subr.mxu0 0.0
      %2379 = vmatpush1.msra.mxu0 0.0
      %2380 = vmatprep.subr.mxu0 0.0
      %2381 = vmatpush1.msra.mxu0 0.0
      %2382 = vmatprep.subr.mxu0 0.0
      %2383 = vmatpush1.msra.mxu0 0.0
      %2384 = vmatprep.subr.mxu0 0.0
      %2385 = vmatpush1.msra.mxu0 0.0
      %2386 = vmatprep.subr.mxu0 0.0
      %2387 = vmatpush1.msra.mxu0 0.0
      %2388 = vmatprep.subr.mxu0 0.0
      %2389 = vmatpush1.msra.mxu0 0.0
      %2390 = vmatprep.subr.mxu0 0.0
      %2391 = vmatpush1.msra.mxu0 0.0
      %2392 = vmatprep.subr.mxu0 0.0
      %2393 = vmatpush1.msra.mxu0 0.0
      %2394 = vmatprep.subr.mxu0 0.0
      %2395 = vmatpush1.msra.mxu0 0.0
      %2396 = vmatprep.subr.mxu0 0.0
      %2397 = vmatpush1.msra.mxu0 0.0
      %2398 = vmatprep.subr.mxu0 0.0
      %2399 = vmatpush1.msra.mxu0 0.0
      %2400 = vmatprep.mubr.f32.mxu0 0.0
      %2401 = vmatmul.mubr.f32.gmra.mrb[0].mxu0 %v2334
      %v2402 = vpop.f32.mrb[0].mxu0
      %v2403 = vadd.f32 0.0, %v2402
      %v2404 = vpop.f32.mrb[0].mxu0
      %v2405 = vadd.f32 0.0, %v2404
      %2406 = vdwg.mxu0
      %v2407 = vadd.f32 %v2258, %v2403
      %v2408 = vadd.f32 %v2259, %v2405
      %s2409 = scalar_lea.vmem %s3, 32
      %v2410 = vld [vmem:[%s2409] sm:$0xff]
      %v2412 = vsel %vm1962, %v2410, 0
      %2414 = vmatprep.subr.mxu0 %v1816
      %2415 = vmatpush1.msra.mxu0 %v1815
      %2416 = vmatprep.subr.mxu0 0.0
      %2417 = vmatpush1.msra.mxu0 0.0
      %2418 = vmatprep.subr.mxu0 0.0
      %2419 = vmatpush1.msra.mxu0 0.0
      %2420 = vmatprep.subr.mxu0 0.0
      %2421 = vmatpush1.msra.mxu0 0.0
      %2422 = vmatprep.subr.mxu0 0.0
      %2423 = vmatpush1.msra.mxu0 0.0
      %2424 = vmatprep.subr.mxu0 0.0
      %2425 = vmatpush1.msra.mxu0 0.0
      %2426 = vmatprep.subr.mxu0 0.0
      %2427 = vmatpush1.msra.mxu0 0.0
      %2428 = vmatprep.subr.mxu0 0.0
      %2429 = vmatpush1.msra.mxu0 0.0
      %2430 = vmatprep.subr.mxu0 0.0
      %2431 = vmatpush1.msra.mxu0 0.0
      %2432 = vmatprep.subr.mxu0 0.0
      %2433 = vmatpush1.msra.mxu0 0.0
      %2434 = vmatprep.subr.mxu0 0.0
      %2435 = vmatpush1.msra.mxu0 0.0
      %2436 = vmatprep.subr.mxu0 0.0
      %2437 = vmatpush1.msra.mxu0 0.0
      %2438 = vmatprep.subr.mxu0 0.0
      %2439 = vmatpush1.msra.mxu0 0.0
      %2440 = vmatprep.subr.mxu0 0.0
      %2441 = vmatpush1.msra.mxu0 0.0
      %2442 = vmatprep.subr.mxu0 0.0
      %2443 = vmatpush1.msra.mxu0 0.0
      %2444 = vmatprep.subr.mxu0 0.0
      %2445 = vmatpush1.msra.mxu0 0.0
      %2446 = vmatprep.subr.mxu0 0.0
      %2447 = vmatpush1.msra.mxu0 0.0
      %2448 = vmatprep.subr.mxu0 0.0
      %2449 = vmatpush1.msra.mxu0 0.0
      %2450 = vmatprep.subr.mxu0 0.0
      %2451 = vmatpush1.msra.mxu0 0.0
      %2452 = vmatprep.subr.mxu0 0.0
      %2453 = vmatpush1.msra.mxu0 0.0
      %2454 = vmatprep.subr.mxu0 0.0
      %2455 = vmatpush1.msra.mxu0 0.0
      %2456 = vmatprep.subr.mxu0 0.0
      %2457 = vmatpush1.msra.mxu0 0.0
      %2458 = vmatprep.subr.mxu0 0.0
      %2459 = vmatpush1.msra.mxu0 0.0
      %2460 = vmatprep.subr.mxu0 0.0
      %2461 = vmatpush1.msra.mxu0 0.0
      %2462 = vmatprep.subr.mxu0 0.0
      %2463 = vmatpush1.msra.mxu0 0.0
      %2464 = vmatprep.subr.mxu0 0.0
      %2465 = vmatpush1.msra.mxu0 0.0
      %2466 = vmatprep.subr.mxu0 0.0
      %2467 = vmatpush1.msra.mxu0 0.0
      %2468 = vmatprep.subr.mxu0 0.0
      %2469 = vmatpush1.msra.mxu0 0.0
      %2470 = vmatprep.subr.mxu0 0.0
      %2471 = vmatpush1.msra.mxu0 0.0
      %2472 = vmatprep.subr.mxu0 0.0
      %2473 = vmatpush1.msra.mxu0 0.0
      %2474 = vmatprep.subr.mxu0 0.0
      %2475 = vmatpush1.msra.mxu0 0.0
      %2476 = vmatprep.subr.mxu0 0.0
      %2477 = vmatpush1.msra.mxu0 0.0
      %2478 = vmatprep.mubr.f32.mxu0 0.0
      %2479 = vmatmul.mubr.f32.gmra.mrb[0].mxu0 %v2412
      %v2480 = vpop.f32.mrb[0].mxu0
      %v2481 = vadd.f32 0.0, %v2480
      %v2482 = vpop.f32.mrb[0].mxu0
      %v2483 = vadd.f32 0.0, %v2482
      %2484 = vdwg.mxu0
      %v2485 = vadd.f32 %v2407, %v2481
      %v2486 = vadd.f32 %v2408, %v2483
      %2487 = vmatprep.subr.mxu0 %v1189
      %2488 = vmatpush1.msra.mxu0 %v1188
      %2489 = vmatprep.subr.mxu0 %v1191
      %2490 = vmatpush1.msra.mxu0 %v1190
      %2491 = vmatprep.subr.mxu0 %v1193
      %2492 = vmatpush1.msra.mxu0 %v1192
      %2493 = vmatprep.subr.mxu0 %v1195
      %2494 = vmatpush1.msra.mxu0 %v1194
      %2495 = vmatprep.subr.mxu0 %v1197
      %2496 = vmatpush1.msra.mxu0 %v1196
      %2497 = vmatprep.subr.mxu0 %v1199
      %2498 = vmatpush1.msra.mxu0 %v1198
      %2499 = vmatprep.subr.mxu0 %v1201
      %2500 = vmatpush1.msra.mxu0 %v1200
      %2501 = vmatprep.subr.mxu0 %v1203
      %2502 = vmatpush1.msra.mxu0 %v1202
      %2503 = vmatprep.subr.mxu0 %v1205
      %2504 = vmatpush1.msra.mxu0 %v1204
      %2505 = vmatprep.subr.mxu0 %v1207
      %2506 = vmatpush1.msra.mxu0 %v1206
      %2507 = vmatprep.subr.mxu0 %v1209
      %2508 = vmatpush1.msra.mxu0 %v1208
      %2509 = vmatprep.subr.mxu0 %v1211
      %2510 = vmatpush1.msra.mxu0 %v1210
      %2511 = vmatprep.subr.mxu0 %v1213
      %2512 = vmatpush1.msra.mxu0 %v1212
      %2513 = vmatprep.subr.mxu0 %v1215
      %2514 = vmatpush1.msra.mxu0 %v1214
      %2515 = vmatprep.subr.mxu0 %v1217
      %2516 = vmatpush1.msra.mxu0 %v1216
      %2517 = vmatprep.subr.mxu0 %v1219
      %2518 = vmatpush1.msra.mxu0 %v1218
      %2519 = vmatprep.subr.mxu0 %v1221
      %2520 = vmatpush1.msra.mxu0 %v1220
      %2521 = vmatprep.subr.mxu0 %v1223
      %2522 = vmatpush1.msra.mxu0 %v1222
      %2523 = vmatprep.subr.mxu0 %v1225
      %2524 = vmatpush1.msra.mxu0 %v1224
      %2525 = vmatprep.subr.mxu0 %v1227
      %2526 = vmatpush1.msra.mxu0 %v1226
      %2527 = vmatprep.subr.mxu0 %v1229
      %2528 = vmatpush1.msra.mxu0 %v1228
      %2529 = vmatprep.subr.mxu0 %v1231
      %2530 = vmatpush1.msra.mxu0 %v1230
      %2531 = vmatprep.subr.mxu0 %v1233
      %2532 = vmatpush1.msra.mxu0 %v1232
      %2533 = vmatprep.subr.mxu0 %v1235
      %2534 = vmatpush1.msra.mxu0 %v1234
      %2535 = vmatprep.subr.mxu0 %v1237
      %2536 = vmatpush1.msra.mxu0 %v1236
      %2537 = vmatprep.subr.mxu0 %v1239
      %2538 = vmatpush1.msra.mxu0 %v1238
      %2539 = vmatprep.subr.mxu0 %v1241
      %2540 = vmatpush1.msra.mxu0 %v1240
      %2541 = vmatprep.subr.mxu0 %v1243
      %2542 = vmatpush1.msra.mxu0 %v1242
      %2543 = vmatprep.subr.mxu0 %v1245
      %2544 = vmatpush1.msra.mxu0 %v1244
      %2545 = vmatprep.subr.mxu0 %v1247
      %2546 = vmatpush1.msra.mxu0 %v1246
      %2547 = vmatprep.subr.mxu0 %v1249
      %2548 = vmatpush1.msra.mxu0 %v1248
      %2549 = vmatprep.subr.mxu0 %v1251
      %2550 = vmatpush1.msra.mxu0 %v1250
      %2551 = vmatprep.mubr.f32.mxu0 %v1816
      %2552 = vmatmul.mubr.f32.gmra.mrb[0].mxu0 %v1815
      %v2553 = vpop.f32.mrb[0].mxu0
      %v2554 = vadd.f32 0.0, %v2553
      %v2555 = vpop.f32.mrb[0].mxu0
      %v2556 = vadd.f32 0.0, %v2555
      %2557 = vdwg.mxu0
      %s2558 = scalar_lea.vmem %s3, 40
      %v2559 = vld [vmem:[%s2558] sm:$0xff]
      %v2561 = vsel %vm1962, %v2559, 0
      %2563 = vmatprep.subr.mxu0 %v2556
      %2564 = vmatpush1.msra.mxu0 %v2554
      %2565 = vmatprep.subr.mxu0 0.0
      %2566 = vmatpush1.msra.mxu0 0.0
      %2567 = vmatprep.subr.mxu0 0.0
      %2568 = vmatpush1.msra.mxu0 0.0
      %2569 = vmatprep.subr.mxu0 0.0
      %2570 = vmatpush1.msra.mxu0 0.0
      %2571 = vmatprep.subr.mxu0 0.0
      %2572 = vmatpush1.msra.mxu0 0.0
      %2573 = vmatprep.subr.mxu0 0.0
      %2574 = vmatpush1.msra.mxu0 0.0
      %2575 = vmatprep.subr.mxu0 0.0
      %2576 = vmatpush1.msra.mxu0 0.0
      %2577 = vmatprep.subr.mxu0 0.0
      %2578 = vmatpush1.msra.mxu0 0.0
      %2579 = vmatprep.subr.mxu0 0.0
      %2580 = vmatpush1.msra.mxu0 0.0
      %2581 = vmatprep.subr.mxu0 0.0
      %2582 = vmatpush1.msra.mxu0 0.0
      %2583 = vmatprep.subr.mxu0 0.0
      %2584 = vmatpush1.msra.mxu0 0.0
      %2585 = vmatprep.subr.mxu0 0.0
      %2586 = vmatpush1.msra.mxu0 0.0
      %2587 = vmatprep.subr.mxu0 0.0
      %2588 = vmatpush1.msra.mxu0 0.0
      %2589 = vmatprep.subr.mxu0 0.0
      %2590 = vmatpush1.msra.mxu0 0.0
      %2591 = vmatprep.subr.mxu0 0.0
      %2592 = vmatpush1.msra.mxu0 0.0
      %2593 = vmatprep.subr.mxu0 0.0
      %2594 = vmatpush1.msra.mxu0 0.0
      %2595 = vmatprep.subr.mxu0 0.0
      %2596 = vmatpush1.msra.mxu0 0.0
      %2597 = vmatprep.subr.mxu0 0.0
      %2598 = vmatpush1.msra.mxu0 0.0
      %2599 = vmatprep.subr.mxu0 0.0
      %2600 = vmatpush1.msra.mxu0 0.0
      %2601 = vmatprep.subr.mxu0 0.0
      %2602 = vmatpush1.msra.mxu0 0.0
      %2603 = vmatprep.subr.mxu0 0.0
      %2604 = vmatpush1.msra.mxu0 0.0
      %2605 = vmatprep.subr.mxu0 0.0
      %2606 = vmatpush1.msra.mxu0 0.0
      %2607 = vmatprep.subr.mxu0 0.0
      %2608 = vmatpush1.msra.mxu0 0.0
      %2609 = vmatprep.subr.mxu0 0.0
      %2610 = vmatpush1.msra.mxu0 0.0
      %2611 = vmatprep.subr.mxu0 0.0
      %2612 = vmatpush1.msra.mxu0 0.0
      %2613 = vmatprep.subr.mxu0 0.0
      %2614 = vmatpush1.msra.mxu0 0.0
      %2615 = vmatprep.subr.mxu0 0.0
      %2616 = vmatpush1.msra.mxu0 0.0
      %2617 = vmatprep.subr.mxu0 0.0
      %2618 = vmatpush1.msra.mxu0 0.0
      %2619 = vmatprep.subr.mxu0 0.0
      %2620 = vmatpush1.msra.mxu0 0.0
      %2621 = vmatprep.subr.mxu0 0.0
      %2622 = vmatpush1.msra.mxu0 0.0
      %2623 = vmatprep.subr.mxu0 0.0
      %2624 = vmatpush1.msra.mxu0 0.0
      %2625 = vmatprep.subr.mxu0 0.0
      %2626 = vmatpush1.msra.mxu0 0.0
      %2627 = vmatprep.mubr.f32.mxu0 0.0
      %2628 = vmatmul.mubr.f32.gmra.mrb[0].mxu0 %v2561
      %v2629 = vpop.f32.mrb[0].mxu0
      %v2630 = vadd.f32 0.0, %v2629
      %v2631 = vpop.f32.mrb[0].mxu0
      %v2632 = vadd.f32 0.0, %v2631
      %2633 = vdwg.mxu0
      %v2634 = vadd.f32 %v2485, %v2630
      %v2635 = vadd.f32 %v2486, %v2632
      %2636 = vmatprep.subr.mxu0 %v1344
      %2637 = vmatpush1.msra.mxu0 %v1343
      %2638 = vmatprep.subr.mxu0 %v1346
      %2639 = vmatpush1.msra.mxu0 %v1345
      %2640 = vmatprep.subr.mxu0 %v1348
      %2641 = vmatpush1.msra.mxu0 %v1347
      %2642 = vmatprep.subr.mxu0 %v1350
      %2643 = vmatpush1.msra.mxu0 %v1349
      %2644 = vmatprep.subr.mxu0 %v1352
      %2645 = vmatpush1.msra.mxu0 %v1351
      %2646 = vmatprep.subr.mxu0 %v1354
      %2647 = vmatpush1.msra.mxu0 %v1353
      %2648 = vmatprep.subr.mxu0 %v1356
      %2649 = vmatpush1.msra.mxu0 %v1355
      %2650 = vmatprep.subr.mxu0 %v1358
      %2651 = vmatpush1.msra.mxu0 %v1357
      %2652 = vmatprep.subr.mxu0 %v1360
      %2653 = vmatpush1.msra.mxu0 %v1359
      %2654 = vmatprep.subr.mxu0 %v1362
      %2655 = vmatpush1.msra.mxu0 %v1361
      %2656 = vmatprep.subr.mxu0 %v1364
      %2657 = vmatpush1.msra.mxu0 %v1363
      %2658 = vmatprep.subr.mxu0 %v1366
      %2659 = vmatpush1.msra.mxu0 %v1365
      %2660 = vmatprep.subr.mxu0 %v1368
      %2661 = vmatpush1.msra.mxu0 %v1367
      %2662 = vmatprep.subr.mxu0 %v1370
      %2663 = vmatpush1.msra.mxu0 %v1369
      %2664 = vmatprep.subr.mxu0 %v1372
      %2665 = vmatpush1.msra.mxu0 %v1371
      %2666 = vmatprep.subr.mxu0 %v1374
      %2667 = vmatpush1.msra.mxu0 %v1373
      %2668 = vmatprep.subr.mxu0 %v1376
      %2669 = vmatpush1.msra.mxu0 %v1375
      %2670 = vmatprep.subr.mxu0 %v1378
      %2671 = vmatpush1.msra.mxu0 %v1377
      %2672 = vmatprep.subr.mxu0 %v1380
      %2673 = vmatpush1.msra.mxu0 %v1379
      %2674 = vmatprep.subr.mxu0 %v1382
      %2675 = vmatpush1.msra.mxu0 %v1381
      %2676 = vmatprep.subr.mxu0 %v1384
      %2677 = vmatpush1.msra.mxu0 %v1383
      %2678 = vmatprep.subr.mxu0 %v1386
      %2679 = vmatpush1.msra.mxu0 %v1385
      %2680 = vmatprep.subr.mxu0 %v1388
      %2681 = vmatpush1.msra.mxu0 %v1387
      %2682 = vmatprep.subr.mxu0 %v1390
      %2683 = vmatpush1.msra.mxu0 %v1389
      %2684 = vmatprep.subr.mxu0 %v1392
      %2685 = vmatpush1.msra.mxu0 %v1391
      %2686 = vmatprep.subr.mxu0 %v1394
      %2687 = vmatpush1.msra.mxu0 %v1393
      %2688 = vmatprep.subr.mxu0 %v1396
      %2689 = vmatpush1.msra.mxu0 %v1395
      %2690 = vmatprep.subr.mxu0 %v1398
      %2691 = vmatpush1.msra.mxu0 %v1397
      %2692 = vmatprep.subr.mxu0 %v1400
      %2693 = vmatpush1.msra.mxu0 %v1399
      %2694 = vmatprep.subr.mxu0 %v1402
      %2695 = vmatpush1.msra.mxu0 %v1401
      %2696 = vmatprep.subr.mxu0 %v1404
      %2697 = vmatpush1.msra.mxu0 %v1403
      %2698 = vmatprep.subr.mxu0 %v1406
      %2699 = vmatpush1.msra.mxu0 %v1405
      %2700 = vmatprep.mubr.f32.mxu0 %v1816
      %2701 = vmatmul.mubr.f32.gmra.mrb[0].mxu0 %v1815
      %v2702 = vpop.f32.mrb[0].mxu0
      %v2703 = vadd.f32 0.0, %v2702
      %v2704 = vpop.f32.mrb[0].mxu0
      %v2705 = vadd.f32 0.0, %v2704
      %2706 = vdwg.mxu0
      %s2707 = scalar_lea.vmem %s3, 48
      %v2708 = vld [vmem:[%s2707] sm:$0xff]
      %v2710 = vsel %vm1962, %v2708, 0
      %2712 = vmatprep.subr.mxu0 %v2705
      %2713 = vmatpush1.msra.mxu0 %v2703
      %2714 = vmatprep.subr.mxu0 0.0
      %2715 = vmatpush1.msra.mxu0 0.0
      %2716 = vmatprep.subr.mxu0 0.0
      %2717 = vmatpush1.msra.mxu0 0.0
      %2718 = vmatprep.subr.mxu0 0.0
      %2719 = vmatpush1.msra.mxu0 0.0
      %2720 = vmatprep.subr.mxu0 0.0
      %2721 = vmatpush1.msra.mxu0 0.0
      %2722 = vmatprep.subr.mxu0 0.0
      %2723 = vmatpush1.msra.mxu0 0.0
      %2724 = vmatprep.subr.mxu0 0.0
      %2725 = vmatpush1.msra.mxu0 0.0
      %2726 = vmatprep.subr.mxu0 0.0
      %2727 = vmatpush1.msra.mxu0 0.0
      %2728 = vmatprep.subr.mxu0 0.0
      %2729 = vmatpush1.msra.mxu0 0.0
      %2730 = vmatprep.subr.mxu0 0.0
      %2731 = vmatpush1.msra.mxu0 0.0
      %2732 = vmatprep.subr.mxu0 0.0
      %2733 = vmatpush1.msra.mxu0 0.0
      %2734 = vmatprep.subr.mxu0 0.0
      %2735 = vmatpush1.msra.mxu0 0.0
      %2736 = vmatprep.subr.mxu0 0.0
      %2737 = vmatpush1.msra.mxu0 0.0
      %2738 = vmatprep.subr.mxu0 0.0
      %2739 = vmatpush1.msra.mxu0 0.0
      %2740 = vmatprep.subr.mxu0 0.0
      %2741 = vmatpush1.msra.mxu0 0.0
      %2742 = vmatprep.subr.mxu0 0.0
      %2743 = vmatpush1.msra.mxu0 0.0
      %2744 = vmatprep.subr.mxu0 0.0
      %2745 = vmatpush1.msra.mxu0 0.0
      %2746 = vmatprep.subr.mxu0 0.0
      %2747 = vmatpush1.msra.mxu0 0.0
      %2748 = vmatprep.subr.mxu0 0.0
      %2749 = vmatpush1.msra.mxu0 0.0
      %2750 = vmatprep.subr.mxu0 0.0
      %2751 = vmatpush1.msra.mxu0 0.0
      %2752 = vmatprep.subr.mxu0 0.0
      %2753 = vmatpush1.msra.mxu0 0.0
      %2754 = vmatprep.subr.mxu0 0.0
      %2755 = vmatpush1.msra.mxu0 0.0
      %2756 = vmatprep.subr.mxu0 0.0
      %2757 = vmatpush1.msra.mxu0 0.0
      %2758 = vmatprep.subr.mxu0 0.0
      %2759 = vmatpush1.msra.mxu0 0.0
      %2760 = vmatprep.subr.mxu0 0.0
      %2761 = vmatpush1.msra.mxu0 0.0
      %2762 = vmatprep.subr.mxu0 0.0
      %2763 = vmatpush1.msra.mxu0 0.0
      %2764 = vmatprep.subr.mxu0 0.0
      %2765 = vmatpush1.msra.mxu0 0.0
      %2766 = vmatprep.subr.mxu0 0.0
      %2767 = vmatpush1.msra.mxu0 0.0
      %2768 = vmatprep.subr.mxu0 0.0
      %2769 = vmatpush1.msra.mxu0 0.0
      %2770 = vmatprep.subr.mxu0 0.0
      %2771 = vmatpush1.msra.mxu0 0.0
      %2772 = vmatprep.subr.mxu0 0.0
      %2773 = vmatpush1.msra.mxu0 0.0
      %2774 = vmatprep.subr.mxu0 0.0
      %2775 = vmatpush1.msra.mxu0 0.0
      %2776 = vmatprep.mubr.f32.mxu0 0.0
      %2777 = vmatmul.mubr.f32.gmra.mrb[0].mxu0 %v2710
      %v2778 = vpop.f32.mrb[0].mxu0
      %v2779 = vadd.f32 0.0, %v2778
      %v2780 = vpop.f32.mrb[0].mxu0
      %v2781 = vadd.f32 0.0, %v2780
      %2782 = vdwg.mxu0
      %v2783 = vadd.f32 %v2634, %v2779
      %v2784 = vadd.f32 %v2635, %v2781
      %2785 = vmatprep.subr.mxu0 %v1499
      %2786 = vmatpush1.msra.mxu0 %v1498
      %2787 = vmatprep.subr.mxu0 %v1501
      %2788 = vmatpush1.msra.mxu0 %v1500
      %2789 = vmatprep.subr.mxu0 %v1503
      %2790 = vmatpush1.msra.mxu0 %v1502
      %2791 = vmatprep.subr.mxu0 %v1505
      %2792 = vmatpush1.msra.mxu0 %v1504
      %2793 = vmatprep.subr.mxu0 %v1507
      %2794 = vmatpush1.msra.mxu0 %v1506
      %2795 = vmatprep.subr.mxu0 %v1509
      %2796 = vmatpush1.msra.mxu0 %v1508
      %2797 = vmatprep.subr.mxu0 %v1511
      %2798 = vmatpush1.msra.mxu0 %v1510
      %2799 = vmatprep.subr.mxu0 %v1513
      %2800 = vmatpush1.msra.mxu0 %v1512
      %2801 = vmatprep.subr.mxu0 %v1515
      %2802 = vmatpush1.msra.mxu0 %v1514
      %2803 = vmatprep.subr.mxu0 %v1517
      %2804 = vmatpush1.msra.mxu0 %v1516
      %2805 = vmatprep.subr.mxu0 %v1519
      %2806 = vmatpush1.msra.mxu0 %v1518
      %2807 = vmatprep.subr.mxu0 %v1521
      %2808 = vmatpush1.msra.mxu0 %v1520
      %2809 = vmatprep.subr.mxu0 %v1523
      %2810 = vmatpush1.msra.mxu0 %v1522
      %2811 = vmatprep.subr.mxu0 %v1525
      %2812 = vmatpush1.msra.mxu0 %v1524
      %2813 = vmatprep.subr.mxu0 %v1527
      %2814 = vmatpush1.msra.mxu0 %v1526
      %2815 = vmatprep.subr.mxu0 %v1529
      %2816 = vmatpush1.msra.mxu0 %v1528
      %2817 = vmatprep.subr.mxu0 %v1531
      %2818 = vmatpush1.msra.mxu0 %v1530
      %2819 = vmatprep.subr.mxu0 %v1533
      %2820 = vmatpush1.msra.mxu0 %v1532
      %2821 = vmatprep.subr.mxu0 %v1535
      %2822 = vmatpush1.msra.mxu0 %v1534
      %2823 = vmatprep.subr.mxu0 %v1537
      %2824 = vmatpush1.msra.mxu0 %v1536
      %2825 = vmatprep.subr.mxu0 %v1539
      %2826 = vmatpush1.msra.mxu0 %v1538
      %2827 = vmatprep.subr.mxu0 %v1541
      %2828 = vmatpush1.msra.mxu0 %v1540
      %2829 = vmatprep.subr.mxu0 %v1543
      %2830 = vmatpush1.msra.mxu0 %v1542
      %2831 = vmatprep.subr.mxu0 %v1545
      %2832 = vmatpush1.msra.mxu0 %v1544
      %2833 = vmatprep.subr.mxu0 %v1547
      %2834 = vmatpush1.msra.mxu0 %v1546
      %2835 = vmatprep.subr.mxu0 %v1549
      %2836 = vmatpush1.msra.mxu0 %v1548
      %2837 = vmatprep.subr.mxu0 %v1551
      %2838 = vmatpush1.msra.mxu0 %v1550
      %2839 = vmatprep.subr.mxu0 %v1553
      %2840 = vmatpush1.msra.mxu0 %v1552
      %2841 = vmatprep.subr.mxu0 %v1555
      %2842 = vmatpush1.msra.mxu0 %v1554
      %2843 = vmatprep.subr.mxu0 %v1557
      %2844 = vmatpush1.msra.mxu0 %v1556
      %2845 = vmatprep.subr.mxu0 %v1559
      %2846 = vmatpush1.msra.mxu0 %v1558
      %2847 = vmatprep.subr.mxu0 %v1561
      %2848 = vmatpush1.msra.mxu0 %v1560
      %2849 = vmatprep.mubr.f32.mxu0 %v1816
      %2850 = vmatmul.mubr.f32.gmra.mrb[0].mxu0 %v1815
      %v2851 = vpop.f32.mrb[0].mxu0
      %v2852 = vadd.f32 0.0, %v2851
      %v2853 = vpop.f32.mrb[0].mxu0
      %v2854 = vadd.f32 0.0, %v2853
      %2855 = vdwg.mxu0
      %s2856 = scalar_lea.vmem %s3, 56
      %v2857 = vld [vmem:[%s2856] sm:$0xff]
      %v2859 = vsel %vm1962, %v2857, 0
      %2861 = vmatprep.subr.mxu0 %v2854
      %2862 = vmatpush1.msra.mxu0 %v2852
      %2863 = vmatprep.subr.mxu0 0.0
      %2864 = vmatpush1.msra.mxu0 0.0
      %2865 = vmatprep.subr.mxu0 0.0
      %2866 = vmatpush1.msra.mxu0 0.0
      %2867 = vmatprep.subr.mxu0 0.0
      %2868 = vmatpush1.msra.mxu0 0.0
      %2869 = vmatprep.subr.mxu0 0.0
      %2870 = vmatpush1.msra.mxu0 0.0
      %2871 = vmatprep.subr.mxu0 0.0
      %2872 = vmatpush1.msra.mxu0 0.0
      %2873 = vmatprep.subr.mxu0 0.0
      %2874 = vmatpush1.msra.mxu0 0.0
      %2875 = vmatprep.subr.mxu0 0.0
      %2876 = vmatpush1.msra.mxu0 0.0
      %2877 = vmatprep.subr.mxu0 0.0
      %2878 = vmatpush1.msra.mxu0 0.0
      %2879 = vmatprep.subr.mxu0 0.0
      %2880 = vmatpush1.msra.mxu0 0.0
      %2881 = vmatprep.subr.mxu0 0.0
      %2882 = vmatpush1.msra.mxu0 0.0
      %2883 = vmatprep.subr.mxu0 0.0
      %2884 = vmatpush1.msra.mxu0 0.0
      %2885 = vmatprep.subr.mxu0 0.0
      %2886 = vmatpush1.msra.mxu0 0.0
      %2887 = vmatprep.subr.mxu0 0.0
      %2888 = vmatpush1.msra.mxu0 0.0
      %2889 = vmatprep.subr.mxu0 0.0
      %2890 = vmatpush1.msra.mxu0 0.0
      %2891 = vmatprep.subr.mxu0 0.0
      %2892 = vmatpush1.msra.mxu0 0.0
      %2893 = vmatprep.subr.mxu0 0.0
      %2894 = vmatpush1.msra.mxu0 0.0
      %2895 = vmatprep.subr.mxu0 0.0
      %2896 = vmatpush1.msra.mxu0 0.0
      %2897 = vmatprep.subr.mxu0 0.0
      %2898 = vmatpush1.msra.mxu0 0.0
      %2899 = vmatprep.subr.mxu0 0.0
      %2900 = vmatpush1.msra.mxu0 0.0
      %2901 = vmatprep.subr.mxu0 0.0
      %2902 = vmatpush1.msra.mxu0 0.0
      %2903 = vmatprep.subr.mxu0 0.0
      %2904 = vmatpush1.msra.mxu0 0.0
      %2905 = vmatprep.subr.mxu0 0.0
      %2906 = vmatpush1.msra.mxu0 0.0
      %2907 = vmatprep.subr.mxu0 0.0
      %2908 = vmatpush1.msra.mxu0 0.0
      %2909 = vmatprep.subr.mxu0 0.0
      %2910 = vmatpush1.msra.mxu0 0.0
      %2911 = vmatprep.subr.mxu0 0.0
      %2912 = vmatpush1.msra.mxu0 0.0
      %2913 = vmatprep.subr.mxu0 0.0
      %2914 = vmatpush1.msra.mxu0 0.0
      %2915 = vmatprep.subr.mxu0 0.0
      %2916 = vmatpush1.msra.mxu0 0.0
      %2917 = vmatprep.subr.mxu0 0.0
      %2918 = vmatpush1.msra.mxu0 0.0
      %2919 = vmatprep.subr.mxu0 0.0
      %2920 = vmatpush1.msra.mxu0 0.0
      %2921 = vmatprep.subr.mxu0 0.0
      %2922 = vmatpush1.msra.mxu0 0.0
      %2923 = vmatprep.subr.mxu0 0.0
      %2924 = vmatpush1.msra.mxu0 0.0
      %2925 = vmatprep.mubr.f32.mxu0 0.0
      %2926 = vmatmul.mubr.f32.gmra.mrb[0].mxu0 %v2859
      %v2927 = vpop.f32.mrb[0].mxu0
      %v2928 = vadd.f32 0.0, %v2927
      %v2929 = vpop.f32.mrb[0].mxu0
      %v2930 = vadd.f32 0.0, %v2929
      %2931 = vdwg.mxu0
      %v2932 = vadd.f32 %v2783, %v2928
      %v2933 = vadd.f32 %v2784, %v2930
      %2934 = vmatprep.subr.mxu0 %v1654
      %2935 = vmatpush1.msra.mxu0 %v1653
      %2936 = vmatprep.subr.mxu0 %v1656
      %2937 = vmatpush1.msra.mxu0 %v1655
      %2938 = vmatprep.subr.mxu0 %v1658
      %2939 = vmatpush1.msra.mxu0 %v1657
      %2940 = vmatprep.subr.mxu0 %v1660
      %2941 = vmatpush1.msra.mxu0 %v1659
      %2942 = vmatprep.subr.mxu0 %v1662
      %2943 = vmatpush1.msra.mxu0 %v1661
      %2944 = vmatprep.subr.mxu0 %v1664
      %2945 = vmatpush1.msra.mxu0 %v1663
      %2946 = vmatprep.subr.mxu0 %v1666
      %2947 = vmatpush1.msra.mxu0 %v1665
      %2948 = vmatprep.subr.mxu0 %v1668
      %2949 = vmatpush1.msra.mxu0 %v1667
      %2950 = vmatprep.subr.mxu0 %v1670
      %2951 = vmatpush1.msra.mxu0 %v1669
      %2952 = vmatprep.subr.mxu0 %v1672
      %2953 = vmatpush1.msra.mxu0 %v1671
      %2954 = vmatprep.subr.mxu0 %v1674
      %2955 = vmatpush1.msra.mxu0 %v1673
      %2956 = vmatprep.subr.mxu0 %v1676
      %2957 = vmatpush1.msra.mxu0 %v1675
      %2958 = vmatprep.subr.mxu0 %v1678
      %2959 = vmatpush1.msra.mxu0 %v1677
      %2960 = vmatprep.subr.mxu0 %v1680
      %2961 = vmatpush1.msra.mxu0 %v1679
      %2962 = vmatprep.subr.mxu0 %v1682
      %2963 = vmatpush1.msra.mxu0 %v1681
      %2964 = vmatprep.subr.mxu0 %v1684
      %2965 = vmatpush1.msra.mxu0 %v1683
      %2966 = vmatprep.subr.mxu0 %v1686
      %2967 = vmatpush1.msra.mxu0 %v1685
      %2968 = vmatprep.subr.mxu0 %v1688
      %2969 = vmatpush1.msra.mxu0 %v1687
      %2970 = vmatprep.subr.mxu0 %v1690
      %2971 = vmatpush1.msra.mxu0 %v1689
      %2972 = vmatprep.subr.mxu0 %v1692
      %2973 = vmatpush1.msra.mxu0 %v1691
      %2974 = vmatprep.subr.mxu0 %v1694
      %2975 = vmatpush1.msra.mxu0 %v1693
      %2976 = vmatprep.subr.mxu0 %v1696
      %2977 = vmatpush1.msra.mxu0 %v1695
      %2978 = vmatprep.subr.mxu0 %v1698
      %2979 = vmatpush1.msra.mxu0 %v1697
      %2980 = vmatprep.subr.mxu0 %v1700
      %2981 = vmatpush1.msra.mxu0 %v1699
      %2982 = vmatprep.subr.mxu0 %v1702
      %2983 = vmatpush1.msra.mxu0 %v1701
      %2984 = vmatprep.subr.mxu0 %v1704
      %2985 = vmatpush1.msra.mxu0 %v1703
      %2986 = vmatprep.subr.mxu0 %v1706
      %2987 = vmatpush1.msra.mxu0 %v1705
      %2988 = vmatprep.subr.mxu0 %v1708
      %2989 = vmatpush1.msra.mxu0 %v1707
      %2990 = vmatprep.subr.mxu0 %v1710
      %2991 = vmatpush1.msra.mxu0 %v1709
      %2992 = vmatprep.subr.mxu0 %v1712
      %2993 = vmatpush1.msra.mxu0 %v1711
      %2994 = vmatprep.subr.mxu0 %v1714
      %2995 = vmatpush1.msra.mxu0 %v1713
      %2996 = vmatprep.subr.mxu0 %v1716
      %2997 = vmatpush1.msra.mxu0 %v1715
      %2998 = vmatprep.mubr.f32.mxu0 %v1816
      %2999 = vmatmul.mubr.f32.gmra.mrb[0].mxu0 %v1815
      %v3000 = vpop.f32.mrb[0].mxu0
      %v3001 = vadd.f32 0.0, %v3000
      %v3002 = vpop.f32.mrb[0].mxu0
      %v3003 = vadd.f32 0.0, %v3002
      %3004 = vdwg.mxu0
      %s3005 = scalar_lea.vmem %s3, 64
      %v3006 = vld [vmem:[%s3005] sm:$0xff]
      %v3008 = vsel %vm1962, %v3006, 0
      %3010 = vmatprep.subr.mxu0 %v3003
      %3011 = vmatpush1.msra.mxu0 %v3001
      %3012 = vmatprep.subr.mxu0 0.0
      %3013 = vmatpush1.msra.mxu0 0.0
      %3014 = vmatprep.subr.mxu0 0.0
      %3015 = vmatpush1.msra.mxu0 0.0
      %3016 = vmatprep.subr.mxu0 0.0
      %3017 = vmatpush1.msra.mxu0 0.0
      %3018 = vmatprep.subr.mxu0 0.0
      %3019 = vmatpush1.msra.mxu0 0.0
      %3020 = vmatprep.subr.mxu0 0.0
      %3021 = vmatpush1.msra.mxu0 0.0
      %3022 = vmatprep.subr.mxu0 0.0
      %3023 = vmatpush1.msra.mxu0 0.0
      %3024 = vmatprep.subr.mxu0 0.0
      %3025 = vmatpush1.msra.mxu0 0.0
      %3026 = vmatprep.subr.mxu0 0.0
      %3027 = vmatpush1.msra.mxu0 0.0
      %3028 = vmatprep.subr.mxu0 0.0
      %3029 = vmatpush1.msra.mxu0 0.0
      %3030 = vmatprep.subr.mxu0 0.0
      %3031 = vmatpush1.msra.mxu0 0.0
      %3032 = vmatprep.subr.mxu0 0.0
      %3033 = vmatpush1.msra.mxu0 0.0
      %3034 = vmatprep.subr.mxu0 0.0
      %3035 = vmatpush1.msra.mxu0 0.0
      %3036 = vmatprep.subr.mxu0 0.0
      %3037 = vmatpush1.msra.mxu0 0.0
      %3038 = vmatprep.subr.mxu0 0.0
      %3039 = vmatpush1.msra.mxu0 0.0
      %3040 = vmatprep.subr.mxu0 0.0
      %3041 = vmatpush1.msra.mxu0 0.0
      %3042 = vmatprep.subr.mxu0 0.0
      %3043 = vmatpush1.msra.mxu0 0.0
      %3044 = vmatprep.subr.mxu0 0.0
      %3045 = vmatpush1.msra.mxu0 0.0
      %3046 = vmatprep.subr.mxu0 0.0
      %3047 = vmatpush1.msra.mxu0 0.0
      %3048 = vmatprep.subr.mxu0 0.0
      %3049 = vmatpush1.msra.mxu0 0.0
      %3050 = vmatprep.subr.mxu0 0.0
      %3051 = vmatpush1.msra.mxu0 0.0
      %3052 = vmatprep.subr.mxu0 0.0
      %3053 = vmatpush1.msra.mxu0 0.0
      %3054 = vmatprep.subr.mxu0 0.0
      %3055 = vmatpush1.msra.mxu0 0.0
      %3056 = vmatprep.subr.mxu0 0.0
      %3057 = vmatpush1.msra.mxu0 0.0
      %3058 = vmatprep.subr.mxu0 0.0
      %3059 = vmatpush1.msra.mxu0 0.0
      %3060 = vmatprep.subr.mxu0 0.0
      %3061 = vmatpush1.msra.mxu0 0.0
      %3062 = vmatprep.subr.mxu0 0.0
      %3063 = vmatpush1.msra.mxu0 0.0
      %3064 = vmatprep.subr.mxu0 0.0
      %3065 = vmatpush1.msra.mxu0 0.0
      %3066 = vmatprep.subr.mxu0 0.0
      %3067 = vmatpush1.msra.mxu0 0.0
      %3068 = vmatprep.subr.mxu0 0.0
      %3069 = vmatpush1.msra.mxu0 0.0
      %3070 = vmatprep.subr.mxu0 0.0
      %3071 = vmatpush1.msra.mxu0 0.0
      %3072 = vmatprep.subr.mxu0 0.0
      %3073 = vmatpush1.msra.mxu0 0.0
      %3074 = vmatprep.mubr.f32.mxu0 0.0
      %3075 = vmatmul.mubr.f32.gmra.mrb[0].mxu0 %v3008
      %v3076 = vpop.f32.mrb[0].mxu0
      %v3077 = vadd.f32 0.0, %v3076
      %v3078 = vpop.f32.mrb[0].mxu0
      %v3079 = vadd.f32 0.0, %v3078
      %3080 = vdwg.mxu0
      %v3081 = vadd.f32 %v2932, %v3077
      %v3082 = vadd.f32 %v2933, %v3079
      %v3083 = vld [vmem:[%s4] sm:$0xff]
      %3085 = vset.pattern.permute.xlu0 0
      %3086 = vperm.xlu0 %3085, %v3083
      %v3087 = vpop.permute.xlu0 %3086
      %v3089 = vadd.f32 %v3081, %v3087
      %v3090 = vadd.f32 %v3082, %v3087
      %v3091 = vmax.f32 %v3089, 0.0
      %v3092 = vmax.f32 %v3090, 0.0
      %3093 = vmatprep.subr.mxu0 %v1189
      %3094 = vmatpush1.msra.mxu0 %v1188
      %3095 = vmatprep.subr.mxu0 %v1191
      %3096 = vmatpush1.msra.mxu0 %v1190
      %3097 = vmatprep.subr.mxu0 %v1193
      %3098 = vmatpush1.msra.mxu0 %v1192
      %3099 = vmatprep.subr.mxu0 %v1195
      %3100 = vmatpush1.msra.mxu0 %v1194
      %3101 = vmatprep.subr.mxu0 %v1197
      %3102 = vmatpush1.msra.mxu0 %v1196
      %3103 = vmatprep.subr.mxu0 %v1199
      %3104 = vmatpush1.msra.mxu0 %v1198
      %3105 = vmatprep.subr.mxu0 %v1201
      %3106 = vmatpush1.msra.mxu0 %v1200
      %3107 = vmatprep.subr.mxu0 %v1203
      %3108 = vmatpush1.msra.mxu0 %v1202
      %3109 = vmatprep.subr.mxu0 %v1205
      %3110 = vmatpush1.msra.mxu0 %v1204
      %3111 = vmatprep.subr.mxu0 %v1207
      %3112 = vmatpush1.msra.mxu0 %v1206
      %3113 = vmatprep.subr.mxu0 %v1209
      %3114 = vmatpush1.msra.mxu0 %v1208
      %3115 = vmatprep.subr.mxu0 %v1211
      %3116 = vmatpush1.msra.mxu0 %v1210
      %3117 = vmatprep.subr.mxu0 %v1213
      %3118 = vmatpush1.msra.mxu0 %v1212
      %3119 = vmatprep.subr.mxu0 %v1215
      %3120 = vmatpush1.msra.mxu0 %v1214
      %3121 = vmatprep.subr.mxu0 %v1217
      %3122 = vmatpush1.msra.mxu0 %v1216
      %3123 = vmatprep.subr.mxu0 %v1219
      %3124 = vmatpush1.msra.mxu0 %v1218
      %3125 = vmatprep.subr.mxu0 %v1221
      %3126 = vmatpush1.msra.mxu0 %v1220
      %3127 = vmatprep.subr.mxu0 %v1223
      %3128 = vmatpush1.msra.mxu0 %v1222
      %3129 = vmatprep.subr.mxu0 %v1225
      %3130 = vmatpush1.msra.mxu0 %v1224
      %3131 = vmatprep.subr.mxu0 %v1227
      %3132 = vmatpush1.msra.mxu0 %v1226
      %3133 = vmatprep.subr.mxu0 %v1229
      %3134 = vmatpush1.msra.mxu0 %v1228
      %3135 = vmatprep.subr.mxu0 %v1231
      %3136 = vmatpush1.msra.mxu0 %v1230
      %3137 = vmatprep.subr.mxu0 %v1233
      %3138 = vmatpush1.msra.mxu0 %v1232
      %3139 = vmatprep.subr.mxu0 %v1235
      %3140 = vmatpush1.msra.mxu0 %v1234
      %3141 = vmatprep.subr.mxu0 %v1237
      %3142 = vmatpush1.msra.mxu0 %v1236
      %3143 = vmatprep.subr.mxu0 %v1239
      %3144 = vmatpush1.msra.mxu0 %v1238
      %3145 = vmatprep.subr.mxu0 %v1241
      %3146 = vmatpush1.msra.mxu0 %v1240
      %3147 = vmatprep.subr.mxu0 %v1243
      %3148 = vmatpush1.msra.mxu0 %v1242
      %3149 = vmatprep.subr.mxu0 %v1245
      %3150 = vmatpush1.msra.mxu0 %v1244
      %3151 = vmatprep.subr.mxu0 %v1247
      %3152 = vmatpush1.msra.mxu0 %v1246
      %3153 = vmatprep.subr.mxu0 %v1249
      %3154 = vmatpush1.msra.mxu0 %v1248
      %3155 = vmatprep.subr.mxu0 %v1251
      %3156 = vmatpush1.msra.mxu0 %v1250
      %3157 = vmatprep.mubr.f32.mxu0 %v3092
      %3158 = vmatmul.mubr.f32.gmra.mrb[0].mxu0 %v3091
      %v3159 = vpop.f32.mrb[0].mxu0
      %v3160 = vadd.f32 0.0, %v3159
      %v3161 = vpop.f32.mrb[0].mxu0
      %v3162 = vadd.f32 0.0, %v3161
      %3163 = vdwg.mxu0
      %v3164 = vmax.f32 %v3091, %v3160
      %v3165 = vmax.f32 %v3092, %v3162
      %3166 = vmatprep.subr.mxu0 %v1499
      %3167 = vmatpush1.msra.mxu0 %v1498
      %3168 = vmatprep.subr.mxu0 %v1501
      %3169 = vmatpush1.msra.mxu0 %v1500
      %3170 = vmatprep.subr.mxu0 %v1503
      %3171 = vmatpush1.msra.mxu0 %v1502
      %3172 = vmatprep.subr.mxu0 %v1505
      %3173 = vmatpush1.msra.mxu0 %v1504
      %3174 = vmatprep.subr.mxu0 %v1507
      %3175 = vmatpush1.msra.mxu0 %v1506
      %3176 = vmatprep.subr.mxu0 %v1509
      %3177 = vmatpush1.msra.mxu0 %v1508
      %3178 = vmatprep.subr.mxu0 %v1511
      %3179 = vmatpush1.msra.mxu0 %v1510
      %3180 = vmatprep.subr.mxu0 %v1513
      %3181 = vmatpush1.msra.mxu0 %v1512
      %3182 = vmatprep.subr.mxu0 %v1515
      %3183 = vmatpush1.msra.mxu0 %v1514
      %3184 = vmatprep.subr.mxu0 %v1517
      %3185 = vmatpush1.msra.mxu0 %v1516
      %3186 = vmatprep.subr.mxu0 %v1519
      %3187 = vmatpush1.msra.mxu0 %v1518
      %3188 = vmatprep.subr.mxu0 %v1521
      %3189 = vmatpush1.msra.mxu0 %v1520
      %3190 = vmatprep.subr.mxu0 %v1523
      %3191 = vmatpush1.msra.mxu0 %v1522
      %3192 = vmatprep.subr.mxu0 %v1525
      %3193 = vmatpush1.msra.mxu0 %v1524
      %3194 = vmatprep.subr.mxu0 %v1527
      %3195 = vmatpush1.msra.mxu0 %v1526
      %3196 = vmatprep.subr.mxu0 %v1529
      %3197 = vmatpush1.msra.mxu0 %v1528
      %3198 = vmatprep.subr.mxu0 %v1531
      %3199 = vmatpush1.msra.mxu0 %v1530
      %3200 = vmatprep.subr.mxu0 %v1533
      %3201 = vmatpush1.msra.mxu0 %v1532
      %3202 = vmatprep.subr.mxu0 %v1535
      %3203 = vmatpush1.msra.mxu0 %v1534
      %3204 = vmatprep.subr.mxu0 %v1537
      %3205 = vmatpush1.msra.mxu0 %v1536
      %3206 = vmatprep.subr.mxu0 %v1539
      %3207 = vmatpush1.msra.mxu0 %v1538
      %3208 = vmatprep.subr.mxu0 %v1541
      %3209 = vmatpush1.msra.mxu0 %v1540
      %3210 = vmatprep.subr.mxu0 %v1543
      %3211 = vmatpush1.msra.mxu0 %v1542
      %3212 = vmatprep.subr.mxu0 %v1545
      %3213 = vmatpush1.msra.mxu0 %v1544
      %3214 = vmatprep.subr.mxu0 %v1547
      %3215 = vmatpush1.msra.mxu0 %v1546
      %3216 = vmatprep.subr.mxu0 %v1549
      %3217 = vmatpush1.msra.mxu0 %v1548
      %3218 = vmatprep.subr.mxu0 %v1551
      %3219 = vmatpush1.msra.mxu0 %v1550
      %3220 = vmatprep.subr.mxu0 %v1553
      %3221 = vmatpush1.msra.mxu0 %v1552
      %3222 = vmatprep.subr.mxu0 %v1555
      %3223 = vmatpush1.msra.mxu0 %v1554
      %3224 = vmatprep.subr.mxu0 %v1557
      %3225 = vmatpush1.msra.mxu0 %v1556
      %3226 = vmatprep.subr.mxu0 %v1559
      %3227 = vmatpush1.msra.mxu0 %v1558
      %3228 = vmatprep.subr.mxu0 %v1561
      %3229 = vmatpush1.msra.mxu0 %v1560
      %3230 = vmatprep.mubr.f32.mxu0 %v3165
      %3231 = vmatmul.mubr.f32.gmra.mrb[0].mxu0 %v3164
      %v3232 = vpop.f32.mrb[0].mxu0
      %v3233 = vadd.f32 0.0, %v3232
      %v3234 = vpop.f32.mrb[0].mxu0
      %v3235 = vadd.f32 0.0, %v3234
      %3236 = vdwg.mxu0
      %v3237 = vmax.f32 %v3164, %v3233
      %v3238 = vmax.f32 %v3165, %v3235
      %v3239 = vld [vmem:[%s15] sm:$0xff]
      %v3240 = vld [vmem:[%s15 + $0x8] sm:$0xff]
      %v3241 = vld [vmem:[%s15 + $0x10] sm:$0xff]
      %v3242 = vld [vmem:[%s15 + $0x18] sm:$0xff]
      %v3243 = vld [vmem:[%s15 + $0x20] sm:$0xff]
      %v3244 = vld [vmem:[%s15 + $0x28] sm:$0xff]
      %v3245 = vld [vmem:[%s15 + $0x30] sm:$0xff]
      %v3246 = vld [vmem:[%s15 + $0x38] sm:$0xff]
      %v3247 = vld [vmem:[%s15 + $0x40] sm:$0xff]
      %v3248 = vld [vmem:[%s15 + $0x48] sm:$0xff]
      %v3249 = vld [vmem:[%s15 + $0x50] sm:$0xff]
      %v3250 = vld [vmem:[%s15 + $0x58] sm:$0xff]
      %v3251 = vld [vmem:[%s15 + $0x60] sm:$0xff]
      %v3252 = vld [vmem:[%s15 + $0x68] sm:$0xff]
      %v3253 = vld [vmem:[%s15 + $0x70] sm:$0xff]
      %v3254 = vld [vmem:[%s15 + $0x78] sm:$0xff]
      %v3255 = vld [vmem:[%s15 + $0x80] sm:$0xff]
      %v3256 = vld [vmem:[%s15 + $0x88] sm:$0xff]
      %v3257 = vld [vmem:[%s15 + $0x90] sm:$0xff]
      %v3258 = vld [vmem:[%s15 + $0x98] sm:$0xff]
      %v3259 = vld [vmem:[%s15 + $0xa0] sm:$0xff]
      %v3260 = vld [vmem:[%s15 + $0xa8] sm:$0xff]
      %v3261 = vld [vmem:[%s15 + $0xb0] sm:$0xff]
      %v3262 = vld [vmem:[%s15 + $0xb8] sm:$0xff]
      %v3263 = vld [vmem:[%s15 + $0xc0] sm:$0xff]
      %v3264 = vld [vmem:[%s15 + $0xc8] sm:$0xff]
      %v3265 = vld [vmem:[%s15 + $0xd0] sm:$0xff]
      %v3266 = vld [vmem:[%s15 + $0xd8] sm:$0xff]
      %v3267 = vld [vmem:[%s15 + $0xe0] sm:$0xff]
      %v3268 = vld [vmem:[%s15 + $0xe8] sm:$0xff]
      %v3269 = vld [vmem:[%s15 + $0xf0] sm:$0xff]
      %v3270 = vld [vmem:[%s15 + $0xf8] sm:$0xff]
      %3271 = vmatprep.subr.mxu0 0.0
      %3272 = vmatpush1.msra.mxu0 %v3239
      %3273 = vmatprep.subr.mxu0 0.0
      %3274 = vmatpush1.msra.mxu0 %v3240
      %3275 = vmatprep.subr.mxu0 0.0
      %3276 = vmatpush1.msra.mxu0 %v3241
      %3277 = vmatprep.subr.mxu0 0.0
      %3278 = vmatpush1.msra.mxu0 %v3242
      %3279 = vmatprep.subr.mxu0 0.0
      %3280 = vmatpush1.msra.mxu0 %v3243
      %3281 = vmatprep.subr.mxu0 0.0
      %3282 = vmatpush1.msra.mxu0 %v3244
      %3283 = vmatprep.subr.mxu0 0.0
      %3284 = vmatpush1.msra.mxu0 %v3245
      %3285 = vmatprep.subr.mxu0 0.0
      %3286 = vmatpush1.msra.mxu0 %v3246
      %3287 = vmatprep.subr.mxu0 0.0
      %3288 = vmatpush1.msra.mxu0 %v3247
      %3289 = vmatprep.subr.mxu0 0.0
      %3290 = vmatpush1.msra.mxu0 %v3248
      %3291 = vmatprep.subr.mxu0 0.0
      %3292 = vmatpush1.msra.mxu0 %v3249
      %3293 = vmatprep.subr.mxu0 0.0
      %3294 = vmatpush1.msra.mxu0 %v3250
      %3295 = vmatprep.subr.mxu0 0.0
      %3296 = vmatpush1.msra.mxu0 %v3251
      %3297 = vmatprep.subr.mxu0 0.0
      %3298 = vmatpush1.msra.mxu0 %v3252
      %3299 = vmatprep.subr.mxu0 0.0
      %3300 = vmatpush1.msra.mxu0 %v3253
      %3301 = vmatprep.subr.mxu0 0.0
      %3302 = vmatpush1.msra.mxu0 %v3254
      %3303 = vmatprep.subr.mxu0 0.0
      %3304 = vmatpush1.msra.mxu0 %v3255
      %3305 = vmatprep.subr.mxu0 0.0
      %3306 = vmatpush1.msra.mxu0 %v3256
      %3307 = vmatprep.subr.mxu0 0.0
      %3308 = vmatpush1.msra.mxu0 %v3257
      %3309 = vmatprep.subr.mxu0 0.0
      %3310 = vmatpush1.msra.mxu0 %v3258
      %3311 = vmatprep.subr.mxu0 0.0
      %3312 = vmatpush1.msra.mxu0 %v3259
      %3313 = vmatprep.subr.mxu0 0.0
      %3314 = vmatpush1.msra.mxu0 %v3260
      %3315 = vmatprep.subr.mxu0 0.0
      %3316 = vmatpush1.msra.mxu0 %v3261
      %3317 = vmatprep.subr.mxu0 0.0
      %3318 = vmatpush1.msra.mxu0 %v3262
      %3319 = vmatprep.subr.mxu0 0.0
      %3320 = vmatpush1.msra.mxu0 %v3263
      %3321 = vmatprep.subr.mxu0 0.0
      %3322 = vmatpush1.msra.mxu0 %v3264
      %3323 = vmatprep.subr.mxu0 0.0
      %3324 = vmatpush1.msra.mxu0 %v3265
      %3325 = vmatprep.subr.mxu0 0.0
      %3326 = vmatpush1.msra.mxu0 %v3266
      %3327 = vmatprep.subr.mxu0 0.0
      %3328 = vmatpush1.msra.mxu0 %v3267
      %3329 = vmatprep.subr.mxu0 0.0
      %3330 = vmatpush1.msra.mxu0 %v3268
      %3331 = vmatprep.subr.mxu0 0.0
      %3332 = vmatpush1.msra.mxu0 %v3269
      %3333 = vmatprep.subr.mxu0 0.0
      %3334 = vmatpush1.msra.mxu0 %v3270
      %3335 = vmatprep.mubr.f32.mxu0 %v3238
      %3336 = vmatmul.mubr.f32.gmra.mrb[0].mxu0 %v3237
      %v3337 = vpop.f32.mrb[0].mxu0
      %v3338 = vadd.f32 0.0, %v3337
      %v3339 = vpop.f32.mrb[0].mxu0
      %3340 = vdwg.mxu0
      %v3341 = vld [vmem:[%s14] sm:$0xff]
      %v3342 = vld [vmem:[%s14 + $0x8] sm:$0xff]
      %v3343 = vld [vmem:[%s14 + $0x10] sm:$0xff]
      %v3344 = vld [vmem:[%s14 + $0x18] sm:$0xff]
      %v3345 = vld [vmem:[%s14 + $0x20] sm:$0xff]
      %v3346 = vld [vmem:[%s14 + $0x28] sm:$0xff]
      %v3347 = vld [vmem:[%s14 + $0x30] sm:$0xff]
      %v3348 = vld [vmem:[%s14 + $0x38] sm:$0xff]
      %vm3349 = vcmask 523264
      %v3351 = vsel %vm3349, %v3338, 0
      %3353 = vmatprep.subr.mxu0 0.0
      %3354 = vmatpush1.msra.mxu0 %v3341
      %3355 = vmatprep.subr.mxu0 0.0
      %3356 = vmatpush1.msra.mxu0 %v3342
      %3357 = vmatprep.subr.mxu0 0.0
      %3358 = vmatpush1.msra.mxu0 %v3343
      %3359 = vmatprep.subr.mxu0 0.0
      %3360 = vmatpush1.msra.mxu0 %v3344
      %3361 = vmatprep.subr.mxu0 0.0
      %3362 = vmatpush1.msra.mxu0 %v3345
      %3363 = vmatprep.subr.mxu0 0.0
      %3364 = vmatpush1.msra.mxu0 %v3346
      %3365 = vmatprep.subr.mxu0 0.0
      %3366 = vmatpush1.msra.mxu0 %v3347
      %3367 = vmatprep.subr.mxu0 0.0
      %3368 = vmatpush1.msra.mxu0 %v3348
      %3369 = vmatprep.subr.mxu0 0.0
      %3370 = vmatpush1.msra.mxu0 0.0
      %3371 = vmatprep.subr.mxu0 0.0
      %3372 = vmatpush1.msra.mxu0 0.0
      %3373 = vmatprep.subr.mxu0 0.0
      %3374 = vmatpush1.msra.mxu0 0.0
      %3375 = vmatprep.subr.mxu0 0.0
      %3376 = vmatpush1.msra.mxu0 0.0
      %3377 = vmatprep.subr.mxu0 0.0
      %3378 = vmatpush1.msra.mxu0 0.0
      %3379 = vmatprep.subr.mxu0 0.0
      %3380 = vmatpush1.msra.mxu0 0.0
      %3381 = vmatprep.subr.mxu0 0.0
      %3382 = vmatpush1.msra.mxu0 0.0
      %3383 = vmatprep.subr.mxu0 0.0
      %3384 = vmatpush1.msra.mxu0 0.0
      %3385 = vmatprep.subr.mxu0 0.0
      %3386 = vmatpush1.msra.mxu0 0.0
      %3387 = vmatprep.subr.mxu0 0.0
      %3388 = vmatpush1.msra.mxu0 0.0
      %3389 = vmatprep.subr.mxu0 0.0
      %3390 = vmatpush1.msra.mxu0 0.0
      %3391 = vmatprep.subr.mxu0 0.0
      %3392 = vmatpush1.msra.mxu0 0.0
      %3393 = vmatprep.subr.mxu0 0.0
      %3394 = vmatpush1.msra.mxu0 0.0
      %3395 = vmatprep.subr.mxu0 0.0
      %3396 = vmatpush1.msra.mxu0 0.0
      %3397 = vmatprep.subr.mxu0 0.0
      %3398 = vmatpush1.msra.mxu0 0.0
      %3399 = vmatprep.subr.mxu0 0.0
      %3400 = vmatpush1.msra.mxu0 0.0
      %3401 = vmatprep.subr.mxu0 0.0
      %3402 = vmatpush1.msra.mxu0 0.0
      %3403 = vmatprep.subr.mxu0 0.0
      %3404 = vmatpush1.msra.mxu0 0.0
      %3405 = vmatprep.subr.mxu0 0.0
      %3406 = vmatpush1.msra.mxu0 0.0
      %3407 = vmatprep.subr.mxu0 0.0
      %3408 = vmatpush1.msra.mxu0 0.0
      %3409 = vmatprep.subr.mxu0 0.0
      %3410 = vmatpush1.msra.mxu0 0.0
      %3411 = vmatprep.subr.mxu0 0.0
      %3412 = vmatpush1.msra.mxu0 0.0
      %3413 = vmatprep.subr.mxu0 0.0
      %3414 = vmatpush1.msra.mxu0 0.0
      %3415 = vmatprep.subr.mxu0 0.0
      %3416 = vmatpush1.msra.mxu0 0.0
      %3417 = vmatprep.mubr.f32.mxu0 0.0
      %3418 = vmatmul.mubr.f32.gmra.mrb[0].mxu0 %v3351
      %v3419 = vpop.f32.mrb[0].mxu0
      %v3420 = vadd.f32 0.0, %v3419
      %v3421 = vpop.f32.mrb[0].mxu0
      %3422 = vdwg.mxu0
      %v3423 = vld [vmem:[%s5] sm:$0xff]
      %v3424 = vld [vmem:[%s5 + $0x8] sm:$0xff]
      %s3425 = scalar_lea.vmem %s14, 64
      %v3426 = vld [vmem:[%s3425] sm:$0xff]
      %v3427 = vld [vmem:[%s3425 + $0x8] sm:$0xff]
      %v3428 = vld [vmem:[%s3425 + $0x10] sm:$0xff]
      %v3429 = vld [vmem:[%s3425 + $0x18] sm:$0xff]
      %v3430 = vld [vmem:[%s3425 + $0x20] sm:$0xff]
      %v3431 = vld [vmem:[%s3425 + $0x28] sm:$0xff]
      %v3432 = vld [vmem:[%s3425 + $0x30] sm:$0xff]
      %v3433 = vld [vmem:[%s3425 + $0x38] sm:$0xff]
      %3434 = vmatprep.subr.mxu0 0.0
      %3435 = vmatpush1.msra.mxu0 %v3426
      %3436 = vmatprep.subr.mxu0 0.0
      %3437 = vmatpush1.msra.mxu0 %v3427
      %3438 = vmatprep.subr.mxu0 0.0
      %3439 = vmatpush1.msra.mxu0 %v3428
      %3440 = vmatprep.subr.mxu0 0.0
      %3441 = vmatpush1.msra.mxu0 %v3429
      %3442 = vmatprep.subr.mxu0 0.0
      %3443 = vmatpush1.msra.mxu0 %v3430
      %3444 = vmatprep.subr.mxu0 0.0
      %3445 = vmatpush1.msra.mxu0 %v3431
      %3446 = vmatprep.subr.mxu0 0.0
      %3447 = vmatpush1.msra.mxu0 %v3432
      %3448 = vmatprep.subr.mxu0 0.0
      %3449 = vmatpush1.msra.mxu0 %v3433
      %3450 = vmatprep.subr.mxu0 0.0
      %3451 = vmatpush1.msra.mxu0 0.0
      %3452 = vmatprep.subr.mxu0 0.0
      %3453 = vmatpush1.msra.mxu0 0.0
      %3454 = vmatprep.subr.mxu0 0.0
      %3455 = vmatpush1.msra.mxu0 0.0
      %3456 = vmatprep.subr.mxu0 0.0
      %3457 = vmatpush1.msra.mxu0 0.0
      %3458 = vmatprep.subr.mxu0 0.0
      %3459 = vmatpush1.msra.mxu0 0.0
      %3460 = vmatprep.subr.mxu0 0.0
      %3461 = vmatpush1.msra.mxu0 0.0
      %3462 = vmatprep.subr.mxu0 0.0
      %3463 = vmatpush1.msra.mxu0 0.0
      %3464 = vmatprep.subr.mxu0 0.0
      %3465 = vmatpush1.msra.mxu0 0.0
      %3466 = vmatprep.subr.mxu0 0.0
      %3467 = vmatpush1.msra.mxu0 0.0
      %3468 = vmatprep.subr.mxu0 0.0
      %3469 = vmatpush1.msra.mxu0 0.0
      %3470 = vmatprep.subr.mxu0 0.0
      %3471 = vmatpush1.msra.mxu0 0.0
      %3472 = vmatprep.subr.mxu0 0.0
      %3473 = vmatpush1.msra.mxu0 0.0
      %3474 = vmatprep.subr.mxu0 0.0
      %3475 = vmatpush1.msra.mxu0 0.0
      %3476 = vmatprep.subr.mxu0 0.0
      %3477 = vmatpush1.msra.mxu0 0.0
      %3478 = vmatprep.subr.mxu0 0.0
      %3479 = vmatpush1.msra.mxu0 0.0
      %3480 = vmatprep.subr.mxu0 0.0
      %3481 = vmatpush1.msra.mxu0 0.0
      %3482 = vmatprep.subr.mxu0 0.0
      %3483 = vmatpush1.msra.mxu0 0.0
      %3484 = vmatprep.subr.mxu0 0.0
      %3485 = vmatpush1.msra.mxu0 0.0
      %3486 = vmatprep.subr.mxu0 0.0
      %3487 = vmatpush1.msra.mxu0 0.0
      %3488 = vmatprep.subr.mxu0 0.0
      %3489 = vmatpush1.msra.mxu0 0.0
      %3490 = vmatprep.subr.mxu0 0.0
      %3491 = vmatpush1.msra.mxu0 0.0
      %3492 = vmatprep.subr.mxu0 0.0
      %3493 = vmatpush1.msra.mxu0 0.0
      %3494 = vmatprep.subr.mxu0 0.0
      %3495 = vmatpush1.msra.mxu0 0.0
      %3496 = vmatprep.subr.mxu0 0.0
      %3497 = vmatpush1.msra.mxu0 0.0
      %3498 = vmatprep.mubr.f32.mxu0 0.0
      %3499 = vmatmul.mubr.f32.gmra.mrb[0].mxu0 %v3351
      %v3500 = vpop.f32.mrb[0].mxu0
      %v3501 = vadd.f32 0.0, %v3500
      %v3502 = vpop.f32.mrb[0].mxu0
      %3503 = vdwg.mxu0
      %s3504 = scalar_lea.vmem %s5, 16
      %v3505 = vld [vmem:[%s3504] sm:$0xff]
      %v3506 = vld [vmem:[%s3504 + $0x8] sm:$0xff]
      %v3508 = vsel %vm1962, %v3505, 0
      %v3511 = vsel %vm1962, %v3506, 0
      %3513 = vmatprep.subr.mxu0 0.0
      %3514 = vmatpush1.msra.mxu0 %v3501
      %3515 = vmatprep.subr.mxu0 0.0
      %3516 = vmatpush1.msra.mxu0 0.0
      %3517 = vmatprep.subr.mxu0 0.0
      %3518 = vmatpush1.msra.mxu0 0.0
      %3519 = vmatprep.subr.mxu0 0.0
      %3520 = vmatpush1.msra.mxu0 0.0
      %3521 = vmatprep.subr.mxu0 0.0
      %3522 = vmatpush1.msra.mxu0 0.0
      %3523 = vmatprep.subr.mxu0 0.0
      %3524 = vmatpush1.msra.mxu0 0.0
      %3525 = vmatprep.subr.mxu0 0.0
      %3526 = vmatpush1.msra.mxu0 0.0
      %3527 = vmatprep.subr.mxu0 0.0
      %3528 = vmatpush1.msra.mxu0 0.0
      %3529 = vmatprep.subr.mxu0 0.0
      %3530 = vmatpush1.msra.mxu0 0.0
      %3531 = vmatprep.subr.mxu0 0.0
      %3532 = vmatpush1.msra.mxu0 0.0
      %3533 = vmatprep.subr.mxu0 0.0
      %3534 = vmatpush1.msra.mxu0 0.0
      %3535 = vmatprep.subr.mxu0 0.0
      %3536 = vmatpush1.msra.mxu0 0.0
      %3537 = vmatprep.subr.mxu0 0.0
      %3538 = vmatpush1.msra.mxu0 0.0
      %3539 = vmatprep.subr.mxu0 0.0
      %3540 = vmatpush1.msra.mxu0 0.0
      %3541 = vmatprep.subr.mxu0 0.0
      %3542 = vmatpush1.msra.mxu0 0.0
      %3543 = vmatprep.subr.mxu0 0.0
      %3544 = vmatpush1.msra.mxu0 0.0
      %3545 = vmatprep.subr.mxu0 0.0
      %3546 = vmatpush1.msra.mxu0 0.0
      %3547 = vmatprep.subr.mxu0 0.0
      %3548 = vmatpush1.msra.mxu0 0.0
      %3549 = vmatprep.subr.mxu0 0.0
      %3550 = vmatpush1.msra.mxu0 0.0
      %3551 = vmatprep.subr.mxu0 0.0
      %3552 = vmatpush1.msra.mxu0 0.0
      %3553 = vmatprep.subr.mxu0 0.0
      %3554 = vmatpush1.msra.mxu0 0.0
      %3555 = vmatprep.subr.mxu0 0.0
      %3556 = vmatpush1.msra.mxu0 0.0
      %3557 = vmatprep.subr.mxu0 0.0
      %3558 = vmatpush1.msra.mxu0 0.0
      %3559 = vmatprep.subr.mxu0 0.0
      %3560 = vmatpush1.msra.mxu0 0.0
      %3561 = vmatprep.subr.mxu0 0.0
      %3562 = vmatpush1.msra.mxu0 0.0
      %3563 = vmatprep.subr.mxu0 0.0
      %3564 = vmatpush1.msra.mxu0 0.0
      %3565 = vmatprep.subr.mxu0 0.0
      %3566 = vmatpush1.msra.mxu0 0.0
      %3567 = vmatprep.subr.mxu0 0.0
      %3568 = vmatpush1.msra.mxu0 0.0
      %3569 = vmatprep.subr.mxu0 0.0
      %3570 = vmatpush1.msra.mxu0 0.0
      %3571 = vmatprep.subr.mxu0 0.0
      %3572 = vmatpush1.msra.mxu0 0.0
      %3573 = vmatprep.subr.mxu0 0.0
      %3574 = vmatpush1.msra.mxu0 0.0
      %3575 = vmatprep.subr.mxu0 0.0
      %3576 = vmatpush1.msra.mxu0 0.0
      %3577 = vmatprep.mubr.f32.mxu0 0.0
      %3578 = vmatmul.mubr.f32.gmra.mrb[0].mxu0 %v3508
      %v3579 = vpop.f32.mrb[0].mxu0
      %v3580 = vadd.f32 0.0, %v3579
      %v3581 = vpop.f32.mrb[0].mxu0
      %3582 = vmatprep.mubr.f32.mxu0 0.0
      %3583 = vmatmul.mubr.f32.gmra.mrb[0].mxu0 %v3511
      %v3584 = vpop.f32.mrb[0].mxu0
      %v3585 = vadd.f32 0.0, %v3584
      %v3586 = vpop.f32.mrb[0].mxu0
      %3587 = vdwg.mxu0
      %v3589 = vsel %vm1962, %v3423, 0
      %v3592 = vsel %vm1962, %v3424, 0
      %3594 = vmatprep.subr.mxu0 0.0
      %3595 = vmatpush1.msra.mxu0 %v3420
      %3596 = vmatprep.subr.mxu0 0.0
      %3597 = vmatpush1.msra.mxu0 0.0
      %3598 = vmatprep.subr.mxu0 0.0
      %3599 = vmatpush1.msra.mxu0 0.0
      %3600 = vmatprep.subr.mxu0 0.0
      %3601 = vmatpush1.msra.mxu0 0.0
      %3602 = vmatprep.subr.mxu0 0.0
      %3603 = vmatpush1.msra.mxu0 0.0
      %3604 = vmatprep.subr.mxu0 0.0
      %3605 = vmatpush1.msra.mxu0 0.0
      %3606 = vmatprep.subr.mxu0 0.0
      %3607 = vmatpush1.msra.mxu0 0.0
      %3608 = vmatprep.subr.mxu0 0.0
      %3609 = vmatpush1.msra.mxu0 0.0
      %3610 = vmatprep.subr.mxu0 0.0
      %3611 = vmatpush1.msra.mxu0 0.0
      %3612 = vmatprep.subr.mxu0 0.0
      %3613 = vmatpush1.msra.mxu0 0.0
      %3614 = vmatprep.subr.mxu0 0.0
      %3615 = vmatpush1.msra.mxu0 0.0
      %3616 = vmatprep.subr.mxu0 0.0
      %3617 = vmatpush1.msra.mxu0 0.0
      %3618 = vmatprep.subr.mxu0 0.0
      %3619 = vmatpush1.msra.mxu0 0.0
      %3620 = vmatprep.subr.mxu0 0.0
      %3621 = vmatpush1.msra.mxu0 0.0
      %3622 = vmatprep.subr.mxu0 0.0
      %3623 = vmatpush1.msra.mxu0 0.0
      %3624 = vmatprep.subr.mxu0 0.0
      %3625 = vmatpush1.msra.mxu0 0.0
      %3626 = vmatprep.subr.mxu0 0.0
      %3627 = vmatpush1.msra.mxu0 0.0
      %3628 = vmatprep.subr.mxu0 0.0
      %3629 = vmatpush1.msra.mxu0 0.0
      %3630 = vmatprep.subr.mxu0 0.0
      %3631 = vmatpush1.msra.mxu0 0.0
      %3632 = vmatprep.subr.mxu0 0.0
      %3633 = vmatpush1.msra.mxu0 0.0
      %3634 = vmatprep.subr.mxu0 0.0
      %3635 = vmatpush1.msra.mxu0 0.0
      %3636 = vmatprep.subr.mxu0 0.0
      %3637 = vmatpush1.msra.mxu0 0.0
      %3638 = vmatprep.subr.mxu0 0.0
      %3639 = vmatpush1.msra.mxu0 0.0
      %3640 = vmatprep.subr.mxu0 0.0
      %3641 = vmatpush1.msra.mxu0 0.0
      %3642 = vmatprep.subr.mxu0 0.0
      %3643 = vmatpush1.msra.mxu0 0.0
      %3644 = vmatprep.subr.mxu0 0.0
      %3645 = vmatpush1.msra.mxu0 0.0
      %3646 = vmatprep.subr.mxu0 0.0
      %3647 = vmatpush1.msra.mxu0 0.0
      %3648 = vmatprep.subr.mxu0 0.0
      %3649 = vmatpush1.msra.mxu0 0.0
      %3650 = vmatprep.subr.mxu0 0.0
      %3651 = vmatpush1.msra.mxu0 0.0
      %3652 = vmatprep.subr.mxu0 0.0
      %3653 = vmatpush1.msra.mxu0 0.0
      %3654 = vmatprep.subr.mxu0 0.0
      %3655 = vmatpush1.msra.mxu0 0.0
      %3656 = vmatprep.subr.mxu0 0.0
      %3657 = vmatpush1.msra.mxu0 0.0
      %3658 = vmatprep.mubr.f32.mxu0 0.0
      %3659 = vmatmul.mubr.f32.gmra.mrb[0].mxu0 %v3589
      %v3660 = vpop.f32.mrb[0].mxu0
      %v3661 = vadd.f32 %v3580, %v3660
      %v3662 = vpop.f32.mrb[0].mxu0
      %3663 = vmatprep.mubr.f32.mxu0 0.0
      %3664 = vmatmul.mubr.f32.gmra.mrb[0].mxu0 %v3592
      %v3665 = vpop.f32.mrb[0].mxu0
      %v3666 = vadd.f32 %v3585, %v3665
      %v3667 = vpop.f32.mrb[0].mxu0
      %3668 = vdwg.mxu0
      %s3669 = scalar_lea.vmem %s14, 128
      %v3670 = vld [vmem:[%s3669] sm:$0xff]
      %v3671 = vld [vmem:[%s3669 + $0x8] sm:$0xff]
      %v3672 = vld [vmem:[%s3669 + $0x10] sm:$0xff]
      %v3673 = vld [vmem:[%s3669 + $0x18] sm:$0xff]
      %v3674 = vld [vmem:[%s3669 + $0x20] sm:$0xff]
      %v3675 = vld [vmem:[%s3669 + $0x28] sm:$0xff]
      %v3676 = vld [vmem:[%s3669 + $0x30] sm:$0xff]
      %v3677 = vld [vmem:[%s3669 + $0x38] sm:$0xff]
      %3678 = vmatprep.subr.mxu0 0.0
      %3679 = vmatpush1.msra.mxu0 %v3670
      %3680 = vmatprep.subr.mxu0 0.0
      %3681 = vmatpush1.msra.mxu0 %v3671
      %3682 = vmatprep.subr.mxu0 0.0
      %3683 = vmatpush1.msra.mxu0 %v3672
      %3684 = vmatprep.subr.mxu0 0.0
      %3685 = vmatpush1.msra.mxu0 %v3673
      %3686 = vmatprep.subr.mxu0 0.0
      %3687 = vmatpush1.msra.mxu0 %v3674
      %3688 = vmatprep.subr.mxu0 0.0
      %3689 = vmatpush1.msra.mxu0 %v3675
      %3690 = vmatprep.subr.mxu0 0.0
      %3691 = vmatpush1.msra.mxu0 %v3676
      %3692 = vmatprep.subr.mxu0 0.0
      %3693 = vmatpush1.msra.mxu0 %v3677
      %3694 = vmatprep.subr.mxu0 0.0
      %3695 = vmatpush1.msra.mxu0 0.0
      %3696 = vmatprep.subr.mxu0 0.0
      %3697 = vmatpush1.msra.mxu0 0.0
      %3698 = vmatprep.subr.mxu0 0.0
      %3699 = vmatpush1.msra.mxu0 0.0
      %3700 = vmatprep.subr.mxu0 0.0
      %3701 = vmatpush1.msra.mxu0 0.0
      %3702 = vmatprep.subr.mxu0 0.0
      %3703 = vmatpush1.msra.mxu0 0.0
      %3704 = vmatprep.subr.mxu0 0.0
      %3705 = vmatpush1.msra.mxu0 0.0
      %3706 = vmatprep.subr.mxu0 0.0
      %3707 = vmatpush1.msra.mxu0 0.0
      %3708 = vmatprep.subr.mxu0 0.0
      %3709 = vmatpush1.msra.mxu0 0.0
      %3710 = vmatprep.subr.mxu0 0.0
      %3711 = vmatpush1.msra.mxu0 0.0
      %3712 = vmatprep.subr.mxu0 0.0
      %3713 = vmatpush1.msra.mxu0 0.0
      %3714 = vmatprep.subr.mxu0 0.0
      %3715 = vmatpush1.msra.mxu0 0.0
      %3716 = vmatprep.subr.mxu0 0.0
      %3717 = vmatpush1.msra.mxu0 0.0
      %3718 = vmatprep.subr.mxu0 0.0
      %3719 = vmatpush1.msra.mxu0 0.0
      %3720 = vmatprep.subr.mxu0 0.0
      %3721 = vmatpush1.msra.mxu0 0.0
      %3722 = vmatprep.subr.mxu0 0.0
      %3723 = vmatpush1.msra.mxu0 0.0
      %3724 = vmatprep.subr.mxu0 0.0
      %3725 = vmatpush1.msra.mxu0 0.0
      %3726 = vmatprep.subr.mxu0 0.0
      %3727 = vmatpush1.msra.mxu0 0.0
      %3728 = vmatprep.subr.mxu0 0.0
      %3729 = vmatpush1.msra.mxu0 0.0
      %3730 = vmatprep.subr.mxu0 0.0
      %3731 = vmatpush1.msra.mxu0 0.0
      %3732 = vmatprep.subr.mxu0 0.0
      %3733 = vmatpush1.msra.mxu0 0.0
      %3734 = vmatprep.subr.mxu0 0.0
      %3735 = vmatpush1.msra.mxu0 0.0
      %3736 = vmatprep.subr.mxu0 0.0
      %3737 = vmatpush1.msra.mxu0 0.0
      %3738 = vmatprep.subr.mxu0 0.0
      %3739 = vmatpush1.msra.mxu0 0.0
      %3740 = vmatprep.subr.mxu0 0.0
      %3741 = vmatpush1.msra.mxu0 0.0
      %3742 = vmatprep.mubr.f32.mxu0 0.0
      %3743 = vmatmul.mubr.f32.gmra.mrb[0].mxu0 %v3351
      %v3744 = vpop.f32.mrb[0].mxu0
      %v3745 = vadd.f32 0.0, %v3744
      %v3746 = vpop.f32.mrb[0].mxu0
      %3747 = vdwg.mxu0
      %s3748 = scalar_lea.vmem %s5, 32
      %v3749 = vld [vmem:[%s3748] sm:$0xff]
      %v3750 = vld [vmem:[%s3748 + $0x8] sm:$0xff]
      %v3752 = vsel %vm1962, %v3749, 0
      %v3755 = vsel %vm1962, %v3750, 0
      %3757 = vmatprep.subr.mxu0 0.0
      %3758 = vmatpush1.msra.mxu0 %v3745
      %3759 = vmatprep.subr.mxu0 0.0
      %3760 = vmatpush1.msra.mxu0 0.0
      %3761 = vmatprep.subr.mxu0 0.0
      %3762 = vmatpush1.msra.mxu0 0.0
      %3763 = vmatprep.subr.mxu0 0.0
      %3764 = vmatpush1.msra.mxu0 0.0
      %3765 = vmatprep.subr.mxu0 0.0
      %3766 = vmatpush1.msra.mxu0 0.0
      %3767 = vmatprep.subr.mxu0 0.0
      %3768 = vmatpush1.msra.mxu0 0.0
      %3769 = vmatprep.subr.mxu0 0.0
      %3770 = vmatpush1.msra.mxu0 0.0
      %3771 = vmatprep.subr.mxu0 0.0
      %3772 = vmatpush1.msra.mxu0 0.0
      %3773 = vmatprep.subr.mxu0 0.0
      %3774 = vmatpush1.msra.mxu0 0.0
      %3775 = vmatprep.subr.mxu0 0.0
      %3776 = vmatpush1.msra.mxu0 0.0
      %3777 = vmatprep.subr.mxu0 0.0
      %3778 = vmatpush1.msra.mxu0 0.0
      %3779 = vmatprep.subr.mxu0 0.0
      %3780 = vmatpush1.msra.mxu0 0.0
      %3781 = vmatprep.subr.mxu0 0.0
      %3782 = vmatpush1.msra.mxu0 0.0
      %3783 = vmatprep.subr.mxu0 0.0
      %3784 = vmatpush1.msra.mxu0 0.0
      %3785 = vmatprep.subr.mxu0 0.0
      %3786 = vmatpush1.msra.mxu0 0.0
      %3787 = vmatprep.subr.mxu0 0.0
      %3788 = vmatpush1.msra.mxu0 0.0
      %3789 = vmatprep.subr.mxu0 0.0
      %3790 = vmatpush1.msra.mxu0 0.0
      %3791 = vmatprep.subr.mxu0 0.0
      %3792 = vmatpush1.msra.mxu0 0.0
      %3793 = vmatprep.subr.mxu0 0.0
      %3794 = vmatpush1.msra.mxu0 0.0
      %3795 = vmatprep.subr.mxu0 0.0
      %3796 = vmatpush1.msra.mxu0 0.0
      %3797 = vmatprep.subr.mxu0 0.0
      %3798 = vmatpush1.msra.mxu0 0.0
      %3799 = vmatprep.subr.mxu0 0.0
      %3800 = vmatpush1.msra.mxu0 0.0
      %3801 = vmatprep.subr.mxu0 0.0
      %3802 = vmatpush1.msra.mxu0 0.0
      %3803 = vmatprep.subr.mxu0 0.0
      %3804 = vmatpush1.msra.mxu0 0.0
      %3805 = vmatprep.subr.mxu0 0.0
      %3806 = vmatpush1.msra.mxu0 0.0
      %3807 = vmatprep.subr.mxu0 0.0
      %3808 = vmatpush1.msra.mxu0 0.0
      %3809 = vmatprep.subr.mxu0 0.0
      %3810 = vmatpush1.msra.mxu0 0.0
      %3811 = vmatprep.subr.mxu0 0.0
      %3812 = vmatpush1.msra.mxu0 0.0
      %3813 = vmatprep.subr.mxu0 0.0
      %3814 = vmatpush1.msra.mxu0 0.0
      %3815 = vmatprep.subr.mxu0 0.0
      %3816 = vmatpush1.msra.mxu0 0.0
      %3817 = vmatprep.subr.mxu0 0.0
      %3818 = vmatpush1.msra.mxu0 0.0
      %3819 = vmatprep.subr.mxu0 0.0
      %3820 = vmatpush1.msra.mxu0 0.0
      %3821 = vmatprep.mubr.f32.mxu0 0.0
      %3822 = vmatmul.mubr.f32.gmra.mrb[0].mxu0 %v3752
      %v3823 = vpop.f32.mrb[0].mxu0
      %v3824 = vadd.f32 0.0, %v3823
      %v3825 = vpop.f32.mrb[0].mxu0
      %3826 = vmatprep.mubr.f32.mxu0 0.0
      %3827 = vmatmul.mubr.f32.gmra.mrb[0].mxu0 %v3755
      %v3828 = vpop.f32.mrb[0].mxu0
      %v3829 = vadd.f32 0.0, %v3828
      %v3830 = vpop.f32.mrb[0].mxu0
      %3831 = vdwg.mxu0
      %v3832 = vadd.f32 %v3661, %v3824
      %v3833 = vadd.f32 %v3666, %v3829
      %s3834 = scalar_lea.vmem %s14, 192
      %v3835 = vld [vmem:[%s3834] sm:$0xff]
      %v3836 = vld [vmem:[%s3834 + $0x8] sm:$0xff]
      %v3837 = vld [vmem:[%s3834 + $0x10] sm:$0xff]
      %v3838 = vld [vmem:[%s3834 + $0x18] sm:$0xff]
      %v3839 = vld [vmem:[%s3834 + $0x20] sm:$0xff]
      %v3840 = vld [vmem:[%s3834 + $0x28] sm:$0xff]
      %v3841 = vld [vmem:[%s3834 + $0x30] sm:$0xff]
      %v3842 = vld [vmem:[%s3834 + $0x38] sm:$0xff]
      %3843 = vmatprep.subr.mxu0 0.0
      %3844 = vmatpush1.msra.mxu0 %v3835
      %3845 = vmatprep.subr.mxu0 0.0
      %3846 = vmatpush1.msra.mxu0 %v3836
      %3847 = vmatprep.subr.mxu0 0.0
      %3848 = vmatpush1.msra.mxu0 %v3837
      %3849 = vmatprep.subr.mxu0 0.0
      %3850 = vmatpush1.msra.mxu0 %v3838
      %3851 = vmatprep.subr.mxu0 0.0
      %3852 = vmatpush1.msra.mxu0 %v3839
      %3853 = vmatprep.subr.mxu0 0.0
      %3854 = vmatpush1.msra.mxu0 %v3840
      %3855 = vmatprep.subr.mxu0 0.0
      %3856 = vmatpush1.msra.mxu0 %v3841
      %3857 = vmatprep.subr.mxu0 0.0
      %3858 = vmatpush1.msra.mxu0 %v3842
      %3859 = vmatprep.subr.mxu0 0.0
      %3860 = vmatpush1.msra.mxu0 0.0
      %3861 = vmatprep.subr.mxu0 0.0
      %3862 = vmatpush1.msra.mxu0 0.0
      %3863 = vmatprep.subr.mxu0 0.0
      %3864 = vmatpush1.msra.mxu0 0.0
      %3865 = vmatprep.subr.mxu0 0.0
      %3866 = vmatpush1.msra.mxu0 0.0
      %3867 = vmatprep.subr.mxu0 0.0
      %3868 = vmatpush1.msra.mxu0 0.0
      %3869 = vmatprep.subr.mxu0 0.0
      %3870 = vmatpush1.msra.mxu0 0.0
      %3871 = vmatprep.subr.mxu0 0.0
      %3872 = vmatpush1.msra.mxu0 0.0
      %3873 = vmatprep.subr.mxu0 0.0
      %3874 = vmatpush1.msra.mxu0 0.0
      %3875 = vmatprep.subr.mxu0 0.0
      %3876 = vmatpush1.msra.mxu0 0.0
      %3877 = vmatprep.subr.mxu0 0.0
      %3878 = vmatpush1.msra.mxu0 0.0
      %3879 = vmatprep.subr.mxu0 0.0
      %3880 = vmatpush1.msra.mxu0 0.0
      %3881 = vmatprep.subr.mxu0 0.0
      %3882 = vmatpush1.msra.mxu0 0.0
      %3883 = vmatprep.subr.mxu0 0.0
      %3884 = vmatpush1.msra.mxu0 0.0
      %3885 = vmatprep.subr.mxu0 0.0
      %3886 = vmatpush1.msra.mxu0 0.0
      %3887 = vmatprep.subr.mxu0 0.0
      %3888 = vmatpush1.msra.mxu0 0.0
      %3889 = vmatprep.subr.mxu0 0.0
      %3890 = vmatpush1.msra.mxu0 0.0
      %3891 = vmatprep.subr.mxu0 0.0
      %3892 = vmatpush1.msra.mxu0 0.0
      %3893 = vmatprep.subr.mxu0 0.0
      %3894 = vmatpush1.msra.mxu0 0.0
      %3895 = vmatprep.subr.mxu0 0.0
      %3896 = vmatpush1.msra.mxu0 0.0
      %3897 = vmatprep.subr.mxu0 0.0
      %3898 = vmatpush1.msra.mxu0 0.0
      %3899 = vmatprep.subr.mxu0 0.0
      %3900 = vmatpush1.msra.mxu0 0.0
      %3901 = vmatprep.subr.mxu0 0.0
      %3902 = vmatpush1.msra.mxu0 0.0
      %3903 = vmatprep.subr.mxu0 0.0
      %3904 = vmatpush1.msra.mxu0 0.0
      %3905 = vmatprep.subr.mxu0 0.0
      %3906 = vmatpush1.msra.mxu0 0.0
      %3907 = vmatprep.mubr.f32.mxu0 0.0
      %3908 = vmatmul.mubr.f32.gmra.mrb[0].mxu0 %v3351
      %v3909 = vpop.f32.mrb[0].mxu0
      %v3910 = vadd.f32 0.0, %v3909
      %v3911 = vpop.f32.mrb[0].mxu0
      %3912 = vdwg.mxu0
      %s3913 = scalar_lea.vmem %s5, 48
      %v3914 = vld [vmem:[%s3913] sm:$0xff]
      %v3915 = vld [vmem:[%s3913 + $0x8] sm:$0xff]
      %v3917 = vsel %vm1962, %v3914, 0
      %v3920 = vsel %vm1962, %v3915, 0
      %3922 = vmatprep.subr.mxu0 0.0
      %3923 = vmatpush1.msra.mxu0 %v3910
      %3924 = vmatprep.subr.mxu0 0.0
      %3925 = vmatpush1.msra.mxu0 0.0
      %3926 = vmatprep.subr.mxu0 0.0
      %3927 = vmatpush1.msra.mxu0 0.0
      %3928 = vmatprep.subr.mxu0 0.0
      %3929 = vmatpush1.msra.mxu0 0.0
      %3930 = vmatprep.subr.mxu0 0.0
      %3931 = vmatpush1.msra.mxu0 0.0
      %3932 = vmatprep.subr.mxu0 0.0
      %3933 = vmatpush1.msra.mxu0 0.0
      %3934 = vmatprep.subr.mxu0 0.0
      %3935 = vmatpush1.msra.mxu0 0.0
      %3936 = vmatprep.subr.mxu0 0.0
      %3937 = vmatpush1.msra.mxu0 0.0
      %3938 = vmatprep.subr.mxu0 0.0
      %3939 = vmatpush1.msra.mxu0 0.0
      %3940 = vmatprep.subr.mxu0 0.0
      %3941 = vmatpush1.msra.mxu0 0.0
      %3942 = vmatprep.subr.mxu0 0.0
      %3943 = vmatpush1.msra.mxu0 0.0
      %3944 = vmatprep.subr.mxu0 0.0
      %3945 = vmatpush1.msra.mxu0 0.0
      %3946 = vmatprep.subr.mxu0 0.0
      %3947 = vmatpush1.msra.mxu0 0.0
      %3948 = vmatprep.subr.mxu0 0.0
      %3949 = vmatpush1.msra.mxu0 0.0
      %3950 = vmatprep.subr.mxu0 0.0
      %3951 = vmatpush1.msra.mxu0 0.0
      %3952 = vmatprep.subr.mxu0 0.0
      %3953 = vmatpush1.msra.mxu0 0.0
      %3954 = vmatprep.subr.mxu0 0.0
      %3955 = vmatpush1.msra.mxu0 0.0
      %3956 = vmatprep.subr.mxu0 0.0
      %3957 = vmatpush1.msra.mxu0 0.0
      %3958 = vmatprep.subr.mxu0 0.0
      %3959 = vmatpush1.msra.mxu0 0.0
      %3960 = vmatprep.subr.mxu0 0.0
      %3961 = vmatpush1.msra.mxu0 0.0
      %3962 = vmatprep.subr.mxu0 0.0
      %3963 = vmatpush1.msra.mxu0 0.0
      %3964 = vmatprep.subr.mxu0 0.0
      %3965 = vmatpush1.msra.mxu0 0.0
      %3966 = vmatprep.subr.mxu0 0.0
      %3967 = vmatpush1.msra.mxu0 0.0
      %3968 = vmatprep.subr.mxu0 0.0
      %3969 = vmatpush1.msra.mxu0 0.0
      %3970 = vmatprep.subr.mxu0 0.0
      %3971 = vmatpush1.msra.mxu0 0.0
      %3972 = vmatprep.subr.mxu0 0.0
      %3973 = vmatpush1.msra.mxu0 0.0
      %3974 = vmatprep.subr.mxu0 0.0
      %3975 = vmatpush1.msra.mxu0 0.0
      %3976 = vmatprep.subr.mxu0 0.0
      %3977 = vmatpush1.msra.mxu0 0.0
      %3978 = vmatprep.subr.mxu0 0.0
      %3979 = vmatpush1.msra.mxu0 0.0
      %3980 = vmatprep.subr.mxu0 0.0
      %3981 = vmatpush1.msra.mxu0 0.0
      %3982 = vmatprep.subr.mxu0 0.0
      %3983 = vmatpush1.msra.mxu0 0.0
      %3984 = vmatprep.subr.mxu0 0.0
      %3985 = vmatpush1.msra.mxu0 0.0
      %3986 = vmatprep.mubr.f32.mxu0 0.0
      %3987 = vmatmul.mubr.f32.gmra.mrb[0].mxu0 %v3917
      %v3988 = vpop.f32.mrb[0].mxu0
      %v3989 = vadd.f32 0.0, %v3988
      %v3990 = vpop.f32.mrb[0].mxu0
      %3991 = vmatprep.mubr.f32.mxu0 0.0
      %3992 = vmatmul.mubr.f32.gmra.mrb[0].mxu0 %v3920
      %v3993 = vpop.f32.mrb[0].mxu0
      %v3994 = vadd.f32 0.0, %v3993
      %v3995 = vpop.f32.mrb[0].mxu0
      %3996 = vdwg.mxu0
      %v3997 = vadd.f32 %v3832, %v3989
      %v3998 = vadd.f32 %v3833, %v3994
      %s3999 = scalar_lea.vmem %s5, 64
      %v4000 = vld [vmem:[%s3999] sm:$0xff]
      %v4001 = vld [vmem:[%s3999 + $0x8] sm:$0xff]
      %v4003 = vsel %vm1962, %v4000, 0
      %v4006 = vsel %vm1962, %v4001, 0
      %4008 = vmatprep.subr.mxu0 0.0
      %4009 = vmatpush1.msra.mxu0 %v3338
      %4010 = vmatprep.subr.mxu0 0.0
      %4011 = vmatpush1.msra.mxu0 0.0
      %4012 = vmatprep.subr.mxu0 0.0
      %4013 = vmatpush1.msra.mxu0 0.0
      %4014 = vmatprep.subr.mxu0 0.0
      %4015 = vmatpush1.msra.mxu0 0.0
      %4016 = vmatprep.subr.mxu0 0.0
      %4017 = vmatpush1.msra.mxu0 0.0
      %4018 = vmatprep.subr.mxu0 0.0
      %4019 = vmatpush1.msra.mxu0 0.0
      %4020 = vmatprep.subr.mxu0 0.0
      %4021 = vmatpush1.msra.mxu0 0.0
      %4022 = vmatprep.subr.mxu0 0.0
      %4023 = vmatpush1.msra.mxu0 0.0
      %4024 = vmatprep.subr.mxu0 0.0
      %4025 = vmatpush1.msra.mxu0 0.0
      %4026 = vmatprep.subr.mxu0 0.0
      %4027 = vmatpush1.msra.mxu0 0.0
      %4028 = vmatprep.subr.mxu0 0.0
      %4029 = vmatpush1.msra.mxu0 0.0
      %4030 = vmatprep.subr.mxu0 0.0
      %4031 = vmatpush1.msra.mxu0 0.0
      %4032 = vmatprep.subr.mxu0 0.0
      %4033 = vmatpush1.msra.mxu0 0.0
      %4034 = vmatprep.subr.mxu0 0.0
      %4035 = vmatpush1.msra.mxu0 0.0
      %4036 = vmatprep.subr.mxu0 0.0
      %4037 = vmatpush1.msra.mxu0 0.0
      %4038 = vmatprep.subr.mxu0 0.0
      %4039 = vmatpush1.msra.mxu0 0.0
      %4040 = vmatprep.subr.mxu0 0.0
      %4041 = vmatpush1.msra.mxu0 0.0
      %4042 = vmatprep.subr.mxu0 0.0
      %4043 = vmatpush1.msra.mxu0 0.0
      %4044 = vmatprep.subr.mxu0 0.0
      %4045 = vmatpush1.msra.mxu0 0.0
      %4046 = vmatprep.subr.mxu0 0.0
      %4047 = vmatpush1.msra.mxu0 0.0
      %4048 = vmatprep.subr.mxu0 0.0
      %4049 = vmatpush1.msra.mxu0 0.0
      %4050 = vmatprep.subr.mxu0 0.0
      %4051 = vmatpush1.msra.mxu0 0.0
      %4052 = vmatprep.subr.mxu0 0.0
      %4053 = vmatpush1.msra.mxu0 0.0
      %4054 = vmatprep.subr.mxu0 0.0
      %4055 = vmatpush1.msra.mxu0 0.0
      %4056 = vmatprep.subr.mxu0 0.0
      %4057 = vmatpush1.msra.mxu0 0.0
      %4058 = vmatprep.subr.mxu0 0.0
      %4059 = vmatpush1.msra.mxu0 0.0
      %4060 = vmatprep.subr.mxu0 0.0
      %4061 = vmatpush1.msra.mxu0 0.0
      %4062 = vmatprep.subr.mxu0 0.0
      %4063 = vmatpush1.msra.mxu0 0.0
      %4064 = vmatprep.subr.mxu0 0.0
      %4065 = vmatpush1.msra.mxu0 0.0
      %4066 = vmatprep.subr.mxu0 0.0
      %4067 = vmatpush1.msra.mxu0 0.0
      %4068 = vmatprep.subr.mxu0 0.0
      %4069 = vmatpush1.msra.mxu0 0.0
      %4070 = vmatprep.subr.mxu0 0.0
      %4071 = vmatpush1.msra.mxu0 0.0
      %4072 = vmatprep.mubr.f32.mxu0 0.0
      %4073 = vmatmul.mubr.f32.gmra.mrb[0].mxu0 %v4003
      %v4074 = vpop.f32.mrb[0].mxu0
      %v4075 = vadd.f32 0.0, %v4074
      %v4076 = vpop.f32.mrb[0].mxu0
      %4077 = vmatprep.mubr.f32.mxu0 0.0
      %4078 = vmatmul.mubr.f32.gmra.mrb[0].mxu0 %v4006
      %v4079 = vpop.f32.mrb[0].mxu0
      %v4080 = vadd.f32 0.0, %v4079
      %v4081 = vpop.f32.mrb[0].mxu0
      %4082 = vdwg.mxu0
      %v4083 = vadd.f32 %v3997, %v4075
      %v4084 = vadd.f32 %v3998, %v4080
      %s4085 = scalar_lea.vmem %s14, 320
      %v4086 = vld [vmem:[%s4085] sm:$0xff]
      %v4087 = vld [vmem:[%s4085 + $0x8] sm:$0xff]
      %v4088 = vld [vmem:[%s4085 + $0x10] sm:$0xff]
      %v4089 = vld [vmem:[%s4085 + $0x18] sm:$0xff]
      %v4090 = vld [vmem:[%s4085 + $0x20] sm:$0xff]
      %v4091 = vld [vmem:[%s4085 + $0x28] sm:$0xff]
      %v4092 = vld [vmem:[%s4085 + $0x30] sm:$0xff]
      %v4093 = vld [vmem:[%s4085 + $0x38] sm:$0xff]
      %4094 = vmatprep.subr.mxu0 0.0
      %4095 = vmatpush1.msra.mxu0 %v4086
      %4096 = vmatprep.subr.mxu0 0.0
      %4097 = vmatpush1.msra.mxu0 %v4087
      %4098 = vmatprep.subr.mxu0 0.0
      %4099 = vmatpush1.msra.mxu0 %v4088
      %4100 = vmatprep.subr.mxu0 0.0
      %4101 = vmatpush1.msra.mxu0 %v4089
      %4102 = vmatprep.subr.mxu0 0.0
      %4103 = vmatpush1.msra.mxu0 %v4090
      %4104 = vmatprep.subr.mxu0 0.0
      %4105 = vmatpush1.msra.mxu0 %v4091
      %4106 = vmatprep.subr.mxu0 0.0
      %4107 = vmatpush1.msra.mxu0 %v4092
      %4108 = vmatprep.subr.mxu0 0.0
      %4109 = vmatpush1.msra.mxu0 %v4093
      %4110 = vmatprep.subr.mxu0 0.0
      %4111 = vmatpush1.msra.mxu0 0.0
      %4112 = vmatprep.subr.mxu0 0.0
      %4113 = vmatpush1.msra.mxu0 0.0
      %4114 = vmatprep.subr.mxu0 0.0
      %4115 = vmatpush1.msra.mxu0 0.0
      %4116 = vmatprep.subr.mxu0 0.0
      %4117 = vmatpush1.msra.mxu0 0.0
      %4118 = vmatprep.subr.mxu0 0.0
      %4119 = vmatpush1.msra.mxu0 0.0
      %4120 = vmatprep.subr.mxu0 0.0
      %4121 = vmatpush1.msra.mxu0 0.0
      %4122 = vmatprep.subr.mxu0 0.0
      %4123 = vmatpush1.msra.mxu0 0.0
      %4124 = vmatprep.subr.mxu0 0.0
      %4125 = vmatpush1.msra.mxu0 0.0
      %4126 = vmatprep.subr.mxu0 0.0
      %4127 = vmatpush1.msra.mxu0 0.0
      %4128 = vmatprep.subr.mxu0 0.0
      %4129 = vmatpush1.msra.mxu0 0.0
      %4130 = vmatprep.subr.mxu0 0.0
      %4131 = vmatpush1.msra.mxu0 0.0
      %4132 = vmatprep.subr.mxu0 0.0
      %4133 = vmatpush1.msra.mxu0 0.0
      %4134 = vmatprep.subr.mxu0 0.0
      %4135 = vmatpush1.msra.mxu0 0.0
      %4136 = vmatprep.subr.mxu0 0.0
      %4137 = vmatpush1.msra.mxu0 0.0
      %4138 = vmatprep.subr.mxu0 0.0
      %4139 = vmatpush1.msra.mxu0 0.0
      %4140 = vmatprep.subr.mxu0 0.0
      %4141 = vmatpush1.msra.mxu0 0.0
      %4142 = vmatprep.subr.mxu0 0.0
      %4143 = vmatpush1.msra.mxu0 0.0
      %4144 = vmatprep.subr.mxu0 0.0
      %4145 = vmatpush1.msra.mxu0 0.0
      %4146 = vmatprep.subr.mxu0 0.0
      %4147 = vmatpush1.msra.mxu0 0.0
      %4148 = vmatprep.subr.mxu0 0.0
      %4149 = vmatpush1.msra.mxu0 0.0
      %4150 = vmatprep.subr.mxu0 0.0
      %4151 = vmatpush1.msra.mxu0 0.0
      %4152 = vmatprep.subr.mxu0 0.0
      %4153 = vmatpush1.msra.mxu0 0.0
      %4154 = vmatprep.subr.mxu0 0.0
      %4155 = vmatpush1.msra.mxu0 0.0
      %4156 = vmatprep.subr.mxu0 0.0
      %4157 = vmatpush1.msra.mxu0 0.0
      %4158 = vmatprep.mubr.f32.mxu0 0.0
      %4159 = vmatmul.mubr.f32.gmra.mrb[0].mxu0 %v3351
      %v4160 = vpop.f32.mrb[0].mxu0
      %v4161 = vadd.f32 0.0, %v4160
      %v4162 = vpop.f32.mrb[0].mxu0
      %4163 = vdwg.mxu0
      %s4164 = scalar_lea.vmem %s5, 80
      %v4165 = vld [vmem:[%s4164] sm:$0xff]
      %v4166 = vld [vmem:[%s4164 + $0x8] sm:$0xff]
      %v4168 = vsel %vm1962, %v4165, 0
      %v4171 = vsel %vm1962, %v4166, 0
      %4173 = vmatprep.subr.mxu0 0.0
      %4174 = vmatpush1.msra.mxu0 %v4161
      %4175 = vmatprep.subr.mxu0 0.0
      %4176 = vmatpush1.msra.mxu0 0.0
      %4177 = vmatprep.subr.mxu0 0.0
      %4178 = vmatpush1.msra.mxu0 0.0
      %4179 = vmatprep.subr.mxu0 0.0
      %4180 = vmatpush1.msra.mxu0 0.0
      %4181 = vmatprep.subr.mxu0 0.0
      %4182 = vmatpush1.msra.mxu0 0.0
      %4183 = vmatprep.subr.mxu0 0.0
      %4184 = vmatpush1.msra.mxu0 0.0
      %4185 = vmatprep.subr.mxu0 0.0
      %4186 = vmatpush1.msra.mxu0 0.0
      %4187 = vmatprep.subr.mxu0 0.0
      %4188 = vmatpush1.msra.mxu0 0.0
      %4189 = vmatprep.subr.mxu0 0.0
      %4190 = vmatpush1.msra.mxu0 0.0
      %4191 = vmatprep.subr.mxu0 0.0
      %4192 = vmatpush1.msra.mxu0 0.0
      %4193 = vmatprep.subr.mxu0 0.0
      %4194 = vmatpush1.msra.mxu0 0.0
      %4195 = vmatprep.subr.mxu0 0.0
      %4196 = vmatpush1.msra.mxu0 0.0
      %4197 = vmatprep.subr.mxu0 0.0
      %4198 = vmatpush1.msra.mxu0 0.0
      %4199 = vmatprep.subr.mxu0 0.0
      %4200 = vmatpush1.msra.mxu0 0.0
      %4201 = vmatprep.subr.mxu0 0.0
      %4202 = vmatpush1.msra.mxu0 0.0
      %4203 = vmatprep.subr.mxu0 0.0
      %4204 = vmatpush1.msra.mxu0 0.0
      %4205 = vmatprep.subr.mxu0 0.0
      %4206 = vmatpush1.msra.mxu0 0.0
      %4207 = vmatprep.subr.mxu0 0.0
      %4208 = vmatpush1.msra.mxu0 0.0
      %4209 = vmatprep.subr.mxu0 0.0
      %4210 = vmatpush1.msra.mxu0 0.0
      %4211 = vmatprep.subr.mxu0 0.0
      %4212 = vmatpush1.msra.mxu0 0.0
      %4213 = vmatprep.subr.mxu0 0.0
      %4214 = vmatpush1.msra.mxu0 0.0
      %4215 = vmatprep.subr.mxu0 0.0
      %4216 = vmatpush1.msra.mxu0 0.0
      %4217 = vmatprep.subr.mxu0 0.0
      %4218 = vmatpush1.msra.mxu0 0.0
      %4219 = vmatprep.subr.mxu0 0.0
      %4220 = vmatpush1.msra.mxu0 0.0
      %4221 = vmatprep.subr.mxu0 0.0
      %4222 = vmatpush1.msra.mxu0 0.0
      %4223 = vmatprep.subr.mxu0 0.0
      %4224 = vmatpush1.msra.mxu0 0.0
      %4225 = vmatprep.subr.mxu0 0.0
      %4226 = vmatpush1.msra.mxu0 0.0
      %4227 = vmatprep.subr.mxu0 0.0
      %4228 = vmatpush1.msra.mxu0 0.0
      %4229 = vmatprep.subr.mxu0 0.0
      %4230 = vmatpush1.msra.mxu0 0.0
      %4231 = vmatprep.subr.mxu0 0.0
      %4232 = vmatpush1.msra.mxu0 0.0
      %4233 = vmatprep.subr.mxu0 0.0
      %4234 = vmatpush1.msra.mxu0 0.0
      %4235 = vmatprep.subr.mxu0 0.0
      %4236 = vmatpush1.msra.mxu0 0.0
      %4237 = vmatprep.mubr.f32.mxu0 0.0
      %4238 = vmatmul.mubr.f32.gmra.mrb[0].mxu0 %v4168
      %v4239 = vpop.f32.mrb[0].mxu0
      %v4240 = vadd.f32 0.0, %v4239
      %v4241 = vpop.f32.mrb[0].mxu0
      %4242 = vmatprep.mubr.f32.mxu0 0.0
      %4243 = vmatmul.mubr.f32.gmra.mrb[0].mxu0 %v4171
      %v4244 = vpop.f32.mrb[0].mxu0
      %v4245 = vadd.f32 0.0, %v4244
      %v4246 = vpop.f32.mrb[0].mxu0
      %4247 = vdwg.mxu0
      %v4248 = vadd.f32 %v4083, %v4240
      %v4249 = vadd.f32 %v4084, %v4245
      %s4250 = scalar_lea.vmem %s14, 384
      %v4251 = vld [vmem:[%s4250] sm:$0xff]
      %v4252 = vld [vmem:[%s4250 + $0x8] sm:$0xff]
      %v4253 = vld [vmem:[%s4250 + $0x10] sm:$0xff]
      %v4254 = vld [vmem:[%s4250 + $0x18] sm:$0xff]
      %v4255 = vld [vmem:[%s4250 + $0x20] sm:$0xff]
      %v4256 = vld [vmem:[%s4250 + $0x28] sm:$0xff]
      %v4257 = vld [vmem:[%s4250 + $0x30] sm:$0xff]
      %v4258 = vld [vmem:[%s4250 + $0x38] sm:$0xff]
      %4259 = vmatprep.subr.mxu0 0.0
      %4260 = vmatpush1.msra.mxu0 %v4251
      %4261 = vmatprep.subr.mxu0 0.0
      %4262 = vmatpush1.msra.mxu0 %v4252
      %4263 = vmatprep.subr.mxu0 0.0
      %4264 = vmatpush1.msra.mxu0 %v4253
      %4265 = vmatprep.subr.mxu0 0.0
      %4266 = vmatpush1.msra.mxu0 %v4254
      %4267 = vmatprep.subr.mxu0 0.0
      %4268 = vmatpush1.msra.mxu0 %v4255
      %4269 = vmatprep.subr.mxu0 0.0
      %4270 = vmatpush1.msra.mxu0 %v4256
      %4271 = vmatprep.subr.mxu0 0.0
      %4272 = vmatpush1.msra.mxu0 %v4257
      %4273 = vmatprep.subr.mxu0 0.0
      %4274 = vmatpush1.msra.mxu0 %v4258
      %4275 = vmatprep.subr.mxu0 0.0
      %4276 = vmatpush1.msra.mxu0 0.0
      %4277 = vmatprep.subr.mxu0 0.0
      %4278 = vmatpush1.msra.mxu0 0.0
      %4279 = vmatprep.subr.mxu0 0.0
      %4280 = vmatpush1.msra.mxu0 0.0
      %4281 = vmatprep.subr.mxu0 0.0
      %4282 = vmatpush1.msra.mxu0 0.0
      %4283 = vmatprep.subr.mxu0 0.0
      %4284 = vmatpush1.msra.mxu0 0.0
      %4285 = vmatprep.subr.mxu0 0.0
      %4286 = vmatpush1.msra.mxu0 0.0
      %4287 = vmatprep.subr.mxu0 0.0
      %4288 = vmatpush1.msra.mxu0 0.0
      %4289 = vmatprep.subr.mxu0 0.0
      %4290 = vmatpush1.msra.mxu0 0.0
      %4291 = vmatprep.subr.mxu0 0.0
      %4292 = vmatpush1.msra.mxu0 0.0
      %4293 = vmatprep.subr.mxu0 0.0
      %4294 = vmatpush1.msra.mxu0 0.0
      %4295 = vmatprep.subr.mxu0 0.0
      %4296 = vmatpush1.msra.mxu0 0.0
      %4297 = vmatprep.subr.mxu0 0.0
      %4298 = vmatpush1.msra.mxu0 0.0
      %4299 = vmatprep.subr.mxu0 0.0
      %4300 = vmatpush1.msra.mxu0 0.0
      %4301 = vmatprep.subr.mxu0 0.0
      %4302 = vmatpush1.msra.mxu0 0.0
      %4303 = vmatprep.subr.mxu0 0.0
      %4304 = vmatpush1.msra.mxu0 0.0
      %4305 = vmatprep.subr.mxu0 0.0
      %4306 = vmatpush1.msra.mxu0 0.0
      %4307 = vmatprep.subr.mxu0 0.0
      %4308 = vmatpush1.msra.mxu0 0.0
      %4309 = vmatprep.subr.mxu0 0.0
      %4310 = vmatpush1.msra.mxu0 0.0
      %4311 = vmatprep.subr.mxu0 0.0
      %4312 = vmatpush1.msra.mxu0 0.0
      %4313 = vmatprep.subr.mxu0 0.0
      %4314 = vmatpush1.msra.mxu0 0.0
      %4315 = vmatprep.subr.mxu0 0.0
      %4316 = vmatpush1.msra.mxu0 0.0
      %4317 = vmatprep.subr.mxu0 0.0
      %4318 = vmatpush1.msra.mxu0 0.0
      %4319 = vmatprep.subr.mxu0 0.0
      %4320 = vmatpush1.msra.mxu0 0.0
      %4321 = vmatprep.subr.mxu0 0.0
      %4322 = vmatpush1.msra.mxu0 0.0
      %4323 = vmatprep.mubr.f32.mxu0 0.0
      %4324 = vmatmul.mubr.f32.gmra.mrb[0].mxu0 %v3351
      %v4325 = vpop.f32.mrb[0].mxu0
      %v4326 = vadd.f32 0.0, %v4325
      %v4327 = vpop.f32.mrb[0].mxu0
      %4328 = vdwg.mxu0
      %s4329 = scalar_lea.vmem %s5, 96
      %v4330 = vld [vmem:[%s4329] sm:$0xff]
      %v4331 = vld [vmem:[%s4329 + $0x8] sm:$0xff]
      %v4333 = vsel %vm1962, %v4330, 0
      %v4336 = vsel %vm1962, %v4331, 0
      %4338 = vmatprep.subr.mxu0 0.0
      %4339 = vmatpush1.msra.mxu0 %v4326
      %4340 = vmatprep.subr.mxu0 0.0
      %4341 = vmatpush1.msra.mxu0 0.0
      %4342 = vmatprep.subr.mxu0 0.0
      %4343 = vmatpush1.msra.mxu0 0.0
      %4344 = vmatprep.subr.mxu0 0.0
      %4345 = vmatpush1.msra.mxu0 0.0
      %4346 = vmatprep.subr.mxu0 0.0
      %4347 = vmatpush1.msra.mxu0 0.0
      %4348 = vmatprep.subr.mxu0 0.0
      %4349 = vmatpush1.msra.mxu0 0.0
      %4350 = vmatprep.subr.mxu0 0.0
      %4351 = vmatpush1.msra.mxu0 0.0
      %4352 = vmatprep.subr.mxu0 0.0
      %4353 = vmatpush1.msra.mxu0 0.0
      %4354 = vmatprep.subr.mxu0 0.0
      %4355 = vmatpush1.msra.mxu0 0.0
      %4356 = vmatprep.subr.mxu0 0.0
      %4357 = vmatpush1.msra.mxu0 0.0
      %4358 = vmatprep.subr.mxu0 0.0
      %4359 = vmatpush1.msra.mxu0 0.0
      %4360 = vmatprep.subr.mxu0 0.0
      %4361 = vmatpush1.msra.mxu0 0.0
      %4362 = vmatprep.subr.mxu0 0.0
      %4363 = vmatpush1.msra.mxu0 0.0
      %4364 = vmatprep.subr.mxu0 0.0
      %4365 = vmatpush1.msra.mxu0 0.0
      %4366 = vmatprep.subr.mxu0 0.0
      %4367 = vmatpush1.msra.mxu0 0.0
      %4368 = vmatprep.subr.mxu0 0.0
      %4369 = vmatpush1.msra.mxu0 0.0
      %4370 = vmatprep.subr.mxu0 0.0
      %4371 = vmatpush1.msra.mxu0 0.0
      %4372 = vmatprep.subr.mxu0 0.0
      %4373 = vmatpush1.msra.mxu0 0.0
      %4374 = vmatprep.subr.mxu0 0.0
      %4375 = vmatpush1.msra.mxu0 0.0
      %4376 = vmatprep.subr.mxu0 0.0
      %4377 = vmatpush1.msra.mxu0 0.0
      %4378 = vmatprep.subr.mxu0 0.0
      %4379 = vmatpush1.msra.mxu0 0.0
      %4380 = vmatprep.subr.mxu0 0.0
      %4381 = vmatpush1.msra.mxu0 0.0
      %4382 = vmatprep.subr.mxu0 0.0
      %4383 = vmatpush1.msra.mxu0 0.0
      %4384 = vmatprep.subr.mxu0 0.0
      %4385 = vmatpush1.msra.mxu0 0.0
      %4386 = vmatprep.subr.mxu0 0.0
      %4387 = vmatpush1.msra.mxu0 0.0
      %4388 = vmatprep.subr.mxu0 0.0
      %4389 = vmatpush1.msra.mxu0 0.0
      %4390 = vmatprep.subr.mxu0 0.0
      %4391 = vmatpush1.msra.mxu0 0.0
      %4392 = vmatprep.subr.mxu0 0.0
      %4393 = vmatpush1.msra.mxu0 0.0
      %4394 = vmatprep.subr.mxu0 0.0
      %4395 = vmatpush1.msra.mxu0 0.0
      %4396 = vmatprep.subr.mxu0 0.0
      %4397 = vmatpush1.msra.mxu0 0.0
      %4398 = vmatprep.subr.mxu0 0.0
      %4399 = vmatpush1.msra.mxu0 0.0
      %4400 = vmatprep.subr.mxu0 0.0
      %4401 = vmatpush1.msra.mxu0 0.0
      %4402 = vmatprep.mubr.f32.mxu0 0.0
      %4403 = vmatmul.mubr.f32.gmra.mrb[0].mxu0 %v4333
      %v4404 = vpop.f32.mrb[0].mxu0
      %v4405 = vadd.f32 0.0, %v4404
      %v4406 = vpop.f32.mrb[0].mxu0
      %4407 = vmatprep.mubr.f32.mxu0 0.0
      %4408 = vmatmul.mubr.f32.gmra.mrb[0].mxu0 %v4336
      %v4409 = vpop.f32.mrb[0].mxu0
      %v4410 = vadd.f32 0.0, %v4409
      %v4411 = vpop.f32.mrb[0].mxu0
      %4412 = vdwg.mxu0
      %v4413 = vadd.f32 %v4248, %v4405
      %v4414 = vadd.f32 %v4249, %v4410
      %s4415 = scalar_lea.vmem %s14, 448
      %v4416 = vld [vmem:[%s4415] sm:$0xff]
      %v4417 = vld [vmem:[%s4415 + $0x8] sm:$0xff]
      %v4418 = vld [vmem:[%s4415 + $0x10] sm:$0xff]
      %v4419 = vld [vmem:[%s4415 + $0x18] sm:$0xff]
      %v4420 = vld [vmem:[%s4415 + $0x20] sm:$0xff]
      %v4421 = vld [vmem:[%s4415 + $0x28] sm:$0xff]
      %v4422 = vld [vmem:[%s4415 + $0x30] sm:$0xff]
      %v4423 = vld [vmem:[%s4415 + $0x38] sm:$0xff]
      %4424 = vmatprep.subr.mxu0 0.0
      %4425 = vmatpush1.msra.mxu0 %v4416
      %4426 = vmatprep.subr.mxu0 0.0
      %4427 = vmatpush1.msra.mxu0 %v4417
      %4428 = vmatprep.subr.mxu0 0.0
      %4429 = vmatpush1.msra.mxu0 %v4418
      %4430 = vmatprep.subr.mxu0 0.0
      %4431 = vmatpush1.msra.mxu0 %v4419
      %4432 = vmatprep.subr.mxu0 0.0
      %4433 = vmatpush1.msra.mxu0 %v4420
      %4434 = vmatprep.subr.mxu0 0.0
      %4435 = vmatpush1.msra.mxu0 %v4421
      %4436 = vmatprep.subr.mxu0 0.0
      %4437 = vmatpush1.msra.mxu0 %v4422
      %4438 = vmatprep.subr.mxu0 0.0
      %4439 = vmatpush1.msra.mxu0 %v4423
      %4440 = vmatprep.subr.mxu0 0.0
      %4441 = vmatpush1.msra.mxu0 0.0
      %4442 = vmatprep.subr.mxu0 0.0
      %4443 = vmatpush1.msra.mxu0 0.0
      %4444 = vmatprep.subr.mxu0 0.0
      %4445 = vmatpush1.msra.mxu0 0.0
      %4446 = vmatprep.subr.mxu0 0.0
      %4447 = vmatpush1.msra.mxu0 0.0
      %4448 = vmatprep.subr.mxu0 0.0
      %4449 = vmatpush1.msra.mxu0 0.0
      %4450 = vmatprep.subr.mxu0 0.0
      %4451 = vmatpush1.msra.mxu0 0.0
      %4452 = vmatprep.subr.mxu0 0.0
      %4453 = vmatpush1.msra.mxu0 0.0
      %4454 = vmatprep.subr.mxu0 0.0
      %4455 = vmatpush1.msra.mxu0 0.0
      %4456 = vmatprep.subr.mxu0 0.0
      %4457 = vmatpush1.msra.mxu0 0.0
      %4458 = vmatprep.subr.mxu0 0.0
      %4459 = vmatpush1.msra.mxu0 0.0
      %4460 = vmatprep.subr.mxu0 0.0
      %4461 = vmatpush1.msra.mxu0 0.0
      %4462 = vmatprep.subr.mxu0 0.0
      %4463 = vmatpush1.msra.mxu0 0.0
      %4464 = vmatprep.subr.mxu0 0.0
      %4465 = vmatpush1.msra.mxu0 0.0
      %4466 = vmatprep.subr.mxu0 0.0
      %4467 = vmatpush1.msra.mxu0 0.0
      %4468 = vmatprep.subr.mxu0 0.0
      %4469 = vmatpush1.msra.mxu0 0.0
      %4470 = vmatprep.subr.mxu0 0.0
      %4471 = vmatpush1.msra.mxu0 0.0
      %4472 = vmatprep.subr.mxu0 0.0
      %4473 = vmatpush1.msra.mxu0 0.0
      %4474 = vmatprep.subr.mxu0 0.0
      %4475 = vmatpush1.msra.mxu0 0.0
      %4476 = vmatprep.subr.mxu0 0.0
      %4477 = vmatpush1.msra.mxu0 0.0
      %4478 = vmatprep.subr.mxu0 0.0
      %4479 = vmatpush1.msra.mxu0 0.0
      %4480 = vmatprep.subr.mxu0 0.0
      %4481 = vmatpush1.msra.mxu0 0.0
      %4482 = vmatprep.subr.mxu0 0.0
      %4483 = vmatpush1.msra.mxu0 0.0
      %4484 = vmatprep.subr.mxu0 0.0
      %4485 = vmatpush1.msra.mxu0 0.0
      %4486 = vmatprep.subr.mxu0 0.0
      %4487 = vmatpush1.msra.mxu0 0.0
      %4488 = vmatprep.mubr.f32.mxu0 0.0
      %4489 = vmatmul.mubr.f32.gmra.mrb[0].mxu0 %v3351
      %v4490 = vpop.f32.mrb[0].mxu0
      %v4491 = vadd.f32 0.0, %v4490
      %v4492 = vpop.f32.mrb[0].mxu0
      %4493 = vdwg.mxu0
      %s4494 = scalar_lea.vmem %s5, 112
      %v4495 = vld [vmem:[%s4494] sm:$0xff]
      %v4496 = vld [vmem:[%s4494 + $0x8] sm:$0xff]
      %v4498 = vsel %vm1962, %v4495, 0
      %v4501 = vsel %vm1962, %v4496, 0
      %4503 = vmatprep.subr.mxu0 0.0
      %4504 = vmatpush1.msra.mxu0 %v4491
      %4505 = vmatprep.subr.mxu0 0.0
      %4506 = vmatpush1.msra.mxu0 0.0
      %4507 = vmatprep.subr.mxu0 0.0
      %4508 = vmatpush1.msra.mxu0 0.0
      %4509 = vmatprep.subr.mxu0 0.0
      %4510 = vmatpush1.msra.mxu0 0.0
      %4511 = vmatprep.subr.mxu0 0.0
      %4512 = vmatpush1.msra.mxu0 0.0
      %4513 = vmatprep.subr.mxu0 0.0
      %4514 = vmatpush1.msra.mxu0 0.0
      %4515 = vmatprep.subr.mxu0 0.0
      %4516 = vmatpush1.msra.mxu0 0.0
      %4517 = vmatprep.subr.mxu0 0.0
      %4518 = vmatpush1.msra.mxu0 0.0
      %4519 = vmatprep.subr.mxu0 0.0
      %4520 = vmatpush1.msra.mxu0 0.0
      %4521 = vmatprep.subr.mxu0 0.0
      %4522 = vmatpush1.msra.mxu0 0.0
      %4523 = vmatprep.subr.mxu0 0.0
      %4524 = vmatpush1.msra.mxu0 0.0
      %4525 = vmatprep.subr.mxu0 0.0
      %4526 = vmatpush1.msra.mxu0 0.0
      %4527 = vmatprep.subr.mxu0 0.0
      %4528 = vmatpush1.msra.mxu0 0.0
      %4529 = vmatprep.subr.mxu0 0.0
      %4530 = vmatpush1.msra.mxu0 0.0
      %4531 = vmatprep.subr.mxu0 0.0
      %4532 = vmatpush1.msra.mxu0 0.0
      %4533 = vmatprep.subr.mxu0 0.0
      %4534 = vmatpush1.msra.mxu0 0.0
      %4535 = vmatprep.subr.mxu0 0.0
      %4536 = vmatpush1.msra.mxu0 0.0
      %4537 = vmatprep.subr.mxu0 0.0
      %4538 = vmatpush1.msra.mxu0 0.0
      %4539 = vmatprep.subr.mxu0 0.0
      %4540 = vmatpush1.msra.mxu0 0.0
      %4541 = vmatprep.subr.mxu0 0.0
      %4542 = vmatpush1.msra.mxu0 0.0
      %4543 = vmatprep.subr.mxu0 0.0
      %4544 = vmatpush1.msra.mxu0 0.0
      %4545 = vmatprep.subr.mxu0 0.0
      %4546 = vmatpush1.msra.mxu0 0.0
      %4547 = vmatprep.subr.mxu0 0.0
      %4548 = vmatpush1.msra.mxu0 0.0
      %4549 = vmatprep.subr.mxu0 0.0
      %4550 = vmatpush1.msra.mxu0 0.0
      %4551 = vmatprep.subr.mxu0 0.0
      %4552 = vmatpush1.msra.mxu0 0.0
      %4553 = vmatprep.subr.mxu0 0.0
      %4554 = vmatpush1.msra.mxu0 0.0
      %4555 = vmatprep.subr.mxu0 0.0
      %4556 = vmatpush1.msra.mxu0 0.0
      %4557 = vmatprep.subr.mxu0 0.0
      %4558 = vmatpush1.msra.mxu0 0.0
      %4559 = vmatprep.subr.mxu0 0.0
      %4560 = vmatpush1.msra.mxu0 0.0
      %4561 = vmatprep.subr.mxu0 0.0
      %4562 = vmatpush1.msra.mxu0 0.0
      %4563 = vmatprep.subr.mxu0 0.0
      %4564 = vmatpush1.msra.mxu0 0.0
      %4565 = vmatprep.subr.mxu0 0.0
      %4566 = vmatpush1.msra.mxu0 0.0
      %4567 = vmatprep.mubr.f32.mxu0 0.0
      %4568 = vmatmul.mubr.f32.gmra.mrb[0].mxu0 %v4498
      %v4569 = vpop.f32.mrb[0].mxu0
      %v4570 = vadd.f32 0.0, %v4569
      %v4571 = vpop.f32.mrb[0].mxu0
      %4572 = vmatprep.mubr.f32.mxu0 0.0
      %4573 = vmatmul.mubr.f32.gmra.mrb[0].mxu0 %v4501
      %v4574 = vpop.f32.mrb[0].mxu0
      %v4575 = vadd.f32 0.0, %v4574
      %v4576 = vpop.f32.mrb[0].mxu0
      %4577 = vdwg.mxu0
      %v4578 = vadd.f32 %v4413, %v4570
      %v4579 = vadd.f32 %v4414, %v4575
      %s4580 = scalar_lea.vmem %s14, 512
      %v4581 = vld [vmem:[%s4580] sm:$0xff]
      %v4582 = vld [vmem:[%s4580 + $0x8] sm:$0xff]
      %v4583 = vld [vmem:[%s4580 + $0x10] sm:$0xff]
      %v4584 = vld [vmem:[%s4580 + $0x18] sm:$0xff]
      %v4585 = vld [vmem:[%s4580 + $0x20] sm:$0xff]
      %v4586 = vld [vmem:[%s4580 + $0x28] sm:$0xff]
      %v4587 = vld [vmem:[%s4580 + $0x30] sm:$0xff]
      %v4588 = vld [vmem:[%s4580 + $0x38] sm:$0xff]
      %4589 = vmatprep.subr.mxu0 0.0
      %4590 = vmatpush1.msra.mxu0 %v4581
      %4591 = vmatprep.subr.mxu0 0.0
      %4592 = vmatpush1.msra.mxu0 %v4582
      %4593 = vmatprep.subr.mxu0 0.0
      %4594 = vmatpush1.msra.mxu0 %v4583
      %4595 = vmatprep.subr.mxu0 0.0
      %4596 = vmatpush1.msra.mxu0 %v4584
      %4597 = vmatprep.subr.mxu0 0.0
      %4598 = vmatpush1.msra.mxu0 %v4585
      %4599 = vmatprep.subr.mxu0 0.0
      %4600 = vmatpush1.msra.mxu0 %v4586
      %4601 = vmatprep.subr.mxu0 0.0
      %4602 = vmatpush1.msra.mxu0 %v4587
      %4603 = vmatprep.subr.mxu0 0.0
      %4604 = vmatpush1.msra.mxu0 %v4588
      %4605 = vmatprep.subr.mxu0 0.0
      %4606 = vmatpush1.msra.mxu0 0.0
      %4607 = vmatprep.subr.mxu0 0.0
      %4608 = vmatpush1.msra.mxu0 0.0
      %4609 = vmatprep.subr.mxu0 0.0
      %4610 = vmatpush1.msra.mxu0 0.0
      %4611 = vmatprep.subr.mxu0 0.0
      %4612 = vmatpush1.msra.mxu0 0.0
      %4613 = vmatprep.subr.mxu0 0.0
      %4614 = vmatpush1.msra.mxu0 0.0
      %4615 = vmatprep.subr.mxu0 0.0
      %4616 = vmatpush1.msra.mxu0 0.0
      %4617 = vmatprep.subr.mxu0 0.0
      %4618 = vmatpush1.msra.mxu0 0.0
      %4619 = vmatprep.subr.mxu0 0.0
      %4620 = vmatpush1.msra.mxu0 0.0
      %4621 = vmatprep.subr.mxu0 0.0
      %4622 = vmatpush1.msra.mxu0 0.0
      %4623 = vmatprep.subr.mxu0 0.0
      %4624 = vmatpush1.msra.mxu0 0.0
      %4625 = vmatprep.subr.mxu0 0.0
      %4626 = vmatpush1.msra.mxu0 0.0
      %4627 = vmatprep.subr.mxu0 0.0
      %4628 = vmatpush1.msra.mxu0 0.0
      %4629 = vmatprep.subr.mxu0 0.0
      %4630 = vmatpush1.msra.mxu0 0.0
      %4631 = vmatprep.subr.mxu0 0.0
      %4632 = vmatpush1.msra.mxu0 0.0
      %4633 = vmatprep.subr.mxu0 0.0
      %4634 = vmatpush1.msra.mxu0 0.0
      %4635 = vmatprep.subr.mxu0 0.0
      %4636 = vmatpush1.msra.mxu0 0.0
      %4637 = vmatprep.subr.mxu0 0.0
      %4638 = vmatpush1.msra.mxu0 0.0
      %4639 = vmatprep.subr.mxu0 0.0
      %4640 = vmatpush1.msra.mxu0 0.0
      %4641 = vmatprep.subr.mxu0 0.0
      %4642 = vmatpush1.msra.mxu0 0.0
      %4643 = vmatprep.subr.mxu0 0.0
      %4644 = vmatpush1.msra.mxu0 0.0
      %4645 = vmatprep.subr.mxu0 0.0
      %4646 = vmatpush1.msra.mxu0 0.0
      %4647 = vmatprep.subr.mxu0 0.0
      %4648 = vmatpush1.msra.mxu0 0.0
      %4649 = vmatprep.subr.mxu0 0.0
      %4650 = vmatpush1.msra.mxu0 0.0
      %4651 = vmatprep.subr.mxu0 0.0
      %4652 = vmatpush1.msra.mxu0 0.0
      %4653 = vmatprep.mubr.f32.mxu0 0.0
      %4654 = vmatmul.mubr.f32.gmra.mrb[0].mxu0 %v3351
      %v4655 = vpop.f32.mrb[0].mxu0
      %v4656 = vadd.f32 0.0, %v4655
      %v4657 = vpop.f32.mrb[0].mxu0
      %4658 = vdwg.mxu0
      %s4659 = scalar_lea.vmem %s5, 128
      %v4660 = vld [vmem:[%s4659] sm:$0xff]
      %v4661 = vld [vmem:[%s4659 + $0x8] sm:$0xff]
      %v4663 = vsel %vm1962, %v4660, 0
      %v4666 = vsel %vm1962, %v4661, 0
      %4668 = vmatprep.subr.mxu0 0.0
      %4669 = vmatpush1.msra.mxu0 %v4656
      %4670 = vmatprep.subr.mxu0 0.0
      %4671 = vmatpush1.msra.mxu0 0.0
      %4672 = vmatprep.subr.mxu0 0.0
      %4673 = vmatpush1.msra.mxu0 0.0
      %4674 = vmatprep.subr.mxu0 0.0
      %4675 = vmatpush1.msra.mxu0 0.0
      %4676 = vmatprep.subr.mxu0 0.0
      %4677 = vmatpush1.msra.mxu0 0.0
      %4678 = vmatprep.subr.mxu0 0.0
      %4679 = vmatpush1.msra.mxu0 0.0
      %4680 = vmatprep.subr.mxu0 0.0
      %4681 = vmatpush1.msra.mxu0 0.0
      %4682 = vmatprep.subr.mxu0 0.0
      %4683 = vmatpush1.msra.mxu0 0.0
      %4684 = vmatprep.subr.mxu0 0.0
      %4685 = vmatpush1.msra.mxu0 0.0
      %4686 = vmatprep.subr.mxu0 0.0
      %4687 = vmatpush1.msra.mxu0 0.0
      %4688 = vmatprep.subr.mxu0 0.0
      %4689 = vmatpush1.msra.mxu0 0.0
      %4690 = vmatprep.subr.mxu0 0.0
      %4691 = vmatpush1.msra.mxu0 0.0
      %4692 = vmatprep.subr.mxu0 0.0
      %4693 = vmatpush1.msra.mxu0 0.0
      %4694 = vmatprep.subr.mxu0 0.0
      %4695 = vmatpush1.msra.mxu0 0.0
      %4696 = vmatprep.subr.mxu0 0.0
      %4697 = vmatpush1.msra.mxu0 0.0
      %4698 = vmatprep.subr.mxu0 0.0
      %4699 = vmatpush1.msra.mxu0 0.0
      %4700 = vmatprep.subr.mxu0 0.0
      %4701 = vmatpush1.msra.mxu0 0.0
      %4702 = vmatprep.subr.mxu0 0.0
      %4703 = vmatpush1.msra.mxu0 0.0
      %4704 = vmatprep.subr.mxu0 0.0
      %4705 = vmatpush1.msra.mxu0 0.0
      %4706 = vmatprep.subr.mxu0 0.0
      %4707 = vmatpush1.msra.mxu0 0.0
      %4708 = vmatprep.subr.mxu0 0.0
      %4709 = vmatpush1.msra.mxu0 0.0
      %4710 = vmatprep.subr.mxu0 0.0
      %4711 = vmatpush1.msra.mxu0 0.0
      %4712 = vmatprep.subr.mxu0 0.0
      %4713 = vmatpush1.msra.mxu0 0.0
      %4714 = vmatprep.subr.mxu0 0.0
      %4715 = vmatpush1.msra.mxu0 0.0
      %4716 = vmatprep.subr.mxu0 0.0
      %4717 = vmatpush1.msra.mxu0 0.0
      %4718 = vmatprep.subr.mxu0 0.0
      %4719 = vmatpush1.msra.mxu0 0.0
      %4720 = vmatprep.subr.mxu0 0.0
      %4721 = vmatpush1.msra.mxu0 0.0
      %4722 = vmatprep.subr.mxu0 0.0
      %4723 = vmatpush1.msra.mxu0 0.0
      %4724 = vmatprep.subr.mxu0 0.0
      %4725 = vmatpush1.msra.mxu0 0.0
      %4726 = vmatprep.subr.mxu0 0.0
      %4727 = vmatpush1.msra.mxu0 0.0
      %4728 = vmatprep.subr.mxu0 0.0
      %4729 = vmatpush1.msra.mxu0 0.0
      %4730 = vmatprep.subr.mxu0 0.0
      %4731 = vmatpush1.msra.mxu0 0.0
      %4732 = vmatprep.mubr.f32.mxu0 0.0
      %4733 = vmatmul.mubr.f32.gmra.mrb[0].mxu0 %v4663
      %v4734 = vpop.f32.mrb[0].mxu0
      %v4735 = vadd.f32 0.0, %v4734
      %v4736 = vpop.f32.mrb[0].mxu0
      %4737 = vmatprep.mubr.f32.mxu0 0.0
      %4738 = vmatmul.mubr.f32.gmra.mrb[0].mxu0 %v4666
      %v4739 = vpop.f32.mrb[0].mxu0
      %v4740 = vadd.f32 0.0, %v4739
      %v4741 = vpop.f32.mrb[0].mxu0
      %4742 = vdwg.mxu0
      %v4743 = vadd.f32 %v4578, %v4735
      %v4744 = vadd.f32 %v4579, %v4740
      %v4745 = vld [vmem:[%s6] sm:$0xff]
      %v4746 = vld [vmem:[%s6 + $0x8] sm:$0xff]
      %4748 = vset.pattern.permute.xlu0 0
      %4749 = vperm.xlu0 %4748, %v4745
      %v4750 = vpop.permute.xlu0 %4749
      %4753 = vset.pattern.permute.xlu0 0
      %4754 = vperm.xlu0 %4753, %v4746
      %v4755 = vpop.permute.xlu0 %4754
      %v4757 = vadd.f32 %v4743, %v4750
      %v4758 = vadd.f32 %v4744, %v4755
      %v4759 = vmax.f32 %v4757, 0.0
      %v4760 = vmax.f32 %v4758, 0.0
      %v4761 = vld [vmem:[%s7] sm:$0xff]
      %vm4762 = vcmask 130048
      %v4764 = vsel %vm4762, %v4761, 0
      %4766 = vmatprep.subr.mxu0 0.0
      %4767 = vmatpush1.msra.mxu0 %v4759
      %4768 = vmatprep.subr.mxu0 0.0
      %4769 = vmatpush1.msra.mxu0 %v4760
      %4770 = vmatprep.subr.mxu0 0.0
      %4771 = vmatpush1.msra.mxu0 0.0
      %4772 = vmatprep.subr.mxu0 0.0
      %4773 = vmatpush1.msra.mxu0 0.0
      %4774 = vmatprep.subr.mxu0 0.0
      %4775 = vmatpush1.msra.mxu0 0.0
      %4776 = vmatprep.subr.mxu0 0.0
      %4777 = vmatpush1.msra.mxu0 0.0
      %4778 = vmatprep.subr.mxu0 0.0
      %4779 = vmatpush1.msra.mxu0 0.0
      %4780 = vmatprep.subr.mxu0 0.0
      %4781 = vmatpush1.msra.mxu0 0.0
      %4782 = vmatprep.subr.mxu0 0.0
      %4783 = vmatpush1.msra.mxu0 0.0
      %4784 = vmatprep.subr.mxu0 0.0
      %4785 = vmatpush1.msra.mxu0 0.0
      %4786 = vmatprep.subr.mxu0 0.0
      %4787 = vmatpush1.msra.mxu0 0.0
      %4788 = vmatprep.subr.mxu0 0.0
      %4789 = vmatpush1.msra.mxu0 0.0
      %4790 = vmatprep.subr.mxu0 0.0
      %4791 = vmatpush1.msra.mxu0 0.0
      %4792 = vmatprep.subr.mxu0 0.0
      %4793 = vmatpush1.msra.mxu0 0.0
      %4794 = vmatprep.subr.mxu0 0.0
      %4795 = vmatpush1.msra.mxu0 0.0
      %4796 = vmatprep.subr.mxu0 0.0
      %4797 = vmatpush1.msra.mxu0 0.0
      %4798 = vmatprep.subr.mxu0 0.0
      %4799 = vmatpush1.msra.mxu0 0.0
      %4800 = vmatprep.subr.mxu0 0.0
      %4801 = vmatpush1.msra.mxu0 0.0
      %4802 = vmatprep.subr.mxu0 0.0
      %4803 = vmatpush1.msra.mxu0 0.0
      %4804 = vmatprep.subr.mxu0 0.0
      %4805 = vmatpush1.msra.mxu0 0.0
      %4806 = vmatprep.subr.mxu0 0.0
      %4807 = vmatpush1.msra.mxu0 0.0
      %4808 = vmatprep.subr.mxu0 0.0
      %4809 = vmatpush1.msra.mxu0 0.0
      %4810 = vmatprep.subr.mxu0 0.0
      %4811 = vmatpush1.msra.mxu0 0.0
      %4812 = vmatprep.subr.mxu0 0.0
      %4813 = vmatpush1.msra.mxu0 0.0
      %4814 = vmatprep.subr.mxu0 0.0
      %4815 = vmatpush1.msra.mxu0 0.0
      %4816 = vmatprep.subr.mxu0 0.0
      %4817 = vmatpush1.msra.mxu0 0.0
      %4818 = vmatprep.subr.mxu0 0.0
      %4819 = vmatpush1.msra.mxu0 0.0
      %4820 = vmatprep.subr.mxu0 0.0
      %4821 = vmatpush1.msra.mxu0 0.0
      %4822 = vmatprep.subr.mxu0 0.0
      %4823 = vmatpush1.msra.mxu0 0.0
      %4824 = vmatprep.subr.mxu0 0.0
      %4825 = vmatpush1.msra.mxu0 0.0
      %4826 = vmatprep.subr.mxu0 0.0
      %4827 = vmatpush1.msra.mxu0 0.0
      %4828 = vmatprep.subr.mxu0 0.0
      %4829 = vmatpush1.msra.mxu0 0.0
      %4830 = vmatprep.mubr.f32.mxu0 0.0
      %4831 = vmatmul.mubr.f32.gmra.mrb[0].mxu0 %v4764
      %v4832 = vpop.f32.mrb[0].mxu0
      %v4833 = vadd.f32 0.0, %v4832
      %v4834 = vpop.f32.mrb[0].mxu0
      %4835 = vdwg.mxu0
      %v4836 = vld [vmem:[%s16] sm:$0xff]
      %v4837 = vld [vmem:[%s16 + $0x8] sm:$0xff]
      %v4838 = vld [vmem:[%s16 + $0x10] sm:$0xff]
      %v4839 = vld [vmem:[%s16 + $0x18] sm:$0xff]
      %v4840 = vld [vmem:[%s16 + $0x20] sm:$0xff]
      %v4841 = vld [vmem:[%s16 + $0x28] sm:$0xff]
      %v4842 = vld [vmem:[%s16 + $0x30] sm:$0xff]
      %v4843 = vld [vmem:[%s16 + $0x38] sm:$0xff]
      %v4844 = vld [vmem:[%s16 + $0x40] sm:$0xff]
      %v4845 = vld [vmem:[%s16 + $0x48] sm:$0xff]
      %v4846 = vld [vmem:[%s16 + $0x50] sm:$0xff]
      %v4847 = vld [vmem:[%s16 + $0x58] sm:$0xff]
      %v4848 = vld [vmem:[%s16 + $0x60] sm:$0xff]
      %v4849 = vld [vmem:[%s16 + $0x68] sm:$0xff]
      %v4850 = vld [vmem:[%s16 + $0x70] sm:$0xff]
      %v4851 = vld [vmem:[%s16 + $0x78] sm:$0xff]
      %s4852 = scalar_lea.vmem %s7, 8
      %v4853 = vld [vmem:[%s4852] sm:$0xff]
      %v4855 = vsel %vm4762, %v4853, 0
      %4857 = vmatprep.subr.mxu0 0.0
      %4858 = vmatpush1.msra.mxu0 %v4759
      %4859 = vmatprep.subr.mxu0 0.0
      %4860 = vmatpush1.msra.mxu0 %v4760
      %4861 = vmatprep.subr.mxu0 0.0
      %4862 = vmatpush1.msra.mxu0 0.0
      %4863 = vmatprep.subr.mxu0 0.0
      %4864 = vmatpush1.msra.mxu0 0.0
      %4865 = vmatprep.subr.mxu0 0.0
      %4866 = vmatpush1.msra.mxu0 0.0
      %4867 = vmatprep.subr.mxu0 0.0
      %4868 = vmatpush1.msra.mxu0 0.0
      %4869 = vmatprep.subr.mxu0 0.0
      %4870 = vmatpush1.msra.mxu0 0.0
      %4871 = vmatprep.subr.mxu0 0.0
      %4872 = vmatpush1.msra.mxu0 0.0
      %4873 = vmatprep.subr.mxu0 0.0
      %4874 = vmatpush1.msra.mxu0 0.0
      %4875 = vmatprep.subr.mxu0 0.0
      %4876 = vmatpush1.msra.mxu0 0.0
      %4877 = vmatprep.subr.mxu0 0.0
      %4878 = vmatpush1.msra.mxu0 0.0
      %4879 = vmatprep.subr.mxu0 0.0
      %4880 = vmatpush1.msra.mxu0 0.0
      %4881 = vmatprep.subr.mxu0 0.0
      %4882 = vmatpush1.msra.mxu0 0.0
      %4883 = vmatprep.subr.mxu0 0.0
      %4884 = vmatpush1.msra.mxu0 0.0
      %4885 = vmatprep.subr.mxu0 0.0
      %4886 = vmatpush1.msra.mxu0 0.0
      %4887 = vmatprep.subr.mxu0 0.0
      %4888 = vmatpush1.msra.mxu0 0.0
      %4889 = vmatprep.subr.mxu0 0.0
      %4890 = vmatpush1.msra.mxu0 0.0
      %4891 = vmatprep.subr.mxu0 0.0
      %4892 = vmatpush1.msra.mxu0 0.0
      %4893 = vmatprep.subr.mxu0 0.0
      %4894 = vmatpush1.msra.mxu0 0.0
      %4895 = vmatprep.subr.mxu0 0.0
      %4896 = vmatpush1.msra.mxu0 0.0
      %4897 = vmatprep.subr.mxu0 0.0
      %4898 = vmatpush1.msra.mxu0 0.0
      %4899 = vmatprep.subr.mxu0 0.0
      %4900 = vmatpush1.msra.mxu0 0.0
      %4901 = vmatprep.subr.mxu0 0.0
      %4902 = vmatpush1.msra.mxu0 0.0
      %4903 = vmatprep.subr.mxu0 0.0
      %4904 = vmatpush1.msra.mxu0 0.0
      %4905 = vmatprep.subr.mxu0 0.0
      %4906 = vmatpush1.msra.mxu0 0.0
      %4907 = vmatprep.subr.mxu0 0.0
      %4908 = vmatpush1.msra.mxu0 0.0
      %4909 = vmatprep.subr.mxu0 0.0
      %4910 = vmatpush1.msra.mxu0 0.0
      %4911 = vmatprep.subr.mxu0 0.0
      %4912 = vmatpush1.msra.mxu0 0.0
      %4913 = vmatprep.subr.mxu0 0.0
      %4914 = vmatpush1.msra.mxu0 0.0
      %4915 = vmatprep.subr.mxu0 0.0
      %4916 = vmatpush1.msra.mxu0 0.0
      %4917 = vmatprep.subr.mxu0 0.0
      %4918 = vmatpush1.msra.mxu0 0.0
      %4919 = vmatprep.subr.mxu0 0.0
      %4920 = vmatpush1.msra.mxu0 0.0
      %4921 = vmatprep.mubr.f32.mxu0 0.0
      %4922 = vmatmul.mubr.f32.gmra.mrb[0].mxu0 %v4855
      %v4923 = vpop.f32.mrb[0].mxu0
      %v4924 = vadd.f32 0.0, %v4923
      %v4925 = vpop.f32.mrb[0].mxu0
      %4926 = vdwg.mxu0
      %s4927 = scalar_lea.vmem %s16, 128
      %v4928 = vld [vmem:[%s4927] sm:$0xff]
      %v4929 = vld [vmem:[%s4927 + $0x8] sm:$0xff]
      %v4930 = vld [vmem:[%s4927 + $0x10] sm:$0xff]
      %v4931 = vld [vmem:[%s4927 + $0x18] sm:$0xff]
      %v4932 = vld [vmem:[%s4927 + $0x20] sm:$0xff]
      %v4933 = vld [vmem:[%s4927 + $0x28] sm:$0xff]
      %v4934 = vld [vmem:[%s4927 + $0x30] sm:$0xff]
      %v4935 = vld [vmem:[%s4927 + $0x38] sm:$0xff]
      %v4936 = vld [vmem:[%s4927 + $0x40] sm:$0xff]
      %v4937 = vld [vmem:[%s4927 + $0x48] sm:$0xff]
      %v4938 = vld [vmem:[%s4927 + $0x50] sm:$0xff]
      %v4939 = vld [vmem:[%s4927 + $0x58] sm:$0xff]
      %v4940 = vld [vmem:[%s4927 + $0x60] sm:$0xff]
      %v4941 = vld [vmem:[%s4927 + $0x68] sm:$0xff]
      %v4942 = vld [vmem:[%s4927 + $0x70] sm:$0xff]
      %v4943 = vld [vmem:[%s4927 + $0x78] sm:$0xff]
      %v4945 = vsel %vm3349, %v4924, 0
      %4947 = vmatprep.subr.mxu0 %v4929
      %4948 = vmatpush1.msra.mxu0 %v4928
      %4949 = vmatprep.subr.mxu0 %v4931
      %4950 = vmatpush1.msra.mxu0 %v4930
      %4951 = vmatprep.subr.mxu0 %v4933
      %4952 = vmatpush1.msra.mxu0 %v4932
      %4953 = vmatprep.subr.mxu0 %v4935
      %4954 = vmatpush1.msra.mxu0 %v4934
      %4955 = vmatprep.subr.mxu0 %v4937
      %4956 = vmatpush1.msra.mxu0 %v4936
      %4957 = vmatprep.subr.mxu0 %v4939
      %4958 = vmatpush1.msra.mxu0 %v4938
      %4959 = vmatprep.subr.mxu0 %v4941
      %4960 = vmatpush1.msra.mxu0 %v4940
      %4961 = vmatprep.subr.mxu0 %v4943
      %4962 = vmatpush1.msra.mxu0 %v4942
      %4963 = vmatprep.subr.mxu0 0.0
      %4964 = vmatpush1.msra.mxu0 0.0
      %4965 = vmatprep.subr.mxu0 0.0
      %4966 = vmatpush1.msra.mxu0 0.0
      %4967 = vmatprep.subr.mxu0 0.0
      %4968 = vmatpush1.msra.mxu0 0.0
      %4969 = vmatprep.subr.mxu0 0.0
      %4970 = vmatpush1.msra.mxu0 0.0
      %4971 = vmatprep.subr.mxu0 0.0
      %4972 = vmatpush1.msra.mxu0 0.0
      %4973 = vmatprep.subr.mxu0 0.0
      %4974 = vmatpush1.msra.mxu0 0.0
      %4975 = vmatprep.subr.mxu0 0.0
      %4976 = vmatpush1.msra.mxu0 0.0
      %4977 = vmatprep.subr.mxu0 0.0
      %4978 = vmatpush1.msra.mxu0 0.0
      %4979 = vmatprep.subr.mxu0 0.0
      %4980 = vmatpush1.msra.mxu0 0.0
      %4981 = vmatprep.subr.mxu0 0.0
      %4982 = vmatpush1.msra.mxu0 0.0
      %4983 = vmatprep.subr.mxu0 0.0
      %4984 = vmatpush1.msra.mxu0 0.0
      %4985 = vmatprep.subr.mxu0 0.0
      %4986 = vmatpush1.msra.mxu0 0.0
      %4987 = vmatprep.subr.mxu0 0.0
      %4988 = vmatpush1.msra.mxu0 0.0
      %4989 = vmatprep.subr.mxu0 0.0
      %4990 = vmatpush1.msra.mxu0 0.0
      %4991 = vmatprep.subr.mxu0 0.0
      %4992 = vmatpush1.msra.mxu0 0.0
      %4993 = vmatprep.subr.mxu0 0.0
      %4994 = vmatpush1.msra.mxu0 0.0
      %4995 = vmatprep.subr.mxu0 0.0
      %4996 = vmatpush1.msra.mxu0 0.0
      %4997 = vmatprep.subr.mxu0 0.0
      %4998 = vmatpush1.msra.mxu0 0.0
      %4999 = vmatprep.subr.mxu0 0.0
      %5000 = vmatpush1.msra.mxu0 0.0
      %5001 = vmatprep.subr.mxu0 0.0
      %5002 = vmatpush1.msra.mxu0 0.0
      %5003 = vmatprep.subr.mxu0 0.0
      %5004 = vmatpush1.msra.mxu0 0.0
      %5005 = vmatprep.subr.mxu0 0.0
      %5006 = vmatpush1.msra.mxu0 0.0
      %5007 = vmatprep.subr.mxu0 0.0
      %5008 = vmatpush1.msra.mxu0 0.0
      %5009 = vmatprep.subr.mxu0 0.0
      %5010 = vmatpush1.msra.mxu0 0.0
      %5011 = vmatprep.mubr.f32.mxu0 0.0
      %5012 = vmatmul.mubr.f32.gmra.mrb[0].mxu0 %v4945
      %v5013 = vpop.f32.mrb[0].mxu0
      %v5014 = vadd.f32 0.0, %v5013
      %v5015 = vpop.f32.mrb[0].mxu0
      %v5016 = vadd.f32 0.0, %v5015
      %5017 = vdwg.mxu0
      %v5019 = vsel %vm3349, %v4833, 0
      %5021 = vmatprep.subr.mxu0 %v4837
      %5022 = vmatpush1.msra.mxu0 %v4836
      %5023 = vmatprep.subr.mxu0 %v4839
      %5024 = vmatpush1.msra.mxu0 %v4838
      %5025 = vmatprep.subr.mxu0 %v4841
      %5026 = vmatpush1.msra.mxu0 %v4840
      %5027 = vmatprep.subr.mxu0 %v4843
      %5028 = vmatpush1.msra.mxu0 %v4842
      %5029 = vmatprep.subr.mxu0 %v4845
      %5030 = vmatpush1.msra.mxu0 %v4844
      %5031 = vmatprep.subr.mxu0 %v4847
      %5032 = vmatpush1.msra.mxu0 %v4846
      %5033 = vmatprep.subr.mxu0 %v4849
      %5034 = vmatpush1.msra.mxu0 %v4848
      %5035 = vmatprep.subr.mxu0 %v4851
      %5036 = vmatpush1.msra.mxu0 %v4850
      %5037 = vmatprep.subr.mxu0 0.0
      %5038 = vmatpush1.msra.mxu0 0.0
      %5039 = vmatprep.subr.mxu0 0.0
      %5040 = vmatpush1.msra.mxu0 0.0
      %5041 = vmatprep.subr.mxu0 0.0
      %5042 = vmatpush1.msra.mxu0 0.0
      %5043 = vmatprep.subr.mxu0 0.0
      %5044 = vmatpush1.msra.mxu0 0.0
      %5045 = vmatprep.subr.mxu0 0.0
      %5046 = vmatpush1.msra.mxu0 0.0
      %5047 = vmatprep.subr.mxu0 0.0
      %5048 = vmatpush1.msra.mxu0 0.0
      %5049 = vmatprep.subr.mxu0 0.0
      %5050 = vmatpush1.msra.mxu0 0.0
      %5051 = vmatprep.subr.mxu0 0.0
      %5052 = vmatpush1.msra.mxu0 0.0
      %5053 = vmatprep.subr.mxu0 0.0
      %5054 = vmatpush1.msra.mxu0 0.0
      %5055 = vmatprep.subr.mxu0 0.0
      %5056 = vmatpush1.msra.mxu0 0.0
      %5057 = vmatprep.subr.mxu0 0.0
      %5058 = vmatpush1.msra.mxu0 0.0
      %5059 = vmatprep.subr.mxu0 0.0
      %5060 = vmatpush1.msra.mxu0 0.0
      %5061 = vmatprep.subr.mxu0 0.0
      %5062 = vmatpush1.msra.mxu0 0.0
      %5063 = vmatprep.subr.mxu0 0.0
      %5064 = vmatpush1.msra.mxu0 0.0
      %5065 = vmatprep.subr.mxu0 0.0
      %5066 = vmatpush1.msra.mxu0 0.0
      %5067 = vmatprep.subr.mxu0 0.0
      %5068 = vmatpush1.msra.mxu0 0.0
      %5069 = vmatprep.subr.mxu0 0.0
      %5070 = vmatpush1.msra.mxu0 0.0
      %5071 = vmatprep.subr.mxu0 0.0
      %5072 = vmatpush1.msra.mxu0 0.0
      %5073 = vmatprep.subr.mxu0 0.0
      %5074 = vmatpush1.msra.mxu0 0.0
      %5075 = vmatprep.subr.mxu0 0.0
      %5076 = vmatpush1.msra.mxu0 0.0
      %5077 = vmatprep.subr.mxu0 0.0
      %5078 = vmatpush1.msra.mxu0 0.0
      %5079 = vmatprep.subr.mxu0 0.0
      %5080 = vmatpush1.msra.mxu0 0.0
      %5081 = vmatprep.subr.mxu0 0.0
      %5082 = vmatpush1.msra.mxu0 0.0
      %5083 = vmatprep.subr.mxu0 0.0
      %5084 = vmatpush1.msra.mxu0 0.0
      %5085 = vmatprep.mubr.f32.mxu0 0.0
      %5086 = vmatmul.mubr.f32.gmra.mrb[0].mxu0 %v5019
      %v5087 = vpop.f32.mrb[0].mxu0
      %v5088 = vadd.f32 %v5014, %v5087
      %v5089 = vpop.f32.mrb[0].mxu0
      %v5090 = vadd.f32 %v5016, %v5089
      %5091 = vdwg.mxu0
      %s5092 = scalar_lea.vmem %s7, 16
      %v5093 = vld [vmem:[%s5092] sm:$0xff]
      %v5095 = vsel %vm4762, %v5093, 0
      %5097 = vmatprep.subr.mxu0 0.0
      %5098 = vmatpush1.msra.mxu0 %v4759
      %5099 = vmatprep.subr.mxu0 0.0
      %5100 = vmatpush1.msra.mxu0 %v4760
      %5101 = vmatprep.subr.mxu0 0.0
      %5102 = vmatpush1.msra.mxu0 0.0
      %5103 = vmatprep.subr.mxu0 0.0
      %5104 = vmatpush1.msra.mxu0 0.0
      %5105 = vmatprep.subr.mxu0 0.0
      %5106 = vmatpush1.msra.mxu0 0.0
      %5107 = vmatprep.subr.mxu0 0.0
      %5108 = vmatpush1.msra.mxu0 0.0
      %5109 = vmatprep.subr.mxu0 0.0
      %5110 = vmatpush1.msra.mxu0 0.0
      %5111 = vmatprep.subr.mxu0 0.0
      %5112 = vmatpush1.msra.mxu0 0.0
      %5113 = vmatprep.subr.mxu0 0.0
      %5114 = vmatpush1.msra.mxu0 0.0
      %5115 = vmatprep.subr.mxu0 0.0
      %5116 = vmatpush1.msra.mxu0 0.0
      %5117 = vmatprep.subr.mxu0 0.0
      %5118 = vmatpush1.msra.mxu0 0.0
      %5119 = vmatprep.subr.mxu0 0.0
      %5120 = vmatpush1.msra.mxu0 0.0
      %5121 = vmatprep.subr.mxu0 0.0
      %5122 = vmatpush1.msra.mxu0 0.0
      %5123 = vmatprep.subr.mxu0 0.0
      %5124 = vmatpush1.msra.mxu0 0.0
      %5125 = vmatprep.subr.mxu0 0.0
      %5126 = vmatpush1.msra.mxu0 0.0
      %5127 = vmatprep.subr.mxu0 0.0
      %5128 = vmatpush1.msra.mxu0 0.0
      %5129 = vmatprep.subr.mxu0 0.0
      %5130 = vmatpush1.msra.mxu0 0.0
      %5131 = vmatprep.subr.mxu0 0.0
      %5132 = vmatpush1.msra.mxu0 0.0
      %5133 = vmatprep.subr.mxu0 0.0
      %5134 = vmatpush1.msra.mxu0 0.0
      %5135 = vmatprep.subr.mxu0 0.0
      %5136 = vmatpush1.msra.mxu0 0.0
      %5137 = vmatprep.subr.mxu0 0.0
      %5138 = vmatpush1.msra.mxu0 0.0
      %5139 = vmatprep.subr.mxu0 0.0
      %5140 = vmatpush1.msra.mxu0 0.0
      %5141 = vmatprep.subr.mxu0 0.0
      %5142 = vmatpush1.msra.mxu0 0.0
      %5143 = vmatprep.subr.mxu0 0.0
      %5144 = vmatpush1.msra.mxu0 0.0
      %5145 = vmatprep.subr.mxu0 0.0
      %5146 = vmatpush1.msra.mxu0 0.0
      %5147 = vmatprep.subr.mxu0 0.0
      %5148 = vmatpush1.msra.mxu0 0.0
      %5149 = vmatprep.subr.mxu0 0.0
      %5150 = vmatpush1.msra.mxu0 0.0
      %5151 = vmatprep.subr.mxu0 0.0
      %5152 = vmatpush1.msra.mxu0 0.0
      %5153 = vmatprep.subr.mxu0 0.0
      %5154 = vmatpush1.msra.mxu0 0.0
      %5155 = vmatprep.subr.mxu0 0.0
      %5156 = vmatpush1.msra.mxu0 0.0
      %5157 = vmatprep.subr.mxu0 0.0
      %5158 = vmatpush1.msra.mxu0 0.0
      %5159 = vmatprep.subr.mxu0 0.0
      %5160 = vmatpush1.msra.mxu0 0.0
      %5161 = vmatprep.mubr.f32.mxu0 0.0
      %5162 = vmatmul.mubr.f32.gmra.mrb[0].mxu0 %v5095
      %v5163 = vpop.f32.mrb[0].mxu0
      %v5164 = vadd.f32 0.0, %v5163
      %v5165 = vpop.f32.mrb[0].mxu0
      %5166 = vdwg.mxu0
      %s5167 = scalar_lea.vmem %s16, 256
      %v5168 = vld [vmem:[%s5167] sm:$0xff]
      %v5169 = vld [vmem:[%s5167 + $0x8] sm:$0xff]
      %v5170 = vld [vmem:[%s5167 + $0x10] sm:$0xff]
      %v5171 = vld [vmem:[%s5167 + $0x18] sm:$0xff]
      %v5172 = vld [vmem:[%s5167 + $0x20] sm:$0xff]
      %v5173 = vld [vmem:[%s5167 + $0x28] sm:$0xff]
      %v5174 = vld [vmem:[%s5167 + $0x30] sm:$0xff]
      %v5175 = vld [vmem:[%s5167 + $0x38] sm:$0xff]
      %v5176 = vld [vmem:[%s5167 + $0x40] sm:$0xff]
      %v5177 = vld [vmem:[%s5167 + $0x48] sm:$0xff]
      %v5178 = vld [vmem:[%s5167 + $0x50] sm:$0xff]
      %v5179 = vld [vmem:[%s5167 + $0x58] sm:$0xff]
      %v5180 = vld [vmem:[%s5167 + $0x60] sm:$0xff]
      %v5181 = vld [vmem:[%s5167 + $0x68] sm:$0xff]
      %v5182 = vld [vmem:[%s5167 + $0x70] sm:$0xff]
      %v5183 = vld [vmem:[%s5167 + $0x78] sm:$0xff]
      %v5185 = vsel %vm3349, %v5164, 0
      %5187 = vmatprep.subr.mxu0 %v5169
      %5188 = vmatpush1.msra.mxu0 %v5168
      %5189 = vmatprep.subr.mxu0 %v5171
      %5190 = vmatpush1.msra.mxu0 %v5170
      %5191 = vmatprep.subr.mxu0 %v5173
      %5192 = vmatpush1.msra.mxu0 %v5172
      %5193 = vmatprep.subr.mxu0 %v5175
      %5194 = vmatpush1.msra.mxu0 %v5174
      %5195 = vmatprep.subr.mxu0 %v5177
      %5196 = vmatpush1.msra.mxu0 %v5176
      %5197 = vmatprep.subr.mxu0 %v5179
      %5198 = vmatpush1.msra.mxu0 %v5178
      %5199 = vmatprep.subr.mxu0 %v5181
      %5200 = vmatpush1.msra.mxu0 %v5180
      %5201 = vmatprep.subr.mxu0 %v5183
      %5202 = vmatpush1.msra.mxu0 %v5182
      %5203 = vmatprep.subr.mxu0 0.0
      %5204 = vmatpush1.msra.mxu0 0.0
      %5205 = vmatprep.subr.mxu0 0.0
      %5206 = vmatpush1.msra.mxu0 0.0
      %5207 = vmatprep.subr.mxu0 0.0
      %5208 = vmatpush1.msra.mxu0 0.0
      %5209 = vmatprep.subr.mxu0 0.0
      %5210 = vmatpush1.msra.mxu0 0.0
      %5211 = vmatprep.subr.mxu0 0.0
      %5212 = vmatpush1.msra.mxu0 0.0
      %5213 = vmatprep.subr.mxu0 0.0
      %5214 = vmatpush1.msra.mxu0 0.0
      %5215 = vmatprep.subr.mxu0 0.0
      %5216 = vmatpush1.msra.mxu0 0.0
      %5217 = vmatprep.subr.mxu0 0.0
      %5218 = vmatpush1.msra.mxu0 0.0
      %5219 = vmatprep.subr.mxu0 0.0
      %5220 = vmatpush1.msra.mxu0 0.0
      %5221 = vmatprep.subr.mxu0 0.0
      %5222 = vmatpush1.msra.mxu0 0.0
      %5223 = vmatprep.subr.mxu0 0.0
      %5224 = vmatpush1.msra.mxu0 0.0
      %5225 = vmatprep.subr.mxu0 0.0
      %5226 = vmatpush1.msra.mxu0 0.0
      %5227 = vmatprep.subr.mxu0 0.0
      %5228 = vmatpush1.msra.mxu0 0.0
      %5229 = vmatprep.subr.mxu0 0.0
      %5230 = vmatpush1.msra.mxu0 0.0
      %5231 = vmatprep.subr.mxu0 0.0
      %5232 = vmatpush1.msra.mxu0 0.0
      %5233 = vmatprep.subr.mxu0 0.0
      %5234 = vmatpush1.msra.mxu0 0.0
      %5235 = vmatprep.subr.mxu0 0.0
      %5236 = vmatpush1.msra.mxu0 0.0
      %5237 = vmatprep.subr.mxu0 0.0
      %5238 = vmatpush1.msra.mxu0 0.0
      %5239 = vmatprep.subr.mxu0 0.0
      %5240 = vmatpush1.msra.mxu0 0.0
      %5241 = vmatprep.subr.mxu0 0.0
      %5242 = vmatpush1.msra.mxu0 0.0
      %5243 = vmatprep.subr.mxu0 0.0
      %5244 = vmatpush1.msra.mxu0 0.0
      %5245 = vmatprep.subr.mxu0 0.0
      %5246 = vmatpush1.msra.mxu0 0.0
      %5247 = vmatprep.subr.mxu0 0.0
      %5248 = vmatpush1.msra.mxu0 0.0
      %5249 = vmatprep.subr.mxu0 0.0
      %5250 = vmatpush1.msra.mxu0 0.0
      %5251 = vmatprep.mubr.f32.mxu0 0.0
      %5252 = vmatmul.mubr.f32.gmra.mrb[0].mxu0 %v5185
      %v5253 = vpop.f32.mrb[0].mxu0
      %v5254 = vadd.f32 0.0, %v5253
      %v5255 = vpop.f32.mrb[0].mxu0
      %v5256 = vadd.f32 0.0, %v5255
      %5257 = vdwg.mxu0
      %v5258 = vadd.f32 %v5088, %v5254
      %v5259 = vadd.f32 %v5090, %v5256
      %s5260 = scalar_lea.vmem %s7, 24
      %v5261 = vld [vmem:[%s5260] sm:$0xff]
      %v5263 = vsel %vm4762, %v5261, 0
      %5265 = vmatprep.subr.mxu0 0.0
      %5266 = vmatpush1.msra.mxu0 %v4759
      %5267 = vmatprep.subr.mxu0 0.0
      %5268 = vmatpush1.msra.mxu0 %v4760
      %5269 = vmatprep.subr.mxu0 0.0
      %5270 = vmatpush1.msra.mxu0 0.0
      %5271 = vmatprep.subr.mxu0 0.0
      %5272 = vmatpush1.msra.mxu0 0.0
      %5273 = vmatprep.subr.mxu0 0.0
      %5274 = vmatpush1.msra.mxu0 0.0
      %5275 = vmatprep.subr.mxu0 0.0
      %5276 = vmatpush1.msra.mxu0 0.0
      %5277 = vmatprep.subr.mxu0 0.0
      %5278 = vmatpush1.msra.mxu0 0.0
      %5279 = vmatprep.subr.mxu0 0.0
      %5280 = vmatpush1.msra.mxu0 0.0
      %5281 = vmatprep.subr.mxu0 0.0
      %5282 = vmatpush1.msra.mxu0 0.0
      %5283 = vmatprep.subr.mxu0 0.0
      %5284 = vmatpush1.msra.mxu0 0.0
      %5285 = vmatprep.subr.mxu0 0.0
      %5286 = vmatpush1.msra.mxu0 0.0
      %5287 = vmatprep.subr.mxu0 0.0
      %5288 = vmatpush1.msra.mxu0 0.0
      %5289 = vmatprep.subr.mxu0 0.0
      %5290 = vmatpush1.msra.mxu0 0.0
      %5291 = vmatprep.subr.mxu0 0.0
      %5292 = vmatpush1.msra.mxu0 0.0
      %5293 = vmatprep.subr.mxu0 0.0
      %5294 = vmatpush1.msra.mxu0 0.0
      %5295 = vmatprep.subr.mxu0 0.0
      %5296 = vmatpush1.msra.mxu0 0.0
      %5297 = vmatprep.subr.mxu0 0.0
      %5298 = vmatpush1.msra.mxu0 0.0
      %5299 = vmatprep.subr.mxu0 0.0
      %5300 = vmatpush1.msra.mxu0 0.0
      %5301 = vmatprep.subr.mxu0 0.0
      %5302 = vmatpush1.msra.mxu0 0.0
      %5303 = vmatprep.subr.mxu0 0.0
      %5304 = vmatpush1.msra.mxu0 0.0
      %5305 = vmatprep.subr.mxu0 0.0
      %5306 = vmatpush1.msra.mxu0 0.0
      %5307 = vmatprep.subr.mxu0 0.0
      %5308 = vmatpush1.msra.mxu0 0.0
      %5309 = vmatprep.subr.mxu0 0.0
      %5310 = vmatpush1.msra.mxu0 0.0
      %5311 = vmatprep.subr.mxu0 0.0
      %5312 = vmatpush1.msra.mxu0 0.0
      %5313 = vmatprep.subr.mxu0 0.0
      %5314 = vmatpush1.msra.mxu0 0.0
      %5315 = vmatprep.subr.mxu0 0.0
      %5316 = vmatpush1.msra.mxu0 0.0
      %5317 = vmatprep.subr.mxu0 0.0
      %5318 = vmatpush1.msra.mxu0 0.0
      %5319 = vmatprep.subr.mxu0 0.0
      %5320 = vmatpush1.msra.mxu0 0.0
      %5321 = vmatprep.subr.mxu0 0.0
      %5322 = vmatpush1.msra.mxu0 0.0
      %5323 = vmatprep.subr.mxu0 0.0
      %5324 = vmatpush1.msra.mxu0 0.0
      %5325 = vmatprep.subr.mxu0 0.0
      %5326 = vmatpush1.msra.mxu0 0.0
      %5327 = vmatprep.subr.mxu0 0.0
      %5328 = vmatpush1.msra.mxu0 0.0
      %5329 = vmatprep.mubr.f32.mxu0 0.0
      %5330 = vmatmul.mubr.f32.gmra.mrb[0].mxu0 %v5263
      %v5331 = vpop.f32.mrb[0].mxu0
      %v5332 = vadd.f32 0.0, %v5331
      %v5333 = vpop.f32.mrb[0].mxu0
      %5334 = vdwg.mxu0
      %s5335 = scalar_lea.vmem %s16, 384
      %v5336 = vld [vmem:[%s5335] sm:$0xff]
      %v5337 = vld [vmem:[%s5335 + $0x8] sm:$0xff]
      %v5338 = vld [vmem:[%s5335 + $0x10] sm:$0xff]
      %v5339 = vld [vmem:[%s5335 + $0x18] sm:$0xff]
      %v5340 = vld [vmem:[%s5335 + $0x20] sm:$0xff]
      %v5341 = vld [vmem:[%s5335 + $0x28] sm:$0xff]
      %v5342 = vld [vmem:[%s5335 + $0x30] sm:$0xff]
      %v5343 = vld [vmem:[%s5335 + $0x38] sm:$0xff]
      %v5344 = vld [vmem:[%s5335 + $0x40] sm:$0xff]
      %v5345 = vld [vmem:[%s5335 + $0x48] sm:$0xff]
      %v5346 = vld [vmem:[%s5335 + $0x50] sm:$0xff]
      %v5347 = vld [vmem:[%s5335 + $0x58] sm:$0xff]
      %v5348 = vld [vmem:[%s5335 + $0x60] sm:$0xff]
      %v5349 = vld [vmem:[%s5335 + $0x68] sm:$0xff]
      %v5350 = vld [vmem:[%s5335 + $0x70] sm:$0xff]
      %v5351 = vld [vmem:[%s5335 + $0x78] sm:$0xff]
      %v5353 = vsel %vm3349, %v5332, 0
      %5355 = vmatprep.subr.mxu0 %v5337
      %5356 = vmatpush1.msra.mxu0 %v5336
      %5357 = vmatprep.subr.mxu0 %v5339
      %5358 = vmatpush1.msra.mxu0 %v5338
      %5359 = vmatprep.subr.mxu0 %v5341
      %5360 = vmatpush1.msra.mxu0 %v5340
      %5361 = vmatprep.subr.mxu0 %v5343
      %5362 = vmatpush1.msra.mxu0 %v5342
      %5363 = vmatprep.subr.mxu0 %v5345
      %5364 = vmatpush1.msra.mxu0 %v5344
      %5365 = vmatprep.subr.mxu0 %v5347
      %5366 = vmatpush1.msra.mxu0 %v5346
      %5367 = vmatprep.subr.mxu0 %v5349
      %5368 = vmatpush1.msra.mxu0 %v5348
      %5369 = vmatprep.subr.mxu0 %v5351
      %5370 = vmatpush1.msra.mxu0 %v5350
      %5371 = vmatprep.subr.mxu0 0.0
      %5372 = vmatpush1.msra.mxu0 0.0
      %5373 = vmatprep.subr.mxu0 0.0
      %5374 = vmatpush1.msra.mxu0 0.0
      %5375 = vmatprep.subr.mxu0 0.0
      %5376 = vmatpush1.msra.mxu0 0.0
      %5377 = vmatprep.subr.mxu0 0.0
      %5378 = vmatpush1.msra.mxu0 0.0
      %5379 = vmatprep.subr.mxu0 0.0
      %5380 = vmatpush1.msra.mxu0 0.0
      %5381 = vmatprep.subr.mxu0 0.0
      %5382 = vmatpush1.msra.mxu0 0.0
      %5383 = vmatprep.subr.mxu0 0.0
      %5384 = vmatpush1.msra.mxu0 0.0
      %5385 = vmatprep.subr.mxu0 0.0
      %5386 = vmatpush1.msra.mxu0 0.0
      %5387 = vmatprep.subr.mxu0 0.0
      %5388 = vmatpush1.msra.mxu0 0.0
      %5389 = vmatprep.subr.mxu0 0.0
      %5390 = vmatpush1.msra.mxu0 0.0
      %5391 = vmatprep.subr.mxu0 0.0
      %5392 = vmatpush1.msra.mxu0 0.0
      %5393 = vmatprep.subr.mxu0 0.0
      %5394 = vmatpush1.msra.mxu0 0.0
      %5395 = vmatprep.subr.mxu0 0.0
      %5396 = vmatpush1.msra.mxu0 0.0
      %5397 = vmatprep.subr.mxu0 0.0
      %5398 = vmatpush1.msra.mxu0 0.0
      %5399 = vmatprep.subr.mxu0 0.0
      %5400 = vmatpush1.msra.mxu0 0.0
      %5401 = vmatprep.subr.mxu0 0.0
      %5402 = vmatpush1.msra.mxu0 0.0
      %5403 = vmatprep.subr.mxu0 0.0
      %5404 = vmatpush1.msra.mxu0 0.0
      %5405 = vmatprep.subr.mxu0 0.0
      %5406 = vmatpush1.msra.mxu0 0.0
      %5407 = vmatprep.subr.mxu0 0.0
      %5408 = vmatpush1.msra.mxu0 0.0
      %5409 = vmatprep.subr.mxu0 0.0
      %5410 = vmatpush1.msra.mxu0 0.0
      %5411 = vmatprep.subr.mxu0 0.0
      %5412 = vmatpush1.msra.mxu0 0.0
      %5413 = vmatprep.subr.mxu0 0.0
      %5414 = vmatpush1.msra.mxu0 0.0
      %5415 = vmatprep.subr.mxu0 0.0
      %5416 = vmatpush1.msra.mxu0 0.0
      %5417 = vmatprep.subr.mxu0 0.0
      %5418 = vmatpush1.msra.mxu0 0.0
      %5419 = vmatprep.mubr.f32.mxu0 0.0
      %5420 = vmatmul.mubr.f32.gmra.mrb[0].mxu0 %v5353
      %v5421 = vpop.f32.mrb[0].mxu0
      %v5422 = vadd.f32 0.0, %v5421
      %v5423 = vpop.f32.mrb[0].mxu0
      %v5424 = vadd.f32 0.0, %v5423
      %5425 = vdwg.mxu0
      %v5426 = vadd.f32 %v5258, %v5422
      %v5427 = vadd.f32 %v5259, %v5424
      %v5428 = vld [vmem:[%s8] sm:$0xff]
      %5430 = vset.pattern.permute.xlu0 0
      %5431 = vperm.xlu0 %5430, %v5428
      %v5432 = vpop.permute.xlu0 %5431
      %v5434 = vadd.f32 %v5426, %v5432
      %v5435 = vadd.f32 %v5427, %v5432
      %v5436 = vld [vmem:[%s9] sm:$0xff]
      %v5438 = vsel %vm4762, %v5436, 0
      %5440 = vmatprep.subr.mxu0 %v5435
      %5441 = vmatpush1.msra.mxu0 %v5434
      %5442 = vmatprep.subr.mxu0 %v3092
      %5443 = vmatpush1.msra.mxu0 %v3091
      %5444 = vmatprep.subr.mxu0 0.0
      %5445 = vmatpush1.msra.mxu0 0.0
      %5446 = vmatprep.subr.mxu0 0.0
      %5447 = vmatpush1.msra.mxu0 0.0
      %5448 = vmatprep.subr.mxu0 0.0
      %5449 = vmatpush1.msra.mxu0 0.0
      %5450 = vmatprep.subr.mxu0 0.0
      %5451 = vmatpush1.msra.mxu0 0.0
      %5452 = vmatprep.subr.mxu0 0.0
      %5453 = vmatpush1.msra.mxu0 0.0
      %5454 = vmatprep.subr.mxu0 0.0
      %5455 = vmatpush1.msra.mxu0 0.0
      %5456 = vmatprep.subr.mxu0 0.0
      %5457 = vmatpush1.msra.mxu0 0.0
      %5458 = vmatprep.subr.mxu0 0.0
      %5459 = vmatpush1.msra.mxu0 0.0
      %5460 = vmatprep.subr.mxu0 0.0
      %5461 = vmatpush1.msra.mxu0 0.0
      %5462 = vmatprep.subr.mxu0 0.0
      %5463 = vmatpush1.msra.mxu0 0.0
      %5464 = vmatprep.subr.mxu0 0.0
      %5465 = vmatpush1.msra.mxu0 0.0
      %5466 = vmatprep.subr.mxu0 0.0
      %5467 = vmatpush1.msra.mxu0 0.0
      %5468 = vmatprep.subr.mxu0 0.0
      %5469 = vmatpush1.msra.mxu0 0.0
      %5470 = vmatprep.subr.mxu0 0.0
      %5471 = vmatpush1.msra.mxu0 0.0
      %5472 = vmatprep.subr.mxu0 0.0
      %5473 = vmatpush1.msra.mxu0 0.0
      %5474 = vmatprep.subr.mxu0 0.0
      %5475 = vmatpush1.msra.mxu0 0.0
      %5476 = vmatprep.subr.mxu0 0.0
      %5477 = vmatpush1.msra.mxu0 0.0
      %5478 = vmatprep.subr.mxu0 0.0
      %5479 = vmatpush1.msra.mxu0 0.0
      %5480 = vmatprep.subr.mxu0 0.0
      %5481 = vmatpush1.msra.mxu0 0.0
      %5482 = vmatprep.subr.mxu0 0.0
      %5483 = vmatpush1.msra.mxu0 0.0
      %5484 = vmatprep.subr.mxu0 0.0
      %5485 = vmatpush1.msra.mxu0 0.0
      %5486 = vmatprep.subr.mxu0 0.0
      %5487 = vmatpush1.msra.mxu0 0.0
      %5488 = vmatprep.subr.mxu0 0.0
      %5489 = vmatpush1.msra.mxu0 0.0
      %5490 = vmatprep.subr.mxu0 0.0
      %5491 = vmatpush1.msra.mxu0 0.0
      %5492 = vmatprep.subr.mxu0 0.0
      %5493 = vmatpush1.msra.mxu0 0.0
      %5494 = vmatprep.subr.mxu0 0.0
      %5495 = vmatpush1.msra.mxu0 0.0
      %5496 = vmatprep.subr.mxu0 0.0
      %5497 = vmatpush1.msra.mxu0 0.0
      %5498 = vmatprep.subr.mxu0 0.0
      %5499 = vmatpush1.msra.mxu0 0.0
      %5500 = vmatprep.subr.mxu0 0.0
      %5501 = vmatpush1.msra.mxu0 0.0
      %5502 = vmatprep.subr.mxu0 0.0
      %5503 = vmatpush1.msra.mxu0 0.0
      %5504 = vmatprep.mubr.f32.mxu0 0.0
      %5505 = vmatmul.mubr.f32.gmra.mrb[0].mxu0 %v5438
      %v5506 = vpop.f32.mrb[0].mxu0
      %v5507 = vadd.f32 0.0, %v5506
      %v5508 = vpop.f32.mrb[0].mxu0
      %v5509 = vadd.f32 0.0, %v5508
      %5510 = vdwg.mxu0
      %s5511 = scalar_lea.vmem %s9, 8
      %v5512 = vld [vmem:[%s5511] sm:$0xff]
      %v5514 = vsel %vm4762, %v5512, 0
      %5516 = vmatprep.subr.mxu0 %v5435
      %5517 = vmatpush1.msra.mxu0 %v5434
      %5518 = vmatprep.subr.mxu0 %v3092
      %5519 = vmatpush1.msra.mxu0 %v3091
      %5520 = vmatprep.subr.mxu0 0.0
      %5521 = vmatpush1.msra.mxu0 0.0
      %5522 = vmatprep.subr.mxu0 0.0
      %5523 = vmatpush1.msra.mxu0 0.0
      %5524 = vmatprep.subr.mxu0 0.0
      %5525 = vmatpush1.msra.mxu0 0.0
      %5526 = vmatprep.subr.mxu0 0.0
      %5527 = vmatpush1.msra.mxu0 0.0
      %5528 = vmatprep.subr.mxu0 0.0
      %5529 = vmatpush1.msra.mxu0 0.0
      %5530 = vmatprep.subr.mxu0 0.0
      %5531 = vmatpush1.msra.mxu0 0.0
      %5532 = vmatprep.subr.mxu0 0.0
      %5533 = vmatpush1.msra.mxu0 0.0
      %5534 = vmatprep.subr.mxu0 0.0
      %5535 = vmatpush1.msra.mxu0 0.0
      %5536 = vmatprep.subr.mxu0 0.0
      %5537 = vmatpush1.msra.mxu0 0.0
      %5538 = vmatprep.subr.mxu0 0.0
      %5539 = vmatpush1.msra.mxu0 0.0
      %5540 = vmatprep.subr.mxu0 0.0
      %5541 = vmatpush1.msra.mxu0 0.0
      %5542 = vmatprep.subr.mxu0 0.0
      %5543 = vmatpush1.msra.mxu0 0.0
      %5544 = vmatprep.subr.mxu0 0.0
      %5545 = vmatpush1.msra.mxu0 0.0
      %5546 = vmatprep.subr.mxu0 0.0
      %5547 = vmatpush1.msra.mxu0 0.0
      %5548 = vmatprep.subr.mxu0 0.0
      %5549 = vmatpush1.msra.mxu0 0.0
      %5550 = vmatprep.subr.mxu0 0.0
      %5551 = vmatpush1.msra.mxu0 0.0
      %5552 = vmatprep.subr.mxu0 0.0
      %5553 = vmatpush1.msra.mxu0 0.0
      %5554 = vmatprep.subr.mxu0 0.0
      %5555 = vmatpush1.msra.mxu0 0.0
      %5556 = vmatprep.subr.mxu0 0.0
      %5557 = vmatpush1.msra.mxu0 0.0
      %5558 = vmatprep.subr.mxu0 0.0
      %5559 = vmatpush1.msra.mxu0 0.0
      %5560 = vmatprep.subr.mxu0 0.0
      %5561 = vmatpush1.msra.mxu0 0.0
      %5562 = vmatprep.subr.mxu0 0.0
      %5563 = vmatpush1.msra.mxu0 0.0
      %5564 = vmatprep.subr.mxu0 0.0
      %5565 = vmatpush1.msra.mxu0 0.0
      %5566 = vmatprep.subr.mxu0 0.0
      %5567 = vmatpush1.msra.mxu0 0.0
      %5568 = vmatprep.subr.mxu0 0.0
      %5569 = vmatpush1.msra.mxu0 0.0
      %5570 = vmatprep.subr.mxu0 0.0
      %5571 = vmatpush1.msra.mxu0 0.0
      %5572 = vmatprep.subr.mxu0 0.0
      %5573 = vmatpush1.msra.mxu0 0.0
      %5574 = vmatprep.subr.mxu0 0.0
      %5575 = vmatpush1.msra.mxu0 0.0
      %5576 = vmatprep.subr.mxu0 0.0
      %5577 = vmatpush1.msra.mxu0 0.0
      %5578 = vmatprep.subr.mxu0 0.0
      %5579 = vmatpush1.msra.mxu0 0.0
      %5580 = vmatprep.mubr.f32.mxu0 0.0
      %5581 = vmatmul.mubr.f32.gmra.mrb[0].mxu0 %v5514
      %v5582 = vpop.f32.mrb[0].mxu0
      %v5583 = vadd.f32 0.0, %v5582
      %v5584 = vpop.f32.mrb[0].mxu0
      %v5585 = vadd.f32 0.0, %v5584
      %5586 = vdwg.mxu0
      %5587 = vmatprep.subr.mxu0 %v713
      %5588 = vmatpush1.msra.mxu0 %v712
      %5589 = vmatprep.subr.mxu0 %v715
      %5590 = vmatpush1.msra.mxu0 %v714
      %5591 = vmatprep.subr.mxu0 %v717
      %5592 = vmatpush1.msra.mxu0 %v716
      %5593 = vmatprep.subr.mxu0 %v719
      %5594 = vmatpush1.msra.mxu0 %v718
      %5595 = vmatprep.subr.mxu0 %v721
      %5596 = vmatpush1.msra.mxu0 %v720
      %5597 = vmatprep.subr.mxu0 %v723
      %5598 = vmatpush1.msra.mxu0 %v722
      %5599 = vmatprep.subr.mxu0 %v725
      %5600 = vmatpush1.msra.mxu0 %v724
      %5601 = vmatprep.subr.mxu0 %v727
      %5602 = vmatpush1.msra.mxu0 %v726
      %5603 = vmatprep.subr.mxu0 %v729
      %5604 = vmatpush1.msra.mxu0 %v728
      %5605 = vmatprep.subr.mxu0 %v731
      %5606 = vmatpush1.msra.mxu0 %v730
      %5607 = vmatprep.subr.mxu0 %v733
      %5608 = vmatpush1.msra.mxu0 %v732
      %5609 = vmatprep.subr.mxu0 %v735
      %5610 = vmatpush1.msra.mxu0 %v734
      %5611 = vmatprep.subr.mxu0 %v737
      %5612 = vmatpush1.msra.mxu0 %v736
      %5613 = vmatprep.subr.mxu0 %v739
      %5614 = vmatpush1.msra.mxu0 %v738
      %5615 = vmatprep.subr.mxu0 %v741
      %5616 = vmatpush1.msra.mxu0 %v740
      %5617 = vmatprep.subr.mxu0 %v743
      %5618 = vmatpush1.msra.mxu0 %v742
      %5619 = vmatprep.subr.mxu0 %v745
      %5620 = vmatpush1.msra.mxu0 %v744
      %5621 = vmatprep.subr.mxu0 %v747
      %5622 = vmatpush1.msra.mxu0 %v746
      %5623 = vmatprep.subr.mxu0 %v749
      %5624 = vmatpush1.msra.mxu0 %v748
      %5625 = vmatprep.subr.mxu0 %v751
      %5626 = vmatpush1.msra.mxu0 %v750
      %5627 = vmatprep.subr.mxu0 %v753
      %5628 = vmatpush1.msra.mxu0 %v752
      %5629 = vmatprep.subr.mxu0 %v755
      %5630 = vmatpush1.msra.mxu0 %v754
      %5631 = vmatprep.subr.mxu0 %v757
      %5632 = vmatpush1.msra.mxu0 %v756
      %5633 = vmatprep.subr.mxu0 %v759
      %5634 = vmatpush1.msra.mxu0 %v758
      %5635 = vmatprep.subr.mxu0 %v761
      %5636 = vmatpush1.msra.mxu0 %v760
      %5637 = vmatprep.subr.mxu0 %v763
      %5638 = vmatpush1.msra.mxu0 %v762
      %5639 = vmatprep.subr.mxu0 %v765
      %5640 = vmatpush1.msra.mxu0 %v764
      %5641 = vmatprep.subr.mxu0 %v767
      %5642 = vmatpush1.msra.mxu0 %v766
      %5643 = vmatprep.subr.mxu0 %v769
      %5644 = vmatpush1.msra.mxu0 %v768
      %5645 = vmatprep.subr.mxu0 %v771
      %5646 = vmatpush1.msra.mxu0 %v770
      %5647 = vmatprep.subr.mxu0 %v773
      %5648 = vmatpush1.msra.mxu0 %v772
      %5649 = vmatprep.subr.mxu0 %v775
      %5650 = vmatpush1.msra.mxu0 %v774
      %5651 = vmatprep.mubr.f32.mxu0 %v5585
      %5652 = vmatmul.mubr.f32.gmra.mrb[0].mxu0 %v5583
      %v5653 = vpop.f32.mrb[0].mxu0
      %v5654 = vadd.f32 0.0, %v5653
      %v5655 = vpop.f32.mrb[0].mxu0
      %v5656 = vadd.f32 0.0, %v5655
      %5657 = vdwg.mxu0
      %5658 = vmatprep.subr.mxu0 %v548
      %5659 = vmatpush1.msra.mxu0 %v547
      %5660 = vmatprep.subr.mxu0 %v550
      %5661 = vmatpush1.msra.mxu0 %v549
      %5662 = vmatprep.subr.mxu0 %v552
      %5663 = vmatpush1.msra.mxu0 %v551
      %5664 = vmatprep.subr.mxu0 %v554
      %5665 = vmatpush1.msra.mxu0 %v553
      %5666 = vmatprep.subr.mxu0 %v556
      %5667 = vmatpush1.msra.mxu0 %v555
      %5668 = vmatprep.subr.mxu0 %v558
      %5669 = vmatpush1.msra.mxu0 %v557
      %5670 = vmatprep.subr.mxu0 %v560
      %5671 = vmatpush1.msra.mxu0 %v559
      %5672 = vmatprep.subr.mxu0 %v562
      %5673 = vmatpush1.msra.mxu0 %v561
      %5674 = vmatprep.subr.mxu0 %v564
      %5675 = vmatpush1.msra.mxu0 %v563
      %5676 = vmatprep.subr.mxu0 %v566
      %5677 = vmatpush1.msra.mxu0 %v565
      %5678 = vmatprep.subr.mxu0 %v568
      %5679 = vmatpush1.msra.mxu0 %v567
      %5680 = vmatprep.subr.mxu0 %v570
      %5681 = vmatpush1.msra.mxu0 %v569
      %5682 = vmatprep.subr.mxu0 %v572
      %5683 = vmatpush1.msra.mxu0 %v571
      %5684 = vmatprep.subr.mxu0 %v574
      %5685 = vmatpush1.msra.mxu0 %v573
      %5686 = vmatprep.subr.mxu0 %v576
      %5687 = vmatpush1.msra.mxu0 %v575
      %5688 = vmatprep.subr.mxu0 %v578
      %5689 = vmatpush1.msra.mxu0 %v577
      %5690 = vmatprep.subr.mxu0 %v580
      %5691 = vmatpush1.msra.mxu0 %v579
      %5692 = vmatprep.subr.mxu0 %v582
      %5693 = vmatpush1.msra.mxu0 %v581
      %5694 = vmatprep.subr.mxu0 %v584
      %5695 = vmatpush1.msra.mxu0 %v583
      %5696 = vmatprep.subr.mxu0 %v586
      %5697 = vmatpush1.msra.mxu0 %v585
      %5698 = vmatprep.subr.mxu0 %v588
      %5699 = vmatpush1.msra.mxu0 %v587
      %5700 = vmatprep.subr.mxu0 %v590
      %5701 = vmatpush1.msra.mxu0 %v589
      %5702 = vmatprep.subr.mxu0 %v592
      %5703 = vmatpush1.msra.mxu0 %v591
      %5704 = vmatprep.subr.mxu0 %v594
      %5705 = vmatpush1.msra.mxu0 %v593
      %5706 = vmatprep.subr.mxu0 %v596
      %5707 = vmatpush1.msra.mxu0 %v595
      %5708 = vmatprep.subr.mxu0 %v598
      %5709 = vmatpush1.msra.mxu0 %v597
      %5710 = vmatprep.subr.mxu0 %v600
      %5711 = vmatpush1.msra.mxu0 %v599
      %5712 = vmatprep.subr.mxu0 %v602
      %5713 = vmatpush1.msra.mxu0 %v601
      %5714 = vmatprep.subr.mxu0 %v604
      %5715 = vmatpush1.msra.mxu0 %v603
      %5716 = vmatprep.subr.mxu0 %v606
      %5717 = vmatpush1.msra.mxu0 %v605
      %5718 = vmatprep.subr.mxu0 %v608
      %5719 = vmatpush1.msra.mxu0 %v607
      %5720 = vmatprep.subr.mxu0 %v610
      %5721 = vmatpush1.msra.mxu0 %v609
      %5722 = vmatprep.mubr.f32.mxu0 %v5509
      %5723 = vmatmul.mubr.f32.gmra.mrb[0].mxu0 %v5507
      %v5724 = vpop.f32.mrb[0].mxu0
      %v5725 = vadd.f32 %v5654, %v5724
      %v5726 = vpop.f32.mrb[0].mxu0
      %v5727 = vadd.f32 %v5656, %v5726
      %5728 = vdwg.mxu0
      %s5729 = scalar_lea.vmem %s9, 16
      %v5730 = vld [vmem:[%s5729] sm:$0xff]
      %v5732 = vsel %vm4762, %v5730, 0
      %5734 = vmatprep.subr.mxu0 %v5435
      %5735 = vmatpush1.msra.mxu0 %v5434
      %5736 = vmatprep.subr.mxu0 %v3092
      %5737 = vmatpush1.msra.mxu0 %v3091
      %5738 = vmatprep.subr.mxu0 0.0
      %5739 = vmatpush1.msra.mxu0 0.0
      %5740 = vmatprep.subr.mxu0 0.0
      %5741 = vmatpush1.msra.mxu0 0.0
      %5742 = vmatprep.subr.mxu0 0.0
      %5743 = vmatpush1.msra.mxu0 0.0
      %5744 = vmatprep.subr.mxu0 0.0
      %5745 = vmatpush1.msra.mxu0 0.0
      %5746 = vmatprep.subr.mxu0 0.0
      %5747 = vmatpush1.msra.mxu0 0.0
      %5748 = vmatprep.subr.mxu0 0.0
      %5749 = vmatpush1.msra.mxu0 0.0
      %5750 = vmatprep.subr.mxu0 0.0
      %5751 = vmatpush1.msra.mxu0 0.0
      %5752 = vmatprep.subr.mxu0 0.0
      %5753 = vmatpush1.msra.mxu0 0.0
      %5754 = vmatprep.subr.mxu0 0.0
      %5755 = vmatpush1.msra.mxu0 0.0
      %5756 = vmatprep.subr.mxu0 0.0
      %5757 = vmatpush1.msra.mxu0 0.0
      %5758 = vmatprep.subr.mxu0 0.0
      %5759 = vmatpush1.msra.mxu0 0.0
      %5760 = vmatprep.subr.mxu0 0.0
      %5761 = vmatpush1.msra.mxu0 0.0
      %5762 = vmatprep.subr.mxu0 0.0
      %5763 = vmatpush1.msra.mxu0 0.0
      %5764 = vmatprep.subr.mxu0 0.0
      %5765 = vmatpush1.msra.mxu0 0.0
      %5766 = vmatprep.subr.mxu0 0.0
      %5767 = vmatpush1.msra.mxu0 0.0
      %5768 = vmatprep.subr.mxu0 0.0
      %5769 = vmatpush1.msra.mxu0 0.0
      %5770 = vmatprep.subr.mxu0 0.0
      %5771 = vmatpush1.msra.mxu0 0.0
      %5772 = vmatprep.subr.mxu0 0.0
      %5773 = vmatpush1.msra.mxu0 0.0
      %5774 = vmatprep.subr.mxu0 0.0
      %5775 = vmatpush1.msra.mxu0 0.0
      %5776 = vmatprep.subr.mxu0 0.0
      %5777 = vmatpush1.msra.mxu0 0.0
      %5778 = vmatprep.subr.mxu0 0.0
      %5779 = vmatpush1.msra.mxu0 0.0
      %5780 = vmatprep.subr.mxu0 0.0
      %5781 = vmatpush1.msra.mxu0 0.0
      %5782 = vmatprep.subr.mxu0 0.0
      %5783 = vmatpush1.msra.mxu0 0.0
      %5784 = vmatprep.subr.mxu0 0.0
      %5785 = vmatpush1.msra.mxu0 0.0
      %5786 = vmatprep.subr.mxu0 0.0
      %5787 = vmatpush1.msra.mxu0 0.0
      %5788 = vmatprep.subr.mxu0 0.0
      %5789 = vmatpush1.msra.mxu0 0.0
      %5790 = vmatprep.subr.mxu0 0.0
      %5791 = vmatpush1.msra.mxu0 0.0
      %5792 = vmatprep.subr.mxu0 0.0
      %5793 = vmatpush1.msra.mxu0 0.0
      %5794 = vmatprep.subr.mxu0 0.0
      %5795 = vmatpush1.msra.mxu0 0.0
      %5796 = vmatprep.subr.mxu0 0.0
      %5797 = vmatpush1.msra.mxu0 0.0
      %5798 = vmatprep.mubr.f32.mxu0 0.0
      %5799 = vmatmul.mubr.f32.gmra.mrb[0].mxu0 %v5732
      %v5800 = vpop.f32.mrb[0].mxu0
      %v5801 = vadd.f32 0.0, %v5800
      %v5802 = vpop.f32.mrb[0].mxu0
      %v5803 = vadd.f32 0.0, %v5802
      %5804 = vdwg.mxu0
      %5805 = vmatprep.subr.mxu0 %v868
      %5806 = vmatpush1.msra.mxu0 %v867
      %5807 = vmatprep.subr.mxu0 %v870
      %5808 = vmatpush1.msra.mxu0 %v869
      %5809 = vmatprep.subr.mxu0 %v872
      %5810 = vmatpush1.msra.mxu0 %v871
      %5811 = vmatprep.subr.mxu0 %v874
      %5812 = vmatpush1.msra.mxu0 %v873
      %5813 = vmatprep.subr.mxu0 %v876
      %5814 = vmatpush1.msra.mxu0 %v875
      %5815 = vmatprep.subr.mxu0 %v878
      %5816 = vmatpush1.msra.mxu0 %v877
      %5817 = vmatprep.subr.mxu0 %v880
      %5818 = vmatpush1.msra.mxu0 %v879
      %5819 = vmatprep.subr.mxu0 %v882
      %5820 = vmatpush1.msra.mxu0 %v881
      %5821 = vmatprep.subr.mxu0 %v884
      %5822 = vmatpush1.msra.mxu0 %v883
      %5823 = vmatprep.subr.mxu0 %v886
      %5824 = vmatpush1.msra.mxu0 %v885
      %5825 = vmatprep.subr.mxu0 %v888
      %5826 = vmatpush1.msra.mxu0 %v887
      %5827 = vmatprep.subr.mxu0 %v890
      %5828 = vmatpush1.msra.mxu0 %v889
      %5829 = vmatprep.subr.mxu0 %v892
      %5830 = vmatpush1.msra.mxu0 %v891
      %5831 = vmatprep.subr.mxu0 %v894
      %5832 = vmatpush1.msra.mxu0 %v893
      %5833 = vmatprep.subr.mxu0 %v896
      %5834 = vmatpush1.msra.mxu0 %v895
      %5835 = vmatprep.subr.mxu0 %v898
      %5836 = vmatpush1.msra.mxu0 %v897
      %5837 = vmatprep.subr.mxu0 %v900
      %5838 = vmatpush1.msra.mxu0 %v899
      %5839 = vmatprep.subr.mxu0 %v902
      %5840 = vmatpush1.msra.mxu0 %v901
      %5841 = vmatprep.subr.mxu0 %v904
      %5842 = vmatpush1.msra.mxu0 %v903
      %5843 = vmatprep.subr.mxu0 %v906
      %5844 = vmatpush1.msra.mxu0 %v905
      %5845 = vmatprep.subr.mxu0 %v908
      %5846 = vmatpush1.msra.mxu0 %v907
      %5847 = vmatprep.subr.mxu0 %v910
      %5848 = vmatpush1.msra.mxu0 %v909
      %5849 = vmatprep.subr.mxu0 %v912
      %5850 = vmatpush1.msra.mxu0 %v911
      %5851 = vmatprep.subr.mxu0 %v914
      %5852 = vmatpush1.msra.mxu0 %v913
      %5853 = vmatprep.subr.mxu0 %v916
      %5854 = vmatpush1.msra.mxu0 %v915
      %5855 = vmatprep.subr.mxu0 %v918
      %5856 = vmatpush1.msra.mxu0 %v917
      %5857 = vmatprep.subr.mxu0 %v920
      %5858 = vmatpush1.msra.mxu0 %v919
      %5859 = vmatprep.subr.mxu0 %v922
      %5860 = vmatpush1.msra.mxu0 %v921
      %5861 = vmatprep.subr.mxu0 %v924
      %5862 = vmatpush1.msra.mxu0 %v923
      %5863 = vmatprep.subr.mxu0 %v926
      %5864 = vmatpush1.msra.mxu0 %v925
      %5865 = vmatprep.subr.mxu0 %v928
      %5866 = vmatpush1.msra.mxu0 %v927
      %5867 = vmatprep.subr.mxu0 %v930
      %5868 = vmatpush1.msra.mxu0 %v929
      %5869 = vmatprep.mubr.f32.mxu0 %v5803
      %5870 = vmatmul.mubr.f32.gmra.mrb[0].mxu0 %v5801
      %v5871 = vpop.f32.mrb[0].mxu0
      %v5872 = vadd.f32 0.0, %v5871
      %v5873 = vpop.f32.mrb[0].mxu0
      %v5874 = vadd.f32 0.0, %v5873
      %5875 = vdwg.mxu0
      %v5876 = vadd.f32 %v5725, %v5872
      %v5877 = vadd.f32 %v5727, %v5874
      %s5878 = scalar_lea.vmem %s9, 24
      %v5879 = vld [vmem:[%s5878] sm:$0xff]
      %v5881 = vsel %vm4762, %v5879, 0
      %5883 = vmatprep.subr.mxu0 %v5435
      %5884 = vmatpush1.msra.mxu0 %v5434
      %5885 = vmatprep.subr.mxu0 %v3092
      %5886 = vmatpush1.msra.mxu0 %v3091
      %5887 = vmatprep.subr.mxu0 0.0
      %5888 = vmatpush1.msra.mxu0 0.0
      %5889 = vmatprep.subr.mxu0 0.0
      %5890 = vmatpush1.msra.mxu0 0.0
      %5891 = vmatprep.subr.mxu0 0.0
      %5892 = vmatpush1.msra.mxu0 0.0
      %5893 = vmatprep.subr.mxu0 0.0
      %5894 = vmatpush1.msra.mxu0 0.0
      %5895 = vmatprep.subr.mxu0 0.0
      %5896 = vmatpush1.msra.mxu0 0.0
      %5897 = vmatprep.subr.mxu0 0.0
      %5898 = vmatpush1.msra.mxu0 0.0
      %5899 = vmatprep.subr.mxu0 0.0
      %5900 = vmatpush1.msra.mxu0 0.0
      %5901 = vmatprep.subr.mxu0 0.0
      %5902 = vmatpush1.msra.mxu0 0.0
      %5903 = vmatprep.subr.mxu0 0.0
      %5904 = vmatpush1.msra.mxu0 0.0
      %5905 = vmatprep.subr.mxu0 0.0
      %5906 = vmatpush1.msra.mxu0 0.0
      %5907 = vmatprep.subr.mxu0 0.0
      %5908 = vmatpush1.msra.mxu0 0.0
      %5909 = vmatprep.subr.mxu0 0.0
      %5910 = vmatpush1.msra.mxu0 0.0
      %5911 = vmatprep.subr.mxu0 0.0
      %5912 = vmatpush1.msra.mxu0 0.0
      %5913 = vmatprep.subr.mxu0 0.0
      %5914 = vmatpush1.msra.mxu0 0.0
      %5915 = vmatprep.subr.mxu0 0.0
      %5916 = vmatpush1.msra.mxu0 0.0
      %5917 = vmatprep.subr.mxu0 0.0
      %5918 = vmatpush1.msra.mxu0 0.0
      %5919 = vmatprep.subr.mxu0 0.0
      %5920 = vmatpush1.msra.mxu0 0.0
      %5921 = vmatprep.subr.mxu0 0.0
      %5922 = vmatpush1.msra.mxu0 0.0
      %5923 = vmatprep.subr.mxu0 0.0
      %5924 = vmatpush1.msra.mxu0 0.0
      %5925 = vmatprep.subr.mxu0 0.0
      %5926 = vmatpush1.msra.mxu0 0.0
      %5927 = vmatprep.subr.mxu0 0.0
      %5928 = vmatpush1.msra.mxu0 0.0
      %5929 = vmatprep.subr.mxu0 0.0
      %5930 = vmatpush1.msra.mxu0 0.0
      %5931 = vmatprep.subr.mxu0 0.0
      %5932 = vmatpush1.msra.mxu0 0.0
      %5933 = vmatprep.subr.mxu0 0.0
      %5934 = vmatpush1.msra.mxu0 0.0
      %5935 = vmatprep.subr.mxu0 0.0
      %5936 = vmatpush1.msra.mxu0 0.0
      %5937 = vmatprep.subr.mxu0 0.0
      %5938 = vmatpush1.msra.mxu0 0.0
      %5939 = vmatprep.subr.mxu0 0.0
      %5940 = vmatpush1.msra.mxu0 0.0
      %5941 = vmatprep.subr.mxu0 0.0
      %5942 = vmatpush1.msra.mxu0 0.0
      %5943 = vmatprep.subr.mxu0 0.0
      %5944 = vmatpush1.msra.mxu0 0.0
      %5945 = vmatprep.subr.mxu0 0.0
      %5946 = vmatpush1.msra.mxu0 0.0
      %5947 = vmatprep.mubr.f32.mxu0 0.0
      %5948 = vmatmul.mubr.f32.gmra.mrb[0].mxu0 %v5881
      %v5949 = vpop.f32.mrb[0].mxu0
      %v5950 = vadd.f32 0.0, %v5949
      %v5951 = vpop.f32.mrb[0].mxu0
      %v5952 = vadd.f32 0.0, %v5951
      %5953 = vdwg.mxu0
      %5954 = vmatprep.subr.mxu0 %v1023
      %5955 = vmatpush1.msra.mxu0 %v1022
      %5956 = vmatprep.subr.mxu0 %v1025
      %5957 = vmatpush1.msra.mxu0 %v1024
      %5958 = vmatprep.subr.mxu0 %v1027
      %5959 = vmatpush1.msra.mxu0 %v1026
      %5960 = vmatprep.subr.mxu0 %v1029
      %5961 = vmatpush1.msra.mxu0 %v1028
      %5962 = vmatprep.subr.mxu0 %v1031
      %5963 = vmatpush1.msra.mxu0 %v1030
      %5964 = vmatprep.subr.mxu0 %v1033
      %5965 = vmatpush1.msra.mxu0 %v1032
      %5966 = vmatprep.subr.mxu0 %v1035
      %5967 = vmatpush1.msra.mxu0 %v1034
      %5968 = vmatprep.subr.mxu0 %v1037
      %5969 = vmatpush1.msra.mxu0 %v1036
      %5970 = vmatprep.subr.mxu0 %v1039
      %5971 = vmatpush1.msra.mxu0 %v1038
      %5972 = vmatprep.subr.mxu0 %v1041
      %5973 = vmatpush1.msra.mxu0 %v1040
      %5974 = vmatprep.subr.mxu0 %v1043
      %5975 = vmatpush1.msra.mxu0 %v1042
      %5976 = vmatprep.subr.mxu0 %v1045
      %5977 = vmatpush1.msra.mxu0 %v1044
      %5978 = vmatprep.subr.mxu0 %v1047
      %5979 = vmatpush1.msra.mxu0 %v1046
      %5980 = vmatprep.subr.mxu0 %v1049
      %5981 = vmatpush1.msra.mxu0 %v1048
      %5982 = vmatprep.subr.mxu0 %v1051
      %5983 = vmatpush1.msra.mxu0 %v1050
      %5984 = vmatprep.subr.mxu0 %v1053
      %5985 = vmatpush1.msra.mxu0 %v1052
      %5986 = vmatprep.subr.mxu0 %v1055
      %5987 = vmatpush1.msra.mxu0 %v1054
      %5988 = vmatprep.subr.mxu0 %v1057
      %5989 = vmatpush1.msra.mxu0 %v1056
      %5990 = vmatprep.subr.mxu0 %v1059
      %5991 = vmatpush1.msra.mxu0 %v1058
      %5992 = vmatprep.subr.mxu0 %v1061
      %5993 = vmatpush1.msra.mxu0 %v1060
      %5994 = vmatprep.subr.mxu0 %v1063
      %5995 = vmatpush1.msra.mxu0 %v1062
      %5996 = vmatprep.subr.mxu0 %v1065
      %5997 = vmatpush1.msra.mxu0 %v1064
      %5998 = vmatprep.subr.mxu0 %v1067
      %5999 = vmatpush1.msra.mxu0 %v1066
      %6000 = vmatprep.subr.mxu0 %v1069
      %6001 = vmatpush1.msra.mxu0 %v1068
      %6002 = vmatprep.subr.mxu0 %v1071
      %6003 = vmatpush1.msra.mxu0 %v1070
      %6004 = vmatprep.subr.mxu0 %v1073
      %6005 = vmatpush1.msra.mxu0 %v1072
      %6006 = vmatprep.subr.mxu0 %v1075
      %6007 = vmatpush1.msra.mxu0 %v1074
      %6008 = vmatprep.subr.mxu0 %v1077
      %6009 = vmatpush1.msra.mxu0 %v1076
      %6010 = vmatprep.subr.mxu0 %v1079
      %6011 = vmatpush1.msra.mxu0 %v1078
      %6012 = vmatprep.subr.mxu0 %v1081
      %6013 = vmatpush1.msra.mxu0 %v1080
      %6014 = vmatprep.subr.mxu0 %v1083
      %6015 = vmatpush1.msra.mxu0 %v1082
      %6016 = vmatprep.subr.mxu0 %v1085
      %6017 = vmatpush1.msra.mxu0 %v1084
      %6018 = vmatprep.mubr.f32.mxu0 %v5952
      %6019 = vmatmul.mubr.f32.gmra.mrb[0].mxu0 %v5950
      %v6020 = vpop.f32.mrb[0].mxu0
      %v6021 = vadd.f32 0.0, %v6020
      %v6022 = vpop.f32.mrb[0].mxu0
      %v6023 = vadd.f32 0.0, %v6022
      %6024 = vdwg.mxu0
      %v6025 = vadd.f32 %v5876, %v6021
      %v6026 = vadd.f32 %v5877, %v6023
      %s6027 = scalar_lea.vmem %s9, 32
      %v6028 = vld [vmem:[%s6027] sm:$0xff]
      %v6030 = vsel %vm4762, %v6028, 0
      %6032 = vmatprep.subr.mxu0 %v5435
      %6033 = vmatpush1.msra.mxu0 %v5434
      %6034 = vmatprep.subr.mxu0 %v3092
      %6035 = vmatpush1.msra.mxu0 %v3091
      %6036 = vmatprep.subr.mxu0 0.0
      %6037 = vmatpush1.msra.mxu0 0.0
      %6038 = vmatprep.subr.mxu0 0.0
      %6039 = vmatpush1.msra.mxu0 0.0
      %6040 = vmatprep.subr.mxu0 0.0
      %6041 = vmatpush1.msra.mxu0 0.0
      %6042 = vmatprep.subr.mxu0 0.0
      %6043 = vmatpush1.msra.mxu0 0.0
      %6044 = vmatprep.subr.mxu0 0.0
      %6045 = vmatpush1.msra.mxu0 0.0
      %6046 = vmatprep.subr.mxu0 0.0
      %6047 = vmatpush1.msra.mxu0 0.0
      %6048 = vmatprep.subr.mxu0 0.0
      %6049 = vmatpush1.msra.mxu0 0.0
      %6050 = vmatprep.subr.mxu0 0.0
      %6051 = vmatpush1.msra.mxu0 0.0
      %6052 = vmatprep.subr.mxu0 0.0
      %6053 = vmatpush1.msra.mxu0 0.0
      %6054 = vmatprep.subr.mxu0 0.0
      %6055 = vmatpush1.msra.mxu0 0.0
      %6056 = vmatprep.subr.mxu0 0.0
      %6057 = vmatpush1.msra.mxu0 0.0
      %6058 = vmatprep.subr.mxu0 0.0
      %6059 = vmatpush1.msra.mxu0 0.0
      %6060 = vmatprep.subr.mxu0 0.0
      %6061 = vmatpush1.msra.mxu0 0.0
      %6062 = vmatprep.subr.mxu0 0.0
      %6063 = vmatpush1.msra.mxu0 0.0
      %6064 = vmatprep.subr.mxu0 0.0
      %6065 = vmatpush1.msra.mxu0 0.0
      %6066 = vmatprep.subr.mxu0 0.0
      %6067 = vmatpush1.msra.mxu0 0.0
      %6068 = vmatprep.subr.mxu0 0.0
      %6069 = vmatpush1.msra.mxu0 0.0
      %6070 = vmatprep.subr.mxu0 0.0
      %6071 = vmatpush1.msra.mxu0 0.0
      %6072 = vmatprep.subr.mxu0 0.0
      %6073 = vmatpush1.msra.mxu0 0.0
      %6074 = vmatprep.subr.mxu0 0.0
      %6075 = vmatpush1.msra.mxu0 0.0
      %6076 = vmatprep.subr.mxu0 0.0
      %6077 = vmatpush1.msra.mxu0 0.0
      %6078 = vmatprep.subr.mxu0 0.0
      %6079 = vmatpush1.msra.mxu0 0.0
      %6080 = vmatprep.subr.mxu0 0.0
      %6081 = vmatpush1.msra.mxu0 0.0
      %6082 = vmatprep.subr.mxu0 0.0
      %6083 = vmatpush1.msra.mxu0 0.0
      %6084 = vmatprep.subr.mxu0 0.0
      %6085 = vmatpush1.msra.mxu0 0.0
      %6086 = vmatprep.subr.mxu0 0.0
      %6087 = vmatpush1.msra.mxu0 0.0
      %6088 = vmatprep.subr.mxu0 0.0
      %6089 = vmatpush1.msra.mxu0 0.0
      %6090 = vmatprep.subr.mxu0 0.0
      %6091 = vmatpush1.msra.mxu0 0.0
      %6092 = vmatprep.subr.mxu0 0.0
      %6093 = vmatpush1.msra.mxu0 0.0
      %6094 = vmatprep.subr.mxu0 0.0
      %6095 = vmatpush1.msra.mxu0 0.0
      %6096 = vmatprep.mubr.f32.mxu0 0.0
      %6097 = vmatmul.mubr.f32.gmra.mrb[0].mxu0 %v6030
      %v6098 = vpop.f32.mrb[0].mxu0
      %v6099 = vadd.f32 0.0, %v6098
      %v6100 = vpop.f32.mrb[0].mxu0
      %v6101 = vadd.f32 0.0, %v6100
      %6102 = vdwg.mxu0
      %v6103 = vadd.f32 %v6025, %v6099
      %v6104 = vadd.f32 %v6026, %v6101
      %s6105 = scalar_lea.vmem %s9, 40
      %v6106 = vld [vmem:[%s6105] sm:$0xff]
      %v6108 = vsel %vm4762, %v6106, 0
      %6110 = vmatprep.subr.mxu0 %v5435
      %6111 = vmatpush1.msra.mxu0 %v5434
      %6112 = vmatprep.subr.mxu0 %v3092
      %6113 = vmatpush1.msra.mxu0 %v3091
      %6114 = vmatprep.subr.mxu0 0.0
      %6115 = vmatpush1.msra.mxu0 0.0
      %6116 = vmatprep.subr.mxu0 0.0
      %6117 = vmatpush1.msra.mxu0 0.0
      %6118 = vmatprep.subr.mxu0 0.0
      %6119 = vmatpush1.msra.mxu0 0.0
      %6120 = vmatprep.subr.mxu0 0.0
      %6121 = vmatpush1.msra.mxu0 0.0
      %6122 = vmatprep.subr.mxu0 0.0
      %6123 = vmatpush1.msra.mxu0 0.0
      %6124 = vmatprep.subr.mxu0 0.0
      %6125 = vmatpush1.msra.mxu0 0.0
      %6126 = vmatprep.subr.mxu0 0.0
      %6127 = vmatpush1.msra.mxu0 0.0
      %6128 = vmatprep.subr.mxu0 0.0
      %6129 = vmatpush1.msra.mxu0 0.0
      %6130 = vmatprep.subr.mxu0 0.0
      %6131 = vmatpush1.msra.mxu0 0.0
      %6132 = vmatprep.subr.mxu0 0.0
      %6133 = vmatpush1.msra.mxu0 0.0
      %6134 = vmatprep.subr.mxu0 0.0
      %6135 = vmatpush1.msra.mxu0 0.0
      %6136 = vmatprep.subr.mxu0 0.0
      %6137 = vmatpush1.msra.mxu0 0.0
      %6138 = vmatprep.subr.mxu0 0.0
      %6139 = vmatpush1.msra.mxu0 0.0
      %6140 = vmatprep.subr.mxu0 0.0
      %6141 = vmatpush1.msra.mxu0 0.0
      %6142 = vmatprep.subr.mxu0 0.0
      %6143 = vmatpush1.msra.mxu0 0.0
      %6144 = vmatprep.subr.mxu0 0.0
      %6145 = vmatpush1.msra.mxu0 0.0
      %6146 = vmatprep.subr.mxu0 0.0
      %6147 = vmatpush1.msra.mxu0 0.0
      %6148 = vmatprep.subr.mxu0 0.0
      %6149 = vmatpush1.msra.mxu0 0.0
      %6150 = vmatprep.subr.mxu0 0.0
      %6151 = vmatpush1.msra.mxu0 0.0
      %6152 = vmatprep.subr.mxu0 0.0
      %6153 = vmatpush1.msra.mxu0 0.0
      %6154 = vmatprep.subr.mxu0 0.0
      %6155 = vmatpush1.msra.mxu0 0.0
      %6156 = vmatprep.subr.mxu0 0.0
      %6157 = vmatpush1.msra.mxu0 0.0
      %6158 = vmatprep.subr.mxu0 0.0
      %6159 = vmatpush1.msra.mxu0 0.0
      %6160 = vmatprep.subr.mxu0 0.0
      %6161 = vmatpush1.msra.mxu0 0.0
      %6162 = vmatprep.subr.mxu0 0.0
      %6163 = vmatpush1.msra.mxu0 0.0
      %6164 = vmatprep.subr.mxu0 0.0
      %6165 = vmatpush1.msra.mxu0 0.0
      %6166 = vmatprep.subr.mxu0 0.0
      %6167 = vmatpush1.msra.mxu0 0.0
      %6168 = vmatprep.subr.mxu0 0.0
      %6169 = vmatpush1.msra.mxu0 0.0
      %6170 = vmatprep.subr.mxu0 0.0
      %6171 = vmatpush1.msra.mxu0 0.0
      %6172 = vmatprep.subr.mxu0 0.0
      %6173 = vmatpush1.msra.mxu0 0.0
      %6174 = vmatprep.mubr.f32.mxu0 0.0
      %6175 = vmatmul.mubr.f32.gmra.mrb[0].mxu0 %v6108
      %v6176 = vpop.f32.mrb[0].mxu0
      %v6177 = vadd.f32 0.0, %v6176
      %v6178 = vpop.f32.mrb[0].mxu0
      %v6179 = vadd.f32 0.0, %v6178
      %6180 = vdwg.mxu0
      %6181 = vmatprep.subr.mxu0 %v1189
      %6182 = vmatpush1.msra.mxu0 %v1188
      %6183 = vmatprep.subr.mxu0 %v1191
      %6184 = vmatpush1.msra.mxu0 %v1190
      %6185 = vmatprep.subr.mxu0 %v1193
      %6186 = vmatpush1.msra.mxu0 %v1192
      %6187 = vmatprep.subr.mxu0 %v1195
      %6188 = vmatpush1.msra.mxu0 %v1194
      %6189 = vmatprep.subr.mxu0 %v1197
      %6190 = vmatpush1.msra.mxu0 %v1196
      %6191 = vmatprep.subr.mxu0 %v1199
      %6192 = vmatpush1.msra.mxu0 %v1198
      %6193 = vmatprep.subr.mxu0 %v1201
      %6194 = vmatpush1.msra.mxu0 %v1200
      %6195 = vmatprep.subr.mxu0 %v1203
      %6196 = vmatpush1.msra.mxu0 %v1202
      %6197 = vmatprep.subr.mxu0 %v1205
      %6198 = vmatpush1.msra.mxu0 %v1204
      %6199 = vmatprep.subr.mxu0 %v1207
      %6200 = vmatpush1.msra.mxu0 %v1206
      %6201 = vmatprep.subr.mxu0 %v1209
      %6202 = vmatpush1.msra.mxu0 %v1208
      %6203 = vmatprep.subr.mxu0 %v1211
      %6204 = vmatpush1.msra.mxu0 %v1210
      %6205 = vmatprep.subr.mxu0 %v1213
      %6206 = vmatpush1.msra.mxu0 %v1212
      %6207 = vmatprep.subr.mxu0 %v1215
      %6208 = vmatpush1.msra.mxu0 %v1214
      %6209 = vmatprep.subr.mxu0 %v1217
      %6210 = vmatpush1.msra.mxu0 %v1216
      %6211 = vmatprep.subr.mxu0 %v1219
      %6212 = vmatpush1.msra.mxu0 %v1218
      %6213 = vmatprep.subr.mxu0 %v1221
      %6214 = vmatpush1.msra.mxu0 %v1220
      %6215 = vmatprep.subr.mxu0 %v1223
      %6216 = vmatpush1.msra.mxu0 %v1222
      %6217 = vmatprep.subr.mxu0 %v1225
      %6218 = vmatpush1.msra.mxu0 %v1224
      %6219 = vmatprep.subr.mxu0 %v1227
      %6220 = vmatpush1.msra.mxu0 %v1226
      %6221 = vmatprep.subr.mxu0 %v1229
      %6222 = vmatpush1.msra.mxu0 %v1228
      %6223 = vmatprep.subr.mxu0 %v1231
      %6224 = vmatpush1.msra.mxu0 %v1230
      %6225 = vmatprep.subr.mxu0 %v1233
      %6226 = vmatpush1.msra.mxu0 %v1232
      %6227 = vmatprep.subr.mxu0 %v1235
      %6228 = vmatpush1.msra.mxu0 %v1234
      %6229 = vmatprep.subr.mxu0 %v1237
      %6230 = vmatpush1.msra.mxu0 %v1236
      %6231 = vmatprep.subr.mxu0 %v1239
      %6232 = vmatpush1.msra.mxu0 %v1238
      %6233 = vmatprep.subr.mxu0 %v1241
      %6234 = vmatpush1.msra.mxu0 %v1240
      %6235 = vmatprep.subr.mxu0 %v1243
      %6236 = vmatpush1.msra.mxu0 %v1242
      %6237 = vmatprep.subr.mxu0 %v1245
      %6238 = vmatpush1.msra.mxu0 %v1244
      %6239 = vmatprep.subr.mxu0 %v1247
      %6240 = vmatpush1.msra.mxu0 %v1246
      %6241 = vmatprep.subr.mxu0 %v1249
      %6242 = vmatpush1.msra.mxu0 %v1248
      %6243 = vmatprep.subr.mxu0 %v1251
      %6244 = vmatpush1.msra.mxu0 %v1250
      %6245 = vmatprep.mubr.f32.mxu0 %v6179
      %6246 = vmatmul.mubr.f32.gmra.mrb[0].mxu0 %v6177
      %v6247 = vpop.f32.mrb[0].mxu0
      %v6248 = vadd.f32 0.0, %v6247
      %v6249 = vpop.f32.mrb[0].mxu0
      %v6250 = vadd.f32 0.0, %v6249
      %6251 = vdwg.mxu0
      %v6252 = vadd.f32 %v6103, %v6248
      %v6253 = vadd.f32 %v6104, %v6250
      %s6254 = scalar_lea.vmem %s9, 48
      %v6255 = vld [vmem:[%s6254] sm:$0xff]
      %v6257 = vsel %vm4762, %v6255, 0
      %6259 = vmatprep.subr.mxu0 %v5435
      %6260 = vmatpush1.msra.mxu0 %v5434
      %6261 = vmatprep.subr.mxu0 %v3092
      %6262 = vmatpush1.msra.mxu0 %v3091
      %6263 = vmatprep.subr.mxu0 0.0
      %6264 = vmatpush1.msra.mxu0 0.0
      %6265 = vmatprep.subr.mxu0 0.0
      %6266 = vmatpush1.msra.mxu0 0.0
      %6267 = vmatprep.subr.mxu0 0.0
      %6268 = vmatpush1.msra.mxu0 0.0
      %6269 = vmatprep.subr.mxu0 0.0
      %6270 = vmatpush1.msra.mxu0 0.0
      %6271 = vmatprep.subr.mxu0 0.0
      %6272 = vmatpush1.msra.mxu0 0.0
      %6273 = vmatprep.subr.mxu0 0.0
      %6274 = vmatpush1.msra.mxu0 0.0
      %6275 = vmatprep.subr.mxu0 0.0
      %6276 = vmatpush1.msra.mxu0 0.0
      %6277 = vmatprep.subr.mxu0 0.0
      %6278 = vmatpush1.msra.mxu0 0.0
      %6279 = vmatprep.subr.mxu0 0.0
      %6280 = vmatpush1.msra.mxu0 0.0
      %6281 = vmatprep.subr.mxu0 0.0
      %6282 = vmatpush1.msra.mxu0 0.0
      %6283 = vmatprep.subr.mxu0 0.0
      %6284 = vmatpush1.msra.mxu0 0.0
      %6285 = vmatprep.subr.mxu0 0.0
      %6286 = vmatpush1.msra.mxu0 0.0
      %6287 = vmatprep.subr.mxu0 0.0
      %6288 = vmatpush1.msra.mxu0 0.0
      %6289 = vmatprep.subr.mxu0 0.0
      %6290 = vmatpush1.msra.mxu0 0.0
      %6291 = vmatprep.subr.mxu0 0.0
      %6292 = vmatpush1.msra.mxu0 0.0
      %6293 = vmatprep.subr.mxu0 0.0
      %6294 = vmatpush1.msra.mxu0 0.0
      %6295 = vmatprep.subr.mxu0 0.0
      %6296 = vmatpush1.msra.mxu0 0.0
      %6297 = vmatprep.subr.mxu0 0.0
      %6298 = vmatpush1.msra.mxu0 0.0
      %6299 = vmatprep.subr.mxu0 0.0
      %6300 = vmatpush1.msra.mxu0 0.0
      %6301 = vmatprep.subr.mxu0 0.0
      %6302 = vmatpush1.msra.mxu0 0.0
      %6303 = vmatprep.subr.mxu0 0.0
      %6304 = vmatpush1.msra.mxu0 0.0
      %6305 = vmatprep.subr.mxu0 0.0
      %6306 = vmatpush1.msra.mxu0 0.0
      %6307 = vmatprep.subr.mxu0 0.0
      %6308 = vmatpush1.msra.mxu0 0.0
      %6309 = vmatprep.subr.mxu0 0.0
      %6310 = vmatpush1.msra.mxu0 0.0
      %6311 = vmatprep.subr.mxu0 0.0
      %6312 = vmatpush1.msra.mxu0 0.0
      %6313 = vmatprep.subr.mxu0 0.0
      %6314 = vmatpush1.msra.mxu0 0.0
      %6315 = vmatprep.subr.mxu0 0.0
      %6316 = vmatpush1.msra.mxu0 0.0
      %6317 = vmatprep.subr.mxu0 0.0
      %6318 = vmatpush1.msra.mxu0 0.0
      %6319 = vmatprep.subr.mxu0 0.0
      %6320 = vmatpush1.msra.mxu0 0.0
      %6321 = vmatprep.subr.mxu0 0.0
      %6322 = vmatpush1.msra.mxu0 0.0
      %6323 = vmatprep.mubr.f32.mxu0 0.0
      %6324 = vmatmul.mubr.f32.gmra.mrb[0].mxu0 %v6257
      %v6325 = vpop.f32.mrb[0].mxu0
      %v6326 = vadd.f32 0.0, %v6325
      %v6327 = vpop.f32.mrb[0].mxu0
      %v6328 = vadd.f32 0.0, %v6327
      %6329 = vdwg.mxu0
      %6330 = vmatprep.subr.mxu0 %v1344
      %6331 = vmatpush1.msra.mxu0 %v1343
      %6332 = vmatprep.subr.mxu0 %v1346
      %6333 = vmatpush1.msra.mxu0 %v1345
      %6334 = vmatprep.subr.mxu0 %v1348
      %6335 = vmatpush1.msra.mxu0 %v1347
      %6336 = vmatprep.subr.mxu0 %v1350
      %6337 = vmatpush1.msra.mxu0 %v1349
      %6338 = vmatprep.subr.mxu0 %v1352
      %6339 = vmatpush1.msra.mxu0 %v1351
      %6340 = vmatprep.subr.mxu0 %v1354
      %6341 = vmatpush1.msra.mxu0 %v1353
      %6342 = vmatprep.subr.mxu0 %v1356
      %6343 = vmatpush1.msra.mxu0 %v1355
      %6344 = vmatprep.subr.mxu0 %v1358
      %6345 = vmatpush1.msra.mxu0 %v1357
      %6346 = vmatprep.subr.mxu0 %v1360
      %6347 = vmatpush1.msra.mxu0 %v1359
      %6348 = vmatprep.subr.mxu0 %v1362
      %6349 = vmatpush1.msra.mxu0 %v1361
      %6350 = vmatprep.subr.mxu0 %v1364
      %6351 = vmatpush1.msra.mxu0 %v1363
      %6352 = vmatprep.subr.mxu0 %v1366
      %6353 = vmatpush1.msra.mxu0 %v1365
      %6354 = vmatprep.subr.mxu0 %v1368
      %6355 = vmatpush1.msra.mxu0 %v1367
      %6356 = vmatprep.subr.mxu0 %v1370
      %6357 = vmatpush1.msra.mxu0 %v1369
      %6358 = vmatprep.subr.mxu0 %v1372
      %6359 = vmatpush1.msra.mxu0 %v1371
      %6360 = vmatprep.subr.mxu0 %v1374
      %6361 = vmatpush1.msra.mxu0 %v1373
      %6362 = vmatprep.subr.mxu0 %v1376
      %6363 = vmatpush1.msra.mxu0 %v1375
      %6364 = vmatprep.subr.mxu0 %v1378
      %6365 = vmatpush1.msra.mxu0 %v1377
      %6366 = vmatprep.subr.mxu0 %v1380
      %6367 = vmatpush1.msra.mxu0 %v1379
      %6368 = vmatprep.subr.mxu0 %v1382
      %6369 = vmatpush1.msra.mxu0 %v1381
      %6370 = vmatprep.subr.mxu0 %v1384
      %6371 = vmatpush1.msra.mxu0 %v1383
      %6372 = vmatprep.subr.mxu0 %v1386
      %6373 = vmatpush1.msra.mxu0 %v1385
      %6374 = vmatprep.subr.mxu0 %v1388
      %6375 = vmatpush1.msra.mxu0 %v1387
      %6376 = vmatprep.subr.mxu0 %v1390
      %6377 = vmatpush1.msra.mxu0 %v1389
      %6378 = vmatprep.subr.mxu0 %v1392
      %6379 = vmatpush1.msra.mxu0 %v1391
      %6380 = vmatprep.subr.mxu0 %v1394
      %6381 = vmatpush1.msra.mxu0 %v1393
      %6382 = vmatprep.subr.mxu0 %v1396
      %6383 = vmatpush1.msra.mxu0 %v1395
      %6384 = vmatprep.subr.mxu0 %v1398
      %6385 = vmatpush1.msra.mxu0 %v1397
      %6386 = vmatprep.subr.mxu0 %v1400
      %6387 = vmatpush1.msra.mxu0 %v1399
      %6388 = vmatprep.subr.mxu0 %v1402
      %6389 = vmatpush1.msra.mxu0 %v1401
      %6390 = vmatprep.subr.mxu0 %v1404
      %6391 = vmatpush1.msra.mxu0 %v1403
      %6392 = vmatprep.subr.mxu0 %v1406
      %6393 = vmatpush1.msra.mxu0 %v1405
      %6394 = vmatprep.mubr.f32.mxu0 %v6328
      %6395 = vmatmul.mubr.f32.gmra.mrb[0].mxu0 %v6326
      %v6396 = vpop.f32.mrb[0].mxu0
      %v6397 = vadd.f32 0.0, %v6396
      %v6398 = vpop.f32.mrb[0].mxu0
      %v6399 = vadd.f32 0.0, %v6398
      %6400 = vdwg.mxu0
      %v6401 = vadd.f32 %v6252, %v6397
      %v6402 = vadd.f32 %v6253, %v6399
      %s6403 = scalar_lea.vmem %s9, 56
      %v6404 = vld [vmem:[%s6403] sm:$0xff]
      %v6406 = vsel %vm4762, %v6404, 0
      %6408 = vmatprep.subr.mxu0 %v5435
      %6409 = vmatpush1.msra.mxu0 %v5434
      %6410 = vmatprep.subr.mxu0 %v3092
      %6411 = vmatpush1.msra.mxu0 %v3091
      %6412 = vmatprep.subr.mxu0 0.0
      %6413 = vmatpush1.msra.mxu0 0.0
      %6414 = vmatprep.subr.mxu0 0.0
      %6415 = vmatpush1.msra.mxu0 0.0
      %6416 = vmatprep.subr.mxu0 0.0
      %6417 = vmatpush1.msra.mxu0 0.0
      %6418 = vmatprep.subr.mxu0 0.0
      %6419 = vmatpush1.msra.mxu0 0.0
      %6420 = vmatprep.subr.mxu0 0.0
      %6421 = vmatpush1.msra.mxu0 0.0
      %6422 = vmatprep.subr.mxu0 0.0
      %6423 = vmatpush1.msra.mxu0 0.0
      %6424 = vmatprep.subr.mxu0 0.0
      %6425 = vmatpush1.msra.mxu0 0.0
      %6426 = vmatprep.subr.mxu0 0.0
      %6427 = vmatpush1.msra.mxu0 0.0
      %6428 = vmatprep.subr.mxu0 0.0
      %6429 = vmatpush1.msra.mxu0 0.0
      %6430 = vmatprep.subr.mxu0 0.0
      %6431 = vmatpush1.msra.mxu0 0.0
      %6432 = vmatprep.subr.mxu0 0.0
      %6433 = vmatpush1.msra.mxu0 0.0
      %6434 = vmatprep.subr.mxu0 0.0
      %6435 = vmatpush1.msra.mxu0 0.0
      %6436 = vmatprep.subr.mxu0 0.0
      %6437 = vmatpush1.msra.mxu0 0.0
      %6438 = vmatprep.subr.mxu0 0.0
      %6439 = vmatpush1.msra.mxu0 0.0
      %6440 = vmatprep.subr.mxu0 0.0
      %6441 = vmatpush1.msra.mxu0 0.0
      %6442 = vmatprep.subr.mxu0 0.0
      %6443 = vmatpush1.msra.mxu0 0.0
      %6444 = vmatprep.subr.mxu0 0.0
      %6445 = vmatpush1.msra.mxu0 0.0
      %6446 = vmatprep.subr.mxu0 0.0
      %6447 = vmatpush1.msra.mxu0 0.0
      %6448 = vmatprep.subr.mxu0 0.0
      %6449 = vmatpush1.msra.mxu0 0.0
      %6450 = vmatprep.subr.mxu0 0.0
      %6451 = vmatpush1.msra.mxu0 0.0
      %6452 = vmatprep.subr.mxu0 0.0
      %6453 = vmatpush1.msra.mxu0 0.0
      %6454 = vmatprep.subr.mxu0 0.0
      %6455 = vmatpush1.msra.mxu0 0.0
      %6456 = vmatprep.subr.mxu0 0.0
      %6457 = vmatpush1.msra.mxu0 0.0
      %6458 = vmatprep.subr.mxu0 0.0
      %6459 = vmatpush1.msra.mxu0 0.0
      %6460 = vmatprep.subr.mxu0 0.0
      %6461 = vmatpush1.msra.mxu0 0.0
      %6462 = vmatprep.subr.mxu0 0.0
      %6463 = vmatpush1.msra.mxu0 0.0
      %6464 = vmatprep.subr.mxu0 0.0
      %6465 = vmatpush1.msra.mxu0 0.0
      %6466 = vmatprep.subr.mxu0 0.0
      %6467 = vmatpush1.msra.mxu0 0.0
      %6468 = vmatprep.subr.mxu0 0.0
      %6469 = vmatpush1.msra.mxu0 0.0
      %6470 = vmatprep.subr.mxu0 0.0
      %6471 = vmatpush1.msra.mxu0 0.0
      %6472 = vmatprep.mubr.f32.mxu0 0.0
      %6473 = vmatmul.mubr.f32.gmra.mrb[0].mxu0 %v6406
      %v6474 = vpop.f32.mrb[0].mxu0
      %v6475 = vadd.f32 0.0, %v6474
      %v6476 = vpop.f32.mrb[0].mxu0
      %v6477 = vadd.f32 0.0, %v6476
      %6478 = vdwg.mxu0
      %6479 = vmatprep.subr.mxu0 %v1499
      %6480 = vmatpush1.msra.mxu0 %v1498
      %6481 = vmatprep.subr.mxu0 %v1501
      %6482 = vmatpush1.msra.mxu0 %v1500
      %6483 = vmatprep.subr.mxu0 %v1503
      %6484 = vmatpush1.msra.mxu0 %v1502
      %6485 = vmatprep.subr.mxu0 %v1505
      %6486 = vmatpush1.msra.mxu0 %v1504
      %6487 = vmatprep.subr.mxu0 %v1507
      %6488 = vmatpush1.msra.mxu0 %v1506
      %6489 = vmatprep.subr.mxu0 %v1509
      %6490 = vmatpush1.msra.mxu0 %v1508
      %6491 = vmatprep.subr.mxu0 %v1511
      %6492 = vmatpush1.msra.mxu0 %v1510
      %6493 = vmatprep.subr.mxu0 %v1513
      %6494 = vmatpush1.msra.mxu0 %v1512
      %6495 = vmatprep.subr.mxu0 %v1515
      %6496 = vmatpush1.msra.mxu0 %v1514
      %6497 = vmatprep.subr.mxu0 %v1517
      %6498 = vmatpush1.msra.mxu0 %v1516
      %6499 = vmatprep.subr.mxu0 %v1519
      %6500 = vmatpush1.msra.mxu0 %v1518
      %6501 = vmatprep.subr.mxu0 %v1521
      %6502 = vmatpush1.msra.mxu0 %v1520
      %6503 = vmatprep.subr.mxu0 %v1523
      %6504 = vmatpush1.msra.mxu0 %v1522
      %6505 = vmatprep.subr.mxu0 %v1525
      %6506 = vmatpush1.msra.mxu0 %v1524
      %6507 = vmatprep.subr.mxu0 %v1527
      %6508 = vmatpush1.msra.mxu0 %v1526
      %6509 = vmatprep.subr.mxu0 %v1529
      %6510 = vmatpush1.msra.mxu0 %v1528
      %6511 = vmatprep.subr.mxu0 %v1531
      %6512 = vmatpush1.msra.mxu0 %v1530
      %6513 = vmatprep.subr.mxu0 %v1533
      %6514 = vmatpush1.msra.mxu0 %v1532
      %6515 = vmatprep.subr.mxu0 %v1535
      %6516 = vmatpush1.msra.mxu0 %v1534
      %6517 = vmatprep.subr.mxu0 %v1537
      %6518 = vmatpush1.msra.mxu0 %v1536
      %6519 = vmatprep.subr.mxu0 %v1539
      %6520 = vmatpush1.msra.mxu0 %v1538
      %6521 = vmatprep.subr.mxu0 %v1541
      %6522 = vmatpush1.msra.mxu0 %v1540
      %6523 = vmatprep.subr.mxu0 %v1543
      %6524 = vmatpush1.msra.mxu0 %v1542
      %6525 = vmatprep.subr.mxu0 %v1545
      %6526 = vmatpush1.msra.mxu0 %v1544
      %6527 = vmatprep.subr.mxu0 %v1547
      %6528 = vmatpush1.msra.mxu0 %v1546
      %6529 = vmatprep.subr.mxu0 %v1549
      %6530 = vmatpush1.msra.mxu0 %v1548
      %6531 = vmatprep.subr.mxu0 %v1551
      %6532 = vmatpush1.msra.mxu0 %v1550
      %6533 = vmatprep.subr.mxu0 %v1553
      %6534 = vmatpush1.msra.mxu0 %v1552
      %6535 = vmatprep.subr.mxu0 %v1555
      %6536 = vmatpush1.msra.mxu0 %v1554
      %6537 = vmatprep.subr.mxu0 %v1557
      %6538 = vmatpush1.msra.mxu0 %v1556
      %6539 = vmatprep.subr.mxu0 %v1559
      %6540 = vmatpush1.msra.mxu0 %v1558
      %6541 = vmatprep.subr.mxu0 %v1561
      %6542 = vmatpush1.msra.mxu0 %v1560
      %6543 = vmatprep.mubr.f32.mxu0 %v6477
      %6544 = vmatmul.mubr.f32.gmra.mrb[0].mxu0 %v6475
      %v6545 = vpop.f32.mrb[0].mxu0
      %v6546 = vadd.f32 0.0, %v6545
      %v6547 = vpop.f32.mrb[0].mxu0
      %v6548 = vadd.f32 0.0, %v6547
      %6549 = vdwg.mxu0
      %v6550 = vadd.f32 %v6401, %v6546
      %v6551 = vadd.f32 %v6402, %v6548
      %s6552 = scalar_lea.vmem %s9, 64
      %v6553 = vld [vmem:[%s6552] sm:$0xff]
      %v6555 = vsel %vm4762, %v6553, 0
      %6557 = vmatprep.subr.mxu0 %v5435
      %6558 = vmatpush1.msra.mxu0 %v5434
      %6559 = vmatprep.subr.mxu0 %v3092
      %6560 = vmatpush1.msra.mxu0 %v3091
      %6561 = vmatprep.subr.mxu0 0.0
      %6562 = vmatpush1.msra.mxu0 0.0
      %6563 = vmatprep.subr.mxu0 0.0
      %6564 = vmatpush1.msra.mxu0 0.0
      %6565 = vmatprep.subr.mxu0 0.0
      %6566 = vmatpush1.msra.mxu0 0.0
      %6567 = vmatprep.subr.mxu0 0.0
      %6568 = vmatpush1.msra.mxu0 0.0
      %6569 = vmatprep.subr.mxu0 0.0
      %6570 = vmatpush1.msra.mxu0 0.0
      %6571 = vmatprep.subr.mxu0 0.0
      %6572 = vmatpush1.msra.mxu0 0.0
      %6573 = vmatprep.subr.mxu0 0.0
      %6574 = vmatpush1.msra.mxu0 0.0
      %6575 = vmatprep.subr.mxu0 0.0
      %6576 = vmatpush1.msra.mxu0 0.0
      %6577 = vmatprep.subr.mxu0 0.0
      %6578 = vmatpush1.msra.mxu0 0.0
      %6579 = vmatprep.subr.mxu0 0.0
      %6580 = vmatpush1.msra.mxu0 0.0
      %6581 = vmatprep.subr.mxu0 0.0
      %6582 = vmatpush1.msra.mxu0 0.0
      %6583 = vmatprep.subr.mxu0 0.0
      %6584 = vmatpush1.msra.mxu0 0.0
      %6585 = vmatprep.subr.mxu0 0.0
      %6586 = vmatpush1.msra.mxu0 0.0
      %6587 = vmatprep.subr.mxu0 0.0
      %6588 = vmatpush1.msra.mxu0 0.0
      %6589 = vmatprep.subr.mxu0 0.0
      %6590 = vmatpush1.msra.mxu0 0.0
      %6591 = vmatprep.subr.mxu0 0.0
      %6592 = vmatpush1.msra.mxu0 0.0
      %6593 = vmatprep.subr.mxu0 0.0
      %6594 = vmatpush1.msra.mxu0 0.0
      %6595 = vmatprep.subr.mxu0 0.0
      %6596 = vmatpush1.msra.mxu0 0.0
      %6597 = vmatprep.subr.mxu0 0.0
      %6598 = vmatpush1.msra.mxu0 0.0
      %6599 = vmatprep.subr.mxu0 0.0
      %6600 = vmatpush1.msra.mxu0 0.0
      %6601 = vmatprep.subr.mxu0 0.0
      %6602 = vmatpush1.msra.mxu0 0.0
      %6603 = vmatprep.subr.mxu0 0.0
      %6604 = vmatpush1.msra.mxu0 0.0
      %6605 = vmatprep.subr.mxu0 0.0
      %6606 = vmatpush1.msra.mxu0 0.0
      %6607 = vmatprep.subr.mxu0 0.0
      %6608 = vmatpush1.msra.mxu0 0.0
      %6609 = vmatprep.subr.mxu0 0.0
      %6610 = vmatpush1.msra.mxu0 0.0
      %6611 = vmatprep.subr.mxu0 0.0
      %6612 = vmatpush1.msra.mxu0 0.0
      %6613 = vmatprep.subr.mxu0 0.0
      %6614 = vmatpush1.msra.mxu0 0.0
      %6615 = vmatprep.subr.mxu0 0.0
      %6616 = vmatpush1.msra.mxu0 0.0
      %6617 = vmatprep.subr.mxu0 0.0
      %6618 = vmatpush1.msra.mxu0 0.0
      %6619 = vmatprep.subr.mxu0 0.0
      %6620 = vmatpush1.msra.mxu0 0.0
      %6621 = vmatprep.mubr.f32.mxu0 0.0
      %6622 = vmatmul.mubr.f32.gmra.mrb[0].mxu0 %v6555
      %v6623 = vpop.f32.mrb[0].mxu0
      %v6624 = vadd.f32 0.0, %v6623
      %v6625 = vpop.f32.mrb[0].mxu0
      %v6626 = vadd.f32 0.0, %v6625
      %6627 = vdwg.mxu0
      %6628 = vmatprep.subr.mxu0 %v1654
      %6629 = vmatpush1.msra.mxu0 %v1653
      %6630 = vmatprep.subr.mxu0 %v1656
      %6631 = vmatpush1.msra.mxu0 %v1655
      %6632 = vmatprep.subr.mxu0 %v1658
      %6633 = vmatpush1.msra.mxu0 %v1657
      %6634 = vmatprep.subr.mxu0 %v1660
      %6635 = vmatpush1.msra.mxu0 %v1659
      %6636 = vmatprep.subr.mxu0 %v1662
      %6637 = vmatpush1.msra.mxu0 %v1661
      %6638 = vmatprep.subr.mxu0 %v1664
      %6639 = vmatpush1.msra.mxu0 %v1663
      %6640 = vmatprep.subr.mxu0 %v1666
      %6641 = vmatpush1.msra.mxu0 %v1665
      %6642 = vmatprep.subr.mxu0 %v1668
      %6643 = vmatpush1.msra.mxu0 %v1667
      %6644 = vmatprep.subr.mxu0 %v1670
      %6645 = vmatpush1.msra.mxu0 %v1669
      %6646 = vmatprep.subr.mxu0 %v1672
      %6647 = vmatpush1.msra.mxu0 %v1671
      %6648 = vmatprep.subr.mxu0 %v1674
      %6649 = vmatpush1.msra.mxu0 %v1673
      %6650 = vmatprep.subr.mxu0 %v1676
      %6651 = vmatpush1.msra.mxu0 %v1675
      %6652 = vmatprep.subr.mxu0 %v1678
      %6653 = vmatpush1.msra.mxu0 %v1677
      %6654 = vmatprep.subr.mxu0 %v1680
      %6655 = vmatpush1.msra.mxu0 %v1679
      %6656 = vmatprep.subr.mxu0 %v1682
      %6657 = vmatpush1.msra.mxu0 %v1681
      %6658 = vmatprep.subr.mxu0 %v1684
      %6659 = vmatpush1.msra.mxu0 %v1683
      %6660 = vmatprep.subr.mxu0 %v1686
      %6661 = vmatpush1.msra.mxu0 %v1685
      %6662 = vmatprep.subr.mxu0 %v1688
      %6663 = vmatpush1.msra.mxu0 %v1687
      %6664 = vmatprep.subr.mxu0 %v1690
      %6665 = vmatpush1.msra.mxu0 %v1689
      %6666 = vmatprep.subr.mxu0 %v1692
      %6667 = vmatpush1.msra.mxu0 %v1691
      %6668 = vmatprep.subr.mxu0 %v1694
      %6669 = vmatpush1.msra.mxu0 %v1693
      %6670 = vmatprep.subr.mxu0 %v1696
      %6671 = vmatpush1.msra.mxu0 %v1695
      %6672 = vmatprep.subr.mxu0 %v1698
      %6673 = vmatpush1.msra.mxu0 %v1697
      %6674 = vmatprep.subr.mxu0 %v1700
      %6675 = vmatpush1.msra.mxu0 %v1699
      %6676 = vmatprep.subr.mxu0 %v1702
      %6677 = vmatpush1.msra.mxu0 %v1701
      %6678 = vmatprep.subr.mxu0 %v1704
      %6679 = vmatpush1.msra.mxu0 %v1703
      %6680 = vmatprep.subr.mxu0 %v1706
      %6681 = vmatpush1.msra.mxu0 %v1705
      %6682 = vmatprep.subr.mxu0 %v1708
      %6683 = vmatpush1.msra.mxu0 %v1707
      %6684 = vmatprep.subr.mxu0 %v1710
      %6685 = vmatpush1.msra.mxu0 %v1709
      %6686 = vmatprep.subr.mxu0 %v1712
      %6687 = vmatpush1.msra.mxu0 %v1711
      %6688 = vmatprep.subr.mxu0 %v1714
      %6689 = vmatpush1.msra.mxu0 %v1713
      %6690 = vmatprep.subr.mxu0 %v1716
      %6691 = vmatpush1.msra.mxu0 %v1715
      %6692 = vmatprep.mubr.f32.mxu0 %v6626
      %6693 = vmatmul.mubr.f32.gmra.mrb[0].mxu0 %v6624
      %v6694 = vpop.f32.mrb[0].mxu0
      %v6695 = vadd.f32 0.0, %v6694
      %v6696 = vpop.f32.mrb[0].mxu0
      %v6697 = vadd.f32 0.0, %v6696
      %6698 = vdwg.mxu0
      %v6699 = vadd.f32 %v6550, %v6695
      %v6700 = vadd.f32 %v6551, %v6697
      %v6701 = vld [vmem:[%s10] sm:$0xff]
      %6703 = vset.pattern.permute.xlu0 0
      %6704 = vperm.xlu0 %6703, %v6701
      %v6705 = vpop.permute.xlu0 %6704
      %v6707 = vadd.f32 %v6699, %v6705
      %v6708 = vadd.f32 %v6700, %v6705
      %v6709 = vmax.f32 %v6707, 0.0
      %v6710 = vmax.f32 %v6708, 0.0
      %v6711 = vld [vmem:[%s11] sm:$0x1]
      %v6713 = vsel %vm1962, %v6711, 0
      %6715 = vmatprep.subr.mxu0 %v6710
      %6716 = vmatpush1.msra.mxu0 %v6709
      %6717 = vmatprep.subr.mxu0 0.0
      %6718 = vmatpush1.msra.mxu0 0.0
      %6719 = vmatprep.subr.mxu0 0.0
      %6720 = vmatpush1.msra.mxu0 0.0
      %6721 = vmatprep.subr.mxu0 0.0
      %6722 = vmatpush1.msra.mxu0 0.0
      %6723 = vmatprep.subr.mxu0 0.0
      %6724 = vmatpush1.msra.mxu0 0.0
      %6725 = vmatprep.subr.mxu0 0.0
      %6726 = vmatpush1.msra.mxu0 0.0
      %6727 = vmatprep.subr.mxu0 0.0
      %6728 = vmatpush1.msra.mxu0 0.0
      %6729 = vmatprep.subr.mxu0 0.0
      %6730 = vmatpush1.msra.mxu0 0.0
      %6731 = vmatprep.subr.mxu0 0.0
      %6732 = vmatpush1.msra.mxu0 0.0
      %6733 = vmatprep.subr.mxu0 0.0
      %6734 = vmatpush1.msra.mxu0 0.0
      %6735 = vmatprep.subr.mxu0 0.0
      %6736 = vmatpush1.msra.mxu0 0.0
      %6737 = vmatprep.subr.mxu0 0.0
      %6738 = vmatpush1.msra.mxu0 0.0
      %6739 = vmatprep.subr.mxu0 0.0
      %6740 = vmatpush1.msra.mxu0 0.0
      %6741 = vmatprep.subr.mxu0 0.0
      %6742 = vmatpush1.msra.mxu0 0.0
      %6743 = vmatprep.subr.mxu0 0.0
      %6744 = vmatpush1.msra.mxu0 0.0
      %6745 = vmatprep.subr.mxu0 0.0
      %6746 = vmatpush1.msra.mxu0 0.0
      %6747 = vmatprep.subr.mxu0 0.0
      %6748 = vmatpush1.msra.mxu0 0.0
      %6749 = vmatprep.subr.mxu0 0.0
      %6750 = vmatpush1.msra.mxu0 0.0
      %6751 = vmatprep.subr.mxu0 0.0
      %6752 = vmatpush1.msra.mxu0 0.0
      %6753 = vmatprep.subr.mxu0 0.0
      %6754 = vmatpush1.msra.mxu0 0.0
      %6755 = vmatprep.subr.mxu0 0.0
      %6756 = vmatpush1.msra.mxu0 0.0
      %6757 = vmatprep.subr.mxu0 0.0
      %6758 = vmatpush1.msra.mxu0 0.0
      %6759 = vmatprep.subr.mxu0 0.0
      %6760 = vmatpush1.msra.mxu0 0.0
      %6761 = vmatprep.subr.mxu0 0.0
      %6762 = vmatpush1.msra.mxu0 0.0
      %6763 = vmatprep.subr.mxu0 0.0
      %6764 = vmatpush1.msra.mxu0 0.0
      %6765 = vmatprep.subr.mxu0 0.0
      %6766 = vmatpush1.msra.mxu0 0.0
      %6767 = vmatprep.subr.mxu0 0.0
      %6768 = vmatpush1.msra.mxu0 0.0
      %6769 = vmatprep.subr.mxu0 0.0
      %6770 = vmatpush1.msra.mxu0 0.0
      %6771 = vmatprep.subr.mxu0 0.0
      %6772 = vmatpush1.msra.mxu0 0.0
      %6773 = vmatprep.subr.mxu0 0.0
      %6774 = vmatpush1.msra.mxu0 0.0
      %6775 = vmatprep.subr.mxu0 0.0
      %6776 = vmatpush1.msra.mxu0 0.0
      %6777 = vmatprep.subr.mxu0 0.0
      %6778 = vmatpush1.msra.mxu0 0.0
      %6779 = vmatprep.mubr.f32.mxu0 0.0
      %6780 = vmatmul.mubr.f32.gmra.mrb[0].mxu0 %v6713
      %v6781 = vpop.f32.mrb[0].mxu0
      %v6782 = vadd.f32 0.0, %v6781
      %v6783 = vpop.f32.mrb[0].mxu0
      %v6784 = vadd.f32 0.0, %v6783
      %6785 = vdwg.mxu0
      %s6786 = scalar_lea.vmem %s11, 1
      %v6787 = vld [vmem:[%s6786] sm:$0x1]
      %v6789 = vsel %vm1962, %v6787, 0
      %6791 = vmatprep.subr.mxu0 %v6710
      %6792 = vmatpush1.msra.mxu0 %v6709
      %6793 = vmatprep.subr.mxu0 0.0
      %6794 = vmatpush1.msra.mxu0 0.0
      %6795 = vmatprep.subr.mxu0 0.0
      %6796 = vmatpush1.msra.mxu0 0.0
      %6797 = vmatprep.subr.mxu0 0.0
      %6798 = vmatpush1.msra.mxu0 0.0
      %6799 = vmatprep.subr.mxu0 0.0
      %6800 = vmatpush1.msra.mxu0 0.0
      %6801 = vmatprep.subr.mxu0 0.0
      %6802 = vmatpush1.msra.mxu0 0.0
      %6803 = vmatprep.subr.mxu0 0.0
      %6804 = vmatpush1.msra.mxu0 0.0
      %6805 = vmatprep.subr.mxu0 0.0
      %6806 = vmatpush1.msra.mxu0 0.0
      %6807 = vmatprep.subr.mxu0 0.0
      %6808 = vmatpush1.msra.mxu0 0.0
      %6809 = vmatprep.subr.mxu0 0.0
      %6810 = vmatpush1.msra.mxu0 0.0
      %6811 = vmatprep.subr.mxu0 0.0
      %6812 = vmatpush1.msra.mxu0 0.0
      %6813 = vmatprep.subr.mxu0 0.0
      %6814 = vmatpush1.msra.mxu0 0.0
      %6815 = vmatprep.subr.mxu0 0.0
      %6816 = vmatpush1.msra.mxu0 0.0
      %6817 = vmatprep.subr.mxu0 0.0
      %6818 = vmatpush1.msra.mxu0 0.0
      %6819 = vmatprep.subr.mxu0 0.0
      %6820 = vmatpush1.msra.mxu0 0.0
      %6821 = vmatprep.subr.mxu0 0.0
      %6822 = vmatpush1.msra.mxu0 0.0
      %6823 = vmatprep.subr.mxu0 0.0
      %6824 = vmatpush1.msra.mxu0 0.0
      %6825 = vmatprep.subr.mxu0 0.0
      %6826 = vmatpush1.msra.mxu0 0.0
      %6827 = vmatprep.subr.mxu0 0.0
      %6828 = vmatpush1.msra.mxu0 0.0
      %6829 = vmatprep.subr.mxu0 0.0
      %6830 = vmatpush1.msra.mxu0 0.0
      %6831 = vmatprep.subr.mxu0 0.0
      %6832 = vmatpush1.msra.mxu0 0.0
      %6833 = vmatprep.subr.mxu0 0.0
      %6834 = vmatpush1.msra.mxu0 0.0
      %6835 = vmatprep.subr.mxu0 0.0
      %6836 = vmatpush1.msra.mxu0 0.0
      %6837 = vmatprep.subr.mxu0 0.0
      %6838 = vmatpush1.msra.mxu0 0.0
      %6839 = vmatprep.subr.mxu0 0.0
      %6840 = vmatpush1.msra.mxu0 0.0
      %6841 = vmatprep.subr.mxu0 0.0
      %6842 = vmatpush1.msra.mxu0 0.0
      %6843 = vmatprep.subr.mxu0 0.0
      %6844 = vmatpush1.msra.mxu0 0.0
      %6845 = vmatprep.subr.mxu0 0.0
      %6846 = vmatpush1.msra.mxu0 0.0
      %6847 = vmatprep.subr.mxu0 0.0
      %6848 = vmatpush1.msra.mxu0 0.0
      %6849 = vmatprep.subr.mxu0 0.0
      %6850 = vmatpush1.msra.mxu0 0.0
      %6851 = vmatprep.subr.mxu0 0.0
      %6852 = vmatpush1.msra.mxu0 0.0
      %6853 = vmatprep.subr.mxu0 0.0
      %6854 = vmatpush1.msra.mxu0 0.0
      %6855 = vmatprep.mubr.f32.mxu0 0.0
      %6856 = vmatmul.mubr.f32.gmra.mrb[0].mxu0 %v6789
      %v6857 = vpop.f32.mrb[0].mxu0
      %v6858 = vadd.f32 0.0, %v6857
      %v6859 = vpop.f32.mrb[0].mxu0
      %v6860 = vadd.f32 0.0, %v6859
      %6861 = vdwg.mxu0
      %6862 = vmatprep.subr.mxu0 %v713
      %6863 = vmatpush1.msra.mxu0 %v712
      %6864 = vmatprep.subr.mxu0 %v715
      %6865 = vmatpush1.msra.mxu0 %v714
      %6866 = vmatprep.subr.mxu0 %v717
      %6867 = vmatpush1.msra.mxu0 %v716
      %6868 = vmatprep.subr.mxu0 %v719
      %6869 = vmatpush1.msra.mxu0 %v718
      %6870 = vmatprep.subr.mxu0 %v721
      %6871 = vmatpush1.msra.mxu0 %v720
      %6872 = vmatprep.subr.mxu0 %v723
      %6873 = vmatpush1.msra.mxu0 %v722
      %6874 = vmatprep.subr.mxu0 %v725
      %6875 = vmatpush1.msra.mxu0 %v724
      %6876 = vmatprep.subr.mxu0 %v727
      %6877 = vmatpush1.msra.mxu0 %v726
      %6878 = vmatprep.subr.mxu0 %v729
      %6879 = vmatpush1.msra.mxu0 %v728
      %6880 = vmatprep.subr.mxu0 %v731
      %6881 = vmatpush1.msra.mxu0 %v730
      %6882 = vmatprep.subr.mxu0 %v733
      %6883 = vmatpush1.msra.mxu0 %v732
      %6884 = vmatprep.subr.mxu0 %v735
      %6885 = vmatpush1.msra.mxu0 %v734
      %6886 = vmatprep.subr.mxu0 %v737
      %6887 = vmatpush1.msra.mxu0 %v736
      %6888 = vmatprep.subr.mxu0 %v739
      %6889 = vmatpush1.msra.mxu0 %v738
      %6890 = vmatprep.subr.mxu0 %v741
      %6891 = vmatpush1.msra.mxu0 %v740
      %6892 = vmatprep.subr.mxu0 %v743
      %6893 = vmatpush1.msra.mxu0 %v742
      %6894 = vmatprep.subr.mxu0 %v745
      %6895 = vmatpush1.msra.mxu0 %v744
      %6896 = vmatprep.subr.mxu0 %v747
      %6897 = vmatpush1.msra.mxu0 %v746
      %6898 = vmatprep.subr.mxu0 %v749
      %6899 = vmatpush1.msra.mxu0 %v748
      %6900 = vmatprep.subr.mxu0 %v751
      %6901 = vmatpush1.msra.mxu0 %v750
      %6902 = vmatprep.subr.mxu0 %v753
      %6903 = vmatpush1.msra.mxu0 %v752
      %6904 = vmatprep.subr.mxu0 %v755
      %6905 = vmatpush1.msra.mxu0 %v754
      %6906 = vmatprep.subr.mxu0 %v757
      %6907 = vmatpush1.msra.mxu0 %v756
      %6908 = vmatprep.subr.mxu0 %v759
      %6909 = vmatpush1.msra.mxu0 %v758
      %6910 = vmatprep.subr.mxu0 %v761
      %6911 = vmatpush1.msra.mxu0 %v760
      %6912 = vmatprep.subr.mxu0 %v763
      %6913 = vmatpush1.msra.mxu0 %v762
      %6914 = vmatprep.subr.mxu0 %v765
      %6915 = vmatpush1.msra.mxu0 %v764
      %6916 = vmatprep.subr.mxu0 %v767
      %6917 = vmatpush1.msra.mxu0 %v766
      %6918 = vmatprep.subr.mxu0 %v769
      %6919 = vmatpush1.msra.mxu0 %v768
      %6920 = vmatprep.subr.mxu0 %v771
      %6921 = vmatpush1.msra.mxu0 %v770
      %6922 = vmatprep.subr.mxu0 %v773
      %6923 = vmatpush1.msra.mxu0 %v772
      %6924 = vmatprep.subr.mxu0 %v775
      %6925 = vmatpush1.msra.mxu0 %v774
      %6926 = vmatprep.mubr.f32.mxu0 %v6860
      %6927 = vmatmul.mubr.f32.gmra.mrb[0].mxu0 %v6858
      %v6928 = vpop.f32.mrb[0].mxu0
      %v6929 = vadd.f32 0.0, %v6928
      %v6930 = vpop.f32.mrb[0].mxu0
      %v6931 = vadd.f32 0.0, %v6930
      %6932 = vdwg.mxu0
      %6933 = vmatprep.subr.mxu0 %v548
      %6934 = vmatpush1.msra.mxu0 %v547
      %6935 = vmatprep.subr.mxu0 %v550
      %6936 = vmatpush1.msra.mxu0 %v549
      %6937 = vmatprep.subr.mxu0 %v552
      %6938 = vmatpush1.msra.mxu0 %v551
      %6939 = vmatprep.subr.mxu0 %v554
      %6940 = vmatpush1.msra.mxu0 %v553
      %6941 = vmatprep.subr.mxu0 %v556
      %6942 = vmatpush1.msra.mxu0 %v555
      %6943 = vmatprep.subr.mxu0 %v558
      %6944 = vmatpush1.msra.mxu0 %v557
      %6945 = vmatprep.subr.mxu0 %v560
      %6946 = vmatpush1.msra.mxu0 %v559
      %6947 = vmatprep.subr.mxu0 %v562
      %6948 = vmatpush1.msra.mxu0 %v561
      %6949 = vmatprep.subr.mxu0 %v564
      %6950 = vmatpush1.msra.mxu0 %v563
      %6951 = vmatprep.subr.mxu0 %v566
      %6952 = vmatpush1.msra.mxu0 %v565
      %6953 = vmatprep.subr.mxu0 %v568
      %6954 = vmatpush1.msra.mxu0 %v567
      %6955 = vmatprep.subr.mxu0 %v570
      %6956 = vmatpush1.msra.mxu0 %v569
      %6957 = vmatprep.subr.mxu0 %v572
      %6958 = vmatpush1.msra.mxu0 %v571
      %6959 = vmatprep.subr.mxu0 %v574
      %6960 = vmatpush1.msra.mxu0 %v573
      %6961 = vmatprep.subr.mxu0 %v576
      %6962 = vmatpush1.msra.mxu0 %v575
      %6963 = vmatprep.subr.mxu0 %v578
      %6964 = vmatpush1.msra.mxu0 %v577
      %6965 = vmatprep.subr.mxu0 %v580
      %6966 = vmatpush1.msra.mxu0 %v579
      %6967 = vmatprep.subr.mxu0 %v582
      %6968 = vmatpush1.msra.mxu0 %v581
      %6969 = vmatprep.subr.mxu0 %v584
      %6970 = vmatpush1.msra.mxu0 %v583
      %6971 = vmatprep.subr.mxu0 %v586
      %6972 = vmatpush1.msra.mxu0 %v585
      %6973 = vmatprep.subr.mxu0 %v588
      %6974 = vmatpush1.msra.mxu0 %v587
      %6975 = vmatprep.subr.mxu0 %v590
      %6976 = vmatpush1.msra.mxu0 %v589
      %6977 = vmatprep.subr.mxu0 %v592
      %6978 = vmatpush1.msra.mxu0 %v591
      %6979 = vmatprep.subr.mxu0 %v594
      %6980 = vmatpush1.msra.mxu0 %v593
      %6981 = vmatprep.subr.mxu0 %v596
      %6982 = vmatpush1.msra.mxu0 %v595
      %6983 = vmatprep.subr.mxu0 %v598
      %6984 = vmatpush1.msra.mxu0 %v597
      %6985 = vmatprep.subr.mxu0 %v600
      %6986 = vmatpush1.msra.mxu0 %v599
      %6987 = vmatprep.subr.mxu0 %v602
      %6988 = vmatpush1.msra.mxu0 %v601
      %6989 = vmatprep.subr.mxu0 %v604
      %6990 = vmatpush1.msra.mxu0 %v603
      %6991 = vmatprep.subr.mxu0 %v606
      %6992 = vmatpush1.msra.mxu0 %v605
      %6993 = vmatprep.subr.mxu0 %v608
      %6994 = vmatpush1.msra.mxu0 %v607
      %6995 = vmatprep.subr.mxu0 %v610
      %6996 = vmatpush1.msra.mxu0 %v609
      %6997 = vmatprep.mubr.f32.mxu0 %v6784
      %6998 = vmatmul.mubr.f32.gmra.mrb[0].mxu0 %v6782
      %v6999 = vpop.f32.mrb[0].mxu0
      %v7000 = vadd.f32 %v6929, %v6999
      %v7001 = vpop.f32.mrb[0].mxu0
      %v7002 = vadd.f32 %v6931, %v7001
      %7003 = vdwg.mxu0
      %s7004 = scalar_lea.vmem %s11, 2
      %v7005 = vld [vmem:[%s7004] sm:$0x1]
      %v7007 = vsel %vm1962, %v7005, 0
      %7009 = vmatprep.subr.mxu0 %v6710
      %7010 = vmatpush1.msra.mxu0 %v6709
      %7011 = vmatprep.subr.mxu0 0.0
      %7012 = vmatpush1.msra.mxu0 0.0
      %7013 = vmatprep.subr.mxu0 0.0
      %7014 = vmatpush1.msra.mxu0 0.0
      %7015 = vmatprep.subr.mxu0 0.0
      %7016 = vmatpush1.msra.mxu0 0.0
      %7017 = vmatprep.subr.mxu0 0.0
      %7018 = vmatpush1.msra.mxu0 0.0
      %7019 = vmatprep.subr.mxu0 0.0
      %7020 = vmatpush1.msra.mxu0 0.0
      %7021 = vmatprep.subr.mxu0 0.0
      %7022 = vmatpush1.msra.mxu0 0.0
      %7023 = vmatprep.subr.mxu0 0.0
      %7024 = vmatpush1.msra.mxu0 0.0
      %7025 = vmatprep.subr.mxu0 0.0
      %7026 = vmatpush1.msra.mxu0 0.0
      %7027 = vmatprep.subr.mxu0 0.0
      %7028 = vmatpush1.msra.mxu0 0.0
      %7029 = vmatprep.subr.mxu0 0.0
      %7030 = vmatpush1.msra.mxu0 0.0
      %7031 = vmatprep.subr.mxu0 0.0
      %7032 = vmatpush1.msra.mxu0 0.0
      %7033 = vmatprep.subr.mxu0 0.0
      %7034 = vmatpush1.msra.mxu0 0.0
      %7035 = vmatprep.subr.mxu0 0.0
      %7036 = vmatpush1.msra.mxu0 0.0
      %7037 = vmatprep.subr.mxu0 0.0
      %7038 = vmatpush1.msra.mxu0 0.0
      %7039 = vmatprep.subr.mxu0 0.0
      %7040 = vmatpush1.msra.mxu0 0.0
      %7041 = vmatprep.subr.mxu0 0.0
      %7042 = vmatpush1.msra.mxu0 0.0
      %7043 = vmatprep.subr.mxu0 0.0
      %7044 = vmatpush1.msra.mxu0 0.0
      %7045 = vmatprep.subr.mxu0 0.0
      %7046 = vmatpush1.msra.mxu0 0.0
      %7047 = vmatprep.subr.mxu0 0.0
      %7048 = vmatpush1.msra.mxu0 0.0
      %7049 = vmatprep.subr.mxu0 0.0
      %7050 = vmatpush1.msra.mxu0 0.0
      %7051 = vmatprep.subr.mxu0 0.0
      %7052 = vmatpush1.msra.mxu0 0.0
      %7053 = vmatprep.subr.mxu0 0.0
      %7054 = vmatpush1.msra.mxu0 0.0
      %7055 = vmatprep.subr.mxu0 0.0
      %7056 = vmatpush1.msra.mxu0 0.0
      %7057 = vmatprep.subr.mxu0 0.0
      %7058 = vmatpush1.msra.mxu0 0.0
      %7059 = vmatprep.subr.mxu0 0.0
      %7060 = vmatpush1.msra.mxu0 0.0
      %7061 = vmatprep.subr.mxu0 0.0
      %7062 = vmatpush1.msra.mxu0 0.0
      %7063 = vmatprep.subr.mxu0 0.0
      %7064 = vmatpush1.msra.mxu0 0.0
      %7065 = vmatprep.subr.mxu0 0.0
      %7066 = vmatpush1.msra.mxu0 0.0
      %7067 = vmatprep.subr.mxu0 0.0
      %7068 = vmatpush1.msra.mxu0 0.0
      %7069 = vmatprep.subr.mxu0 0.0
      %7070 = vmatpush1.msra.mxu0 0.0
      %7071 = vmatprep.subr.mxu0 0.0
      %7072 = vmatpush1.msra.mxu0 0.0
      %7073 = vmatprep.mubr.f32.mxu0 0.0
      %7074 = vmatmul.mubr.f32.gmra.mrb[0].mxu0 %v7007
      %v7075 = vpop.f32.mrb[0].mxu0
      %v7076 = vadd.f32 0.0, %v7075
      %v7077 = vpop.f32.mrb[0].mxu0
      %v7078 = vadd.f32 0.0, %v7077
      %7079 = vdwg.mxu0
      %7080 = vmatprep.subr.mxu0 %v868
      %7081 = vmatpush1.msra.mxu0 %v867
      %7082 = vmatprep.subr.mxu0 %v870
      %7083 = vmatpush1.msra.mxu0 %v869
      %7084 = vmatprep.subr.mxu0 %v872
      %7085 = vmatpush1.msra.mxu0 %v871
      %7086 = vmatprep.subr.mxu0 %v874
      %7087 = vmatpush1.msra.mxu0 %v873
      %7088 = vmatprep.subr.mxu0 %v876
      %7089 = vmatpush1.msra.mxu0 %v875
      %7090 = vmatprep.subr.mxu0 %v878
      %7091 = vmatpush1.msra.mxu0 %v877
      %7092 = vmatprep.subr.mxu0 %v880
      %7093 = vmatpush1.msra.mxu0 %v879
      %7094 = vmatprep.subr.mxu0 %v882
      %7095 = vmatpush1.msra.mxu0 %v881
      %7096 = vmatprep.subr.mxu0 %v884
      %7097 = vmatpush1.msra.mxu0 %v883
      %7098 = vmatprep.subr.mxu0 %v886
      %7099 = vmatpush1.msra.mxu0 %v885
      %7100 = vmatprep.subr.mxu0 %v888
      %7101 = vmatpush1.msra.mxu0 %v887
      %7102 = vmatprep.subr.mxu0 %v890
      %7103 = vmatpush1.msra.mxu0 %v889
      %7104 = vmatprep.subr.mxu0 %v892
      %7105 = vmatpush1.msra.mxu0 %v891
      %7106 = vmatprep.subr.mxu0 %v894
      %7107 = vmatpush1.msra.mxu0 %v893
      %7108 = vmatprep.subr.mxu0 %v896
      %7109 = vmatpush1.msra.mxu0 %v895
      %7110 = vmatprep.subr.mxu0 %v898
      %7111 = vmatpush1.msra.mxu0 %v897
      %7112 = vmatprep.subr.mxu0 %v900
      %7113 = vmatpush1.msra.mxu0 %v899
      %7114 = vmatprep.subr.mxu0 %v902
      %7115 = vmatpush1.msra.mxu0 %v901
      %7116 = vmatprep.subr.mxu0 %v904
      %7117 = vmatpush1.msra.mxu0 %v903
      %7118 = vmatprep.subr.mxu0 %v906
      %7119 = vmatpush1.msra.mxu0 %v905
      %7120 = vmatprep.subr.mxu0 %v908
      %7121 = vmatpush1.msra.mxu0 %v907
      %7122 = vmatprep.subr.mxu0 %v910
      %7123 = vmatpush1.msra.mxu0 %v909
      %7124 = vmatprep.subr.mxu0 %v912
      %7125 = vmatpush1.msra.mxu0 %v911
      %7126 = vmatprep.subr.mxu0 %v914
      %7127 = vmatpush1.msra.mxu0 %v913
      %7128 = vmatprep.subr.mxu0 %v916
      %7129 = vmatpush1.msra.mxu0 %v915
      %7130 = vmatprep.subr.mxu0 %v918
      %7131 = vmatpush1.msra.mxu0 %v917
      %7132 = vmatprep.subr.mxu0 %v920
      %7133 = vmatpush1.msra.mxu0 %v919
      %7134 = vmatprep.subr.mxu0 %v922
      %7135 = vmatpush1.msra.mxu0 %v921
      %7136 = vmatprep.subr.mxu0 %v924
      %7137 = vmatpush1.msra.mxu0 %v923
      %7138 = vmatprep.subr.mxu0 %v926
      %7139 = vmatpush1.msra.mxu0 %v925
      %7140 = vmatprep.subr.mxu0 %v928
      %7141 = vmatpush1.msra.mxu0 %v927
      %7142 = vmatprep.subr.mxu0 %v930
      %7143 = vmatpush1.msra.mxu0 %v929
      %7144 = vmatprep.mubr.f32.mxu0 %v7078
      %7145 = vmatmul.mubr.f32.gmra.mrb[0].mxu0 %v7076
      %v7146 = vpop.f32.mrb[0].mxu0
      %v7147 = vadd.f32 0.0, %v7146
      %v7148 = vpop.f32.mrb[0].mxu0
      %v7149 = vadd.f32 0.0, %v7148
      %7150 = vdwg.mxu0
      %v7151 = vadd.f32 %v7000, %v7147
      %v7152 = vadd.f32 %v7002, %v7149
      %s7153 = scalar_lea.vmem %s11, 3
      %v7154 = vld [vmem:[%s7153] sm:$0x1]
      %v7156 = vsel %vm1962, %v7154, 0
      %7158 = vmatprep.subr.mxu0 %v6710
      %7159 = vmatpush1.msra.mxu0 %v6709
      %7160 = vmatprep.subr.mxu0 0.0
      %7161 = vmatpush1.msra.mxu0 0.0
      %7162 = vmatprep.subr.mxu0 0.0
      %7163 = vmatpush1.msra.mxu0 0.0
      %7164 = vmatprep.subr.mxu0 0.0
      %7165 = vmatpush1.msra.mxu0 0.0
      %7166 = vmatprep.subr.mxu0 0.0
      %7167 = vmatpush1.msra.mxu0 0.0
      %7168 = vmatprep.subr.mxu0 0.0
      %7169 = vmatpush1.msra.mxu0 0.0
      %7170 = vmatprep.subr.mxu0 0.0
      %7171 = vmatpush1.msra.mxu0 0.0
      %7172 = vmatprep.subr.mxu0 0.0
      %7173 = vmatpush1.msra.mxu0 0.0
      %7174 = vmatprep.subr.mxu0 0.0
      %7175 = vmatpush1.msra.mxu0 0.0
      %7176 = vmatprep.subr.mxu0 0.0
      %7177 = vmatpush1.msra.mxu0 0.0
      %7178 = vmatprep.subr.mxu0 0.0
      %7179 = vmatpush1.msra.mxu0 0.0
      %7180 = vmatprep.subr.mxu0 0.0
      %7181 = vmatpush1.msra.mxu0 0.0
      %7182 = vmatprep.subr.mxu0 0.0
      %7183 = vmatpush1.msra.mxu0 0.0
      %7184 = vmatprep.subr.mxu0 0.0
      %7185 = vmatpush1.msra.mxu0 0.0
      %7186 = vmatprep.subr.mxu0 0.0
      %7187 = vmatpush1.msra.mxu0 0.0
      %7188 = vmatprep.subr.mxu0 0.0
      %7189 = vmatpush1.msra.mxu0 0.0
      %7190 = vmatprep.subr.mxu0 0.0
      %7191 = vmatpush1.msra.mxu0 0.0
      %7192 = vmatprep.subr.mxu0 0.0
      %7193 = vmatpush1.msra.mxu0 0.0
      %7194 = vmatprep.subr.mxu0 0.0
      %7195 = vmatpush1.msra.mxu0 0.0
      %7196 = vmatprep.subr.mxu0 0.0
      %7197 = vmatpush1.msra.mxu0 0.0
      %7198 = vmatprep.subr.mxu0 0.0
      %7199 = vmatpush1.msra.mxu0 0.0
      %7200 = vmatprep.subr.mxu0 0.0
      %7201 = vmatpush1.msra.mxu0 0.0
      %7202 = vmatprep.subr.mxu0 0.0
      %7203 = vmatpush1.msra.mxu0 0.0
      %7204 = vmatprep.subr.mxu0 0.0
      %7205 = vmatpush1.msra.mxu0 0.0
      %7206 = vmatprep.subr.mxu0 0.0
      %7207 = vmatpush1.msra.mxu0 0.0
      %7208 = vmatprep.subr.mxu0 0.0
      %7209 = vmatpush1.msra.mxu0 0.0
      %7210 = vmatprep.subr.mxu0 0.0
      %7211 = vmatpush1.msra.mxu0 0.0
      %7212 = vmatprep.subr.mxu0 0.0
      %7213 = vmatpush1.msra.mxu0 0.0
      %7214 = vmatprep.subr.mxu0 0.0
      %7215 = vmatpush1.msra.mxu0 0.0
      %7216 = vmatprep.subr.mxu0 0.0
      %7217 = vmatpush1.msra.mxu0 0.0
      %7218 = vmatprep.subr.mxu0 0.0
      %7219 = vmatpush1.msra.mxu0 0.0
      %7220 = vmatprep.subr.mxu0 0.0
      %7221 = vmatpush1.msra.mxu0 0.0
      %7222 = vmatprep.mubr.f32.mxu0 0.0
      %7223 = vmatmul.mubr.f32.gmra.mrb[0].mxu0 %v7156
      %v7224 = vpop.f32.mrb[0].mxu0
      %v7225 = vadd.f32 0.0, %v7224
      %v7226 = vpop.f32.mrb[0].mxu0
      %v7227 = vadd.f32 0.0, %v7226
      %7228 = vdwg.mxu0
      %7229 = vmatprep.subr.mxu0 %v1023
      %7230 = vmatpush1.msra.mxu0 %v1022
      %7231 = vmatprep.subr.mxu0 %v1025
      %7232 = vmatpush1.msra.mxu0 %v1024
      %7233 = vmatprep.subr.mxu0 %v1027
      %7234 = vmatpush1.msra.mxu0 %v1026
      %7235 = vmatprep.subr.mxu0 %v1029
      %7236 = vmatpush1.msra.mxu0 %v1028
      %7237 = vmatprep.subr.mxu0 %v1031
      %7238 = vmatpush1.msra.mxu0 %v1030
      %7239 = vmatprep.subr.mxu0 %v1033
      %7240 = vmatpush1.msra.mxu0 %v1032
      %7241 = vmatprep.subr.mxu0 %v1035
      %7242 = vmatpush1.msra.mxu0 %v1034
      %7243 = vmatprep.subr.mxu0 %v1037
      %7244 = vmatpush1.msra.mxu0 %v1036
      %7245 = vmatprep.subr.mxu0 %v1039
      %7246 = vmatpush1.msra.mxu0 %v1038
      %7247 = vmatprep.subr.mxu0 %v1041
      %7248 = vmatpush1.msra.mxu0 %v1040
      %7249 = vmatprep.subr.mxu0 %v1043
      %7250 = vmatpush1.msra.mxu0 %v1042
      %7251 = vmatprep.subr.mxu0 %v1045
      %7252 = vmatpush1.msra.mxu0 %v1044
      %7253 = vmatprep.subr.mxu0 %v1047
      %7254 = vmatpush1.msra.mxu0 %v1046
      %7255 = vmatprep.subr.mxu0 %v1049
      %7256 = vmatpush1.msra.mxu0 %v1048
      %7257 = vmatprep.subr.mxu0 %v1051
      %7258 = vmatpush1.msra.mxu0 %v1050
      %7259 = vmatprep.subr.mxu0 %v1053
      %7260 = vmatpush1.msra.mxu0 %v1052
      %7261 = vmatprep.subr.mxu0 %v1055
      %7262 = vmatpush1.msra.mxu0 %v1054
      %7263 = vmatprep.subr.mxu0 %v1057
      %7264 = vmatpush1.msra.mxu0 %v1056
      %7265 = vmatprep.subr.mxu0 %v1059
      %7266 = vmatpush1.msra.mxu0 %v1058
      %7267 = vmatprep.subr.mxu0 %v1061
      %7268 = vmatpush1.msra.mxu0 %v1060
      %7269 = vmatprep.subr.mxu0 %v1063
      %7270 = vmatpush1.msra.mxu0 %v1062
      %7271 = vmatprep.subr.mxu0 %v1065
      %7272 = vmatpush1.msra.mxu0 %v1064
      %7273 = vmatprep.subr.mxu0 %v1067
      %7274 = vmatpush1.msra.mxu0 %v1066
      %7275 = vmatprep.subr.mxu0 %v1069
      %7276 = vmatpush1.msra.mxu0 %v1068
      %7277 = vmatprep.subr.mxu0 %v1071
      %7278 = vmatpush1.msra.mxu0 %v1070
      %7279 = vmatprep.subr.mxu0 %v1073
      %7280 = vmatpush1.msra.mxu0 %v1072
      %7281 = vmatprep.subr.mxu0 %v1075
      %7282 = vmatpush1.msra.mxu0 %v1074
      %7283 = vmatprep.subr.mxu0 %v1077
      %7284 = vmatpush1.msra.mxu0 %v1076
      %7285 = vmatprep.subr.mxu0 %v1079
      %7286 = vmatpush1.msra.mxu0 %v1078
      %7287 = vmatprep.subr.mxu0 %v1081
      %7288 = vmatpush1.msra.mxu0 %v1080
      %7289 = vmatprep.subr.mxu0 %v1083
      %7290 = vmatpush1.msra.mxu0 %v1082
      %7291 = vmatprep.subr.mxu0 %v1085
      %7292 = vmatpush1.msra.mxu0 %v1084
      %7293 = vmatprep.mubr.f32.mxu0 %v7227
      %7294 = vmatmul.mubr.f32.gmra.mrb[0].mxu0 %v7225
      %v7295 = vpop.f32.mrb[0].mxu0
      %v7296 = vadd.f32 0.0, %v7295
      %v7297 = vpop.f32.mrb[0].mxu0
      %v7298 = vadd.f32 0.0, %v7297
      %7299 = vdwg.mxu0
      %v7300 = vadd.f32 %v7151, %v7296
      %v7301 = vadd.f32 %v7152, %v7298
      %s7302 = scalar_lea.vmem %s11, 4
      %v7303 = vld [vmem:[%s7302] sm:$0x1]
      %v7305 = vsel %vm1962, %v7303, 0
      %7307 = vmatprep.subr.mxu0 %v6710
      %7308 = vmatpush1.msra.mxu0 %v6709
      %7309 = vmatprep.subr.mxu0 0.0
      %7310 = vmatpush1.msra.mxu0 0.0
      %7311 = vmatprep.subr.mxu0 0.0
      %7312 = vmatpush1.msra.mxu0 0.0
      %7313 = vmatprep.subr.mxu0 0.0
      %7314 = vmatpush1.msra.mxu0 0.0
      %7315 = vmatprep.subr.mxu0 0.0
      %7316 = vmatpush1.msra.mxu0 0.0
      %7317 = vmatprep.subr.mxu0 0.0
      %7318 = vmatpush1.msra.mxu0 0.0
      %7319 = vmatprep.subr.mxu0 0.0
      %7320 = vmatpush1.msra.mxu0 0.0
      %7321 = vmatprep.subr.mxu0 0.0
      %7322 = vmatpush1.msra.mxu0 0.0
      %7323 = vmatprep.subr.mxu0 0.0
      %7324 = vmatpush1.msra.mxu0 0.0
      %7325 = vmatprep.subr.mxu0 0.0
      %7326 = vmatpush1.msra.mxu0 0.0
      %7327 = vmatprep.subr.mxu0 0.0
      %7328 = vmatpush1.msra.mxu0 0.0
      %7329 = vmatprep.subr.mxu0 0.0
      %7330 = vmatpush1.msra.mxu0 0.0
      %7331 = vmatprep.subr.mxu0 0.0
      %7332 = vmatpush1.msra.mxu0 0.0
      %7333 = vmatprep.subr.mxu0 0.0
      %7334 = vmatpush1.msra.mxu0 0.0
      %7335 = vmatprep.subr.mxu0 0.0
      %7336 = vmatpush1.msra.mxu0 0.0
      %7337 = vmatprep.subr.mxu0 0.0
      %7338 = vmatpush1.msra.mxu0 0.0
      %7339 = vmatprep.subr.mxu0 0.0
      %7340 = vmatpush1.msra.mxu0 0.0
      %7341 = vmatprep.subr.mxu0 0.0
      %7342 = vmatpush1.msra.mxu0 0.0
      %7343 = vmatprep.subr.mxu0 0.0
      %7344 = vmatpush1.msra.mxu0 0.0
      %7345 = vmatprep.subr.mxu0 0.0
      %7346 = vmatpush1.msra.mxu0 0.0
      %7347 = vmatprep.subr.mxu0 0.0
      %7348 = vmatpush1.msra.mxu0 0.0
      %7349 = vmatprep.subr.mxu0 0.0
      %7350 = vmatpush1.msra.mxu0 0.0
      %7351 = vmatprep.subr.mxu0 0.0
      %7352 = vmatpush1.msra.mxu0 0.0
      %7353 = vmatprep.subr.mxu0 0.0
      %7354 = vmatpush1.msra.mxu0 0.0
      %7355 = vmatprep.subr.mxu0 0.0
      %7356 = vmatpush1.msra.mxu0 0.0
      %7357 = vmatprep.subr.mxu0 0.0
      %7358 = vmatpush1.msra.mxu0 0.0
      %7359 = vmatprep.subr.mxu0 0.0
      %7360 = vmatpush1.msra.mxu0 0.0
      %7361 = vmatprep.subr.mxu0 0.0
      %7362 = vmatpush1.msra.mxu0 0.0
      %7363 = vmatprep.subr.mxu0 0.0
      %7364 = vmatpush1.msra.mxu0 0.0
      %7365 = vmatprep.subr.mxu0 0.0
      %7366 = vmatpush1.msra.mxu0 0.0
      %7367 = vmatprep.subr.mxu0 0.0
      %7368 = vmatpush1.msra.mxu0 0.0
      %7369 = vmatprep.subr.mxu0 0.0
      %7370 = vmatpush1.msra.mxu0 0.0
      %7371 = vmatprep.mubr.f32.mxu0 0.0
      %7372 = vmatmul.mubr.f32.gmra.mrb[0].mxu0 %v7305
      %v7373 = vpop.f32.mrb[0].mxu0
      %v7374 = vadd.f32 0.0, %v7373
      %v7375 = vpop.f32.mrb[0].mxu0
      %v7376 = vadd.f32 0.0, %v7375
      %7377 = vdwg.mxu0
      %v7378 = vadd.f32 %v7300, %v7374
      %v7379 = vadd.f32 %v7301, %v7376
      %s7380 = scalar_lea.vmem %s11, 5
      %v7381 = vld [vmem:[%s7380] sm:$0x1]
      %v7383 = vsel %vm1962, %v7381, 0
      %7385 = vmatprep.subr.mxu0 %v6710
      %7386 = vmatpush1.msra.mxu0 %v6709
      %7387 = vmatprep.subr.mxu0 0.0
      %7388 = vmatpush1.msra.mxu0 0.0
      %7389 = vmatprep.subr.mxu0 0.0
      %7390 = vmatpush1.msra.mxu0 0.0
      %7391 = vmatprep.subr.mxu0 0.0
      %7392 = vmatpush1.msra.mxu0 0.0
      %7393 = vmatprep.subr.mxu0 0.0
      %7394 = vmatpush1.msra.mxu0 0.0
      %7395 = vmatprep.subr.mxu0 0.0
      %7396 = vmatpush1.msra.mxu0 0.0
      %7397 = vmatprep.subr.mxu0 0.0
      %7398 = vmatpush1.msra.mxu0 0.0
      %7399 = vmatprep.subr.mxu0 0.0
      %7400 = vmatpush1.msra.mxu0 0.0
      %7401 = vmatprep.subr.mxu0 0.0
      %7402 = vmatpush1.msra.mxu0 0.0
      %7403 = vmatprep.subr.mxu0 0.0
      %7404 = vmatpush1.msra.mxu0 0.0
      %7405 = vmatprep.subr.mxu0 0.0
      %7406 = vmatpush1.msra.mxu0 0.0
      %7407 = vmatprep.subr.mxu0 0.0
      %7408 = vmatpush1.msra.mxu0 0.0
      %7409 = vmatprep.subr.mxu0 0.0
      %7410 = vmatpush1.msra.mxu0 0.0
      %7411 = vmatprep.subr.mxu0 0.0
      %7412 = vmatpush1.msra.mxu0 0.0
      %7413 = vmatprep.subr.mxu0 0.0
      %7414 = vmatpush1.msra.mxu0 0.0
      %7415 = vmatprep.subr.mxu0 0.0
      %7416 = vmatpush1.msra.mxu0 0.0
      %7417 = vmatprep.subr.mxu0 0.0
      %7418 = vmatpush1.msra.mxu0 0.0
      %7419 = vmatprep.subr.mxu0 0.0
      %7420 = vmatpush1.msra.mxu0 0.0
      %7421 = vmatprep.subr.mxu0 0.0
      %7422 = vmatpush1.msra.mxu0 0.0
      %7423 = vmatprep.subr.mxu0 0.0
      %7424 = vmatpush1.msra.mxu0 0.0
      %7425 = vmatprep.subr.mxu0 0.0
      %7426 = vmatpush1.msra.mxu0 0.0
      %7427 = vmatprep.subr.mxu0 0.0
      %7428 = vmatpush1.msra.mxu0 0.0
      %7429 = vmatprep.subr.mxu0 0.0
      %7430 = vmatpush1.msra.mxu0 0.0
      %7431 = vmatprep.subr.mxu0 0.0
      %7432 = vmatpush1.msra.mxu0 0.0
      %7433 = vmatprep.subr.mxu0 0.0
      %7434 = vmatpush1.msra.mxu0 0.0
      %7435 = vmatprep.subr.mxu0 0.0
      %7436 = vmatpush1.msra.mxu0 0.0
      %7437 = vmatprep.subr.mxu0 0.0
      %7438 = vmatpush1.msra.mxu0 0.0
      %7439 = vmatprep.subr.mxu0 0.0
      %7440 = vmatpush1.msra.mxu0 0.0
      %7441 = vmatprep.subr.mxu0 0.0
      %7442 = vmatpush1.msra.mxu0 0.0
      %7443 = vmatprep.subr.mxu0 0.0
      %7444 = vmatpush1.msra.mxu0 0.0
      %7445 = vmatprep.subr.mxu0 0.0
      %7446 = vmatpush1.msra.mxu0 0.0
      %7447 = vmatprep.subr.mxu0 0.0
      %7448 = vmatpush1.msra.mxu0 0.0
      %7449 = vmatprep.mubr.f32.mxu0 0.0
      %7450 = vmatmul.mubr.f32.gmra.mrb[0].mxu0 %v7383
      %v7451 = vpop.f32.mrb[0].mxu0
      %v7452 = vadd.f32 0.0, %v7451
      %v7453 = vpop.f32.mrb[0].mxu0
      %v7454 = vadd.f32 0.0, %v7453
      %7455 = vdwg.mxu0
      %7456 = vmatprep.subr.mxu0 %v1189
      %7457 = vmatpush1.msra.mxu0 %v1188
      %7458 = vmatprep.subr.mxu0 %v1191
      %7459 = vmatpush1.msra.mxu0 %v1190
      %7460 = vmatprep.subr.mxu0 %v1193
      %7461 = vmatpush1.msra.mxu0 %v1192
      %7462 = vmatprep.subr.mxu0 %v1195
      %7463 = vmatpush1.msra.mxu0 %v1194
      %7464 = vmatprep.subr.mxu0 %v1197
      %7465 = vmatpush1.msra.mxu0 %v1196
      %7466 = vmatprep.subr.mxu0 %v1199
      %7467 = vmatpush1.msra.mxu0 %v1198
      %7468 = vmatprep.subr.mxu0 %v1201
      %7469 = vmatpush1.msra.mxu0 %v1200
      %7470 = vmatprep.subr.mxu0 %v1203
      %7471 = vmatpush1.msra.mxu0 %v1202
      %7472 = vmatprep.subr.mxu0 %v1205
      %7473 = vmatpush1.msra.mxu0 %v1204
      %7474 = vmatprep.subr.mxu0 %v1207
      %7475 = vmatpush1.msra.mxu0 %v1206
      %7476 = vmatprep.subr.mxu0 %v1209
      %7477 = vmatpush1.msra.mxu0 %v1208
      %7478 = vmatprep.subr.mxu0 %v1211
      %7479 = vmatpush1.msra.mxu0 %v1210
      %7480 = vmatprep.subr.mxu0 %v1213
      %7481 = vmatpush1.msra.mxu0 %v1212
      %7482 = vmatprep.subr.mxu0 %v1215
      %7483 = vmatpush1.msra.mxu0 %v1214
      %7484 = vmatprep.subr.mxu0 %v1217
      %7485 = vmatpush1.msra.mxu0 %v1216
      %7486 = vmatprep.subr.mxu0 %v1219
      %7487 = vmatpush1.msra.mxu0 %v1218
      %7488 = vmatprep.subr.mxu0 %v1221
      %7489 = vmatpush1.msra.mxu0 %v1220
      %7490 = vmatprep.subr.mxu0 %v1223
      %7491 = vmatpush1.msra.mxu0 %v1222
      %7492 = vmatprep.subr.mxu0 %v1225
      %7493 = vmatpush1.msra.mxu0 %v1224
      %7494 = vmatprep.subr.mxu0 %v1227
      %7495 = vmatpush1.msra.mxu0 %v1226
      %7496 = vmatprep.subr.mxu0 %v1229
      %7497 = vmatpush1.msra.mxu0 %v1228
      %7498 = vmatprep.subr.mxu0 %v1231
      %7499 = vmatpush1.msra.mxu0 %v1230
      %7500 = vmatprep.subr.mxu0 %v1233
      %7501 = vmatpush1.msra.mxu0 %v1232
      %7502 = vmatprep.subr.mxu0 %v1235
      %7503 = vmatpush1.msra.mxu0 %v1234
      %7504 = vmatprep.subr.mxu0 %v1237
      %7505 = vmatpush1.msra.mxu0 %v1236
      %7506 = vmatprep.subr.mxu0 %v1239
      %7507 = vmatpush1.msra.mxu0 %v1238
      %7508 = vmatprep.subr.mxu0 %v1241
      %7509 = vmatpush1.msra.mxu0 %v1240
      %7510 = vmatprep.subr.mxu0 %v1243
      %7511 = vmatpush1.msra.mxu0 %v1242
      %7512 = vmatprep.subr.mxu0 %v1245
      %7513 = vmatpush1.msra.mxu0 %v1244
      %7514 = vmatprep.subr.mxu0 %v1247
      %7515 = vmatpush1.msra.mxu0 %v1246
      %7516 = vmatprep.subr.mxu0 %v1249
      %7517 = vmatpush1.msra.mxu0 %v1248
      %7518 = vmatprep.subr.mxu0 %v1251
      %7519 = vmatpush1.msra.mxu0 %v1250
      %7520 = vmatprep.mubr.f32.mxu0 %v7454
      %7521 = vmatmul.mubr.f32.gmra.mrb[0].mxu0 %v7452
      %v7522 = vpop.f32.mrb[0].mxu0
      %v7523 = vadd.f32 0.0, %v7522
      %v7524 = vpop.f32.mrb[0].mxu0
      %v7525 = vadd.f32 0.0, %v7524
      %7526 = vdwg.mxu0
      %v7527 = vadd.f32 %v7378, %v7523
      %v7528 = vadd.f32 %v7379, %v7525
      %s7529 = scalar_lea.vmem %s11, 6
      %v7530 = vld [vmem:[%s7529] sm:$0x1]
      %v7532 = vsel %vm1962, %v7530, 0
      %7534 = vmatprep.subr.mxu0 %v6710
      %7535 = vmatpush1.msra.mxu0 %v6709
      %7536 = vmatprep.subr.mxu0 0.0
      %7537 = vmatpush1.msra.mxu0 0.0
      %7538 = vmatprep.subr.mxu0 0.0
      %7539 = vmatpush1.msra.mxu0 0.0
      %7540 = vmatprep.subr.mxu0 0.0
      %7541 = vmatpush1.msra.mxu0 0.0
      %7542 = vmatprep.subr.mxu0 0.0
      %7543 = vmatpush1.msra.mxu0 0.0
      %7544 = vmatprep.subr.mxu0 0.0
      %7545 = vmatpush1.msra.mxu0 0.0
      %7546 = vmatprep.subr.mxu0 0.0
      %7547 = vmatpush1.msra.mxu0 0.0
      %7548 = vmatprep.subr.mxu0 0.0
      %7549 = vmatpush1.msra.mxu0 0.0
      %7550 = vmatprep.subr.mxu0 0.0
      %7551 = vmatpush1.msra.mxu0 0.0
      %7552 = vmatprep.subr.mxu0 0.0
      %7553 = vmatpush1.msra.mxu0 0.0
      %7554 = vmatprep.subr.mxu0 0.0
      %7555 = vmatpush1.msra.mxu0 0.0
      %7556 = vmatprep.subr.mxu0 0.0
      %7557 = vmatpush1.msra.mxu0 0.0
      %7558 = vmatprep.subr.mxu0 0.0
      %7559 = vmatpush1.msra.mxu0 0.0
      %7560 = vmatprep.subr.mxu0 0.0
      %7561 = vmatpush1.msra.mxu0 0.0
      %7562 = vmatprep.subr.mxu0 0.0
      %7563 = vmatpush1.msra.mxu0 0.0
      %7564 = vmatprep.subr.mxu0 0.0
      %7565 = vmatpush1.msra.mxu0 0.0
      %7566 = vmatprep.subr.mxu0 0.0
      %7567 = vmatpush1.msra.mxu0 0.0
      %7568 = vmatprep.subr.mxu0 0.0
      %7569 = vmatpush1.msra.mxu0 0.0
      %7570 = vmatprep.subr.mxu0 0.0
      %7571 = vmatpush1.msra.mxu0 0.0
      %7572 = vmatprep.subr.mxu0 0.0
      %7573 = vmatpush1.msra.mxu0 0.0
      %7574 = vmatprep.subr.mxu0 0.0
      %7575 = vmatpush1.msra.mxu0 0.0
      %7576 = vmatprep.subr.mxu0 0.0
      %7577 = vmatpush1.msra.mxu0 0.0
      %7578 = vmatprep.subr.mxu0 0.0
      %7579 = vmatpush1.msra.mxu0 0.0
      %7580 = vmatprep.subr.mxu0 0.0
      %7581 = vmatpush1.msra.mxu0 0.0
      %7582 = vmatprep.subr.mxu0 0.0
      %7583 = vmatpush1.msra.mxu0 0.0
      %7584 = vmatprep.subr.mxu0 0.0
      %7585 = vmatpush1.msra.mxu0 0.0
      %7586 = vmatprep.subr.mxu0 0.0
      %7587 = vmatpush1.msra.mxu0 0.0
      %7588 = vmatprep.subr.mxu0 0.0
      %7589 = vmatpush1.msra.mxu0 0.0
      %7590 = vmatprep.subr.mxu0 0.0
      %7591 = vmatpush1.msra.mxu0 0.0
      %7592 = vmatprep.subr.mxu0 0.0
      %7593 = vmatpush1.msra.mxu0 0.0
      %7594 = vmatprep.subr.mxu0 0.0
      %7595 = vmatpush1.msra.mxu0 0.0
      %7596 = vmatprep.subr.mxu0 0.0
      %7597 = vmatpush1.msra.mxu0 0.0
      %7598 = vmatprep.mubr.f32.mxu0 0.0
      %7599 = vmatmul.mubr.f32.gmra.mrb[0].mxu0 %v7532
      %v7600 = vpop.f32.mrb[0].mxu0
      %v7601 = vadd.f32 0.0, %v7600
      %v7602 = vpop.f32.mrb[0].mxu0
      %v7603 = vadd.f32 0.0, %v7602
      %7604 = vdwg.mxu0
      %7605 = vmatprep.subr.mxu0 %v1344
      %7606 = vmatpush1.msra.mxu0 %v1343
      %7607 = vmatprep.subr.mxu0 %v1346
      %7608 = vmatpush1.msra.mxu0 %v1345
      %7609 = vmatprep.subr.mxu0 %v1348
      %7610 = vmatpush1.msra.mxu0 %v1347
      %7611 = vmatprep.subr.mxu0 %v1350
      %7612 = vmatpush1.msra.mxu0 %v1349
      %7613 = vmatprep.subr.mxu0 %v1352
      %7614 = vmatpush1.msra.mxu0 %v1351
      %7615 = vmatprep.subr.mxu0 %v1354
      %7616 = vmatpush1.msra.mxu0 %v1353
      %7617 = vmatprep.subr.mxu0 %v1356
      %7618 = vmatpush1.msra.mxu0 %v1355
      %7619 = vmatprep.subr.mxu0 %v1358
      %7620 = vmatpush1.msra.mxu0 %v1357
      %7621 = vmatprep.subr.mxu0 %v1360
      %7622 = vmatpush1.msra.mxu0 %v1359
      %7623 = vmatprep.subr.mxu0 %v1362
      %7624 = vmatpush1.msra.mxu0 %v1361
      %7625 = vmatprep.subr.mxu0 %v1364
      %7626 = vmatpush1.msra.mxu0 %v1363
      %7627 = vmatprep.subr.mxu0 %v1366
      %7628 = vmatpush1.msra.mxu0 %v1365
      %7629 = vmatprep.subr.mxu0 %v1368
      %7630 = vmatpush1.msra.mxu0 %v1367
      %7631 = vmatprep.subr.mxu0 %v1370
      %7632 = vmatpush1.msra.mxu0 %v1369
      %7633 = vmatprep.subr.mxu0 %v1372
      %7634 = vmatpush1.msra.mxu0 %v1371
      %7635 = vmatprep.subr.mxu0 %v1374
      %7636 = vmatpush1.msra.mxu0 %v1373
      %7637 = vmatprep.subr.mxu0 %v1376
      %7638 = vmatpush1.msra.mxu0 %v1375
      %7639 = vmatprep.subr.mxu0 %v1378
      %7640 = vmatpush1.msra.mxu0 %v1377
      %7641 = vmatprep.subr.mxu0 %v1380
      %7642 = vmatpush1.msra.mxu0 %v1379
      %7643 = vmatprep.subr.mxu0 %v1382
      %7644 = vmatpush1.msra.mxu0 %v1381
      %7645 = vmatprep.subr.mxu0 %v1384
      %7646 = vmatpush1.msra.mxu0 %v1383
      %7647 = vmatprep.subr.mxu0 %v1386
      %7648 = vmatpush1.msra.mxu0 %v1385
      %7649 = vmatprep.subr.mxu0 %v1388
      %7650 = vmatpush1.msra.mxu0 %v1387
      %7651 = vmatprep.subr.mxu0 %v1390
      %7652 = vmatpush1.msra.mxu0 %v1389
      %7653 = vmatprep.subr.mxu0 %v1392
      %7654 = vmatpush1.msra.mxu0 %v1391
      %7655 = vmatprep.subr.mxu0 %v1394
      %7656 = vmatpush1.msra.mxu0 %v1393
      %7657 = vmatprep.subr.mxu0 %v1396
      %7658 = vmatpush1.msra.mxu0 %v1395
      %7659 = vmatprep.subr.mxu0 %v1398
      %7660 = vmatpush1.msra.mxu0 %v1397
      %7661 = vmatprep.subr.mxu0 %v1400
      %7662 = vmatpush1.msra.mxu0 %v1399
      %7663 = vmatprep.subr.mxu0 %v1402
      %7664 = vmatpush1.msra.mxu0 %v1401
      %7665 = vmatprep.subr.mxu0 %v1404
      %7666 = vmatpush1.msra.mxu0 %v1403
      %7667 = vmatprep.subr.mxu0 %v1406
      %7668 = vmatpush1.msra.mxu0 %v1405
      %7669 = vmatprep.mubr.f32.mxu0 %v7603
      %7670 = vmatmul.mubr.f32.gmra.mrb[0].mxu0 %v7601
      %v7671 = vpop.f32.mrb[0].mxu0
      %v7672 = vadd.f32 0.0, %v7671
      %v7673 = vpop.f32.mrb[0].mxu0
      %v7674 = vadd.f32 0.0, %v7673
      %7675 = vdwg.mxu0
      %v7676 = vadd.f32 %v7527, %v7672
      %v7677 = vadd.f32 %v7528, %v7674
      %s7678 = scalar_lea.vmem %s11, 7
      %v7679 = vld [vmem:[%s7678] sm:$0x1]
      %v7681 = vsel %vm1962, %v7679, 0
      %7683 = vmatprep.subr.mxu0 %v6710
      %7684 = vmatpush1.msra.mxu0 %v6709
      %7685 = vmatprep.subr.mxu0 0.0
      %7686 = vmatpush1.msra.mxu0 0.0
      %7687 = vmatprep.subr.mxu0 0.0
      %7688 = vmatpush1.msra.mxu0 0.0
      %7689 = vmatprep.subr.mxu0 0.0
      %7690 = vmatpush1.msra.mxu0 0.0
      %7691 = vmatprep.subr.mxu0 0.0
      %7692 = vmatpush1.msra.mxu0 0.0
      %7693 = vmatprep.subr.mxu0 0.0
      %7694 = vmatpush1.msra.mxu0 0.0
      %7695 = vmatprep.subr.mxu0 0.0
      %7696 = vmatpush1.msra.mxu0 0.0
      %7697 = vmatprep.subr.mxu0 0.0
      %7698 = vmatpush1.msra.mxu0 0.0
      %7699 = vmatprep.subr.mxu0 0.0
      %7700 = vmatpush1.msra.mxu0 0.0
      %7701 = vmatprep.subr.mxu0 0.0
      %7702 = vmatpush1.msra.mxu0 0.0
      %7703 = vmatprep.subr.mxu0 0.0
      %7704 = vmatpush1.msra.mxu0 0.0
      %7705 = vmatprep.subr.mxu0 0.0
      %7706 = vmatpush1.msra.mxu0 0.0
      %7707 = vmatprep.subr.mxu0 0.0
      %7708 = vmatpush1.msra.mxu0 0.0
      %7709 = vmatprep.subr.mxu0 0.0
      %7710 = vmatpush1.msra.mxu0 0.0
      %7711 = vmatprep.subr.mxu0 0.0
      %7712 = vmatpush1.msra.mxu0 0.0
      %7713 = vmatprep.subr.mxu0 0.0
      %7714 = vmatpush1.msra.mxu0 0.0
      %7715 = vmatprep.subr.mxu0 0.0
      %7716 = vmatpush1.msra.mxu0 0.0
      %7717 = vmatprep.subr.mxu0 0.0
      %7718 = vmatpush1.msra.mxu0 0.0
      %7719 = vmatprep.subr.mxu0 0.0
      %7720 = vmatpush1.msra.mxu0 0.0
      %7721 = vmatprep.subr.mxu0 0.0
      %7722 = vmatpush1.msra.mxu0 0.0
      %7723 = vmatprep.subr.mxu0 0.0
      %7724 = vmatpush1.msra.mxu0 0.0
      %7725 = vmatprep.subr.mxu0 0.0
      %7726 = vmatpush1.msra.mxu0 0.0
      %7727 = vmatprep.subr.mxu0 0.0
      %7728 = vmatpush1.msra.mxu0 0.0
      %7729 = vmatprep.subr.mxu0 0.0
      %7730 = vmatpush1.msra.mxu0 0.0
      %7731 = vmatprep.subr.mxu0 0.0
      %7732 = vmatpush1.msra.mxu0 0.0
      %7733 = vmatprep.subr.mxu0 0.0
      %7734 = vmatpush1.msra.mxu0 0.0
      %7735 = vmatprep.subr.mxu0 0.0
      %7736 = vmatpush1.msra.mxu0 0.0
      %7737 = vmatprep.subr.mxu0 0.0
      %7738 = vmatpush1.msra.mxu0 0.0
      %7739 = vmatprep.subr.mxu0 0.0
      %7740 = vmatpush1.msra.mxu0 0.0
      %7741 = vmatprep.subr.mxu0 0.0
      %7742 = vmatpush1.msra.mxu0 0.0
      %7743 = vmatprep.subr.mxu0 0.0
      %7744 = vmatpush1.msra.mxu0 0.0
      %7745 = vmatprep.subr.mxu0 0.0
      %7746 = vmatpush1.msra.mxu0 0.0
      %7747 = vmatprep.mubr.f32.mxu0 0.0
      %7748 = vmatmul.mubr.f32.gmra.mrb[0].mxu0 %v7681
      %v7749 = vpop.f32.mrb[0].mxu0
      %v7750 = vadd.f32 0.0, %v7749
      %v7751 = vpop.f32.mrb[0].mxu0
      %v7752 = vadd.f32 0.0, %v7751
      %7753 = vdwg.mxu0
      %7754 = vmatprep.subr.mxu0 %v1499
      %7755 = vmatpush1.msra.mxu0 %v1498
      %7756 = vmatprep.subr.mxu0 %v1501
      %7757 = vmatpush1.msra.mxu0 %v1500
      %7758 = vmatprep.subr.mxu0 %v1503
      %7759 = vmatpush1.msra.mxu0 %v1502
      %7760 = vmatprep.subr.mxu0 %v1505
      %7761 = vmatpush1.msra.mxu0 %v1504
      %7762 = vmatprep.subr.mxu0 %v1507
      %7763 = vmatpush1.msra.mxu0 %v1506
      %7764 = vmatprep.subr.mxu0 %v1509
      %7765 = vmatpush1.msra.mxu0 %v1508
      %7766 = vmatprep.subr.mxu0 %v1511
      %7767 = vmatpush1.msra.mxu0 %v1510
      %7768 = vmatprep.subr.mxu0 %v1513
      %7769 = vmatpush1.msra.mxu0 %v1512
      %7770 = vmatprep.subr.mxu0 %v1515
      %7771 = vmatpush1.msra.mxu0 %v1514
      %7772 = vmatprep.subr.mxu0 %v1517
      %7773 = vmatpush1.msra.mxu0 %v1516
      %7774 = vmatprep.subr.mxu0 %v1519
      %7775 = vmatpush1.msra.mxu0 %v1518
      %7776 = vmatprep.subr.mxu0 %v1521
      %7777 = vmatpush1.msra.mxu0 %v1520
      %7778 = vmatprep.subr.mxu0 %v1523
      %7779 = vmatpush1.msra.mxu0 %v1522
      %7780 = vmatprep.subr.mxu0 %v1525
      %7781 = vmatpush1.msra.mxu0 %v1524
      %7782 = vmatprep.subr.mxu0 %v1527
      %7783 = vmatpush1.msra.mxu0 %v1526
      %7784 = vmatprep.subr.mxu0 %v1529
      %7785 = vmatpush1.msra.mxu0 %v1528
      %7786 = vmatprep.subr.mxu0 %v1531
      %7787 = vmatpush1.msra.mxu0 %v1530
      %7788 = vmatprep.subr.mxu0 %v1533
      %7789 = vmatpush1.msra.mxu0 %v1532
      %7790 = vmatprep.subr.mxu0 %v1535
      %7791 = vmatpush1.msra.mxu0 %v1534
      %7792 = vmatprep.subr.mxu0 %v1537
      %7793 = vmatpush1.msra.mxu0 %v1536
      %7794 = vmatprep.subr.mxu0 %v1539
      %7795 = vmatpush1.msra.mxu0 %v1538
      %7796 = vmatprep.subr.mxu0 %v1541
      %7797 = vmatpush1.msra.mxu0 %v1540
      %7798 = vmatprep.subr.mxu0 %v1543
      %7799 = vmatpush1.msra.mxu0 %v1542
      %7800 = vmatprep.subr.mxu0 %v1545
      %7801 = vmatpush1.msra.mxu0 %v1544
      %7802 = vmatprep.subr.mxu0 %v1547
      %7803 = vmatpush1.msra.mxu0 %v1546
      %7804 = vmatprep.subr.mxu0 %v1549
      %7805 = vmatpush1.msra.mxu0 %v1548
      %7806 = vmatprep.subr.mxu0 %v1551
      %7807 = vmatpush1.msra.mxu0 %v1550
      %7808 = vmatprep.subr.mxu0 %v1553
      %7809 = vmatpush1.msra.mxu0 %v1552
      %7810 = vmatprep.subr.mxu0 %v1555
      %7811 = vmatpush1.msra.mxu0 %v1554
      %7812 = vmatprep.subr.mxu0 %v1557
      %7813 = vmatpush1.msra.mxu0 %v1556
      %7814 = vmatprep.subr.mxu0 %v1559
      %7815 = vmatpush1.msra.mxu0 %v1558
      %7816 = vmatprep.subr.mxu0 %v1561
      %7817 = vmatpush1.msra.mxu0 %v1560
      %7818 = vmatprep.mubr.f32.mxu0 %v7752
      %7819 = vmatmul.mubr.f32.gmra.mrb[0].mxu0 %v7750
      %v7820 = vpop.f32.mrb[0].mxu0
      %v7821 = vadd.f32 0.0, %v7820
      %v7822 = vpop.f32.mrb[0].mxu0
      %v7823 = vadd.f32 0.0, %v7822
      %7824 = vdwg.mxu0
      %v7825 = vadd.f32 %v7676, %v7821
      %v7826 = vadd.f32 %v7677, %v7823
      %s7827 = scalar_lea.vmem %s11, 8
      %v7828 = vld [vmem:[%s7827] sm:$0x1]
      %v7830 = vsel %vm1962, %v7828, 0
      %7832 = vmatprep.subr.mxu0 %v6710
      %7833 = vmatpush1.msra.mxu0 %v6709
      %7834 = vmatprep.subr.mxu0 0.0
      %7835 = vmatpush1.msra.mxu0 0.0
      %7836 = vmatprep.subr.mxu0 0.0
      %7837 = vmatpush1.msra.mxu0 0.0
      %7838 = vmatprep.subr.mxu0 0.0
      %7839 = vmatpush1.msra.mxu0 0.0
      %7840 = vmatprep.subr.mxu0 0.0
      %7841 = vmatpush1.msra.mxu0 0.0
      %7842 = vmatprep.subr.mxu0 0.0
      %7843 = vmatpush1.msra.mxu0 0.0
      %7844 = vmatprep.subr.mxu0 0.0
      %7845 = vmatpush1.msra.mxu0 0.0
      %7846 = vmatprep.subr.mxu0 0.0
      %7847 = vmatpush1.msra.mxu0 0.0
      %7848 = vmatprep.subr.mxu0 0.0
      %7849 = vmatpush1.msra.mxu0 0.0
      %7850 = vmatprep.subr.mxu0 0.0
      %7851 = vmatpush1.msra.mxu0 0.0
      %7852 = vmatprep.subr.mxu0 0.0
      %7853 = vmatpush1.msra.mxu0 0.0
      %7854 = vmatprep.subr.mxu0 0.0
      %7855 = vmatpush1.msra.mxu0 0.0
      %7856 = vmatprep.subr.mxu0 0.0
      %7857 = vmatpush1.msra.mxu0 0.0
      %7858 = vmatprep.subr.mxu0 0.0
      %7859 = vmatpush1.msra.mxu0 0.0
      %7860 = vmatprep.subr.mxu0 0.0
      %7861 = vmatpush1.msra.mxu0 0.0
      %7862 = vmatprep.subr.mxu0 0.0
      %7863 = vmatpush1.msra.mxu0 0.0
      %7864 = vmatprep.subr.mxu0 0.0
      %7865 = vmatpush1.msra.mxu0 0.0
      %7866 = vmatprep.subr.mxu0 0.0
      %7867 = vmatpush1.msra.mxu0 0.0
      %7868 = vmatprep.subr.mxu0 0.0
      %7869 = vmatpush1.msra.mxu0 0.0
      %7870 = vmatprep.subr.mxu0 0.0
      %7871 = vmatpush1.msra.mxu0 0.0
      %7872 = vmatprep.subr.mxu0 0.0
      %7873 = vmatpush1.msra.mxu0 0.0
      %7874 = vmatprep.subr.mxu0 0.0
      %7875 = vmatpush1.msra.mxu0 0.0
      %7876 = vmatprep.subr.mxu0 0.0
      %7877 = vmatpush1.msra.mxu0 0.0
      %7878 = vmatprep.subr.mxu0 0.0
      %7879 = vmatpush1.msra.mxu0 0.0
      %7880 = vmatprep.subr.mxu0 0.0
      %7881 = vmatpush1.msra.mxu0 0.0
      %7882 = vmatprep.subr.mxu0 0.0
      %7883 = vmatpush1.msra.mxu0 0.0
      %7884 = vmatprep.subr.mxu0 0.0
      %7885 = vmatpush1.msra.mxu0 0.0
      %7886 = vmatprep.subr.mxu0 0.0
      %7887 = vmatpush1.msra.mxu0 0.0
      %7888 = vmatprep.subr.mxu0 0.0
      %7889 = vmatpush1.msra.mxu0 0.0
      %7890 = vmatprep.subr.mxu0 0.0
      %7891 = vmatpush1.msra.mxu0 0.0
      %7892 = vmatprep.subr.mxu0 0.0
      %7893 = vmatpush1.msra.mxu0 0.0
      %7894 = vmatprep.subr.mxu0 0.0
      %7895 = vmatpush1.msra.mxu0 0.0
      %7896 = vmatprep.mubr.f32.mxu0 0.0
      %7897 = vmatmul.mubr.f32.gmra.mrb[0].mxu0 %v7830
      %v7898 = vpop.f32.mrb[0].mxu0
      %v7899 = vadd.f32 0.0, %v7898
      %v7900 = vpop.f32.mrb[0].mxu0
      %v7901 = vadd.f32 0.0, %v7900
      %7902 = vdwg.mxu0
      %7903 = vmatprep.subr.mxu0 %v1654
      %7904 = vmatpush1.msra.mxu0 %v1653
      %7905 = vmatprep.subr.mxu0 %v1656
      %7906 = vmatpush1.msra.mxu0 %v1655
      %7907 = vmatprep.subr.mxu0 %v1658
      %7908 = vmatpush1.msra.mxu0 %v1657
      %7909 = vmatprep.subr.mxu0 %v1660
      %7910 = vmatpush1.msra.mxu0 %v1659
      %7911 = vmatprep.subr.mxu0 %v1662
      %7912 = vmatpush1.msra.mxu0 %v1661
      %7913 = vmatprep.subr.mxu0 %v1664
      %7914 = vmatpush1.msra.mxu0 %v1663
      %7915 = vmatprep.subr.mxu0 %v1666
      %7916 = vmatpush1.msra.mxu0 %v1665
      %7917 = vmatprep.subr.mxu0 %v1668
      %7918 = vmatpush1.msra.mxu0 %v1667
      %7919 = vmatprep.subr.mxu0 %v1670
      %7920 = vmatpush1.msra.mxu0 %v1669
      %7921 = vmatprep.subr.mxu0 %v1672
      %7922 = vmatpush1.msra.mxu0 %v1671
      %7923 = vmatprep.subr.mxu0 %v1674
      %7924 = vmatpush1.msra.mxu0 %v1673
      %7925 = vmatprep.subr.mxu0 %v1676
      %7926 = vmatpush1.msra.mxu0 %v1675
      %7927 = vmatprep.subr.mxu0 %v1678
      %7928 = vmatpush1.msra.mxu0 %v1677
      %7929 = vmatprep.subr.mxu0 %v1680
      %7930 = vmatpush1.msra.mxu0 %v1679
      %7931 = vmatprep.subr.mxu0 %v1682
      %7932 = vmatpush1.msra.mxu0 %v1681
      %7933 = vmatprep.subr.mxu0 %v1684
      %7934 = vmatpush1.msra.mxu0 %v1683
      %7935 = vmatprep.subr.mxu0 %v1686
      %7936 = vmatpush1.msra.mxu0 %v1685
      %7937 = vmatprep.subr.mxu0 %v1688
      %7938 = vmatpush1.msra.mxu0 %v1687
      %7939 = vmatprep.subr.mxu0 %v1690
      %7940 = vmatpush1.msra.mxu0 %v1689
      %7941 = vmatprep.subr.mxu0 %v1692
      %7942 = vmatpush1.msra.mxu0 %v1691
      %7943 = vmatprep.subr.mxu0 %v1694
      %7944 = vmatpush1.msra.mxu0 %v1693
      %7945 = vmatprep.subr.mxu0 %v1696
      %7946 = vmatpush1.msra.mxu0 %v1695
      %7947 = vmatprep.subr.mxu0 %v1698
      %7948 = vmatpush1.msra.mxu0 %v1697
      %7949 = vmatprep.subr.mxu0 %v1700
      %7950 = vmatpush1.msra.mxu0 %v1699
      %7951 = vmatprep.subr.mxu0 %v1702
      %7952 = vmatpush1.msra.mxu0 %v1701
      %7953 = vmatprep.subr.mxu0 %v1704
      %7954 = vmatpush1.msra.mxu0 %v1703
      %7955 = vmatprep.subr.mxu0 %v1706
      %7956 = vmatpush1.msra.mxu0 %v1705
      %7957 = vmatprep.subr.mxu0 %v1708
      %7958 = vmatpush1.msra.mxu0 %v1707
      %7959 = vmatprep.subr.mxu0 %v1710
      %7960 = vmatpush1.msra.mxu0 %v1709
      %7961 = vmatprep.subr.mxu0 %v1712
      %7962 = vmatpush1.msra.mxu0 %v1711
      %7963 = vmatprep.subr.mxu0 %v1714
      %7964 = vmatpush1.msra.mxu0 %v1713
      %7965 = vmatprep.subr.mxu0 %v1716
      %7966 = vmatpush1.msra.mxu0 %v1715
      %7967 = vmatprep.mubr.f32.mxu0 %v7901
      %7968 = vmatmul.mubr.f32.gmra.mrb[0].mxu0 %v7899
      %v7969 = vpop.f32.mrb[0].mxu0
      %v7970 = vadd.f32 0.0, %v7969
      %v7971 = vpop.f32.mrb[0].mxu0
      %v7972 = vadd.f32 0.0, %v7971
      %7973 = vdwg.mxu0
      %v7974 = vadd.f32 %v7825, %v7970
      %v7975 = vadd.f32 %v7826, %v7972
      %v7976 = vld [vmem:[#allocation2] sm:$0x1]
      %7978 = vset.pattern.permute.xlu0 0
      %7979 = vperm.xlu0 %7978, %v7976
      %v7980 = vpop.permute.xlu0 %7979
      %v7982 = vlaneseq
      %v7983 = vshrl.u32 %v7982, 7
      %v7984 = vsub.s32 0, %v7983
      %v7985 = vrot.slane %v7980, %v7984
      %v7986 = vadd.f32 %v7974, %v7985
      %v7987 = vadd.f32 %v7975, %v7985
      %v7988 = vadd.f32 %v7986, %v615
      %v7989 = vadd.f32 %v7987, %v619
      %v7992 = vcombine.low %v7988, %v7989
      %v7994 = vunpack.c.l.s4 1966171168
      %v7995 = vunpack.c.0.s8 %v7994
      %v7996 = vlaneseq
      %v7997 = vshrl.u32 %v7996, 7
      %v7998 = vsub.s32 %v7995, %v7997
      %v7999 = vrot.slane %v7992, %v7998
      %v8001 = vunpack.c.l.s4 1966171168
      %v8002 = vunpack.c.0.s8 %v8001
      %v8003 = vlaneseq
      %v8004 = vshrl.u32 %v8003, 7
      %v8005 = vsub.s32 %v8002, %v8004
      %v8006 = vrot.slane %v7999, %v8005
      %v8008 = vlaneseq
      %vm8009 = vcmp.ge.s32.totalorder %v8008, 0
      %vm8010 = vcmp.lt.s32.totalorder %v8008, 256
      %vm8011 = vmand %vm8009, %vm8010
      %8012 = vst.msk [vmem:[%s545] sm:$0x3] %vm8011, %v8006
      %p8013 = scmp.lt.s32.totalorder %s30, 1
      %s8014 = scalar_select %p8013, %s30, 1
      %s8015 = smul.addr %s8014, 2
      %s8016 = scalar_lea.vmem %s17, %s8015
      // Predicated region
      $region89: #{unet_forward.1} parent=87 // pred_check
        %p8017 = pneg %p410
      $region90: #{unet_forward.1} parent=87 // pred_check_branch
        %8019 = sbr.rel (%p8017) target = $region92
      $region91: #{unet_forward.1} parent=87 // pred_region
        _
      $region92: #{unet_forward.1} parent=87 // pred_fallthru
        _
    $region88: #{unet_forward.1} parent=5 // pred_fallthru
      _
    %p8020 = scmp.le.s32.totalorder 2, %s25
    // Predicated region
    $region93: #{unet_forward.1} parent=5 // pred_check
      %p8021 = pneg %p8020
    $region94: #{unet_forward.1} parent=5 // pred_check_branch
      %8023 = sbr.rel (%p8021) target = $region96
    $region95: #{unet_forward.1} parent=5 // pred_region
      %s8024 = ssub.s32 %s25, 2
      // Predicated region
      $region97: #{unet_forward.1} parent=95 // pred_check
        %p8025 = pneg %p416
      $region98: #{unet_forward.1} parent=95 // pred_check_branch
        %8027 = sbr.rel (%p8025) target = $region100
      $region99: #{unet_forward.1} parent=95 // pred_region
        %p8028 = scmp.lt.s32.totalorder %s31, 1
        %s8029 = scalar_select %p8028, %s31, 1
        %s8030 = smul.addr %s8029, 2
        %s8031 = scalar_lea.vmem %s17, %s8030
      $region100: #{unet_forward.1} parent=95 // pred_fallthru
        _
    $region96: #{unet_forward.1} parent=5 // pred_fallthru
      _
  $region6: #{unet_forward.1} parent=0 // loop_footer
    %s29 = sadd.s32 1, %s25
  $region7: #{unet_forward.1} parent=0 // loop_footer_branch
    %24 = sbr.rel target = $region3
  $region8: #{unet_forward.1} parent=0 // loop_exit
    _

</llo_original>
